<compile_context>
chip_gen: v5e
topology: v5e:2x2
jax: 0.10.0
libtpu: 0.0.40
codegen_flags: <defaults>
</compile_context>

<pallas_src>
import functools

import jax
import jax.numpy as jnp
from jax import lax
from jax.experimental import pallas as pl
from jax.experimental.pallas import tpu as pltpu


HIDDEN_DIM = 256            # module's self.hidden_dim
H = HIDDEN_DIM // 2         # per-direction hidden size (PyTorch hidden_size)
NUM_LAYERS = 2


def _gate_math(gates, c_prev, h):
    """PyTorch LSTM gate math, gate order [i, f, g, o], no bias. f32."""
    i_g = jax.nn.sigmoid(gates[:, 0 * h:1 * h])
    f_g = jax.nn.sigmoid(gates[:, 1 * h:2 * h])
    g_g = jnp.tanh(gates[:, 2 * h:3 * h])
    o_g = jax.nn.sigmoid(gates[:, 3 * h:4 * h])
    c_new = f_g * c_prev + i_g * g_g
    h_new = o_g * jnp.tanh(c_new)
    return h_new, c_new


def _bilstm_kernel(x_ref, w1ih_ref, w1hh_ref, w2ihf_ref, w2ihb_ref, w2hhf_ref,
                   out_ref, y1_scr, *, seq_len, batch_p):
    """Fused 2-layer bidirectional LSTM; emits only the last-timestep output.

    x_ref    : (T*BP, D)    bf16 time-major flattened input (batch padded to BP)
    w1ih_ref : (D, 8H)      bf16 layer-1 [W_ih_fwd^T | W_ih_bwd^T]
    w1hh_ref : (2H, 8H)     bf16 layer-1 block-diag [W_hh_fwd^T , W_hh_bwd^T]
    w2ihf_ref: (2H, 4H)     bf16 layer-2 forward W_ih^T
    w2ihb_ref: (2H, 4H)     bf16 layer-2 backward W_ih^T
    w2hhf_ref: (H, 4H)      bf16 layer-2 forward W_hh^T
    out_ref  : (BP, 2H)     f32  [h2_fwd[T-1] | h2_bwd[T-1]]
    y1_scr   : (T*BP, 2H)   f32  VMEM-resident layer-1 outputs (layer-2 input)
    """
    T, BP = seq_len, batch_p
    h = w2hhf_ref.shape[0]                       # per-direction hidden (128)

    # ---- Layer 1: hoisted input projection, both directions in one matmul --
    gx1 = jnp.dot(x_ref[...], w1ih_ref[...],
                  preferred_element_type=jnp.float32)          # (T*BP, 8H) f32

    w1hh = w1hh_ref[...]                                        # (2H, 8H) bf16
    zeros = jnp.zeros((BP, h), jnp.float32)
    h1f, c1f = zeros, zeros
    h1b, c1b = zeros, zeros

    # Forward & backward recurrences share ONE block-diagonal hidden matmul.
    for t in range(T):
        tr = T - 1 - t
        hcat = jnp.concatenate([h1f, h1b], axis=1).astype(jnp.bfloat16)
        g_hh = jnp.dot(hcat, w1hh, preferred_element_type=jnp.float32)  # (BP,8H)
        g_f = gx1[t * BP:(t + 1) * BP, 0:4 * h] + g_hh[:, 0:4 * h]
        g_b = gx1[tr * BP:(tr + 1) * BP, 4 * h:8 * h] + g_hh[:, 4 * h:8 * h]
        h1f, c1f = _gate_math(g_f, c1f, h)
        h1b, c1b = _gate_math(g_b, c1b, h)
        # Whole (8,128) f32 tile stores (batch padded to the sublane tile).
        y1_scr[t * BP:(t + 1) * BP, 0:h] = h1f
        y1_scr[tr * BP:(tr + 1) * BP, h:2 * h] = h1b

    # ---- Layer 2: hoisted input projections on VMEM-resident activations ---
    y1_bf = y1_scr[...].astype(jnp.bfloat16)                    # one-time cast
    gx2f = jnp.dot(y1_bf, w2ihf_ref[...],
                   preferred_element_type=jnp.float32)          # (T*BP, 4H)
    # Only the backward gates at t = T-1 are ever consumed.
    gxb2 = jnp.dot(y1_bf[(T - 1) * BP:T * BP, :], w2ihb_ref[...],
                   preferred_element_type=jnp.float32)          # (BP, 4H)

    w2hh = w2hhf_ref[...]                                        # (H, 4H) bf16
    h2f, c2f = zeros, zeros
    for t in range(T):
        g = gx2f[t * BP:(t + 1) * BP, :] + jnp.dot(
            h2f.astype(jnp.bfloat16), w2hh, preferred_element_type=jnp.float32)
        h2f, c2f = _gate_math(g, c2f, h)

    # Layer-2 backward output at t = T-1 is the FIRST step of its reversed
    # scan (zero initial h/c), so its hidden matmul vanishes — exact.
    h2b, _ = _gate_math(gxb2, zeros, h)

    out_ref[:, 0:h] = h2f
    out_ref[:, h:2 * h] = h2b


def _prep_weights(params):
    """PyTorch layout -> kernel layout (transpose, concat, block-diag, bf16)."""
    p1, p2 = params[0], params[1]
    bf16 = jnp.bfloat16
    # Layer-1 input weights, fwd|bwd side by side.
    w1_ih = jnp.concatenate([p1["w_ih_f"].T, p1["w_ih_b"].T],
                            axis=1).astype(bf16)                 # (D, 8H)
    # Layer-1 hidden weights as one block-diagonal matrix.
    z = jnp.zeros((H, 4 * H), jnp.float32)
    w1_hh_blk = jnp.concatenate(
        [jnp.concatenate([p1["w_hh_f"].T, z], axis=1),
         jnp.concatenate([z, p1["w_hh_b"].T], axis=1)],
        axis=0).astype(bf16)                                     # (2H, 8H)
    # Layer-2 input weights, split per direction (bwd only needed at t=T-1).
    w2_ih_f = p2["w_ih_f"].T.astype(bf16)                        # (2H, 4H)
    w2_ih_b = p2["w_ih_b"].T.astype(bf16)                        # (2H, 4H)
    w2_hh_f = p2["w_hh_f"].T.astype(bf16)                        # (H, 4H)
    # Layer-2 backward hidden weights never needed (single zero-state step).
    return w1_ih, w1_hh_blk, w2_ih_f, w2_ih_b, w2_hh_f


@jax.jit
def bilstm_forward(x, params):
    """Matches BiLSTM.forward: x (batch, seq, input) -> (batch, 2H)."""
    B, T, D = x.shape
    BP = ((B + 7) // 8) * 8                       # pad batch to sublane tile
    x_tm = jnp.transpose(x, (1, 0, 2))            # (T, B, D) time-major
    x_tm = jnp.pad(x_tm, ((0, 0), (0, BP - B), (0, 0)))
    x_flat = x_tm.reshape(T * BP, D).astype(jnp.bfloat16)

    w1_ih, w1_hh_blk, w2_ih_f, w2_ih_b, w2_hh_f = _prep_weights(params)

    kernel = functools.partial(_bilstm_kernel, seq_len=T, batch_p=BP)
    vmem = pl.BlockSpec(memory_space=pltpu.MemorySpace.VMEM)
    out = pl.pallas_call(
        kernel,
        out_shape=jax.ShapeDtypeStruct((BP, 2 * H), jnp.float32),
        in_specs=[vmem] * 6,
        out_specs=vmem,
        scratch_shapes=[pltpu.VMEM((T * BP, 2 * H), jnp.float32)],
    )(x_flat, w1_ih, w1_hh_blk, w2_ih_f, w2_ih_b, w2_hh_f)
    return out[:B]


# ---------------------------------------------------------------------------
# Pure-JAX f32 reference (lax.scan, full bidirectional stack) — correctness.
# ---------------------------------------------------------------------------
def _ref_lstm_direction(x_seq, w_ih, w_hh):
    T, B, _ = x_seq.shape
    h = w_hh.shape[1]

    def step(carry, x_t):
        h_prev, c_prev = carry
        gates = x_t @ w_ih.T + h_prev @ w_hh.T
        i_g = jax.nn.sigmoid(gates[:, 0 * h:1 * h])
        f_g = jax.nn.sigmoid(gates[:, 1 * h:2 * h])
        g_g = jnp.tanh(gates[:, 2 * h:3 * h])
        o_g = jax.nn.sigmoid(gates[:, 3 * h:4 * h])
        c_new = f_g * c_prev + i_g * g_g
        h_new = o_g * jnp.tanh(c_new)
        return (h_new, c_new), h_new

    init = (jnp.zeros((B, h), jnp.float32), jnp.zeros((B, h), jnp.float32))
    _, hs = lax.scan(step, init, x_seq)
    return hs


def _ref_forward(x, params):
    x_seq = jnp.transpose(x, (1, 0, 2))
    out = x_seq
    for layer in range(NUM_LAYERS):
        p = params[layer]
        h_f = _ref_lstm_direction(out, p["w_ih_f"], p["w_hh_f"])
        h_b = _ref_lstm_direction(out[::-1], p["w_ih_b"], p["w_hh_b"])[::-1]
        out = jnp.concatenate([h_f, h_b], axis=-1)
    return out[-1]


def init_params(key, input_size):
    """Deterministic init matching PyTorch LSTM shapes (bias=False)."""
    params = []
    bound = 1.0 / jnp.sqrt(jnp.float32(H))
    for layer in range(NUM_LAYERS):
        d_in = input_size if layer == 0 else 2 * H
        layer_p = {}
        for name, shape in [
            ("w_ih_f", (4 * H, d_in)), ("w_hh_f", (4 * H, H)),
            ("w_ih_b", (4 * H, d_in)), ("w_hh_b", (4 * H, H)),
        ]:
            key, sub = jax.random.split(key)
            layer_p[name] = jax.random.uniform(
                sub, shape, jnp.float32, minval=-bound, maxval=bound)
        params.append(layer_p)
    return params


if __name__ == "__main__":
    INPUT_SIZE = 64
    BATCH = 2
    SEQ = 8

    key = jax.random.PRNGKey(0)
    k_x, k_p = jax.random.split(key)
    x = jax.random.normal(k_x, (BATCH, SEQ, INPUT_SIZE), jnp.float32)
    params = init_params(k_p, INPUT_SIZE)

    out = jax.block_until_ready(bilstm_forward(x, params))
    assert out.shape == (BATCH, HIDDEN_DIM), out.shape

    ref = jax.block_until_ready(_ref_forward(x, params))
    # bf16 MXU operands with f32 accumulation: tolerance loosened from 1e-4.
    max_err = float(jnp.max(jnp.abs(out - ref)))
    assert jnp.allclose(out, ref, rtol=2e-2, atol=2e-2), max_err

    print("KERNEL_OK")
</pallas_src>

<mosaic_0001>
module attributes {stable_mosaic.version = 11 : i64} {
  func.func @_bilstm_kernel(%arg0: memref<64x64xbf16, #tpu.memory_space<vmem>>, %arg1: memref<64x1024xbf16, #tpu.memory_space<vmem>>, %arg2: memref<256x1024xbf16, #tpu.memory_space<vmem>>, %arg3: memref<256x512xbf16, #tpu.memory_space<vmem>>, %arg4: memref<256x512xbf16, #tpu.memory_space<vmem>>, %arg5: memref<128x512xbf16, #tpu.memory_space<vmem>>, %arg6: memref<8x256xf32, #tpu.memory_space<vmem>>, %arg7: memref<64x256xf32, #tpu.memory_space<vmem>>) attributes {dimension_semantics = [], scalar_prefetch = 0 : i64, scratch_operands = 1 : i64, tpu.core_type = #tpu.core_type<tc>} {
    %c0 = arith.constant 0 : index
    %c0_0 = arith.constant 0 : index
    %0 = vector.load %arg0[%c0, %c0_0] : memref<64x64xbf16, #tpu.memory_space<vmem>>, vector<64x64xbf16>
    %c0_1 = arith.constant 0 : index
    %c0_2 = arith.constant 0 : index
    %1 = vector.load %arg1[%c0_1, %c0_2] : memref<64x1024xbf16, #tpu.memory_space<vmem>>, vector<64x1024xbf16>
    %cst = arith.constant dense<0.000000e+00> : vector<64x1024xf32>
    %2 = tpu.matmul %0, %1, %cst {dimension_numbers = #tpu.dot_dimension_numbers<[1], [0], [0], [1], [0, 0, 1, 1], [], []>} : vector<64x64xbf16>, vector<64x1024xbf16>, vector<64x1024xf32> -> vector<64x1024xf32>
    %c0_3 = arith.constant 0 : index
    %c0_4 = arith.constant 0 : index
    %3 = vector.load %arg2[%c0_3, %c0_4] : memref<256x1024xbf16, #tpu.memory_space<vmem>>, vector<256x1024xbf16>
    %cst_5 = arith.constant 0.000000e+00 : f32
    %4 = vector.broadcast %cst_5 : f32 to vector<8x128xf32>
    %5 = tpu.concatenate %4, %4 in 1 : vector<8x128xf32>, vector<8x128xf32> -> vector<8x256xf32>
    %6 = arith.truncf %5 : vector<8x256xf32> to vector<8x256xbf16>
    %cst_6 = arith.constant dense<0.000000e+00> : vector<8x1024xf32>
    %7 = tpu.matmul %6, %3, %cst_6 {dimension_numbers = #tpu.dot_dimension_numbers<[1], [0], [0], [1], [0, 0, 1, 1], [], []>} : vector<8x256xbf16>, vector<256x1024xbf16>, vector<8x1024xf32> -> vector<8x1024xf32>
    %8 = vector.extract_strided_slice %2 {offsets = [0, 0], sizes = [8, 512], strides = [1, 1]} : vector<64x1024xf32> to vector<8x512xf32>
    %9 = vector.extract_strided_slice %7 {offsets = [0, 0], sizes = [8, 512], strides = [1, 1]} : vector<8x1024xf32> to vector<8x512xf32>
    %10 = arith.addf %8, %9 : vector<8x512xf32>
    %11 = vector.extract_strided_slice %2 {offsets = [56, 512], sizes = [8, 512], strides = [1, 1]} : vector<64x1024xf32> to vector<8x512xf32>
    %12 = vector.extract_strided_slice %7 {offsets = [0, 512], sizes = [8, 512], strides = [1, 1]} : vector<8x1024xf32> to vector<8x512xf32>
    %13 = arith.addf %11, %12 : vector<8x512xf32>
    %14 = vector.extract_strided_slice %10 {offsets = [0, 0], sizes = [8, 128], strides = [1, 1]} : vector<8x512xf32> to vector<8x128xf32>
    %15 = arith.negf %14 : vector<8x128xf32>
    %16 = math.exp %15 : vector<8x128xf32>
    %cst_7 = arith.constant 1.000000e+00 : f32
    %17 = vector.broadcast %cst_7 : f32 to vector<8x128xf32>
    %18 = arith.addf %17, %16 : vector<8x128xf32>
    %19 = arith.divf %17, %18 : vector<8x128xf32>
    %20 = vector.extract_strided_slice %10 {offsets = [0, 128], sizes = [8, 128], strides = [1, 1]} : vector<8x512xf32> to vector<8x128xf32>
    %21 = arith.negf %20 : vector<8x128xf32>
    %22 = math.exp %21 : vector<8x128xf32>
    %cst_8 = arith.constant 1.000000e+00 : f32
    %23 = vector.broadcast %cst_8 : f32 to vector<8x128xf32>
    %24 = arith.addf %23, %22 : vector<8x128xf32>
    %25 = arith.divf %23, %24 : vector<8x128xf32>
    %26 = vector.extract_strided_slice %10 {offsets = [0, 256], sizes = [8, 128], strides = [1, 1]} : vector<8x512xf32> to vector<8x128xf32>
    %27 = math.tanh %26 : vector<8x128xf32>
    %28 = vector.extract_strided_slice %10 {offsets = [0, 384], sizes = [8, 128], strides = [1, 1]} : vector<8x512xf32> to vector<8x128xf32>
    %29 = arith.negf %28 : vector<8x128xf32>
    %30 = math.exp %29 : vector<8x128xf32>
    %cst_9 = arith.constant 1.000000e+00 : f32
    %31 = vector.broadcast %cst_9 : f32 to vector<8x128xf32>
    %32 = arith.addf %31, %30 : vector<8x128xf32>
    %33 = arith.divf %31, %32 : vector<8x128xf32>
    %34 = arith.mulf %25, %4 : vector<8x128xf32>
    %35 = arith.mulf %19, %27 : vector<8x128xf32>
    %36 = arith.addf %34, %35 : vector<8x128xf32>
    %37 = math.tanh %36 : vector<8x128xf32>
    %38 = arith.mulf %33, %37 : vector<8x128xf32>
    %39 = vector.extract_strided_slice %13 {offsets = [0, 0], sizes = [8, 128], strides = [1, 1]} : vector<8x512xf32> to vector<8x128xf32>
    %40 = arith.negf %39 : vector<8x128xf32>
    %41 = math.exp %40 : vector<8x128xf32>
    %cst_10 = arith.constant 1.000000e+00 : f32
    %42 = vector.broadcast %cst_10 : f32 to vector<8x128xf32>
    %43 = arith.addf %42, %41 : vector<8x128xf32>
    %44 = arith.divf %42, %43 : vector<8x128xf32>
    %45 = vector.extract_strided_slice %13 {offsets = [0, 128], sizes = [8, 128], strides = [1, 1]} : vector<8x512xf32> to vector<8x128xf32>
    %46 = arith.negf %45 : vector<8x128xf32>
    %47 = math.exp %46 : vector<8x128xf32>
    %cst_11 = arith.constant 1.000000e+00 : f32
    %48 = vector.broadcast %cst_11 : f32 to vector<8x128xf32>
    %49 = arith.addf %48, %47 : vector<8x128xf32>
    %50 = arith.divf %48, %49 : vector<8x128xf32>
    %51 = vector.extract_strided_slice %13 {offsets = [0, 256], sizes = [8, 128], strides = [1, 1]} : vector<8x512xf32> to vector<8x128xf32>
    %52 = math.tanh %51 : vector<8x128xf32>
    %53 = vector.extract_strided_slice %13 {offsets = [0, 384], sizes = [8, 128], strides = [1, 1]} : vector<8x512xf32> to vector<8x128xf32>
    %54 = arith.negf %53 : vector<8x128xf32>
    %55 = math.exp %54 : vector<8x128xf32>
    %cst_12 = arith.constant 1.000000e+00 : f32
    %56 = vector.broadcast %cst_12 : f32 to vector<8x128xf32>
    %57 = arith.addf %56, %55 : vector<8x128xf32>
    %58 = arith.divf %56, %57 : vector<8x128xf32>
    %59 = arith.mulf %50, %4 : vector<8x128xf32>
    %60 = arith.mulf %44, %52 : vector<8x128xf32>
    %61 = arith.addf %59, %60 : vector<8x128xf32>
    %62 = math.tanh %61 : vector<8x128xf32>
    %63 = arith.mulf %58, %62 : vector<8x128xf32>
    %c0_13 = arith.constant 0 : index
    %c0_14 = arith.constant 0 : index
    %64 = vector.load %arg7[%c0_13, %c0_14] : memref<64x256xf32, #tpu.memory_space<vmem>>, vector<8x128xf32>
    tpu.vector_store %arg7[%c0_13, %c0_14], %38 {strides = array<i32>} : memref<64x256xf32, #tpu.memory_space<vmem>>, vector<8x128xf32>,
    %c56 = arith.constant 56 : index
    %c128 = arith.constant 128 : index
    %65 = vector.load %arg7[%c56, %c128] : memref<64x256xf32, #tpu.memory_space<vmem>>, vector<8x128xf32>
    tpu.vector_store %arg7[%c56, %c128], %63 {strides = array<i32>} : memref<64x256xf32, #tpu.memory_space<vmem>>, vector<8x128xf32>,
    %66 = tpu.concatenate %38, %63 in 1 : vector<8x128xf32>, vector<8x128xf32> -> vector<8x256xf32>
    %67 = arith.truncf %66 : vector<8x256xf32> to vector<8x256xbf16>
    %cst_15 = arith.constant dense<0.000000e+00> : vector<8x1024xf32>
    %68 = tpu.matmul %67, %3, %cst_15 {dimension_numbers = #tpu.dot_dimension_numbers<[1], [0], [0], [1], [0, 0, 1, 1], [], []>} : vector<8x256xbf16>, vector<256x1024xbf16>, vector<8x1024xf32> -> vector<8x1024xf32>
    %69 = vector.extract_strided_slice %2 {offsets = [8, 0], sizes = [8, 512], strides = [1, 1]} : vector<64x1024xf32> to vector<8x512xf32>
    %70 = vector.extract_strided_slice %68 {offsets = [0, 0], sizes = [8, 512], strides = [1, 1]} : vector<8x1024xf32> to vector<8x512xf32>
    %71 = arith.addf %69, %70 : vector<8x512xf32>
    %72 = vector.extract_strided_slice %2 {offsets = [48, 512], sizes = [8, 512], strides = [1, 1]} : vector<64x1024xf32> to vector<8x512xf32>
    %73 = vector.extract_strided_slice %68 {offsets = [0, 512], sizes = [8, 512], strides = [1, 1]} : vector<8x1024xf32> to vector<8x512xf32>
    %74 = arith.addf %72, %73 : vector<8x512xf32>
    %75 = vector.extract_strided_slice %71 {offsets = [0, 0], sizes = [8, 128], strides = [1, 1]} : vector<8x512xf32> to vector<8x128xf32>
    %76 = arith.negf %75 : vector<8x128xf32>
    %77 = math.exp %76 : vector<8x128xf32>
    %cst_16 = arith.constant 1.000000e+00 : f32
    %78 = vector.broadcast %cst_16 : f32 to vector<8x128xf32>
    %79 = arith.addf %78, %77 : vector<8x128xf32>
    %80 = arith.divf %78, %79 : vector<8x128xf32>
    %81 = vector.extract_strided_slice %71 {offsets = [0, 128], sizes = [8, 128], strides = [1, 1]} : vector<8x512xf32> to vector<8x128xf32>
    %82 = arith.negf %81 : vector<8x128xf32>
    %83 = math.exp %82 : vector<8x128xf32>
    %cst_17 = arith.constant 1.000000e+00 : f32
    %84 = vector.broadcast %cst_17 : f32 to vector<8x128xf32>
    %85 = arith.addf %84, %83 : vector<8x128xf32>
    %86 = arith.divf %84, %85 : vector<8x128xf32>
    %87 = vector.extract_strided_slice %71 {offsets = [0, 256], sizes = [8, 128], strides = [1, 1]} : vector<8x512xf32> to vector<8x128xf32>
    %88 = math.tanh %87 : vector<8x128xf32>
    %89 = vector.extract_strided_slice %71 {offsets = [0, 384], sizes = [8, 128], strides = [1, 1]} : vector<8x512xf32> to vector<8x128xf32>
    %90 = arith.negf %89 : vector<8x128xf32>
    %91 = math.exp %90 : vector<8x128xf32>
    %cst_18 = arith.constant 1.000000e+00 : f32
    %92 = vector.broadcast %cst_18 : f32 to vector<8x128xf32>
    %93 = arith.addf %92, %91 : vector<8x128xf32>
    %94 = arith.divf %92, %93 : vector<8x128xf32>
    %95 = arith.mulf %86, %36 : vector<8x128xf32>
    %96 = arith.mulf %80, %88 : vector<8x128xf32>
    %97 = arith.addf %95, %96 : vector<8x128xf32>
    %98 = math.tanh %97 : vector<8x128xf32>
    %99 = arith.mulf %94, %98 : vector<8x128xf32>
    %100 = vector.extract_strided_slice %74 {offsets = [0, 0], sizes = [8, 128], strides = [1, 1]} : vector<8x512xf32> to vector<8x128xf32>
    %101 = arith.negf %100 : vector<8x128xf32>
    %102 = math.exp %101 : vector<8x128xf32>
    %cst_19 = arith.constant 1.000000e+00 : f32
    %103 = vector.broadcast %cst_19 : f32 to vector<8x128xf32>
    %104 = arith.addf %103, %102 : vector<8x128xf32>
    %105 = arith.divf %103, %104 : vector<8x128xf32>
    %106 = vector.extract_strided_slice %74 {offsets = [0, 128], sizes = [8, 128], strides = [1, 1]} : vector<8x512xf32> to vector<8x128xf32>
    %107 = arith.negf %106 : vector<8x128xf32>
    %108 = math.exp %107 : vector<8x128xf32>
    %cst_20 = arith.constant 1.000000e+00 : f32
    %109 = vector.broadcast %cst_20 : f32 to vector<8x128xf32>
    %110 = arith.addf %109, %108 : vector<8x128xf32>
    %111 = arith.divf %109, %110 : vector<8x128xf32>
    %112 = vector.extract_strided_slice %74 {offsets = [0, 256], sizes = [8, 128], strides = [1, 1]} : vector<8x512xf32> to vector<8x128xf32>
    %113 = math.tanh %112 : vector<8x128xf32>
    %114 = vector.extract_strided_slice %74 {offsets = [0, 384], sizes = [8, 128], strides = [1, 1]} : vector<8x512xf32> to vector<8x128xf32>
    %115 = arith.negf %114 : vector<8x128xf32>
    %116 = math.exp %115 : vector<8x128xf32>
    %cst_21 = arith.constant 1.000000e+00 : f32
    %117 = vector.broadcast %cst_21 : f32 to vector<8x128xf32>
    %118 = arith.addf %117, %116 : vector<8x128xf32>
    %119 = arith.divf %117, %118 : vector<8x128xf32>
    %120 = arith.mulf %111, %61 : vector<8x128xf32>
    %121 = arith.mulf %105, %113 : vector<8x128xf32>
    %122 = arith.addf %120, %121 : vector<8x128xf32>
    %123 = math.tanh %122 : vector<8x128xf32>
    %124 = arith.mulf %119, %123 : vector<8x128xf32>
    %c8 = arith.constant 8 : index
    %c0_22 = arith.constant 0 : index
    %125 = vector.load %arg7[%c8, %c0_22] : memref<64x256xf32, #tpu.memory_space<vmem>>, vector<8x128xf32>
    tpu.vector_store %arg7[%c8, %c0_22], %99 {strides = array<i32>} : memref<64x256xf32, #tpu.memory_space<vmem>>, vector<8x128xf32>,
    %c48 = arith.constant 48 : index
    %c128_23 = arith.constant 128 : index
    %126 = vector.load %arg7[%c48, %c128_23] : memref<64x256xf32, #tpu.memory_space<vmem>>, vector<8x128xf32>
    tpu.vector_store %arg7[%c48, %c128_23], %124 {strides = array<i32>} : memref<64x256xf32, #tpu.memory_space<vmem>>, vector<8x128xf32>,
    %127 = tpu.concatenate %99, %124 in 1 : vector<8x128xf32>, vector<8x128xf32> -> vector<8x256xf32>
    %128 = arith.truncf %127 : vector<8x256xf32> to vector<8x256xbf16>
    %cst_24 = arith.constant dense<0.000000e+00> : vector<8x1024xf32>
    %129 = tpu.matmul %128, %3, %cst_24 {dimension_numbers = #tpu.dot_dimension_numbers<[1], [0], [0], [1], [0, 0, 1, 1], [], []>} : vector<8x256xbf16>, vector<256x1024xbf16>, vector<8x1024xf32> -> vector<8x1024xf32>
    %130 = vector.extract_strided_slice %2 {offsets = [16, 0], sizes = [8, 512], strides = [1, 1]} : vector<64x1024xf32> to vector<8x512xf32>
    %131 = vector.extract_strided_slice %129 {offsets = [0, 0], sizes = [8, 512], strides = [1, 1]} : vector<8x1024xf32> to vector<8x512xf32>
    %132 = arith.addf %130, %131 : vector<8x512xf32>
    %133 = vector.extract_strided_slice %2 {offsets = [40, 512], sizes = [8, 512], strides = [1, 1]} : vector<64x1024xf32> to vector<8x512xf32>
    %134 = vector.extract_strided_slice %129 {offsets = [0, 512], sizes = [8, 512], strides = [1, 1]} : vector<8x1024xf32> to vector<8x512xf32>
    %135 = arith.addf %133, %134 : vector<8x512xf32>
    %136 = vector.extract_strided_slice %132 {offsets = [0, 0], sizes = [8, 128], strides = [1, 1]} : vector<8x512xf32> to vector<8x128xf32>
    %137 = arith.negf %136 : vector<8x128xf32>
    %138 = math.exp %137 : vector<8x128xf32>
    %cst_25 = arith.constant 1.000000e+00 : f32
    %139 = vector.broadcast %cst_25 : f32 to vector<8x128xf32>
    %140 = arith.addf %139, %138 : vector<8x128xf32>
    %141 = arith.divf %139, %140 : vector<8x128xf32>
    %142 = vector.extract_strided_slice %132 {offsets = [0, 128], sizes = [8, 128], strides = [1, 1]} : vector<8x512xf32> to vector<8x128xf32>
    %143 = arith.negf %142 : vector<8x128xf32>
    %144 = math.exp %143 : vector<8x128xf32>
    %cst_26 = arith.constant 1.000000e+00 : f32
    %145 = vector.broadcast %cst_26 : f32 to vector<8x128xf32>
    %146 = arith.addf %145, %144 : vector<8x128xf32>
    %147 = arith.divf %145, %146 : vector<8x128xf32>
    %148 = vector.extract_strided_slice %132 {offsets = [0, 256], sizes = [8, 128], strides = [1, 1]} : vector<8x512xf32> to vector<8x128xf32>
    %149 = math.tanh %148 : vector<8x128xf32>
    %150 = vector.extract_strided_slice %132 {offsets = [0, 384], sizes = [8, 128], strides = [1, 1]} : vector<8x512xf32> to vector<8x128xf32>
    %151 = arith.negf %150 : vector<8x128xf32>
    %152 = math.exp %151 : vector<8x128xf32>
    %cst_27 = arith.constant 1.000000e+00 : f32
    %153 = vector.broadcast %cst_27 : f32 to vector<8x128xf32>
    %154 = arith.addf %153, %152 : vector<8x128xf32>
    %155 = arith.divf %153, %154 : vector<8x128xf32>
    %156 = arith.mulf %147, %97 : vector<8x128xf32>
    %157 = arith.mulf %141, %149 : vector<8x128xf32>
    %158 = arith.addf %156, %157 : vector<8x128xf32>
    %159 = math.tanh %158 : vector<8x128xf32>
    %160 = arith.mulf %155, %159 : vector<8x128xf32>
    %161 = vector.extract_strided_slice %135 {offsets = [0, 0], sizes = [8, 128], strides = [1, 1]} : vector<8x512xf32> to vector<8x128xf32>
    %162 = arith.negf %161 : vector<8x128xf32>
    %163 = math.exp %162 : vector<8x128xf32>
    %cst_28 = arith.constant 1.000000e+00 : f32
    %164 = vector.broadcast %cst_28 : f32 to vector<8x128xf32>
    %165 = arith.addf %164, %163 : vector<8x128xf32>
    %166 = arith.divf %164, %165 : vector<8x128xf32>
    %167 = vector.extract_strided_slice %135 {offsets = [0, 128], sizes = [8, 128], strides = [1, 1]} : vector<8x512xf32> to vector<8x128xf32>
    %168 = arith.negf %167 : vector<8x128xf32>
    %169 = math.exp %168 : vector<8x128xf32>
    %cst_29 = arith.constant 1.000000e+00 : f32
    %170 = vector.broadcast %cst_29 : f32 to vector<8x128xf32>
    %171 = arith.addf %170, %169 : vector<8x128xf32>
    %172 = arith.divf %170, %171 : vector<8x128xf32>
    %173 = vector.extract_strided_slice %135 {offsets = [0, 256], sizes = [8, 128], strides = [1, 1]} : vector<8x512xf32> to vector<8x128xf32>
    %174 = math.tanh %173 : vector<8x128xf32>
    %175 = vector.extract_strided_slice %135 {offsets = [0, 384], sizes = [8, 128], strides = [1, 1]} : vector<8x512xf32> to vector<8x128xf32>
    %176 = arith.negf %175 : vector<8x128xf32>
    %177 = math.exp %176 : vector<8x128xf32>
    %cst_30 = arith.constant 1.000000e+00 : f32
    %178 = vector.broadcast %cst_30 : f32 to vector<8x128xf32>
    %179 = arith.addf %178, %177 : vector<8x128xf32>
    %180 = arith.divf %178, %179 : vector<8x128xf32>
    %181 = arith.mulf %172, %122 : vector<8x128xf32>
    %182 = arith.mulf %166, %174 : vector<8x128xf32>
    %183 = arith.addf %181, %182 : vector<8x128xf32>
    %184 = math.tanh %183 : vector<8x128xf32>
    %185 = arith.mulf %180, %184 : vector<8x128xf32>
    %c16 = arith.constant 16 : index
    %c0_31 = arith.constant 0 : index
    %186 = vector.load %arg7[%c16, %c0_31] : memref<64x256xf32, #tpu.memory_space<vmem>>, vector<8x128xf32>
    tpu.vector_store %arg7[%c16, %c0_31], %160 {strides = array<i32>} : memref<64x256xf32, #tpu.memory_space<vmem>>, vector<8x128xf32>,
    %c40 = arith.constant 40 : index
    %c128_32 = arith.constant 128 : index
    %187 = vector.load %arg7[%c40, %c128_32] : memref<64x256xf32, #tpu.memory_space<vmem>>, vector<8x128xf32>
    tpu.vector_store %arg7[%c40, %c128_32], %185 {strides = array<i32>} : memref<64x256xf32, #tpu.memory_space<vmem>>, vector<8x128xf32>,
    %188 = tpu.concatenate %160, %185 in 1 : vector<8x128xf32>, vector<8x128xf32> -> vector<8x256xf32>
    %189 = arith.truncf %188 : vector<8x256xf32> to vector<8x256xbf16>
    %cst_33 = arith.constant dense<0.000000e+00> : vector<8x1024xf32>
    %190 = tpu.matmul %189, %3, %cst_33 {dimension_numbers = #tpu.dot_dimension_numbers<[1], [0], [0], [1], [0, 0, 1, 1], [], []>} : vector<8x256xbf16>, vector<256x1024xbf16>, vector<8x1024xf32> -> vector<8x1024xf32>
    %191 = vector.extract_strided_slice %2 {offsets = [24, 0], sizes = [8, 512], strides = [1, 1]} : vector<64x1024xf32> to vector<8x512xf32>
    %192 = vector.extract_strided_slice %190 {offsets = [0, 0], sizes = [8, 512], strides = [1, 1]} : vector<8x1024xf32> to vector<8x512xf32>
    %193 = arith.addf %191, %192 : vector<8x512xf32>
    %194 = vector.extract_strided_slice %2 {offsets = [32, 512], sizes = [8, 512], strides = [1, 1]} : vector<64x1024xf32> to vector<8x512xf32>
    %195 = vector.extract_strided_slice %190 {offsets = [0, 512], sizes = [8, 512], strides = [1, 1]} : vector<8x1024xf32> to vector<8x512xf32>
    %196 = arith.addf %194, %195 : vector<8x512xf32>
    %197 = vector.extract_strided_slice %193 {offsets = [0, 0], sizes = [8, 128], strides = [1, 1]} : vector<8x512xf32> to vector<8x128xf32>
    %198 = arith.negf %197 : vector<8x128xf32>
    %199 = math.exp %198 : vector<8x128xf32>
    %cst_34 = arith.constant 1.000000e+00 : f32
    %200 = vector.broadcast %cst_34 : f32 to vector<8x128xf32>
    %201 = arith.addf %200, %199 : vector<8x128xf32>
    %202 = arith.divf %200, %201 : vector<8x128xf32>
    %203 = vector.extract_strided_slice %193 {offsets = [0, 128], sizes = [8, 128], strides = [1, 1]} : vector<8x512xf32> to vector<8x128xf32>
    %204 = arith.negf %203 : vector<8x128xf32>
    %205 = math.exp %204 : vector<8x128xf32>
    %cst_35 = arith.constant 1.000000e+00 : f32
    %206 = vector.broadcast %cst_35 : f32 to vector<8x128xf32>
    %207 = arith.addf %206, %205 : vector<8x128xf32>
    %208 = arith.divf %206, %207 : vector<8x128xf32>
    %209 = vector.extract_strided_slice %193 {offsets = [0, 256], sizes = [8, 128], strides = [1, 1]} : vector<8x512xf32> to vector<8x128xf32>
    %210 = math.tanh %209 : vector<8x128xf32>
    %211 = vector.extract_strided_slice %193 {offsets = [0, 384], sizes = [8, 128], strides = [1, 1]} : vector<8x512xf32> to vector<8x128xf32>
    %212 = arith.negf %211 : vector<8x128xf32>
    %213 = math.exp %212 : vector<8x128xf32>
    %cst_36 = arith.constant 1.000000e+00 : f32
    %214 = vector.broadcast %cst_36 : f32 to vector<8x128xf32>
    %215 = arith.addf %214, %213 : vector<8x128xf32>
    %216 = arith.divf %214, %215 : vector<8x128xf32>
    %217 = arith.mulf %208, %158 : vector<8x128xf32>
    %218 = arith.mulf %202, %210 : vector<8x128xf32>
    %219 = arith.addf %217, %218 : vector<8x128xf32>
    %220 = math.tanh %219 : vector<8x128xf32>
    %221 = arith.mulf %216, %220 : vector<8x128xf32>
    %222 = vector.extract_strided_slice %196 {offsets = [0, 0], sizes = [8, 128], strides = [1, 1]} : vector<8x512xf32> to vector<8x128xf32>
    %223 = arith.negf %222 : vector<8x128xf32>
    %224 = math.exp %223 : vector<8x128xf32>
    %cst_37 = arith.constant 1.000000e+00 : f32
    %225 = vector.broadcast %cst_37 : f32 to vector<8x128xf32>
    %226 = arith.addf %225, %224 : vector<8x128xf32>
    %227 = arith.divf %225, %226 : vector<8x128xf32>
    %228 = vector.extract_strided_slice %196 {offsets = [0, 128], sizes = [8, 128], strides = [1, 1]} : vector<8x512xf32> to vector<8x128xf32>
    %229 = arith.negf %228 : vector<8x128xf32>
    %230 = math.exp %229 : vector<8x128xf32>
    %cst_38 = arith.constant 1.000000e+00 : f32
    %231 = vector.broadcast %cst_38 : f32 to vector<8x128xf32>
    %232 = arith.addf %231, %230 : vector<8x128xf32>
    %233 = arith.divf %231, %232 : vector<8x128xf32>
    %234 = vector.extract_strided_slice %196 {offsets = [0, 256], sizes = [8, 128], strides = [1, 1]} : vector<8x512xf32> to vector<8x128xf32>
    %235 = math.tanh %234 : vector<8x128xf32>
    %236 = vector.extract_strided_slice %196 {offsets = [0, 384], sizes = [8, 128], strides = [1, 1]} : vector<8x512xf32> to vector<8x128xf32>
    %237 = arith.negf %236 : vector<8x128xf32>
    %238 = math.exp %237 : vector<8x128xf32>
    %cst_39 = arith.constant 1.000000e+00 : f32
    %239 = vector.broadcast %cst_39 : f32 to vector<8x128xf32>
    %240 = arith.addf %239, %238 : vector<8x128xf32>
    %241 = arith.divf %239, %240 : vector<8x128xf32>
    %242 = arith.mulf %233, %183 : vector<8x128xf32>
    %243 = arith.mulf %227, %235 : vector<8x128xf32>
    %244 = arith.addf %242, %243 : vector<8x128xf32>
    %245 = math.tanh %244 : vector<8x128xf32>
    %246 = arith.mulf %241, %245 : vector<8x128xf32>
    %c24 = arith.constant 24 : index
    %c0_40 = arith.constant 0 : index
    %247 = vector.load %arg7[%c24, %c0_40] : memref<64x256xf32, #tpu.memory_space<vmem>>, vector<8x128xf32>
    tpu.vector_store %arg7[%c24, %c0_40], %221 {strides = array<i32>} : memref<64x256xf32, #tpu.memory_space<vmem>>, vector<8x128xf32>,
    %c32 = arith.constant 32 : index
    %c128_41 = arith.constant 128 : index
    %248 = vector.load %arg7[%c32, %c128_41] : memref<64x256xf32, #tpu.memory_space<vmem>>, vector<8x128xf32>
    tpu.vector_store %arg7[%c32, %c128_41], %246 {strides = array<i32>} : memref<64x256xf32, #tpu.memory_space<vmem>>, vector<8x128xf32>,
    %249 = tpu.concatenate %221, %246 in 1 : vector<8x128xf32>, vector<8x128xf32> -> vector<8x256xf32>
    %250 = arith.truncf %249 : vector<8x256xf32> to vector<8x256xbf16>
    %cst_42 = arith.constant dense<0.000000e+00> : vector<8x1024xf32>
    %251 = tpu.matmul %250, %3, %cst_42 {dimension_numbers = #tpu.dot_dimension_numbers<[1], [0], [0], [1], [0, 0, 1, 1], [], []>} : vector<8x256xbf16>, vector<256x1024xbf16>, vector<8x1024xf32> -> vector<8x1024xf32>
    %252 = vector.extract_strided_slice %2 {offsets = [32, 0], sizes = [8, 512], strides = [1, 1]} : vector<64x1024xf32> to vector<8x512xf32>
    %253 = vector.extract_strided_slice %251 {offsets = [0, 0], sizes = [8, 512], strides = [1, 1]} : vector<8x1024xf32> to vector<8x512xf32>
    %254 = arith.addf %252, %253 : vector<8x512xf32>
    %255 = vector.extract_strided_slice %2 {offsets = [24, 512], sizes = [8, 512], strides = [1, 1]} : vector<64x1024xf32> to vector<8x512xf32>
    %256 = vector.extract_strided_slice %251 {offsets = [0, 512], sizes = [8, 512], strides = [1, 1]} : vector<8x1024xf32> to vector<8x512xf32>
    %257 = arith.addf %255, %256 : vector<8x512xf32>
    %258 = vector.extract_strided_slice %254 {offsets = [0, 0], sizes = [8, 128], strides = [1, 1]} : vector<8x512xf32> to vector<8x128xf32>
    %259 = arith.negf %258 : vector<8x128xf32>
    %260 = math.exp %259 : vector<8x128xf32>
    %cst_43 = arith.constant 1.000000e+00 : f32
    %261 = vector.broadcast %cst_43 : f32 to vector<8x128xf32>
    %262 = arith.addf %261, %260 : vector<8x128xf32>
    %263 = arith.divf %261, %262 : vector<8x128xf32>
    %264 = vector.extract_strided_slice %254 {offsets = [0, 128], sizes = [8, 128], strides = [1, 1]} : vector<8x512xf32> to vector<8x128xf32>
    %265 = arith.negf %264 : vector<8x128xf32>
    %266 = math.exp %265 : vector<8x128xf32>
    %cst_44 = arith.constant 1.000000e+00 : f32
    %267 = vector.broadcast %cst_44 : f32 to vector<8x128xf32>
    %268 = arith.addf %267, %266 : vector<8x128xf32>
    %269 = arith.divf %267, %268 : vector<8x128xf32>
    %270 = vector.extract_strided_slice %254 {offsets = [0, 256], sizes = [8, 128], strides = [1, 1]} : vector<8x512xf32> to vector<8x128xf32>
    %271 = math.tanh %270 : vector<8x128xf32>
    %272 = vector.extract_strided_slice %254 {offsets = [0, 384], sizes = [8, 128], strides = [1, 1]} : vector<8x512xf32> to vector<8x128xf32>
    %273 = arith.negf %272 : vector<8x128xf32>
    %274 = math.exp %273 : vector<8x128xf32>
    %cst_45 = arith.constant 1.000000e+00 : f32
    %275 = vector.broadcast %cst_45 : f32 to vector<8x128xf32>
    %276 = arith.addf %275, %274 : vector<8x128xf32>
    %277 = arith.divf %275, %276 : vector<8x128xf32>
    %278 = arith.mulf %269, %219 : vector<8x128xf32>
    %279 = arith.mulf %263, %271 : vector<8x128xf32>
    %280 = arith.addf %278, %279 : vector<8x128xf32>
    %281 = math.tanh %280 : vector<8x128xf32>
    %282 = arith.mulf %277, %281 : vector<8x128xf32>
    %283 = vector.extract_strided_slice %257 {offsets = [0, 0], sizes = [8, 128], strides = [1, 1]} : vector<8x512xf32> to vector<8x128xf32>
    %284 = arith.negf %283 : vector<8x128xf32>
    %285 = math.exp %284 : vector<8x128xf32>
    %cst_46 = arith.constant 1.000000e+00 : f32
    %286 = vector.broadcast %cst_46 : f32 to vector<8x128xf32>
    %287 = arith.addf %286, %285 : vector<8x128xf32>
    %288 = arith.divf %286, %287 : vector<8x128xf32>
    %289 = vector.extract_strided_slice %257 {offsets = [0, 128], sizes = [8, 128], strides = [1, 1]} : vector<8x512xf32> to vector<8x128xf32>
    %290 = arith.negf %289 : vector<8x128xf32>
    %291 = math.exp %290 : vector<8x128xf32>
    %cst_47 = arith.constant 1.000000e+00 : f32
    %292 = vector.broadcast %cst_47 : f32 to vector<8x128xf32>
    %293 = arith.addf %292, %291 : vector<8x128xf32>
    %294 = arith.divf %292, %293 : vector<8x128xf32>
    %295 = vector.extract_strided_slice %257 {offsets = [0, 256], sizes = [8, 128], strides = [1, 1]} : vector<8x512xf32> to vector<8x128xf32>
    %296 = math.tanh %295 : vector<8x128xf32>
    %297 = vector.extract_strided_slice %257 {offsets = [0, 384], sizes = [8, 128], strides = [1, 1]} : vector<8x512xf32> to vector<8x128xf32>
    %298 = arith.negf %297 : vector<8x128xf32>
    %299 = math.exp %298 : vector<8x128xf32>
    %cst_48 = arith.constant 1.000000e+00 : f32
    %300 = vector.broadcast %cst_48 : f32 to vector<8x128xf32>
    %301 = arith.addf %300, %299 : vector<8x128xf32>
    %302 = arith.divf %300, %301 : vector<8x128xf32>
    %303 = arith.mulf %294, %244 : vector<8x128xf32>
    %304 = arith.mulf %288, %296 : vector<8x128xf32>
    %305 = arith.addf %303, %304 : vector<8x128xf32>
    %306 = math.tanh %305 : vector<8x128xf32>
    %307 = arith.mulf %302, %306 : vector<8x128xf32>
    %c32_49 = arith.constant 32 : index
    %c0_50 = arith.constant 0 : index
    %308 = vector.load %arg7[%c32_49, %c0_50] : memref<64x256xf32, #tpu.memory_space<vmem>>, vector<8x128xf32>
    tpu.vector_store %arg7[%c32_49, %c0_50], %282 {strides = array<i32>} : memref<64x256xf32, #tpu.memory_space<vmem>>, vector<8x128xf32>,
    %c24_51 = arith.constant 24 : index
    %c128_52 = arith.constant 128 : index
    %309 = vector.load %arg7[%c24_51, %c128_52] : memref<64x256xf32, #tpu.memory_space<vmem>>, vector<8x128xf32>
    tpu.vector_store %arg7[%c24_51, %c128_52], %307 {strides = array<i32>} : memref<64x256xf32, #tpu.memory_space<vmem>>, vector<8x128xf32>,
    %310 = tpu.concatenate %282, %307 in 1 : vector<8x128xf32>, vector<8x128xf32> -> vector<8x256xf32>
    %311 = arith.truncf %310 : vector<8x256xf32> to vector<8x256xbf16>
    %cst_53 = arith.constant dense<0.000000e+00> : vector<8x1024xf32>
    %312 = tpu.matmul %311, %3, %cst_53 {dimension_numbers = #tpu.dot_dimension_numbers<[1], [0], [0], [1], [0, 0, 1, 1], [], []>} : vector<8x256xbf16>, vector<256x1024xbf16>, vector<8x1024xf32> -> vector<8x1024xf32>
    %313 = vector.extract_strided_slice %2 {offsets = [40, 0], sizes = [8, 512], strides = [1, 1]} : vector<64x1024xf32> to vector<8x512xf32>
    %314 = vector.extract_strided_slice %312 {offsets = [0, 0], sizes = [8, 512], strides = [1, 1]} : vector<8x1024xf32> to vector<8x512xf32>
    %315 = arith.addf %313, %314 : vector<8x512xf32>
    %316 = vector.extract_strided_slice %2 {offsets = [16, 512], sizes = [8, 512], strides = [1, 1]} : vector<64x1024xf32> to vector<8x512xf32>
    %317 = vector.extract_strided_slice %312 {offsets = [0, 512], sizes = [8, 512], strides = [1, 1]} : vector<8x1024xf32> to vector<8x512xf32>
    %318 = arith.addf %316, %317 : vector<8x512xf32>
    %319 = vector.extract_strided_slice %315 {offsets = [0, 0], sizes = [8, 128], strides = [1, 1]} : vector<8x512xf32> to vector<8x128xf32>
    %320 = arith.negf %319 : vector<8x128xf32>
    %321 = math.exp %320 : vector<8x128xf32>
    %cst_54 = arith.constant 1.000000e+00 : f32
    %322 = vector.broadcast %cst_54 : f32 to vector<8x128xf32>
    %323 = arith.addf %322, %321 : vector<8x128xf32>
    %324 = arith.divf %322, %323 : vector<8x128xf32>
    %325 = vector.extract_strided_slice %315 {offsets = [0, 128], sizes = [8, 128], strides = [1, 1]} : vector<8x512xf32> to vector<8x128xf32>
    %326 = arith.negf %325 : vector<8x128xf32>
    %327 = math.exp %326 : vector<8x128xf32>
    %cst_55 = arith.constant 1.000000e+00 : f32
    %328 = vector.broadcast %cst_55 : f32 to vector<8x128xf32>
    %329 = arith.addf %328, %327 : vector<8x128xf32>
    %330 = arith.divf %328, %329 : vector<8x128xf32>
    %331 = vector.extract_strided_slice %315 {offsets = [0, 256], sizes = [8, 128], strides = [1, 1]} : vector<8x512xf32> to vector<8x128xf32>
    %332 = math.tanh %331 : vector<8x128xf32>
    %333 = vector.extract_strided_slice %315 {offsets = [0, 384], sizes = [8, 128], strides = [1, 1]} : vector<8x512xf32> to vector<8x128xf32>
    %334 = arith.negf %333 : vector<8x128xf32>
    %335 = math.exp %334 : vector<8x128xf32>
    %cst_56 = arith.constant 1.000000e+00 : f32
    %336 = vector.broadcast %cst_56 : f32 to vector<8x128xf32>
    %337 = arith.addf %336, %335 : vector<8x128xf32>
    %338 = arith.divf %336, %337 : vector<8x128xf32>
    %339 = arith.mulf %330, %280 : vector<8x128xf32>
    %340 = arith.mulf %324, %332 : vector<8x128xf32>
    %341 = arith.addf %339, %340 : vector<8x128xf32>
    %342 = math.tanh %341 : vector<8x128xf32>
    %343 = arith.mulf %338, %342 : vector<8x128xf32>
    %344 = vector.extract_strided_slice %318 {offsets = [0, 0], sizes = [8, 128], strides = [1, 1]} : vector<8x512xf32> to vector<8x128xf32>
    %345 = arith.negf %344 : vector<8x128xf32>
    %346 = math.exp %345 : vector<8x128xf32>
    %cst_57 = arith.constant 1.000000e+00 : f32
    %347 = vector.broadcast %cst_57 : f32 to vector<8x128xf32>
    %348 = arith.addf %347, %346 : vector<8x128xf32>
    %349 = arith.divf %347, %348 : vector<8x128xf32>
    %350 = vector.extract_strided_slice %318 {offsets = [0, 128], sizes = [8, 128], strides = [1, 1]} : vector<8x512xf32> to vector<8x128xf32>
    %351 = arith.negf %350 : vector<8x128xf32>
    %352 = math.exp %351 : vector<8x128xf32>
    %cst_58 = arith.constant 1.000000e+00 : f32
    %353 = vector.broadcast %cst_58 : f32 to vector<8x128xf32>
    %354 = arith.addf %353, %352 : vector<8x128xf32>
    %355 = arith.divf %353, %354 : vector<8x128xf32>
    %356 = vector.extract_strided_slice %318 {offsets = [0, 256], sizes = [8, 128], strides = [1, 1]} : vector<8x512xf32> to vector<8x128xf32>
    %357 = math.tanh %356 : vector<8x128xf32>
    %358 = vector.extract_strided_slice %318 {offsets = [0, 384], sizes = [8, 128], strides = [1, 1]} : vector<8x512xf32> to vector<8x128xf32>
    %359 = arith.negf %358 : vector<8x128xf32>
    %360 = math.exp %359 : vector<8x128xf32>
    %cst_59 = arith.constant 1.000000e+00 : f32
    %361 = vector.broadcast %cst_59 : f32 to vector<8x128xf32>
    %362 = arith.addf %361, %360 : vector<8x128xf32>
    %363 = arith.divf %361, %362 : vector<8x128xf32>
    %364 = arith.mulf %355, %305 : vector<8x128xf32>
    %365 = arith.mulf %349, %357 : vector<8x128xf32>
    %366 = arith.addf %364, %365 : vector<8x128xf32>
    %367 = math.tanh %366 : vector<8x128xf32>
    %368 = arith.mulf %363, %367 : vector<8x128xf32>
    %c40_60 = arith.constant 40 : index
    %c0_61 = arith.constant 0 : index
    %369 = vector.load %arg7[%c40_60, %c0_61] : memref<64x256xf32, #tpu.memory_space<vmem>>, vector<8x128xf32>
    tpu.vector_store %arg7[%c40_60, %c0_61], %343 {strides = array<i32>} : memref<64x256xf32, #tpu.memory_space<vmem>>, vector<8x128xf32>,
    %c16_62 = arith.constant 16 : index
    %c128_63 = arith.constant 128 : index
    %370 = vector.load %arg7[%c16_62, %c128_63] : memref<64x256xf32, #tpu.memory_space<vmem>>, vector<8x128xf32>
    tpu.vector_store %arg7[%c16_62, %c128_63], %368 {strides = array<i32>} : memref<64x256xf32, #tpu.memory_space<vmem>>, vector<8x128xf32>,
    %371 = tpu.concatenate %343, %368 in 1 : vector<8x128xf32>, vector<8x128xf32> -> vector<8x256xf32>
    %372 = arith.truncf %371 : vector<8x256xf32> to vector<8x256xbf16>
    %cst_64 = arith.constant dense<0.000000e+00> : vector<8x1024xf32>
    %373 = tpu.matmul %372, %3, %cst_64 {dimension_numbers = #tpu.dot_dimension_numbers<[1], [0], [0], [1], [0, 0, 1, 1], [], []>} : vector<8x256xbf16>, vector<256x1024xbf16>, vector<8x1024xf32> -> vector<8x1024xf32>
    %374 = vector.extract_strided_slice %2 {offsets = [48, 0], sizes = [8, 512], strides = [1, 1]} : vector<64x1024xf32> to vector<8x512xf32>
    %375 = vector.extract_strided_slice %373 {offsets = [0, 0], sizes = [8, 512], strides = [1, 1]} : vector<8x1024xf32> to vector<8x512xf32>
    %376 = arith.addf %374, %375 : vector<8x512xf32>
    %377 = vector.extract_strided_slice %2 {offsets = [8, 512], sizes = [8, 512], strides = [1, 1]} : vector<64x1024xf32> to vector<8x512xf32>
    %378 = vector.extract_strided_slice %373 {offsets = [0, 512], sizes = [8, 512], strides = [1, 1]} : vector<8x1024xf32> to vector<8x512xf32>
    %379 = arith.addf %377, %378 : vector<8x512xf32>
    %380 = vector.extract_strided_slice %376 {offsets = [0, 0], sizes = [8, 128], strides = [1, 1]} : vector<8x512xf32> to vector<8x128xf32>
    %381 = arith.negf %380 : vector<8x128xf32>
    %382 = math.exp %381 : vector<8x128xf32>
    %cst_65 = arith.constant 1.000000e+00 : f32
    %383 = vector.broadcast %cst_65 : f32 to vector<8x128xf32>
    %384 = arith.addf %383, %382 : vector<8x128xf32>
    %385 = arith.divf %383, %384 : vector<8x128xf32>
    %386 = vector.extract_strided_slice %376 {offsets = [0, 128], sizes = [8, 128], strides = [1, 1]} : vector<8x512xf32> to vector<8x128xf32>
    %387 = arith.negf %386 : vector<8x128xf32>
    %388 = math.exp %387 : vector<8x128xf32>
    %cst_66 = arith.constant 1.000000e+00 : f32
    %389 = vector.broadcast %cst_66 : f32 to vector<8x128xf32>
    %390 = arith.addf %389, %388 : vector<8x128xf32>
    %391 = arith.divf %389, %390 : vector<8x128xf32>
    %392 = vector.extract_strided_slice %376 {offsets = [0, 256], sizes = [8, 128], strides = [1, 1]} : vector<8x512xf32> to vector<8x128xf32>
    %393 = math.tanh %392 : vector<8x128xf32>
    %394 = vector.extract_strided_slice %376 {offsets = [0, 384], sizes = [8, 128], strides = [1, 1]} : vector<8x512xf32> to vector<8x128xf32>
    %395 = arith.negf %394 : vector<8x128xf32>
    %396 = math.exp %395 : vector<8x128xf32>
    %cst_67 = arith.constant 1.000000e+00 : f32
    %397 = vector.broadcast %cst_67 : f32 to vector<8x128xf32>
    %398 = arith.addf %397, %396 : vector<8x128xf32>
    %399 = arith.divf %397, %398 : vector<8x128xf32>
    %400 = arith.mulf %391, %341 : vector<8x128xf32>
    %401 = arith.mulf %385, %393 : vector<8x128xf32>
    %402 = arith.addf %400, %401 : vector<8x128xf32>
    %403 = math.tanh %402 : vector<8x128xf32>
    %404 = arith.mulf %399, %403 : vector<8x128xf32>
    %405 = vector.extract_strided_slice %379 {offsets = [0, 0], sizes = [8, 128], strides = [1, 1]} : vector<8x512xf32> to vector<8x128xf32>
    %406 = arith.negf %405 : vector<8x128xf32>
    %407 = math.exp %406 : vector<8x128xf32>
    %cst_68 = arith.constant 1.000000e+00 : f32
    %408 = vector.broadcast %cst_68 : f32 to vector<8x128xf32>
    %409 = arith.addf %408, %407 : vector<8x128xf32>
    %410 = arith.divf %408, %409 : vector<8x128xf32>
    %411 = vector.extract_strided_slice %379 {offsets = [0, 128], sizes = [8, 128], strides = [1, 1]} : vector<8x512xf32> to vector<8x128xf32>
    %412 = arith.negf %411 : vector<8x128xf32>
    %413 = math.exp %412 : vector<8x128xf32>
    %cst_69 = arith.constant 1.000000e+00 : f32
    %414 = vector.broadcast %cst_69 : f32 to vector<8x128xf32>
    %415 = arith.addf %414, %413 : vector<8x128xf32>
    %416 = arith.divf %414, %415 : vector<8x128xf32>
    %417 = vector.extract_strided_slice %379 {offsets = [0, 256], sizes = [8, 128], strides = [1, 1]} : vector<8x512xf32> to vector<8x128xf32>
    %418 = math.tanh %417 : vector<8x128xf32>
    %419 = vector.extract_strided_slice %379 {offsets = [0, 384], sizes = [8, 128], strides = [1, 1]} : vector<8x512xf32> to vector<8x128xf32>
    %420 = arith.negf %419 : vector<8x128xf32>
    %421 = math.exp %420 : vector<8x128xf32>
    %cst_70 = arith.constant 1.000000e+00 : f32
    %422 = vector.broadcast %cst_70 : f32 to vector<8x128xf32>
    %423 = arith.addf %422, %421 : vector<8x128xf32>
    %424 = arith.divf %422, %423 : vector<8x128xf32>
    %425 = arith.mulf %416, %366 : vector<8x128xf32>
    %426 = arith.mulf %410, %418 : vector<8x128xf32>
    %427 = arith.addf %425, %426 : vector<8x128xf32>
    %428 = math.tanh %427 : vector<8x128xf32>
    %429 = arith.mulf %424, %428 : vector<8x128xf32>
    %c48_71 = arith.constant 48 : index
    %c0_72 = arith.constant 0 : index
    %430 = vector.load %arg7[%c48_71, %c0_72] : memref<64x256xf32, #tpu.memory_space<vmem>>, vector<8x128xf32>
    tpu.vector_store %arg7[%c48_71, %c0_72], %404 {strides = array<i32>} : memref<64x256xf32, #tpu.memory_space<vmem>>, vector<8x128xf32>,
    %c8_73 = arith.constant 8 : index
    %c128_74 = arith.constant 128 : index
    %431 = vector.load %arg7[%c8_73, %c128_74] : memref<64x256xf32, #tpu.memory_space<vmem>>, vector<8x128xf32>
    tpu.vector_store %arg7[%c8_73, %c128_74], %429 {strides = array<i32>} : memref<64x256xf32, #tpu.memory_space<vmem>>, vector<8x128xf32>,
    %432 = tpu.concatenate %404, %429 in 1 : vector<8x128xf32>, vector<8x128xf32> -> vector<8x256xf32>
    %433 = arith.truncf %432 : vector<8x256xf32> to vector<8x256xbf16>
    %cst_75 = arith.constant dense<0.000000e+00> : vector<8x1024xf32>
    %434 = tpu.matmul %433, %3, %cst_75 {dimension_numbers = #tpu.dot_dimension_numbers<[1], [0], [0], [1], [0, 0, 1, 1], [], []>} : vector<8x256xbf16>, vector<256x1024xbf16>, vector<8x1024xf32> -> vector<8x1024xf32>
    %435 = vector.extract_strided_slice %2 {offsets = [56, 0], sizes = [8, 512], strides = [1, 1]} : vector<64x1024xf32> to vector<8x512xf32>
    %436 = vector.extract_strided_slice %434 {offsets = [0, 0], sizes = [8, 512], strides = [1, 1]} : vector<8x1024xf32> to vector<8x512xf32>
    %437 = arith.addf %435, %436 : vector<8x512xf32>
    %438 = vector.extract_strided_slice %2 {offsets = [0, 512], sizes = [8, 512], strides = [1, 1]} : vector<64x1024xf32> to vector<8x512xf32>
    %439 = vector.extract_strided_slice %434 {offsets = [0, 512], sizes = [8, 512], strides = [1, 1]} : vector<8x1024xf32> to vector<8x512xf32>
    %440 = arith.addf %438, %439 : vector<8x512xf32>
    %441 = vector.extract_strided_slice %437 {offsets = [0, 0], sizes = [8, 128], strides = [1, 1]} : vector<8x512xf32> to vector<8x128xf32>
    %442 = arith.negf %441 : vector<8x128xf32>
    %443 = math.exp %442 : vector<8x128xf32>
    %cst_76 = arith.constant 1.000000e+00 : f32
    %444 = vector.broadcast %cst_76 : f32 to vector<8x128xf32>
    %445 = arith.addf %444, %443 : vector<8x128xf32>
    %446 = arith.divf %444, %445 : vector<8x128xf32>
    %447 = vector.extract_strided_slice %437 {offsets = [0, 128], sizes = [8, 128], strides = [1, 1]} : vector<8x512xf32> to vector<8x128xf32>
    %448 = arith.negf %447 : vector<8x128xf32>
    %449 = math.exp %448 : vector<8x128xf32>
    %cst_77 = arith.constant 1.000000e+00 : f32
    %450 = vector.broadcast %cst_77 : f32 to vector<8x128xf32>
    %451 = arith.addf %450, %449 : vector<8x128xf32>
    %452 = arith.divf %450, %451 : vector<8x128xf32>
    %453 = vector.extract_strided_slice %437 {offsets = [0, 256], sizes = [8, 128], strides = [1, 1]} : vector<8x512xf32> to vector<8x128xf32>
    %454 = math.tanh %453 : vector<8x128xf32>
    %455 = vector.extract_strided_slice %437 {offsets = [0, 384], sizes = [8, 128], strides = [1, 1]} : vector<8x512xf32> to vector<8x128xf32>
    %456 = arith.negf %455 : vector<8x128xf32>
    %457 = math.exp %456 : vector<8x128xf32>
    %cst_78 = arith.constant 1.000000e+00 : f32
    %458 = vector.broadcast %cst_78 : f32 to vector<8x128xf32>
    %459 = arith.addf %458, %457 : vector<8x128xf32>
    %460 = arith.divf %458, %459 : vector<8x128xf32>
    %461 = arith.mulf %452, %402 : vector<8x128xf32>
    %462 = arith.mulf %446, %454 : vector<8x128xf32>
    %463 = arith.addf %461, %462 : vector<8x128xf32>
    %464 = math.tanh %463 : vector<8x128xf32>
    %465 = arith.mulf %460, %464 : vector<8x128xf32>
    %466 = vector.extract_strided_slice %440 {offsets = [0, 0], sizes = [8, 128], strides = [1, 1]} : vector<8x512xf32> to vector<8x128xf32>
    %467 = arith.negf %466 : vector<8x128xf32>
    %468 = math.exp %467 : vector<8x128xf32>
    %cst_79 = arith.constant 1.000000e+00 : f32
    %469 = vector.broadcast %cst_79 : f32 to vector<8x128xf32>
    %470 = arith.addf %469, %468 : vector<8x128xf32>
    %471 = arith.divf %469, %470 : vector<8x128xf32>
    %472 = vector.extract_strided_slice %440 {offsets = [0, 128], sizes = [8, 128], strides = [1, 1]} : vector<8x512xf32> to vector<8x128xf32>
    %473 = arith.negf %472 : vector<8x128xf32>
    %474 = math.exp %473 : vector<8x128xf32>
    %cst_80 = arith.constant 1.000000e+00 : f32
    %475 = vector.broadcast %cst_80 : f32 to vector<8x128xf32>
    %476 = arith.addf %475, %474 : vector<8x128xf32>
    %477 = arith.divf %475, %476 : vector<8x128xf32>
    %478 = vector.extract_strided_slice %440 {offsets = [0, 256], sizes = [8, 128], strides = [1, 1]} : vector<8x512xf32> to vector<8x128xf32>
    %479 = math.tanh %478 : vector<8x128xf32>
    %480 = vector.extract_strided_slice %440 {offsets = [0, 384], sizes = [8, 128], strides = [1, 1]} : vector<8x512xf32> to vector<8x128xf32>
    %481 = arith.negf %480 : vector<8x128xf32>
    %482 = math.exp %481 : vector<8x128xf32>
    %cst_81 = arith.constant 1.000000e+00 : f32
    %483 = vector.broadcast %cst_81 : f32 to vector<8x128xf32>
    %484 = arith.addf %483, %482 : vector<8x128xf32>
    %485 = arith.divf %483, %484 : vector<8x128xf32>
    %486 = arith.mulf %477, %427 : vector<8x128xf32>
    %487 = arith.mulf %471, %479 : vector<8x128xf32>
    %488 = arith.addf %486, %487 : vector<8x128xf32>
    %489 = math.tanh %488 : vector<8x128xf32>
    %490 = arith.mulf %485, %489 : vector<8x128xf32>
    %c56_82 = arith.constant 56 : index
    %c0_83 = arith.constant 0 : index
    %491 = vector.load %arg7[%c56_82, %c0_83] : memref<64x256xf32, #tpu.memory_space<vmem>>, vector<8x128xf32>
    tpu.vector_store %arg7[%c56_82, %c0_83], %465 {strides = array<i32>} : memref<64x256xf32, #tpu.memory_space<vmem>>, vector<8x128xf32>,
    %c0_84 = arith.constant 0 : index
    %c128_85 = arith.constant 128 : index
    %492 = vector.load %arg7[%c0_84, %c128_85] : memref<64x256xf32, #tpu.memory_space<vmem>>, vector<8x128xf32>
    tpu.vector_store %arg7[%c0_84, %c128_85], %490 {strides = array<i32>} : memref<64x256xf32, #tpu.memory_space<vmem>>, vector<8x128xf32>,
    %c0_86 = arith.constant 0 : index
    %c0_87 = arith.constant 0 : index
    %493 = vector.load %arg7[%c0_86, %c0_87] : memref<64x256xf32, #tpu.memory_space<vmem>>, vector<64x256xf32>
    %494 = arith.truncf %493 : vector<64x256xf32> to vector<64x256xbf16>
    %c0_88 = arith.constant 0 : index
    %c0_89 = arith.constant 0 : index
    %495 = vector.load %arg3[%c0_88, %c0_89] : memref<256x512xbf16, #tpu.memory_space<vmem>>, vector<256x512xbf16>
    %cst_90 = arith.constant dense<0.000000e+00> : vector<64x512xf32>
    %496 = tpu.matmul %494, %495, %cst_90 {dimension_numbers = #tpu.dot_dimension_numbers<[1], [0], [0], [1], [0, 0, 1, 1], [], []>} : vector<64x256xbf16>, vector<256x512xbf16>, vector<64x512xf32> -> vector<64x512xf32>
    %497 = vector.extract_strided_slice %494 {offsets = [56, 0], sizes = [8, 256], strides = [1, 1]} : vector<64x256xbf16> to vector<8x256xbf16>
    %c0_91 = arith.constant 0 : index
    %c0_92 = arith.constant 0 : index
    %498 = vector.load %arg4[%c0_91, %c0_92] : memref<256x512xbf16, #tpu.memory_space<vmem>>, vector<256x512xbf16>
    %cst_93 = arith.constant dense<0.000000e+00> : vector<8x512xf32>
    %499 = tpu.matmul %497, %498, %cst_93 {dimension_numbers = #tpu.dot_dimension_numbers<[1], [0], [0], [1], [0, 0, 1, 1], [], []>} : vector<8x256xbf16>, vector<256x512xbf16>, vector<8x512xf32> -> vector<8x512xf32>
    %c0_94 = arith.constant 0 : index
    %c0_95 = arith.constant 0 : index
    %500 = vector.load %arg5[%c0_94, %c0_95] : memref<128x512xbf16, #tpu.memory_space<vmem>>, vector<128x512xbf16>
    %501 = vector.extract_strided_slice %496 {offsets = [0, 0], sizes = [8, 512], strides = [1, 1]} : vector<64x512xf32> to vector<8x512xf32>
    %502 = arith.truncf %4 : vector<8x128xf32> to vector<8x128xbf16>
    %cst_96 = arith.constant dense<0.000000e+00> : vector<8x512xf32>
    %503 = tpu.matmul %502, %500, %cst_96 {dimension_numbers = #tpu.dot_dimension_numbers<[1], [0], [0], [1], [0, 0, 1, 1], [], []>} : vector<8x128xbf16>, vector<128x512xbf16>, vector<8x512xf32> -> vector<8x512xf32>
    %504 = arith.addf %501, %503 : vector<8x512xf32>
    %505 = vector.extract_strided_slice %504 {offsets = [0, 0], sizes = [8, 128], strides = [1, 1]} : vector<8x512xf32> to vector<8x128xf32>
    %506 = arith.negf %505 : vector<8x128xf32>
    %507 = math.exp %506 : vector<8x128xf32>
    %cst_97 = arith.constant 1.000000e+00 : f32
    %508 = vector.broadcast %cst_97 : f32 to vector<8x128xf32>
    %509 = arith.addf %508, %507 : vector<8x128xf32>
    %510 = arith.divf %508, %509 : vector<8x128xf32>
    %511 = vector.extract_strided_slice %504 {offsets = [0, 128], sizes = [8, 128], strides = [1, 1]} : vector<8x512xf32> to vector<8x128xf32>
    %512 = arith.negf %511 : vector<8x128xf32>
    %513 = math.exp %512 : vector<8x128xf32>
    %cst_98 = arith.constant 1.000000e+00 : f32
    %514 = vector.broadcast %cst_98 : f32 to vector<8x128xf32>
    %515 = arith.addf %514, %513 : vector<8x128xf32>
    %516 = arith.divf %514, %515 : vector<8x128xf32>
    %517 = vector.extract_strided_slice %504 {offsets = [0, 256], sizes = [8, 128], strides = [1, 1]} : vector<8x512xf32> to vector<8x128xf32>
    %518 = math.tanh %517 : vector<8x128xf32>
    %519 = vector.extract_strided_slice %504 {offsets = [0, 384], sizes = [8, 128], strides = [1, 1]} : vector<8x512xf32> to vector<8x128xf32>
    %520 = arith.negf %519 : vector<8x128xf32>
    %521 = math.exp %520 : vector<8x128xf32>
    %cst_99 = arith.constant 1.000000e+00 : f32
    %522 = vector.broadcast %cst_99 : f32 to vector<8x128xf32>
    %523 = arith.addf %522, %521 : vector<8x128xf32>
    %524 = arith.divf %522, %523 : vector<8x128xf32>
    %525 = arith.mulf %516, %4 : vector<8x128xf32>
    %526 = arith.mulf %510, %518 : vector<8x128xf32>
    %527 = arith.addf %525, %526 : vector<8x128xf32>
    %528 = math.tanh %527 : vector<8x128xf32>
    %529 = arith.mulf %524, %528 : vector<8x128xf32>
    %530 = vector.extract_strided_slice %496 {offsets = [8, 0], sizes = [8, 512], strides = [1, 1]} : vector<64x512xf32> to vector<8x512xf32>
    %531 = arith.truncf %529 : vector<8x128xf32> to vector<8x128xbf16>
    %cst_100 = arith.constant dense<0.000000e+00> : vector<8x512xf32>
    %532 = tpu.matmul %531, %500, %cst_100 {dimension_numbers = #tpu.dot_dimension_numbers<[1], [0], [0], [1], [0, 0, 1, 1], [], []>} : vector<8x128xbf16>, vector<128x512xbf16>, vector<8x512xf32> -> vector<8x512xf32>
    %533 = arith.addf %530, %532 : vector<8x512xf32>
    %534 = vector.extract_strided_slice %533 {offsets = [0, 0], sizes = [8, 128], strides = [1, 1]} : vector<8x512xf32> to vector<8x128xf32>
    %535 = arith.negf %534 : vector<8x128xf32>
    %536 = math.exp %535 : vector<8x128xf32>
    %cst_101 = arith.constant 1.000000e+00 : f32
    %537 = vector.broadcast %cst_101 : f32 to vector<8x128xf32>
    %538 = arith.addf %537, %536 : vector<8x128xf32>
    %539 = arith.divf %537, %538 : vector<8x128xf32>
    %540 = vector.extract_strided_slice %533 {offsets = [0, 128], sizes = [8, 128], strides = [1, 1]} : vector<8x512xf32> to vector<8x128xf32>
    %541 = arith.negf %540 : vector<8x128xf32>
    %542 = math.exp %541 : vector<8x128xf32>
    %cst_102 = arith.constant 1.000000e+00 : f32
    %543 = vector.broadcast %cst_102 : f32 to vector<8x128xf32>
    %544 = arith.addf %543, %542 : vector<8x128xf32>
    %545 = arith.divf %543, %544 : vector<8x128xf32>
    %546 = vector.extract_strided_slice %533 {offsets = [0, 256], sizes = [8, 128], strides = [1, 1]} : vector<8x512xf32> to vector<8x128xf32>
    %547 = math.tanh %546 : vector<8x128xf32>
    %548 = vector.extract_strided_slice %533 {offsets = [0, 384], sizes = [8, 128], strides = [1, 1]} : vector<8x512xf32> to vector<8x128xf32>
    %549 = arith.negf %548 : vector<8x128xf32>
    %550 = math.exp %549 : vector<8x128xf32>
    %cst_103 = arith.constant 1.000000e+00 : f32
    %551 = vector.broadcast %cst_103 : f32 to vector<8x128xf32>
    %552 = arith.addf %551, %550 : vector<8x128xf32>
    %553 = arith.divf %551, %552 : vector<8x128xf32>
    %554 = arith.mulf %545, %527 : vector<8x128xf32>
    %555 = arith.mulf %539, %547 : vector<8x128xf32>
    %556 = arith.addf %554, %555 : vector<8x128xf32>
    %557 = math.tanh %556 : vector<8x128xf32>
    %558 = arith.mulf %553, %557 : vector<8x128xf32>
    %559 = vector.extract_strided_slice %496 {offsets = [16, 0], sizes = [8, 512], strides = [1, 1]} : vector<64x512xf32> to vector<8x512xf32>
    %560 = arith.truncf %558 : vector<8x128xf32> to vector<8x128xbf16>
    %cst_104 = arith.constant dense<0.000000e+00> : vector<8x512xf32>
    %561 = tpu.matmul %560, %500, %cst_104 {dimension_numbers = #tpu.dot_dimension_numbers<[1], [0], [0], [1], [0, 0, 1, 1], [], []>} : vector<8x128xbf16>, vector<128x512xbf16>, vector<8x512xf32> -> vector<8x512xf32>
    %562 = arith.addf %559, %561 : vector<8x512xf32>
    %563 = vector.extract_strided_slice %562 {offsets = [0, 0], sizes = [8, 128], strides = [1, 1]} : vector<8x512xf32> to vector<8x128xf32>
    %564 = arith.negf %563 : vector<8x128xf32>
    %565 = math.exp %564 : vector<8x128xf32>
    %cst_105 = arith.constant 1.000000e+00 : f32
    %566 = vector.broadcast %cst_105 : f32 to vector<8x128xf32>
    %567 = arith.addf %566, %565 : vector<8x128xf32>
    %568 = arith.divf %566, %567 : vector<8x128xf32>
    %569 = vector.extract_strided_slice %562 {offsets = [0, 128], sizes = [8, 128], strides = [1, 1]} : vector<8x512xf32> to vector<8x128xf32>
    %570 = arith.negf %569 : vector<8x128xf32>
    %571 = math.exp %570 : vector<8x128xf32>
    %cst_106 = arith.constant 1.000000e+00 : f32
    %572 = vector.broadcast %cst_106 : f32 to vector<8x128xf32>
    %573 = arith.addf %572, %571 : vector<8x128xf32>
    %574 = arith.divf %572, %573 : vector<8x128xf32>
    %575 = vector.extract_strided_slice %562 {offsets = [0, 256], sizes = [8, 128], strides = [1, 1]} : vector<8x512xf32> to vector<8x128xf32>
    %576 = math.tanh %575 : vector<8x128xf32>
    %577 = vector.extract_strided_slice %562 {offsets = [0, 384], sizes = [8, 128], strides = [1, 1]} : vector<8x512xf32> to vector<8x128xf32>
    %578 = arith.negf %577 : vector<8x128xf32>
    %579 = math.exp %578 : vector<8x128xf32>
    %cst_107 = arith.constant 1.000000e+00 : f32
    %580 = vector.broadcast %cst_107 : f32 to vector<8x128xf32>
    %581 = arith.addf %580, %579 : vector<8x128xf32>
    %582 = arith.divf %580, %581 : vector<8x128xf32>
    %583 = arith.mulf %574, %556 : vector<8x128xf32>
    %584 = arith.mulf %568, %576 : vector<8x128xf32>
    %585 = arith.addf %583, %584 : vector<8x128xf32>
    %586 = math.tanh %585 : vector<8x128xf32>
    %587 = arith.mulf %582, %586 : vector<8x128xf32>
    %588 = vector.extract_strided_slice %496 {offsets = [24, 0], sizes = [8, 512], strides = [1, 1]} : vector<64x512xf32> to vector<8x512xf32>
    %589 = arith.truncf %587 : vector<8x128xf32> to vector<8x128xbf16>
    %cst_108 = arith.constant dense<0.000000e+00> : vector<8x512xf32>
    %590 = tpu.matmul %589, %500, %cst_108 {dimension_numbers = #tpu.dot_dimension_numbers<[1], [0], [0], [1], [0, 0, 1, 1], [], []>} : vector<8x128xbf16>, vector<128x512xbf16>, vector<8x512xf32> -> vector<8x512xf32>
    %591 = arith.addf %588, %590 : vector<8x512xf32>
    %592 = vector.extract_strided_slice %591 {offsets = [0, 0], sizes = [8, 128], strides = [1, 1]} : vector<8x512xf32> to vector<8x128xf32>
    %593 = arith.negf %592 : vector<8x128xf32>
    %594 = math.exp %593 : vector<8x128xf32>
    %cst_109 = arith.constant 1.000000e+00 : f32
    %595 = vector.broadcast %cst_109 : f32 to vector<8x128xf32>
    %596 = arith.addf %595, %594 : vector<8x128xf32>
    %597 = arith.divf %595, %596 : vector<8x128xf32>
    %598 = vector.extract_strided_slice %591 {offsets = [0, 128], sizes = [8, 128], strides = [1, 1]} : vector<8x512xf32> to vector<8x128xf32>
    %599 = arith.negf %598 : vector<8x128xf32>
    %600 = math.exp %599 : vector<8x128xf32>
    %cst_110 = arith.constant 1.000000e+00 : f32
    %601 = vector.broadcast %cst_110 : f32 to vector<8x128xf32>
    %602 = arith.addf %601, %600 : vector<8x128xf32>
    %603 = arith.divf %601, %602 : vector<8x128xf32>
    %604 = vector.extract_strided_slice %591 {offsets = [0, 256], sizes = [8, 128], strides = [1, 1]} : vector<8x512xf32> to vector<8x128xf32>
    %605 = math.tanh %604 : vector<8x128xf32>
    %606 = vector.extract_strided_slice %591 {offsets = [0, 384], sizes = [8, 128], strides = [1, 1]} : vector<8x512xf32> to vector<8x128xf32>
    %607 = arith.negf %606 : vector<8x128xf32>
    %608 = math.exp %607 : vector<8x128xf32>
    %cst_111 = arith.constant 1.000000e+00 : f32
    %609 = vector.broadcast %cst_111 : f32 to vector<8x128xf32>
    %610 = arith.addf %609, %608 : vector<8x128xf32>
    %611 = arith.divf %609, %610 : vector<8x128xf32>
    %612 = arith.mulf %603, %585 : vector<8x128xf32>
    %613 = arith.mulf %597, %605 : vector<8x128xf32>
    %614 = arith.addf %612, %613 : vector<8x128xf32>
    %615 = math.tanh %614 : vector<8x128xf32>
    %616 = arith.mulf %611, %615 : vector<8x128xf32>
    %617 = vector.extract_strided_slice %496 {offsets = [32, 0], sizes = [8, 512], strides = [1, 1]} : vector<64x512xf32> to vector<8x512xf32>
    %618 = arith.truncf %616 : vector<8x128xf32> to vector<8x128xbf16>
    %cst_112 = arith.constant dense<0.000000e+00> : vector<8x512xf32>
    %619 = tpu.matmul %618, %500, %cst_112 {dimension_numbers = #tpu.dot_dimension_numbers<[1], [0], [0], [1], [0, 0, 1, 1], [], []>} : vector<8x128xbf16>, vector<128x512xbf16>, vector<8x512xf32> -> vector<8x512xf32>
    %620 = arith.addf %617, %619 : vector<8x512xf32>
    %621 = vector.extract_strided_slice %620 {offsets = [0, 0], sizes = [8, 128], strides = [1, 1]} : vector<8x512xf32> to vector<8x128xf32>
    %622 = arith.negf %621 : vector<8x128xf32>
    %623 = math.exp %622 : vector<8x128xf32>
    %cst_113 = arith.constant 1.000000e+00 : f32
    %624 = vector.broadcast %cst_113 : f32 to vector<8x128xf32>
    %625 = arith.addf %624, %623 : vector<8x128xf32>
    %626 = arith.divf %624, %625 : vector<8x128xf32>
    %627 = vector.extract_strided_slice %620 {offsets = [0, 128], sizes = [8, 128], strides = [1, 1]} : vector<8x512xf32> to vector<8x128xf32>
    %628 = arith.negf %627 : vector<8x128xf32>
    %629 = math.exp %628 : vector<8x128xf32>
    %cst_114 = arith.constant 1.000000e+00 : f32
    %630 = vector.broadcast %cst_114 : f32 to vector<8x128xf32>
    %631 = arith.addf %630, %629 : vector<8x128xf32>
    %632 = arith.divf %630, %631 : vector<8x128xf32>
    %633 = vector.extract_strided_slice %620 {offsets = [0, 256], sizes = [8, 128], strides = [1, 1]} : vector<8x512xf32> to vector<8x128xf32>
    %634 = math.tanh %633 : vector<8x128xf32>
    %635 = vector.extract_strided_slice %620 {offsets = [0, 384], sizes = [8, 128], strides = [1, 1]} : vector<8x512xf32> to vector<8x128xf32>
    %636 = arith.negf %635 : vector<8x128xf32>
    %637 = math.exp %636 : vector<8x128xf32>
    %cst_115 = arith.constant 1.000000e+00 : f32
    %638 = vector.broadcast %cst_115 : f32 to vector<8x128xf32>
    %639 = arith.addf %638, %637 : vector<8x128xf32>
    %640 = arith.divf %638, %639 : vector<8x128xf32>
    %641 = arith.mulf %632, %614 : vector<8x128xf32>
    %642 = arith.mulf %626, %634 : vector<8x128xf32>
    %643 = arith.addf %641, %642 : vector<8x128xf32>
    %644 = math.tanh %643 : vector<8x128xf32>
    %645 = arith.mulf %640, %644 : vector<8x128xf32>
    %646 = vector.extract_strided_slice %496 {offsets = [40, 0], sizes = [8, 512], strides = [1, 1]} : vector<64x512xf32> to vector<8x512xf32>
    %647 = arith.truncf %645 : vector<8x128xf32> to vector<8x128xbf16>
    %cst_116 = arith.constant dense<0.000000e+00> : vector<8x512xf32>
    %648 = tpu.matmul %647, %500, %cst_116 {dimension_numbers = #tpu.dot_dimension_numbers<[1], [0], [0], [1], [0, 0, 1, 1], [], []>} : vector<8x128xbf16>, vector<128x512xbf16>, vector<8x512xf32> -> vector<8x512xf32>
    %649 = arith.addf %646, %648 : vector<8x512xf32>
    %650 = vector.extract_strided_slice %649 {offsets = [0, 0], sizes = [8, 128], strides = [1, 1]} : vector<8x512xf32> to vector<8x128xf32>
    %651 = arith.negf %650 : vector<8x128xf32>
    %652 = math.exp %651 : vector<8x128xf32>
    %cst_117 = arith.constant 1.000000e+00 : f32
    %653 = vector.broadcast %cst_117 : f32 to vector<8x128xf32>
    %654 = arith.addf %653, %652 : vector<8x128xf32>
    %655 = arith.divf %653, %654 : vector<8x128xf32>
    %656 = vector.extract_strided_slice %649 {offsets = [0, 128], sizes = [8, 128], strides = [1, 1]} : vector<8x512xf32> to vector<8x128xf32>
    %657 = arith.negf %656 : vector<8x128xf32>
    %658 = math.exp %657 : vector<8x128xf32>
    %cst_118 = arith.constant 1.000000e+00 : f32
    %659 = vector.broadcast %cst_118 : f32 to vector<8x128xf32>
    %660 = arith.addf %659, %658 : vector<8x128xf32>
    %661 = arith.divf %659, %660 : vector<8x128xf32>
    %662 = vector.extract_strided_slice %649 {offsets = [0, 256], sizes = [8, 128], strides = [1, 1]} : vector<8x512xf32> to vector<8x128xf32>
    %663 = math.tanh %662 : vector<8x128xf32>
    %664 = vector.extract_strided_slice %649 {offsets = [0, 384], sizes = [8, 128], strides = [1, 1]} : vector<8x512xf32> to vector<8x128xf32>
    %665 = arith.negf %664 : vector<8x128xf32>
    %666 = math.exp %665 : vector<8x128xf32>
    %cst_119 = arith.constant 1.000000e+00 : f32
    %667 = vector.broadcast %cst_119 : f32 to vector<8x128xf32>
    %668 = arith.addf %667, %666 : vector<8x128xf32>
    %669 = arith.divf %667, %668 : vector<8x128xf32>
    %670 = arith.mulf %661, %643 : vector<8x128xf32>
    %671 = arith.mulf %655, %663 : vector<8x128xf32>
    %672 = arith.addf %670, %671 : vector<8x128xf32>
    %673 = math.tanh %672 : vector<8x128xf32>
    %674 = arith.mulf %669, %673 : vector<8x128xf32>
    %675 = vector.extract_strided_slice %496 {offsets = [48, 0], sizes = [8, 512], strides = [1, 1]} : vector<64x512xf32> to vector<8x512xf32>
    %676 = arith.truncf %674 : vector<8x128xf32> to vector<8x128xbf16>
    %cst_120 = arith.constant dense<0.000000e+00> : vector<8x512xf32>
    %677 = tpu.matmul %676, %500, %cst_120 {dimension_numbers = #tpu.dot_dimension_numbers<[1], [0], [0], [1], [0, 0, 1, 1], [], []>} : vector<8x128xbf16>, vector<128x512xbf16>, vector<8x512xf32> -> vector<8x512xf32>
    %678 = arith.addf %675, %677 : vector<8x512xf32>
    %679 = vector.extract_strided_slice %678 {offsets = [0, 0], sizes = [8, 128], strides = [1, 1]} : vector<8x512xf32> to vector<8x128xf32>
    %680 = arith.negf %679 : vector<8x128xf32>
    %681 = math.exp %680 : vector<8x128xf32>
    %cst_121 = arith.constant 1.000000e+00 : f32
    %682 = vector.broadcast %cst_121 : f32 to vector<8x128xf32>
    %683 = arith.addf %682, %681 : vector<8x128xf32>
    %684 = arith.divf %682, %683 : vector<8x128xf32>
    %685 = vector.extract_strided_slice %678 {offsets = [0, 128], sizes = [8, 128], strides = [1, 1]} : vector<8x512xf32> to vector<8x128xf32>
    %686 = arith.negf %685 : vector<8x128xf32>
    %687 = math.exp %686 : vector<8x128xf32>
    %cst_122 = arith.constant 1.000000e+00 : f32
    %688 = vector.broadcast %cst_122 : f32 to vector<8x128xf32>
    %689 = arith.addf %688, %687 : vector<8x128xf32>
    %690 = arith.divf %688, %689 : vector<8x128xf32>
    %691 = vector.extract_strided_slice %678 {offsets = [0, 256], sizes = [8, 128], strides = [1, 1]} : vector<8x512xf32> to vector<8x128xf32>
    %692 = math.tanh %691 : vector<8x128xf32>
    %693 = vector.extract_strided_slice %678 {offsets = [0, 384], sizes = [8, 128], strides = [1, 1]} : vector<8x512xf32> to vector<8x128xf32>
    %694 = arith.negf %693 : vector<8x128xf32>
    %695 = math.exp %694 : vector<8x128xf32>
    %cst_123 = arith.constant 1.000000e+00 : f32
    %696 = vector.broadcast %cst_123 : f32 to vector<8x128xf32>
    %697 = arith.addf %696, %695 : vector<8x128xf32>
    %698 = arith.divf %696, %697 : vector<8x128xf32>
    %699 = arith.mulf %690, %672 : vector<8x128xf32>
    %700 = arith.mulf %684, %692 : vector<8x128xf32>
    %701 = arith.addf %699, %700 : vector<8x128xf32>
    %702 = math.tanh %701 : vector<8x128xf32>
    %703 = arith.mulf %698, %702 : vector<8x128xf32>
    %704 = vector.extract_strided_slice %496 {offsets = [56, 0], sizes = [8, 512], strides = [1, 1]} : vector<64x512xf32> to vector<8x512xf32>
    %705 = arith.truncf %703 : vector<8x128xf32> to vector<8x128xbf16>
    %cst_124 = arith.constant dense<0.000000e+00> : vector<8x512xf32>
    %706 = tpu.matmul %705, %500, %cst_124 {dimension_numbers = #tpu.dot_dimension_numbers<[1], [0], [0], [1], [0, 0, 1, 1], [], []>} : vector<8x128xbf16>, vector<128x512xbf16>, vector<8x512xf32> -> vector<8x512xf32>
    %707 = arith.addf %704, %706 : vector<8x512xf32>
    %708 = vector.extract_strided_slice %707 {offsets = [0, 0], sizes = [8, 128], strides = [1, 1]} : vector<8x512xf32> to vector<8x128xf32>
    %709 = arith.negf %708 : vector<8x128xf32>
    %710 = math.exp %709 : vector<8x128xf32>
    %cst_125 = arith.constant 1.000000e+00 : f32
    %711 = vector.broadcast %cst_125 : f32 to vector<8x128xf32>
    %712 = arith.addf %711, %710 : vector<8x128xf32>
    %713 = arith.divf %711, %712 : vector<8x128xf32>
    %714 = vector.extract_strided_slice %707 {offsets = [0, 128], sizes = [8, 128], strides = [1, 1]} : vector<8x512xf32> to vector<8x128xf32>
    %715 = arith.negf %714 : vector<8x128xf32>
    %716 = math.exp %715 : vector<8x128xf32>
    %cst_126 = arith.constant 1.000000e+00 : f32
    %717 = vector.broadcast %cst_126 : f32 to vector<8x128xf32>
    %718 = arith.addf %717, %716 : vector<8x128xf32>
    %719 = arith.divf %717, %718 : vector<8x128xf32>
    %720 = vector.extract_strided_slice %707 {offsets = [0, 256], sizes = [8, 128], strides = [1, 1]} : vector<8x512xf32> to vector<8x128xf32>
    %721 = math.tanh %720 : vector<8x128xf32>
    %722 = vector.extract_strided_slice %707 {offsets = [0, 384], sizes = [8, 128], strides = [1, 1]} : vector<8x512xf32> to vector<8x128xf32>
    %723 = arith.negf %722 : vector<8x128xf32>
    %724 = math.exp %723 : vector<8x128xf32>
    %cst_127 = arith.constant 1.000000e+00 : f32
    %725 = vector.broadcast %cst_127 : f32 to vector<8x128xf32>
    %726 = arith.addf %725, %724 : vector<8x128xf32>
    %727 = arith.divf %725, %726 : vector<8x128xf32>
    %728 = arith.mulf %719, %701 : vector<8x128xf32>
    %729 = arith.mulf %713, %721 : vector<8x128xf32>
    %730 = arith.addf %728, %729 : vector<8x128xf32>
    %731 = math.tanh %730 : vector<8x128xf32>
    %732 = arith.mulf %727, %731 : vector<8x128xf32>
    %733 = vector.extract_strided_slice %499 {offsets = [0, 0], sizes = [8, 128], strides = [1, 1]} : vector<8x512xf32> to vector<8x128xf32>
    %734 = arith.negf %733 : vector<8x128xf32>
    %735 = math.exp %734 : vector<8x128xf32>
    %cst_128 = arith.constant 1.000000e+00 : f32
    %736 = vector.broadcast %cst_128 : f32 to vector<8x128xf32>
    %737 = arith.addf %736, %735 : vector<8x128xf32>
    %738 = arith.divf %736, %737 : vector<8x128xf32>
    %739 = vector.extract_strided_slice %499 {offsets = [0, 128], sizes = [8, 128], strides = [1, 1]} : vector<8x512xf32> to vector<8x128xf32>
    %740 = arith.negf %739 : vector<8x128xf32>
    %741 = math.exp %740 : vector<8x128xf32>
    %cst_129 = arith.constant 1.000000e+00 : f32
    %742 = vector.broadcast %cst_129 : f32 to vector<8x128xf32>
    %743 = arith.addf %742, %741 : vector<8x128xf32>
    %744 = arith.divf %742, %743 : vector<8x128xf32>
    %745 = vector.extract_strided_slice %499 {offsets = [0, 256], sizes = [8, 128], strides = [1, 1]} : vector<8x512xf32> to vector<8x128xf32>
    %746 = math.tanh %745 : vector<8x128xf32>
    %747 = vector.extract_strided_slice %499 {offsets = [0, 384], sizes = [8, 128], strides = [1, 1]} : vector<8x512xf32> to vector<8x128xf32>
    %748 = arith.negf %747 : vector<8x128xf32>
    %749 = math.exp %748 : vector<8x128xf32>
    %cst_130 = arith.constant 1.000000e+00 : f32
    %750 = vector.broadcast %cst_130 : f32 to vector<8x128xf32>
    %751 = arith.addf %750, %749 : vector<8x128xf32>
    %752 = arith.divf %750, %751 : vector<8x128xf32>
    %753 = arith.mulf %744, %4 : vector<8x128xf32>
    %754 = arith.mulf %738, %746 : vector<8x128xf32>
    %755 = arith.addf %753, %754 : vector<8x128xf32>
    %756 = math.tanh %755 : vector<8x128xf32>
    %757 = arith.mulf %752, %756 : vector<8x128xf32>
    %c0_131 = arith.constant 0 : index
    %c0_132 = arith.constant 0 : index
    %758 = vector.load %arg6[%c0_131, %c0_132] : memref<8x256xf32, #tpu.memory_space<vmem>>, vector<8x128xf32>
    tpu.vector_store %arg6[%c0_131, %c0_132], %732 {strides = array<i32>} : memref<8x256xf32, #tpu.memory_space<vmem>>, vector<8x128xf32>,
    %c0_133 = arith.constant 0 : index
    %c128_134 = arith.constant 128 : index
    %759 = vector.load %arg6[%c0_133, %c128_134] : memref<8x256xf32, #tpu.memory_space<vmem>>, vector<8x128xf32>
    tpu.vector_store %arg6[%c0_133, %c128_134], %757 {strides = array<i32>} : memref<8x256xf32, #tpu.memory_space<vmem>>, vector<8x128xf32>,
    return
  }
}

</mosaic_0001>

<llo_original>
// kernel: bilstm_forward.1
$region0: #{bilstm_forward.1}
  #allocation0 [shape = 'u32[]', space=smem, size = 0x4, offset = 0x4, fixed_abs, tag = 'smem constant byte address 0x4 - core index']
  #allocation1 [shape = 'u32[72,128]{1,0:T(1,128)}', space=vmem, size = 0x9000, scoped, tag = 'internal scratch']
  #allocation2 [shape = 'f32[64,256]{1,0:T(8,128)}', space=vmem, size = 0x10000, scoped, tag = 'scratch operand']
  %s0 = inlined_call_operand.vmem [shape: bf16[64,64], index: 0, kind: input, shape index: {}]
  %s1 = inlined_call_operand.vmem [shape: bf16[64,1024], index: 1, kind: input, shape index: {}]
  %s2 = inlined_call_operand.vmem [shape: bf16[256,1024], index: 2, kind: input, shape index: {}]
  %s3 = inlined_call_operand.vmem [shape: bf16[256,512], index: 3, kind: input, shape index: {}]
  %s4 = inlined_call_operand.vmem [shape: bf16[256,512], index: 4, kind: input, shape index: {}]
  %s5 = inlined_call_operand.vmem [shape: bf16[128,512], index: 5, kind: input, shape index: {}]
  %s6 = inlined_call_operand.vmem [shape: f32[8,256], index: 6, kind: output, shape index: {}]
  %s7 = sld [smem:[#allocation0]]
  $region34: #{bilstm_forward.1} parent=0
    _
  %s9 = ssub.s32 1, %s7
  %s10 = scalar_select 0, %s9, %s7
  // Predicated region
  $region2: #{bilstm_forward.1} parent=0 // pred_check
    _
  $region3: #{bilstm_forward.1} parent=0 // pred_check_branch
    %12 = sbr.rel (0) target = $region5
  $region4: #{bilstm_forward.1} parent=0 // pred_region
    _
  $region5: #{bilstm_forward.1} parent=0 // pred_fallthru
    _
  // Predicated region
  $region6: #{bilstm_forward.1} parent=0 // pred_check
    _
  $region7: #{bilstm_forward.1} parent=0 // pred_check_branch
    %14 = sbr.rel (0) target = $region9
  $region8: #{bilstm_forward.1} parent=0 // pred_region
    _
  $region9: #{bilstm_forward.1} parent=0 // pred_fallthru
    _
  // Predicated region
  $region10: #{bilstm_forward.1} parent=0 // pred_check
    _
  $region11: #{bilstm_forward.1} parent=0 // pred_check_branch
    %16 = sbr.rel (0) target = $region13
  $region12: #{bilstm_forward.1} parent=0 // pred_region
    _
  $region13: #{bilstm_forward.1} parent=0 // pred_fallthru
    _
  // Predicated region
  $region14: #{bilstm_forward.1} parent=0 // pred_check
    _
  $region15: #{bilstm_forward.1} parent=0 // pred_check_branch
    %18 = sbr.rel (0) target = $region17
  $region16: #{bilstm_forward.1} parent=0 // pred_region
    _
  $region17: #{bilstm_forward.1} parent=0 // pred_fallthru
    _
  // Predicated region
  $region18: #{bilstm_forward.1} parent=0 // pred_check
    _
  $region19: #{bilstm_forward.1} parent=0 // pred_check_branch
    %20 = sbr.rel (0) target = $region21
  $region20: #{bilstm_forward.1} parent=0 // pred_region
    _
  $region21: #{bilstm_forward.1} parent=0 // pred_fallthru
    _
  // Predicated region
  $region22: #{bilstm_forward.1} parent=0 // pred_check
    _
  $region23: #{bilstm_forward.1} parent=0 // pred_check_branch
    %22 = sbr.rel (0) target = $region25
  $region24: #{bilstm_forward.1} parent=0 // pred_region
    _
  $region25: #{bilstm_forward.1} parent=0 // pred_fallthru
    _
  %v24 = vld [vmem:[%s0] sm:$0xf]
  %v25 = vld [vmem:[%s0 + $0x4] sm:$0xf]
  %v26 = vld [vmem:[%s0 + $0x8] sm:$0xf]
  %v27 = vld [vmem:[%s0 + $0xc] sm:$0xf]
  %v28 = vld [vmem:[%s0 + $0x10] sm:$0xf]
  %v29 = vld [vmem:[%s0 + $0x14] sm:$0xf]
  %v30 = vld [vmem:[%s0 + $0x18] sm:$0xf]
  %v31 = vld [vmem:[%s0 + $0x1c] sm:$0xf]
  %v32 = vld [vmem:[%s1] sm:$0xff]
  %v33 = vld [vmem:[%s1 + $0x8] sm:$0xff]
  %v34 = vld [vmem:[%s1 + $0x10] sm:$0xff]
  %v35 = vld [vmem:[%s1 + $0x18] sm:$0xff]
  %v36 = vld [vmem:[%s1 + $0x20] sm:$0xff]
  %v37 = vld [vmem:[%s1 + $0x28] sm:$0xff]
  %v38 = vld [vmem:[%s1 + $0x30] sm:$0xff]
  %v39 = vld [vmem:[%s1 + $0x38] sm:$0xff]
  %v40 = vld [vmem:[%s1 + $0x40] sm:$0xff]
  %v41 = vld [vmem:[%s1 + $0x48] sm:$0xff]
  %v42 = vld [vmem:[%s1 + $0x50] sm:$0xff]
  %v43 = vld [vmem:[%s1 + $0x58] sm:$0xff]
  %v44 = vld [vmem:[%s1 + $0x60] sm:$0xff]
  %v45 = vld [vmem:[%s1 + $0x68] sm:$0xff]
  %v46 = vld [vmem:[%s1 + $0x70] sm:$0xff]
  %v47 = vld [vmem:[%s1 + $0x78] sm:$0xff]
  %v48 = vld [vmem:[%s1 + $0x80] sm:$0xff]
  %v49 = vld [vmem:[%s1 + $0x88] sm:$0xff]
  %v50 = vld [vmem:[%s1 + $0x90] sm:$0xff]
  %v51 = vld [vmem:[%s1 + $0x98] sm:$0xff]
  %v52 = vld [vmem:[%s1 + $0xa0] sm:$0xff]
  %v53 = vld [vmem:[%s1 + $0xa8] sm:$0xff]
  %v54 = vld [vmem:[%s1 + $0xb0] sm:$0xff]
  %v55 = vld [vmem:[%s1 + $0xb8] sm:$0xff]
  %v56 = vld [vmem:[%s1 + $0xc0] sm:$0xff]
  %v57 = vld [vmem:[%s1 + $0xc8] sm:$0xff]
  %v58 = vld [vmem:[%s1 + $0xd0] sm:$0xff]
  %v59 = vld [vmem:[%s1 + $0xd8] sm:$0xff]
  %v60 = vld [vmem:[%s1 + $0xe0] sm:$0xff]
  %v61 = vld [vmem:[%s1 + $0xe8] sm:$0xff]
  %v62 = vld [vmem:[%s1 + $0xf0] sm:$0xff]
  %v63 = vld [vmem:[%s1 + $0xf8] sm:$0xff]
  %v72 = vunpack.c.l.b16 %v24
  %v73 = vunpack.c.l.b16 %v25
  %v74 = vunpack.c.l.b16 %v26
  %v75 = vunpack.c.l.b16 %v27
  %v76 = vunpack.c.l.b16 %v28
  %v77 = vunpack.c.l.b16 %v29
  %v78 = vunpack.c.l.b16 %v30
  %v79 = vunpack.c.l.b16 %v31
  %v80 = vpack.c.b16 %v73, %v72
  %v81 = vpack.c.b16 %v75, %v74
  %v82 = vpack.c.b16 %v77, %v76
  %v83 = vpack.c.b16 %v79, %v78
  %v116 = vunpack.c.l.b16 %v32
  %v117 = vunpack.c.h.b16 %v32
  %v118 = vunpack.c.l.b16 %v33
  %v119 = vunpack.c.h.b16 %v33
  %v120 = vunpack.c.l.b16 %v34
  %v121 = vunpack.c.h.b16 %v34
  %v122 = vunpack.c.l.b16 %v35
  %v123 = vunpack.c.h.b16 %v35
  %v124 = vunpack.c.l.b16 %v36
  %v125 = vunpack.c.h.b16 %v36
  %v126 = vunpack.c.l.b16 %v37
  %v127 = vunpack.c.h.b16 %v37
  %v128 = vunpack.c.l.b16 %v38
  %v129 = vunpack.c.h.b16 %v38
  %v130 = vunpack.c.l.b16 %v39
  %v131 = vunpack.c.h.b16 %v39
  %v132 = vunpack.c.l.b16 %v40
  %v133 = vunpack.c.h.b16 %v40
  %v134 = vunpack.c.l.b16 %v41
  %v135 = vunpack.c.h.b16 %v41
  %v136 = vunpack.c.l.b16 %v42
  %v137 = vunpack.c.h.b16 %v42
  %v138 = vunpack.c.l.b16 %v43
  %v139 = vunpack.c.h.b16 %v43
  %v140 = vunpack.c.l.b16 %v44
  %v141 = vunpack.c.h.b16 %v44
  %v142 = vunpack.c.l.b16 %v45
  %v143 = vunpack.c.h.b16 %v45
  %v144 = vunpack.c.l.b16 %v46
  %v145 = vunpack.c.h.b16 %v46
  %v146 = vunpack.c.l.b16 %v47
  %v147 = vunpack.c.h.b16 %v47
  %v148 = vunpack.c.l.b16 %v48
  %v149 = vunpack.c.h.b16 %v48
  %v150 = vunpack.c.l.b16 %v49
  %v151 = vunpack.c.h.b16 %v49
  %v152 = vunpack.c.l.b16 %v50
  %v153 = vunpack.c.h.b16 %v50
  %v154 = vunpack.c.l.b16 %v51
  %v155 = vunpack.c.h.b16 %v51
  %v156 = vunpack.c.l.b16 %v52
  %v157 = vunpack.c.h.b16 %v52
  %v158 = vunpack.c.l.b16 %v53
  %v159 = vunpack.c.h.b16 %v53
  %v160 = vunpack.c.l.b16 %v54
  %v161 = vunpack.c.h.b16 %v54
  %v162 = vunpack.c.l.b16 %v55
  %v163 = vunpack.c.h.b16 %v55
  %v164 = vunpack.c.l.b16 %v56
  %v165 = vunpack.c.h.b16 %v56
  %v166 = vunpack.c.l.b16 %v57
  %v167 = vunpack.c.h.b16 %v57
  %v168 = vunpack.c.l.b16 %v58
  %v169 = vunpack.c.h.b16 %v58
  %v170 = vunpack.c.l.b16 %v59
  %v171 = vunpack.c.h.b16 %v59
  %v172 = vunpack.c.l.b16 %v60
  %v173 = vunpack.c.h.b16 %v60
  %v174 = vunpack.c.l.b16 %v61
  %v175 = vunpack.c.h.b16 %v61
  %v176 = vunpack.c.l.b16 %v62
  %v177 = vunpack.c.h.b16 %v62
  %v178 = vunpack.c.l.b16 %v63
  %v179 = vunpack.c.h.b16 %v63
  %v180 = vpack.c.b16 %v124, %v116
  %v181 = vpack.c.b16 %v125, %v117
  %v182 = vpack.c.b16 %v126, %v118
  %v183 = vpack.c.b16 %v127, %v119
  %v184 = vpack.c.b16 %v128, %v120
  %v185 = vpack.c.b16 %v129, %v121
  %v186 = vpack.c.b16 %v130, %v122
  %v187 = vpack.c.b16 %v131, %v123
  %v188 = vpack.c.b16 %v140, %v132
  %v189 = vpack.c.b16 %v141, %v133
  %v190 = vpack.c.b16 %v142, %v134
  %v191 = vpack.c.b16 %v143, %v135
  %v192 = vpack.c.b16 %v144, %v136
  %v193 = vpack.c.b16 %v145, %v137
  %v194 = vpack.c.b16 %v146, %v138
  %v195 = vpack.c.b16 %v147, %v139
  %v196 = vpack.c.b16 %v156, %v148
  %v197 = vpack.c.b16 %v157, %v149
  %v198 = vpack.c.b16 %v158, %v150
  %v199 = vpack.c.b16 %v159, %v151
  %v200 = vpack.c.b16 %v160, %v152
  %v201 = vpack.c.b16 %v161, %v153
  %v202 = vpack.c.b16 %v162, %v154
  %v203 = vpack.c.b16 %v163, %v155
  %v204 = vpack.c.b16 %v172, %v164
  %v205 = vpack.c.b16 %v173, %v165
  %v206 = vpack.c.b16 %v174, %v166
  %v207 = vpack.c.b16 %v175, %v167
  %v208 = vpack.c.b16 %v176, %v168
  %v209 = vpack.c.b16 %v177, %v169
  %v210 = vpack.c.b16 %v178, %v170
  %v211 = vpack.c.b16 %v179, %v171
  %vm244 = vcmask 523264
  %v246 = vsel %vm244, %v80, 0
  %v249 = vsel %vm244, %v81, 0
  %v252 = vsel %vm244, %v82, 0
  %v255 = vsel %vm244, %v83, 0
  %257 = vmatpush.bf16.msra.mxu0 0
  %258 = vmatpush.bf16.msra.mxu0 0
  %259 = vmatpush.bf16.msra.mxu0 0
  %260 = vmatpush.bf16.msra.mxu0 0
  %261 = vmatpush.bf16.msra.mxu0 %v204
  %262 = vmatpush.bf16.msra.mxu0 %v196
  %263 = vmatpush.bf16.msra.mxu0 %v188
  %264 = vmatpush.bf16.msra.mxu0 %v180
  %265 = vmatmul.bf16.gmra.mxu0 %v246
  %v266 = vpop.f32.mrf.mxu0
  %v267 = vadd.f32 0.0, %v266
  %v268 = vpop.f32.mrf.mxu0
  %v269 = vadd.f32 0.0, %v268
  %270 = vmatmul.bf16.gmra.mxu0 %v249
  %v271 = vpop.f32.mrf.mxu0
  %v272 = vadd.f32 0.0, %v271
  %v273 = vpop.f32.mrf.mxu0
  %v274 = vadd.f32 0.0, %v273
  %275 = vmatmul.bf16.gmra.mxu0 %v252
  %v276 = vpop.f32.mrf.mxu0
  %v277 = vadd.f32 0.0, %v276
  %v278 = vpop.f32.mrf.mxu0
  %v279 = vadd.f32 0.0, %v278
  %280 = vmatmul.bf16.gmra.mxu0 %v255
  %v281 = vpop.f32.mrf.mxu0
  %v282 = vadd.f32 0.0, %v281
  %v283 = vpop.f32.mrf.mxu0
  %v284 = vadd.f32 0.0, %v283
  %285 = vdwg.mxu0
  %286 = vmatpush.bf16.msra.mxu0 0
  %287 = vmatpush.bf16.msra.mxu0 0
  %288 = vmatpush.bf16.msra.mxu0 0
  %289 = vmatpush.bf16.msra.mxu0 0
  %290 = vmatpush.bf16.msra.mxu0 %v205
  %291 = vmatpush.bf16.msra.mxu0 %v197
  %292 = vmatpush.bf16.msra.mxu0 %v189
  %293 = vmatpush.bf16.msra.mxu0 %v181
  %294 = vmatmul.bf16.gmra.mxu0 %v246
  %v295 = vpop.f32.mrf.mxu0
  %v296 = vadd.f32 0.0, %v295
  %v297 = vpop.f32.mrf.mxu0
  %v298 = vadd.f32 0.0, %v297
  %299 = vmatmul.bf16.gmra.mxu0 %v249
  %v300 = vpop.f32.mrf.mxu0
  %v301 = vadd.f32 0.0, %v300
  %v302 = vpop.f32.mrf.mxu0
  %v303 = vadd.f32 0.0, %v302
  %304 = vmatmul.bf16.gmra.mxu0 %v252
  %v305 = vpop.f32.mrf.mxu0
  %v306 = vadd.f32 0.0, %v305
  %v307 = vpop.f32.mrf.mxu0
  %v308 = vadd.f32 0.0, %v307
  %309 = vmatmul.bf16.gmra.mxu0 %v255
  %v310 = vpop.f32.mrf.mxu0
  %v311 = vadd.f32 0.0, %v310
  %v312 = vpop.f32.mrf.mxu0
  %v313 = vadd.f32 0.0, %v312
  %314 = vdwg.mxu0
  %315 = vmatpush.bf16.msra.mxu0 0
  %316 = vmatpush.bf16.msra.mxu0 0
  %317 = vmatpush.bf16.msra.mxu0 0
  %318 = vmatpush.bf16.msra.mxu0 0
  %319 = vmatpush.bf16.msra.mxu0 %v206
  %320 = vmatpush.bf16.msra.mxu0 %v198
  %321 = vmatpush.bf16.msra.mxu0 %v190
  %322 = vmatpush.bf16.msra.mxu0 %v182
  %323 = vmatmul.bf16.gmra.mxu0 %v246
  %v324 = vpop.f32.mrf.mxu0
  %v325 = vadd.f32 0.0, %v324
  %v326 = vpop.f32.mrf.mxu0
  %v327 = vadd.f32 0.0, %v326
  %328 = vmatmul.bf16.gmra.mxu0 %v249
  %v329 = vpop.f32.mrf.mxu0
  %v330 = vadd.f32 0.0, %v329
  %v331 = vpop.f32.mrf.mxu0
  %v332 = vadd.f32 0.0, %v331
  %333 = vmatmul.bf16.gmra.mxu0 %v252
  %v334 = vpop.f32.mrf.mxu0
  %v335 = vadd.f32 0.0, %v334
  %v336 = vpop.f32.mrf.mxu0
  %v337 = vadd.f32 0.0, %v336
  %338 = vmatmul.bf16.gmra.mxu0 %v255
  %v339 = vpop.f32.mrf.mxu0
  %v340 = vadd.f32 0.0, %v339
  %v341 = vpop.f32.mrf.mxu0
  %v342 = vadd.f32 0.0, %v341
  %343 = vdwg.mxu0
  %344 = vmatpush.bf16.msra.mxu0 0
  %345 = vmatpush.bf16.msra.mxu0 0
  %346 = vmatpush.bf16.msra.mxu0 0
  %347 = vmatpush.bf16.msra.mxu0 0
  %348 = vmatpush.bf16.msra.mxu0 %v207
  %349 = vmatpush.bf16.msra.mxu0 %v199
  %350 = vmatpush.bf16.msra.mxu0 %v191
  %351 = vmatpush.bf16.msra.mxu0 %v183
  %352 = vmatmul.bf16.gmra.mxu0 %v246
  %v353 = vpop.f32.mrf.mxu0
  %v354 = vadd.f32 0.0, %v353
  %v355 = vpop.f32.mrf.mxu0
  %v356 = vadd.f32 0.0, %v355
  %357 = vmatmul.bf16.gmra.mxu0 %v249
  %v358 = vpop.f32.mrf.mxu0
  %v359 = vadd.f32 0.0, %v358
  %v360 = vpop.f32.mrf.mxu0
  %v361 = vadd.f32 0.0, %v360
  %362 = vmatmul.bf16.gmra.mxu0 %v252
  %v363 = vpop.f32.mrf.mxu0
  %v364 = vadd.f32 0.0, %v363
  %v365 = vpop.f32.mrf.mxu0
  %v366 = vadd.f32 0.0, %v365
  %367 = vmatmul.bf16.gmra.mxu0 %v255
  %v368 = vpop.f32.mrf.mxu0
  %v369 = vadd.f32 0.0, %v368
  %v370 = vpop.f32.mrf.mxu0
  %v371 = vadd.f32 0.0, %v370
  %372 = vdwg.mxu0
  %373 = vmatpush.bf16.msra.mxu0 0
  %374 = vmatpush.bf16.msra.mxu0 0
  %375 = vmatpush.bf16.msra.mxu0 0
  %376 = vmatpush.bf16.msra.mxu0 0
  %377 = vmatpush.bf16.msra.mxu0 %v208
  %378 = vmatpush.bf16.msra.mxu0 %v200
  %379 = vmatpush.bf16.msra.mxu0 %v192
  %380 = vmatpush.bf16.msra.mxu0 %v184
  %381 = vmatmul.bf16.gmra.mxu0 %v246
  %v382 = vpop.f32.mrf.mxu0
  %v383 = vadd.f32 0.0, %v382
  %v384 = vpop.f32.mrf.mxu0
  %v385 = vadd.f32 0.0, %v384
  %386 = vmatmul.bf16.gmra.mxu0 %v249
  %v387 = vpop.f32.mrf.mxu0
  %v388 = vadd.f32 0.0, %v387
  %v389 = vpop.f32.mrf.mxu0
  %v390 = vadd.f32 0.0, %v389
  %391 = vmatmul.bf16.gmra.mxu0 %v252
  %v392 = vpop.f32.mrf.mxu0
  %v393 = vadd.f32 0.0, %v392
  %v394 = vpop.f32.mrf.mxu0
  %v395 = vadd.f32 0.0, %v394
  %396 = vmatmul.bf16.gmra.mxu0 %v255
  %v397 = vpop.f32.mrf.mxu0
  %v398 = vadd.f32 0.0, %v397
  %v399 = vpop.f32.mrf.mxu0
  %v400 = vadd.f32 0.0, %v399
  %401 = vdwg.mxu0
  %402 = vmatpush.bf16.msra.mxu0 0
  %403 = vmatpush.bf16.msra.mxu0 0
  %404 = vmatpush.bf16.msra.mxu0 0
  %405 = vmatpush.bf16.msra.mxu0 0
  %406 = vmatpush.bf16.msra.mxu0 %v209
  %407 = vmatpush.bf16.msra.mxu0 %v201
  %408 = vmatpush.bf16.msra.mxu0 %v193
  %409 = vmatpush.bf16.msra.mxu0 %v185
  %410 = vmatmul.bf16.gmra.mxu0 %v246
  %v411 = vpop.f32.mrf.mxu0
  %v412 = vadd.f32 0.0, %v411
  %v413 = vpop.f32.mrf.mxu0
  %v414 = vadd.f32 0.0, %v413
  %415 = vmatmul.bf16.gmra.mxu0 %v249
  %v416 = vpop.f32.mrf.mxu0
  %v417 = vadd.f32 0.0, %v416
  %v418 = vpop.f32.mrf.mxu0
  %v419 = vadd.f32 0.0, %v418
  %420 = vmatmul.bf16.gmra.mxu0 %v252
  %v421 = vpop.f32.mrf.mxu0
  %v422 = vadd.f32 0.0, %v421
  %v423 = vpop.f32.mrf.mxu0
  %v424 = vadd.f32 0.0, %v423
  %425 = vmatmul.bf16.gmra.mxu0 %v255
  %v426 = vpop.f32.mrf.mxu0
  %v427 = vadd.f32 0.0, %v426
  %v428 = vpop.f32.mrf.mxu0
  %v429 = vadd.f32 0.0, %v428
  %430 = vdwg.mxu0
  %431 = vmatpush.bf16.msra.mxu0 0
  %432 = vmatpush.bf16.msra.mxu0 0
  %433 = vmatpush.bf16.msra.mxu0 0
  %434 = vmatpush.bf16.msra.mxu0 0
  %435 = vmatpush.bf16.msra.mxu0 %v210
  %436 = vmatpush.bf16.msra.mxu0 %v202
  %437 = vmatpush.bf16.msra.mxu0 %v194
  %438 = vmatpush.bf16.msra.mxu0 %v186
  %439 = vmatmul.bf16.gmra.mxu0 %v246
  %v440 = vpop.f32.mrf.mxu0
  %v441 = vadd.f32 0.0, %v440
  %v442 = vpop.f32.mrf.mxu0
  %v443 = vadd.f32 0.0, %v442
  %444 = vmatmul.bf16.gmra.mxu0 %v249
  %v445 = vpop.f32.mrf.mxu0
  %v446 = vadd.f32 0.0, %v445
  %v447 = vpop.f32.mrf.mxu0
  %v448 = vadd.f32 0.0, %v447
  %449 = vmatmul.bf16.gmra.mxu0 %v252
  %v450 = vpop.f32.mrf.mxu0
  %v451 = vadd.f32 0.0, %v450
  %v452 = vpop.f32.mrf.mxu0
  %v453 = vadd.f32 0.0, %v452
  %454 = vmatmul.bf16.gmra.mxu0 %v255
  %v455 = vpop.f32.mrf.mxu0
  %v456 = vadd.f32 0.0, %v455
  %v457 = vpop.f32.mrf.mxu0
  %v458 = vadd.f32 0.0, %v457
  %459 = vdwg.mxu0
  %460 = vmatpush.bf16.msra.mxu0 0
  %461 = vmatpush.bf16.msra.mxu0 0
  %462 = vmatpush.bf16.msra.mxu0 0
  %463 = vmatpush.bf16.msra.mxu0 0
  %464 = vmatpush.bf16.msra.mxu0 %v211
  %465 = vmatpush.bf16.msra.mxu0 %v203
  %466 = vmatpush.bf16.msra.mxu0 %v195
  %467 = vmatpush.bf16.msra.mxu0 %v187
  %468 = vmatmul.bf16.gmra.mxu0 %v246
  %v469 = vpop.f32.mrf.mxu0
  %v470 = vadd.f32 0.0, %v469
  %v471 = vpop.f32.mrf.mxu0
  %v472 = vadd.f32 0.0, %v471
  %473 = vmatmul.bf16.gmra.mxu0 %v249
  %v474 = vpop.f32.mrf.mxu0
  %v475 = vadd.f32 0.0, %v474
  %v476 = vpop.f32.mrf.mxu0
  %v477 = vadd.f32 0.0, %v476
  %478 = vmatmul.bf16.gmra.mxu0 %v252
  %v479 = vpop.f32.mrf.mxu0
  %v480 = vadd.f32 0.0, %v479
  %v481 = vpop.f32.mrf.mxu0
  %v482 = vadd.f32 0.0, %v481
  %483 = vmatmul.bf16.gmra.mxu0 %v255
  %v484 = vpop.f32.mrf.mxu0
  %v485 = vadd.f32 0.0, %v484
  %v486 = vpop.f32.mrf.mxu0
  %v487 = vadd.f32 0.0, %v486
  %488 = vdwg.mxu0
  %v489 = vld [vmem:[%s2] sm:$0xff]
  %v490 = vld [vmem:[%s2 + $0x8] sm:$0xff]
  %v491 = vld [vmem:[%s2 + $0x10] sm:$0xff]
  %v492 = vld [vmem:[%s2 + $0x18] sm:$0xff]
  %v493 = vld [vmem:[%s2 + $0x20] sm:$0xff]
  %v494 = vld [vmem:[%s2 + $0x28] sm:$0xff]
  %v495 = vld [vmem:[%s2 + $0x30] sm:$0xff]
  %v496 = vld [vmem:[%s2 + $0x38] sm:$0xff]
  %v497 = vld [vmem:[%s2 + $0x40] sm:$0xff]
  %v498 = vld [vmem:[%s2 + $0x48] sm:$0xff]
  %v499 = vld [vmem:[%s2 + $0x50] sm:$0xff]
  %v500 = vld [vmem:[%s2 + $0x58] sm:$0xff]
  %v501 = vld [vmem:[%s2 + $0x60] sm:$0xff]
  %v502 = vld [vmem:[%s2 + $0x68] sm:$0xff]
  %v503 = vld [vmem:[%s2 + $0x70] sm:$0xff]
  %v504 = vld [vmem:[%s2 + $0x78] sm:$0xff]
  %v505 = vld [vmem:[%s2 + $0x80] sm:$0xff]
  %v506 = vld [vmem:[%s2 + $0x88] sm:$0xff]
  %v507 = vld [vmem:[%s2 + $0x90] sm:$0xff]
  %v508 = vld [vmem:[%s2 + $0x98] sm:$0xff]
  %v509 = vld [vmem:[%s2 + $0xa0] sm:$0xff]
  %v510 = vld [vmem:[%s2 + $0xa8] sm:$0xff]
  %v511 = vld [vmem:[%s2 + $0xb0] sm:$0xff]
  %v512 = vld [vmem:[%s2 + $0xb8] sm:$0xff]
  %v513 = vld [vmem:[%s2 + $0xc0] sm:$0xff]
  %v514 = vld [vmem:[%s2 + $0xc8] sm:$0xff]
  %v515 = vld [vmem:[%s2 + $0xd0] sm:$0xff]
  %v516 = vld [vmem:[%s2 + $0xd8] sm:$0xff]
  %v517 = vld [vmem:[%s2 + $0xe0] sm:$0xff]
  %v518 = vld [vmem:[%s2 + $0xe8] sm:$0xff]
  %v519 = vld [vmem:[%s2 + $0xf0] sm:$0xff]
  %v520 = vld [vmem:[%s2 + $0xf8] sm:$0xff]
  %v521 = vld [vmem:[%s2 + $0x100] sm:$0xff]
  %v522 = vld [vmem:[%s2 + $0x108] sm:$0xff]
  %v523 = vld [vmem:[%s2 + $0x110] sm:$0xff]
  %v524 = vld [vmem:[%s2 + $0x118] sm:$0xff]
  %v525 = vld [vmem:[%s2 + $0x120] sm:$0xff]
  %v526 = vld [vmem:[%s2 + $0x128] sm:$0xff]
  %v527 = vld [vmem:[%s2 + $0x130] sm:$0xff]
  %v528 = vld [vmem:[%s2 + $0x138] sm:$0xff]
  %v529 = vld [vmem:[%s2 + $0x140] sm:$0xff]
  %v530 = vld [vmem:[%s2 + $0x148] sm:$0xff]
  %v531 = vld [vmem:[%s2 + $0x150] sm:$0xff]
  %v532 = vld [vmem:[%s2 + $0x158] sm:$0xff]
  %v533 = vld [vmem:[%s2 + $0x160] sm:$0xff]
  %v534 = vld [vmem:[%s2 + $0x168] sm:$0xff]
  %v535 = vld [vmem:[%s2 + $0x170] sm:$0xff]
  %v536 = vld [vmem:[%s2 + $0x178] sm:$0xff]
  %v537 = vld [vmem:[%s2 + $0x180] sm:$0xff]
  %v538 = vld [vmem:[%s2 + $0x188] sm:$0xff]
  %v539 = vld [vmem:[%s2 + $0x190] sm:$0xff]
  %v540 = vld [vmem:[%s2 + $0x198] sm:$0xff]
  %v541 = vld [vmem:[%s2 + $0x1a0] sm:$0xff]
  %v542 = vld [vmem:[%s2 + $0x1a8] sm:$0xff]
  %v543 = vld [vmem:[%s2 + $0x1b0] sm:$0xff]
  %v544 = vld [vmem:[%s2 + $0x1b8] sm:$0xff]
  %v545 = vld [vmem:[%s2 + $0x1c0] sm:$0xff]
  %v546 = vld [vmem:[%s2 + $0x1c8] sm:$0xff]
  %v547 = vld [vmem:[%s2 + $0x1d0] sm:$0xff]
  %v548 = vld [vmem:[%s2 + $0x1d8] sm:$0xff]
  %v549 = vld [vmem:[%s2 + $0x1e0] sm:$0xff]
  %v550 = vld [vmem:[%s2 + $0x1e8] sm:$0xff]
  %v551 = vld [vmem:[%s2 + $0x1f0] sm:$0xff]
  %v552 = vld [vmem:[%s2 + $0x1f8] sm:$0xff]
  %v553 = vld [vmem:[%s2 + $0x200] sm:$0xff]
  %v554 = vld [vmem:[%s2 + $0x208] sm:$0xff]
  %v555 = vld [vmem:[%s2 + $0x210] sm:$0xff]
  %v556 = vld [vmem:[%s2 + $0x218] sm:$0xff]
  %v557 = vld [vmem:[%s2 + $0x220] sm:$0xff]
  %v558 = vld [vmem:[%s2 + $0x228] sm:$0xff]
  %v559 = vld [vmem:[%s2 + $0x230] sm:$0xff]
  %v560 = vld [vmem:[%s2 + $0x238] sm:$0xff]
  %v561 = vld [vmem:[%s2 + $0x240] sm:$0xff]
  %v562 = vld [vmem:[%s2 + $0x248] sm:$0xff]
  %v563 = vld [vmem:[%s2 + $0x250] sm:$0xff]
  %v564 = vld [vmem:[%s2 + $0x258] sm:$0xff]
  %v565 = vld [vmem:[%s2 + $0x260] sm:$0xff]
  %v566 = vld [vmem:[%s2 + $0x268] sm:$0xff]
  %v567 = vld [vmem:[%s2 + $0x270] sm:$0xff]
  %v568 = vld [vmem:[%s2 + $0x278] sm:$0xff]
  %v569 = vld [vmem:[%s2 + $0x280] sm:$0xff]
  %v570 = vld [vmem:[%s2 + $0x288] sm:$0xff]
  %v571 = vld [vmem:[%s2 + $0x290] sm:$0xff]
  %v572 = vld [vmem:[%s2 + $0x298] sm:$0xff]
  %v573 = vld [vmem:[%s2 + $0x2a0] sm:$0xff]
  %v574 = vld [vmem:[%s2 + $0x2a8] sm:$0xff]
  %v575 = vld [vmem:[%s2 + $0x2b0] sm:$0xff]
  %v576 = vld [vmem:[%s2 + $0x2b8] sm:$0xff]
  %v577 = vld [vmem:[%s2 + $0x2c0] sm:$0xff]
  %v578 = vld [vmem:[%s2 + $0x2c8] sm:$0xff]
  %v579 = vld [vmem:[%s2 + $0x2d0] sm:$0xff]
  %v580 = vld [vmem:[%s2 + $0x2d8] sm:$0xff]
  %v581 = vld [vmem:[%s2 + $0x2e0] sm:$0xff]
  %v582 = vld [vmem:[%s2 + $0x2e8] sm:$0xff]
  %v583 = vld [vmem:[%s2 + $0x2f0] sm:$0xff]
  %v584 = vld [vmem:[%s2 + $0x2f8] sm:$0xff]
  %v585 = vld [vmem:[%s2 + $0x300] sm:$0xff]
  %v586 = vld [vmem:[%s2 + $0x308] sm:$0xff]
  %v587 = vld [vmem:[%s2 + $0x310] sm:$0xff]
  %v588 = vld [vmem:[%s2 + $0x318] sm:$0xff]
  %v589 = vld [vmem:[%s2 + $0x320] sm:$0xff]
  %v590 = vld [vmem:[%s2 + $0x328] sm:$0xff]
  %v591 = vld [vmem:[%s2 + $0x330] sm:$0xff]
  %v592 = vld [vmem:[%s2 + $0x338] sm:$0xff]
  %v593 = vld [vmem:[%s2 + $0x340] sm:$0xff]
  %v594 = vld [vmem:[%s2 + $0x348] sm:$0xff]
  %v595 = vld [vmem:[%s2 + $0x350] sm:$0xff]
  %v596 = vld [vmem:[%s2 + $0x358] sm:$0xff]
  %v597 = vld [vmem:[%s2 + $0x360] sm:$0xff]
  %v598 = vld [vmem:[%s2 + $0x368] sm:$0xff]
  %v599 = vld [vmem:[%s2 + $0x370] sm:$0xff]
  %v600 = vld [vmem:[%s2 + $0x378] sm:$0xff]
  %v601 = vld [vmem:[%s2 + $0x380] sm:$0xff]
  %v602 = vld [vmem:[%s2 + $0x388] sm:$0xff]
  %v603 = vld [vmem:[%s2 + $0x390] sm:$0xff]
  %v604 = vld [vmem:[%s2 + $0x398] sm:$0xff]
  %v605 = vld [vmem:[%s2 + $0x3a0] sm:$0xff]
  %v606 = vld [vmem:[%s2 + $0x3a8] sm:$0xff]
  %v607 = vld [vmem:[%s2 + $0x3b0] sm:$0xff]
  %v608 = vld [vmem:[%s2 + $0x3b8] sm:$0xff]
  %v609 = vld [vmem:[%s2 + $0x3c0] sm:$0xff]
  %v610 = vld [vmem:[%s2 + $0x3c8] sm:$0xff]
  %v611 = vld [vmem:[%s2 + $0x3d0] sm:$0xff]
  %v612 = vld [vmem:[%s2 + $0x3d8] sm:$0xff]
  %v613 = vld [vmem:[%s2 + $0x3e0] sm:$0xff]
  %v614 = vld [vmem:[%s2 + $0x3e8] sm:$0xff]
  %v615 = vld [vmem:[%s2 + $0x3f0] sm:$0xff]
  %v616 = vld [vmem:[%s2 + $0x3f8] sm:$0xff]
  %v617 = vpack.c.bf16 0.0, 0.0
  %v746 = vunpack.c.l.b16 %v489
  %v747 = vunpack.c.h.b16 %v489
  %v748 = vunpack.c.l.b16 %v490
  %v749 = vunpack.c.h.b16 %v490
  %v750 = vunpack.c.l.b16 %v491
  %v751 = vunpack.c.h.b16 %v491
  %v752 = vunpack.c.l.b16 %v492
  %v753 = vunpack.c.h.b16 %v492
  %v754 = vunpack.c.l.b16 %v493
  %v755 = vunpack.c.h.b16 %v493
  %v756 = vunpack.c.l.b16 %v494
  %v757 = vunpack.c.h.b16 %v494
  %v758 = vunpack.c.l.b16 %v495
  %v759 = vunpack.c.h.b16 %v495
  %v760 = vunpack.c.l.b16 %v496
  %v761 = vunpack.c.h.b16 %v496
  %v762 = vunpack.c.l.b16 %v497
  %v763 = vunpack.c.h.b16 %v497
  %v764 = vunpack.c.l.b16 %v498
  %v765 = vunpack.c.h.b16 %v498
  %v766 = vunpack.c.l.b16 %v499
  %v767 = vunpack.c.h.b16 %v499
  %v768 = vunpack.c.l.b16 %v500
  %v769 = vunpack.c.h.b16 %v500
  %v770 = vunpack.c.l.b16 %v501
  %v771 = vunpack.c.h.b16 %v501
  %v772 = vunpack.c.l.b16 %v502
  %v773 = vunpack.c.h.b16 %v502
  %v774 = vunpack.c.l.b16 %v503
  %v775 = vunpack.c.h.b16 %v503
  %v776 = vunpack.c.l.b16 %v504
  %v777 = vunpack.c.h.b16 %v504
  %v778 = vunpack.c.l.b16 %v505
  %v779 = vunpack.c.h.b16 %v505
  %v780 = vunpack.c.l.b16 %v506
  %v781 = vunpack.c.h.b16 %v506
  %v782 = vunpack.c.l.b16 %v507
  %v783 = vunpack.c.h.b16 %v507
  %v784 = vunpack.c.l.b16 %v508
  %v785 = vunpack.c.h.b16 %v508
  %v786 = vunpack.c.l.b16 %v509
  %v787 = vunpack.c.h.b16 %v509
  %v788 = vunpack.c.l.b16 %v510
  %v789 = vunpack.c.h.b16 %v510
  %v790 = vunpack.c.l.b16 %v511
  %v791 = vunpack.c.h.b16 %v511
  %v792 = vunpack.c.l.b16 %v512
  %v793 = vunpack.c.h.b16 %v512
  %v794 = vunpack.c.l.b16 %v513
  %v795 = vunpack.c.h.b16 %v513
  %v796 = vunpack.c.l.b16 %v514
  %v797 = vunpack.c.h.b16 %v514
  %v798 = vunpack.c.l.b16 %v515
  %v799 = vunpack.c.h.b16 %v515
  %v800 = vunpack.c.l.b16 %v516
  %v801 = vunpack.c.h.b16 %v516
  %v802 = vunpack.c.l.b16 %v517
  %v803 = vunpack.c.h.b16 %v517
  %v804 = vunpack.c.l.b16 %v518
  %v805 = vunpack.c.h.b16 %v518
  %v806 = vunpack.c.l.b16 %v519
  %v807 = vunpack.c.h.b16 %v519
  %v808 = vunpack.c.l.b16 %v520
  %v809 = vunpack.c.h.b16 %v520
  %v810 = vunpack.c.l.b16 %v521
  %v811 = vunpack.c.h.b16 %v521
  %v812 = vunpack.c.l.b16 %v522
  %v813 = vunpack.c.h.b16 %v522
  %v814 = vunpack.c.l.b16 %v523
  %v815 = vunpack.c.h.b16 %v523
  %v816 = vunpack.c.l.b16 %v524
  %v817 = vunpack.c.h.b16 %v524
  %v818 = vunpack.c.l.b16 %v525
  %v819 = vunpack.c.h.b16 %v525
  %v820 = vunpack.c.l.b16 %v526
  %v821 = vunpack.c.h.b16 %v526
  %v822 = vunpack.c.l.b16 %v527
  %v823 = vunpack.c.h.b16 %v527
  %v824 = vunpack.c.l.b16 %v528
  %v825 = vunpack.c.h.b16 %v528
  %v826 = vunpack.c.l.b16 %v529
  %v827 = vunpack.c.h.b16 %v529
  %v828 = vunpack.c.l.b16 %v530
  %v829 = vunpack.c.h.b16 %v530
  %v830 = vunpack.c.l.b16 %v531
  %v831 = vunpack.c.h.b16 %v531
  %v832 = vunpack.c.l.b16 %v532
  %v833 = vunpack.c.h.b16 %v532
  %v834 = vunpack.c.l.b16 %v533
  %v835 = vunpack.c.h.b16 %v533
  %v836 = vunpack.c.l.b16 %v534
  %v837 = vunpack.c.h.b16 %v534
  %v838 = vunpack.c.l.b16 %v535
  %v839 = vunpack.c.h.b16 %v535
  %v840 = vunpack.c.l.b16 %v536
  %v841 = vunpack.c.h.b16 %v536
  %v842 = vunpack.c.l.b16 %v537
  %v843 = vunpack.c.h.b16 %v537
  %v844 = vunpack.c.l.b16 %v538
  %v845 = vunpack.c.h.b16 %v538
  %v846 = vunpack.c.l.b16 %v539
  %v847 = vunpack.c.h.b16 %v539
  %v848 = vunpack.c.l.b16 %v540
  %v849 = vunpack.c.h.b16 %v540
  %v850 = vunpack.c.l.b16 %v541
  %v851 = vunpack.c.h.b16 %v541
  %v852 = vunpack.c.l.b16 %v542
  %v853 = vunpack.c.h.b16 %v542
  %v854 = vunpack.c.l.b16 %v543
  %v855 = vunpack.c.h.b16 %v543
  %v856 = vunpack.c.l.b16 %v544
  %v857 = vunpack.c.h.b16 %v544
  %v858 = vunpack.c.l.b16 %v545
  %v859 = vunpack.c.h.b16 %v545
  %v860 = vunpack.c.l.b16 %v546
  %v861 = vunpack.c.h.b16 %v546
  %v862 = vunpack.c.l.b16 %v547
  %v863 = vunpack.c.h.b16 %v547
  %v864 = vunpack.c.l.b16 %v548
  %v865 = vunpack.c.h.b16 %v548
  %v866 = vunpack.c.l.b16 %v549
  %v867 = vunpack.c.h.b16 %v549
  %v868 = vunpack.c.l.b16 %v550
  %v869 = vunpack.c.h.b16 %v550
  %v870 = vunpack.c.l.b16 %v551
  %v871 = vunpack.c.h.b16 %v551
  %v872 = vunpack.c.l.b16 %v552
  %v873 = vunpack.c.h.b16 %v552
  %v874 = vunpack.c.l.b16 %v553
  %v875 = vunpack.c.h.b16 %v553
  %v876 = vunpack.c.l.b16 %v554
  %v877 = vunpack.c.h.b16 %v554
  %v878 = vunpack.c.l.b16 %v555
  %v879 = vunpack.c.h.b16 %v555
  %v880 = vunpack.c.l.b16 %v556
  %v881 = vunpack.c.h.b16 %v556
  %v882 = vunpack.c.l.b16 %v557
  %v883 = vunpack.c.h.b16 %v557
  %v884 = vunpack.c.l.b16 %v558
  %v885 = vunpack.c.h.b16 %v558
  %v886 = vunpack.c.l.b16 %v559
  %v887 = vunpack.c.h.b16 %v559
  %v888 = vunpack.c.l.b16 %v560
  %v889 = vunpack.c.h.b16 %v560
  %v890 = vunpack.c.l.b16 %v561
  %v891 = vunpack.c.h.b16 %v561
  %v892 = vunpack.c.l.b16 %v562
  %v893 = vunpack.c.h.b16 %v562
  %v894 = vunpack.c.l.b16 %v563
  %v895 = vunpack.c.h.b16 %v563
  %v896 = vunpack.c.l.b16 %v564
  %v897 = vunpack.c.h.b16 %v564
  %v898 = vunpack.c.l.b16 %v565
  %v899 = vunpack.c.h.b16 %v565
  %v900 = vunpack.c.l.b16 %v566
  %v901 = vunpack.c.h.b16 %v566
  %v902 = vunpack.c.l.b16 %v567
  %v903 = vunpack.c.h.b16 %v567
  %v904 = vunpack.c.l.b16 %v568
  %v905 = vunpack.c.h.b16 %v568
  %v906 = vunpack.c.l.b16 %v569
  %v907 = vunpack.c.h.b16 %v569
  %v908 = vunpack.c.l.b16 %v570
  %v909 = vunpack.c.h.b16 %v570
  %v910 = vunpack.c.l.b16 %v571
  %v911 = vunpack.c.h.b16 %v571
  %v912 = vunpack.c.l.b16 %v572
  %v913 = vunpack.c.h.b16 %v572
  %v914 = vunpack.c.l.b16 %v573
  %v915 = vunpack.c.h.b16 %v573
  %v916 = vunpack.c.l.b16 %v574
  %v917 = vunpack.c.h.b16 %v574
  %v918 = vunpack.c.l.b16 %v575
  %v919 = vunpack.c.h.b16 %v575
  %v920 = vunpack.c.l.b16 %v576
  %v921 = vunpack.c.h.b16 %v576
  %v922 = vunpack.c.l.b16 %v577
  %v923 = vunpack.c.h.b16 %v577
  %v924 = vunpack.c.l.b16 %v578
  %v925 = vunpack.c.h.b16 %v578
  %v926 = vunpack.c.l.b16 %v579
  %v927 = vunpack.c.h.b16 %v579
  %v928 = vunpack.c.l.b16 %v580
  %v929 = vunpack.c.h.b16 %v580
  %v930 = vunpack.c.l.b16 %v581
  %v931 = vunpack.c.h.b16 %v581
  %v932 = vunpack.c.l.b16 %v582
  %v933 = vunpack.c.h.b16 %v582
  %v934 = vunpack.c.l.b16 %v583
  %v935 = vunpack.c.h.b16 %v583
  %v936 = vunpack.c.l.b16 %v584
  %v937 = vunpack.c.h.b16 %v584
  %v938 = vunpack.c.l.b16 %v585
  %v939 = vunpack.c.h.b16 %v585
  %v940 = vunpack.c.l.b16 %v586
  %v941 = vunpack.c.h.b16 %v586
  %v942 = vunpack.c.l.b16 %v587
  %v943 = vunpack.c.h.b16 %v587
  %v944 = vunpack.c.l.b16 %v588
  %v945 = vunpack.c.h.b16 %v588
  %v946 = vunpack.c.l.b16 %v589
  %v947 = vunpack.c.h.b16 %v589
  %v948 = vunpack.c.l.b16 %v590
  %v949 = vunpack.c.h.b16 %v590
  %v950 = vunpack.c.l.b16 %v591
  %v951 = vunpack.c.h.b16 %v591
  %v952 = vunpack.c.l.b16 %v592
  %v953 = vunpack.c.h.b16 %v592
  %v954 = vunpack.c.l.b16 %v593
  %v955 = vunpack.c.h.b16 %v593
  %v956 = vunpack.c.l.b16 %v594
  %v957 = vunpack.c.h.b16 %v594
  %v958 = vunpack.c.l.b16 %v595
  %v959 = vunpack.c.h.b16 %v595
  %v960 = vunpack.c.l.b16 %v596
  %v961 = vunpack.c.h.b16 %v596
  %v962 = vunpack.c.l.b16 %v597
  %v963 = vunpack.c.h.b16 %v597
  %v964 = vunpack.c.l.b16 %v598
  %v965 = vunpack.c.h.b16 %v598
  %v966 = vunpack.c.l.b16 %v599
  %v967 = vunpack.c.h.b16 %v599
  %v968 = vunpack.c.l.b16 %v600
  %v969 = vunpack.c.h.b16 %v600
  %v970 = vunpack.c.l.b16 %v601
  %v971 = vunpack.c.h.b16 %v601
  %v972 = vunpack.c.l.b16 %v602
  %v973 = vunpack.c.h.b16 %v602
  %v974 = vunpack.c.l.b16 %v603
  %v975 = vunpack.c.h.b16 %v603
  %v976 = vunpack.c.l.b16 %v604
  %v977 = vunpack.c.h.b16 %v604
  %v978 = vunpack.c.l.b16 %v605
  %v979 = vunpack.c.h.b16 %v605
  %v980 = vunpack.c.l.b16 %v606
  %v981 = vunpack.c.h.b16 %v606
  %v982 = vunpack.c.l.b16 %v607
  %v983 = vunpack.c.h.b16 %v607
  %v984 = vunpack.c.l.b16 %v608
  %v985 = vunpack.c.h.b16 %v608
  %v986 = vunpack.c.l.b16 %v609
  %v987 = vunpack.c.h.b16 %v609
  %v988 = vunpack.c.l.b16 %v610
  %v989 = vunpack.c.h.b16 %v610
  %v990 = vunpack.c.l.b16 %v611
  %v991 = vunpack.c.h.b16 %v611
  %v992 = vunpack.c.l.b16 %v612
  %v993 = vunpack.c.h.b16 %v612
  %v994 = vunpack.c.l.b16 %v613
  %v995 = vunpack.c.h.b16 %v613
  %v996 = vunpack.c.l.b16 %v614
  %v997 = vunpack.c.h.b16 %v614
  %v998 = vunpack.c.l.b16 %v615
  %v999 = vunpack.c.h.b16 %v615
  %v1000 = vunpack.c.l.b16 %v616
  %v1001 = vunpack.c.h.b16 %v616
  %v1002 = vpack.c.b16 %v754, %v746
  %v1003 = vpack.c.b16 %v755, %v747
  %v1004 = vpack.c.b16 %v756, %v748
  %v1005 = vpack.c.b16 %v757, %v749
  %v1006 = vpack.c.b16 %v758, %v750
  %v1007 = vpack.c.b16 %v759, %v751
  %v1008 = vpack.c.b16 %v760, %v752
  %v1009 = vpack.c.b16 %v761, %v753
  %v1010 = vpack.c.b16 %v770, %v762
  %v1011 = vpack.c.b16 %v771, %v763
  %v1012 = vpack.c.b16 %v772, %v764
  %v1013 = vpack.c.b16 %v773, %v765
  %v1014 = vpack.c.b16 %v774, %v766
  %v1015 = vpack.c.b16 %v775, %v767
  %v1016 = vpack.c.b16 %v776, %v768
  %v1017 = vpack.c.b16 %v777, %v769
  %v1018 = vpack.c.b16 %v786, %v778
  %v1019 = vpack.c.b16 %v787, %v779
  %v1020 = vpack.c.b16 %v788, %v780
  %v1021 = vpack.c.b16 %v789, %v781
  %v1022 = vpack.c.b16 %v790, %v782
  %v1023 = vpack.c.b16 %v791, %v783
  %v1024 = vpack.c.b16 %v792, %v784
  %v1025 = vpack.c.b16 %v793, %v785
  %v1026 = vpack.c.b16 %v802, %v794
  %v1027 = vpack.c.b16 %v803, %v795
  %v1028 = vpack.c.b16 %v804, %v796
  %v1029 = vpack.c.b16 %v805, %v797
  %v1030 = vpack.c.b16 %v806, %v798
  %v1031 = vpack.c.b16 %v807, %v799
  %v1032 = vpack.c.b16 %v808, %v800
  %v1033 = vpack.c.b16 %v809, %v801
  %v1034 = vpack.c.b16 %v818, %v810
  %v1035 = vpack.c.b16 %v819, %v811
  %v1036 = vpack.c.b16 %v820, %v812
  %v1037 = vpack.c.b16 %v821, %v813
  %v1038 = vpack.c.b16 %v822, %v814
  %v1039 = vpack.c.b16 %v823, %v815
  %v1040 = vpack.c.b16 %v824, %v816
  %v1041 = vpack.c.b16 %v825, %v817
  %v1042 = vpack.c.b16 %v834, %v826
  %v1043 = vpack.c.b16 %v835, %v827
  %v1044 = vpack.c.b16 %v836, %v828
  %v1045 = vpack.c.b16 %v837, %v829
  %v1046 = vpack.c.b16 %v838, %v830
  %v1047 = vpack.c.b16 %v839, %v831
  %v1048 = vpack.c.b16 %v840, %v832
  %v1049 = vpack.c.b16 %v841, %v833
  %v1050 = vpack.c.b16 %v850, %v842
  %v1051 = vpack.c.b16 %v851, %v843
  %v1052 = vpack.c.b16 %v852, %v844
  %v1053 = vpack.c.b16 %v853, %v845
  %v1054 = vpack.c.b16 %v854, %v846
  %v1055 = vpack.c.b16 %v855, %v847
  %v1056 = vpack.c.b16 %v856, %v848
  %v1057 = vpack.c.b16 %v857, %v849
  %v1058 = vpack.c.b16 %v866, %v858
  %v1059 = vpack.c.b16 %v867, %v859
  %v1060 = vpack.c.b16 %v868, %v860
  %v1061 = vpack.c.b16 %v869, %v861
  %v1062 = vpack.c.b16 %v870, %v862
  %v1063 = vpack.c.b16 %v871, %v863
  %v1064 = vpack.c.b16 %v872, %v864
  %v1065 = vpack.c.b16 %v873, %v865
  %v1066 = vpack.c.b16 %v882, %v874
  %v1067 = vpack.c.b16 %v883, %v875
  %v1068 = vpack.c.b16 %v884, %v876
  %v1069 = vpack.c.b16 %v885, %v877
  %v1070 = vpack.c.b16 %v886, %v878
  %v1071 = vpack.c.b16 %v887, %v879
  %v1072 = vpack.c.b16 %v888, %v880
  %v1073 = vpack.c.b16 %v889, %v881
  %v1074 = vpack.c.b16 %v898, %v890
  %v1075 = vpack.c.b16 %v899, %v891
  %v1076 = vpack.c.b16 %v900, %v892
  %v1077 = vpack.c.b16 %v901, %v893
  %v1078 = vpack.c.b16 %v902, %v894
  %v1079 = vpack.c.b16 %v903, %v895
  %v1080 = vpack.c.b16 %v904, %v896
  %v1081 = vpack.c.b16 %v905, %v897
  %v1082 = vpack.c.b16 %v914, %v906
  %v1083 = vpack.c.b16 %v915, %v907
  %v1084 = vpack.c.b16 %v916, %v908
  %v1085 = vpack.c.b16 %v917, %v909
  %v1086 = vpack.c.b16 %v918, %v910
  %v1087 = vpack.c.b16 %v919, %v911
  %v1088 = vpack.c.b16 %v920, %v912
  %v1089 = vpack.c.b16 %v921, %v913
  %v1090 = vpack.c.b16 %v930, %v922
  %v1091 = vpack.c.b16 %v931, %v923
  %v1092 = vpack.c.b16 %v932, %v924
  %v1093 = vpack.c.b16 %v933, %v925
  %v1094 = vpack.c.b16 %v934, %v926
  %v1095 = vpack.c.b16 %v935, %v927
  %v1096 = vpack.c.b16 %v936, %v928
  %v1097 = vpack.c.b16 %v937, %v929
  %v1098 = vpack.c.b16 %v946, %v938
  %v1099 = vpack.c.b16 %v947, %v939
  %v1100 = vpack.c.b16 %v948, %v940
  %v1101 = vpack.c.b16 %v949, %v941
  %v1102 = vpack.c.b16 %v950, %v942
  %v1103 = vpack.c.b16 %v951, %v943
  %v1104 = vpack.c.b16 %v952, %v944
  %v1105 = vpack.c.b16 %v953, %v945
  %v1106 = vpack.c.b16 %v962, %v954
  %v1107 = vpack.c.b16 %v963, %v955
  %v1108 = vpack.c.b16 %v964, %v956
  %v1109 = vpack.c.b16 %v965, %v957
  %v1110 = vpack.c.b16 %v966, %v958
  %v1111 = vpack.c.b16 %v967, %v959
  %v1112 = vpack.c.b16 %v968, %v960
  %v1113 = vpack.c.b16 %v969, %v961
  %v1114 = vpack.c.b16 %v978, %v970
  %v1115 = vpack.c.b16 %v979, %v971
  %v1116 = vpack.c.b16 %v980, %v972
  %v1117 = vpack.c.b16 %v981, %v973
  %v1118 = vpack.c.b16 %v982, %v974
  %v1119 = vpack.c.b16 %v983, %v975
  %v1120 = vpack.c.b16 %v984, %v976
  %v1121 = vpack.c.b16 %v985, %v977
  %v1122 = vpack.c.b16 %v994, %v986
  %v1123 = vpack.c.b16 %v995, %v987
  %v1124 = vpack.c.b16 %v996, %v988
  %v1125 = vpack.c.b16 %v997, %v989
  %v1126 = vpack.c.b16 %v998, %v990
  %v1127 = vpack.c.b16 %v999, %v991
  %v1128 = vpack.c.b16 %v1000, %v992
  %v1129 = vpack.c.b16 %v1001, %v993
  %1258 = vmatpush.bf16.msra.mxu0 %v1058
  %1259 = vmatpush.bf16.msra.mxu0 %v1050
  %1260 = vmatpush.bf16.msra.mxu0 %v1042
  %1261 = vmatpush.bf16.msra.mxu0 %v1034
  %1262 = vmatpush.bf16.msra.mxu0 %v1026
  %1263 = vmatpush.bf16.msra.mxu0 %v1018
  %1264 = vmatpush.bf16.msra.mxu0 %v1010
  %1265 = vmatpush.bf16.msra.mxu0 %v1002
  %1266 = vmatmul.bf16.gmra.mxu0 %v617
  %v1267 = vpop.f32.mrf.mxu0
  %v1268 = vadd.f32 0.0, %v1267
  %v1269 = vpop.f32.mrf.mxu0
  %1270 = vdwg.mxu0
  %1271 = vmatpush.bf16.msra.mxu0 %v1122
  %1272 = vmatpush.bf16.msra.mxu0 %v1114
  %1273 = vmatpush.bf16.msra.mxu0 %v1106
  %1274 = vmatpush.bf16.msra.mxu0 %v1098
  %1275 = vmatpush.bf16.msra.mxu0 %v1090
  %1276 = vmatpush.bf16.msra.mxu0 %v1082
  %1277 = vmatpush.bf16.msra.mxu0 %v1074
  %1278 = vmatpush.bf16.msra.mxu0 %v1066
  %1279 = vmatmul.bf16.gmra.mxu0 %v617
  %v1280 = vpop.f32.mrf.mxu0
  %v1281 = vadd.f32 %v1268, %v1280
  %v1282 = vpop.f32.mrf.mxu0
  %1283 = vdwg.mxu0
  %1284 = vmatpush.bf16.msra.mxu0 %v1059
  %1285 = vmatpush.bf16.msra.mxu0 %v1051
  %1286 = vmatpush.bf16.msra.mxu0 %v1043
  %1287 = vmatpush.bf16.msra.mxu0 %v1035
  %1288 = vmatpush.bf16.msra.mxu0 %v1027
  %1289 = vmatpush.bf16.msra.mxu0 %v1019
  %1290 = vmatpush.bf16.msra.mxu0 %v1011
  %1291 = vmatpush.bf16.msra.mxu0 %v1003
  %1292 = vmatmul.bf16.gmra.mxu0 %v617
  %v1293 = vpop.f32.mrf.mxu0
  %v1294 = vadd.f32 0.0, %v1293
  %v1295 = vpop.f32.mrf.mxu0
  %1296 = vdwg.mxu0
  %1297 = vmatpush.bf16.msra.mxu0 %v1123
  %1298 = vmatpush.bf16.msra.mxu0 %v1115
  %1299 = vmatpush.bf16.msra.mxu0 %v1107
  %1300 = vmatpush.bf16.msra.mxu0 %v1099
  %1301 = vmatpush.bf16.msra.mxu0 %v1091
  %1302 = vmatpush.bf16.msra.mxu0 %v1083
  %1303 = vmatpush.bf16.msra.mxu0 %v1075
  %1304 = vmatpush.bf16.msra.mxu0 %v1067
  %1305 = vmatmul.bf16.gmra.mxu0 %v617
  %v1306 = vpop.f32.mrf.mxu0
  %v1307 = vadd.f32 %v1294, %v1306
  %v1308 = vpop.f32.mrf.mxu0
  %1309 = vdwg.mxu0
  %1310 = vmatpush.bf16.msra.mxu0 %v1060
  %1311 = vmatpush.bf16.msra.mxu0 %v1052
  %1312 = vmatpush.bf16.msra.mxu0 %v1044
  %1313 = vmatpush.bf16.msra.mxu0 %v1036
  %1314 = vmatpush.bf16.msra.mxu0 %v1028
  %1315 = vmatpush.bf16.msra.mxu0 %v1020
  %1316 = vmatpush.bf16.msra.mxu0 %v1012
  %1317 = vmatpush.bf16.msra.mxu0 %v1004
  %1318 = vmatmul.bf16.gmra.mxu0 %v617
  %v1319 = vpop.f32.mrf.mxu0
  %v1320 = vadd.f32 0.0, %v1319
  %v1321 = vpop.f32.mrf.mxu0
  %1322 = vdwg.mxu0
  %1323 = vmatpush.bf16.msra.mxu0 %v1124
  %1324 = vmatpush.bf16.msra.mxu0 %v1116
  %1325 = vmatpush.bf16.msra.mxu0 %v1108
  %1326 = vmatpush.bf16.msra.mxu0 %v1100
  %1327 = vmatpush.bf16.msra.mxu0 %v1092
  %1328 = vmatpush.bf16.msra.mxu0 %v1084
  %1329 = vmatpush.bf16.msra.mxu0 %v1076
  %1330 = vmatpush.bf16.msra.mxu0 %v1068
  %1331 = vmatmul.bf16.gmra.mxu0 %v617
  %v1332 = vpop.f32.mrf.mxu0
  %v1333 = vadd.f32 %v1320, %v1332
  %v1334 = vpop.f32.mrf.mxu0
  %1335 = vdwg.mxu0
  %1336 = vmatpush.bf16.msra.mxu0 %v1061
  %1337 = vmatpush.bf16.msra.mxu0 %v1053
  %1338 = vmatpush.bf16.msra.mxu0 %v1045
  %1339 = vmatpush.bf16.msra.mxu0 %v1037
  %1340 = vmatpush.bf16.msra.mxu0 %v1029
  %1341 = vmatpush.bf16.msra.mxu0 %v1021
  %1342 = vmatpush.bf16.msra.mxu0 %v1013
  %1343 = vmatpush.bf16.msra.mxu0 %v1005
  %1344 = vmatmul.bf16.gmra.mxu0 %v617
  %v1345 = vpop.f32.mrf.mxu0
  %v1346 = vadd.f32 0.0, %v1345
  %v1347 = vpop.f32.mrf.mxu0
  %1348 = vdwg.mxu0
  %1349 = vmatpush.bf16.msra.mxu0 %v1125
  %1350 = vmatpush.bf16.msra.mxu0 %v1117
  %1351 = vmatpush.bf16.msra.mxu0 %v1109
  %1352 = vmatpush.bf16.msra.mxu0 %v1101
  %1353 = vmatpush.bf16.msra.mxu0 %v1093
  %1354 = vmatpush.bf16.msra.mxu0 %v1085
  %1355 = vmatpush.bf16.msra.mxu0 %v1077
  %1356 = vmatpush.bf16.msra.mxu0 %v1069
  %1357 = vmatmul.bf16.gmra.mxu0 %v617
  %v1358 = vpop.f32.mrf.mxu0
  %v1359 = vadd.f32 %v1346, %v1358
  %v1360 = vpop.f32.mrf.mxu0
  %1361 = vdwg.mxu0
  %1362 = vmatpush.bf16.msra.mxu0 %v1062
  %1363 = vmatpush.bf16.msra.mxu0 %v1054
  %1364 = vmatpush.bf16.msra.mxu0 %v1046
  %1365 = vmatpush.bf16.msra.mxu0 %v1038
  %1366 = vmatpush.bf16.msra.mxu0 %v1030
  %1367 = vmatpush.bf16.msra.mxu0 %v1022
  %1368 = vmatpush.bf16.msra.mxu0 %v1014
  %1369 = vmatpush.bf16.msra.mxu0 %v1006
  %1370 = vmatmul.bf16.gmra.mxu0 %v617
  %v1371 = vpop.f32.mrf.mxu0
  %v1372 = vadd.f32 0.0, %v1371
  %v1373 = vpop.f32.mrf.mxu0
  %1374 = vdwg.mxu0
  %1375 = vmatpush.bf16.msra.mxu0 %v1126
  %1376 = vmatpush.bf16.msra.mxu0 %v1118
  %1377 = vmatpush.bf16.msra.mxu0 %v1110
  %1378 = vmatpush.bf16.msra.mxu0 %v1102
  %1379 = vmatpush.bf16.msra.mxu0 %v1094
  %1380 = vmatpush.bf16.msra.mxu0 %v1086
  %1381 = vmatpush.bf16.msra.mxu0 %v1078
  %1382 = vmatpush.bf16.msra.mxu0 %v1070
  %1383 = vmatmul.bf16.gmra.mxu0 %v617
  %v1384 = vpop.f32.mrf.mxu0
  %v1385 = vadd.f32 %v1372, %v1384
  %v1386 = vpop.f32.mrf.mxu0
  %1387 = vdwg.mxu0
  %1388 = vmatpush.bf16.msra.mxu0 %v1063
  %1389 = vmatpush.bf16.msra.mxu0 %v1055
  %1390 = vmatpush.bf16.msra.mxu0 %v1047
  %1391 = vmatpush.bf16.msra.mxu0 %v1039
  %1392 = vmatpush.bf16.msra.mxu0 %v1031
  %1393 = vmatpush.bf16.msra.mxu0 %v1023
  %1394 = vmatpush.bf16.msra.mxu0 %v1015
  %1395 = vmatpush.bf16.msra.mxu0 %v1007
  %1396 = vmatmul.bf16.gmra.mxu0 %v617
  %v1397 = vpop.f32.mrf.mxu0
  %v1398 = vadd.f32 0.0, %v1397
  %v1399 = vpop.f32.mrf.mxu0
  %1400 = vdwg.mxu0
  %1401 = vmatpush.bf16.msra.mxu0 %v1127
  %1402 = vmatpush.bf16.msra.mxu0 %v1119
  %1403 = vmatpush.bf16.msra.mxu0 %v1111
  %1404 = vmatpush.bf16.msra.mxu0 %v1103
  %1405 = vmatpush.bf16.msra.mxu0 %v1095
  %1406 = vmatpush.bf16.msra.mxu0 %v1087
  %1407 = vmatpush.bf16.msra.mxu0 %v1079
  %1408 = vmatpush.bf16.msra.mxu0 %v1071
  %1409 = vmatmul.bf16.gmra.mxu0 %v617
  %v1410 = vpop.f32.mrf.mxu0
  %v1411 = vadd.f32 %v1398, %v1410
  %v1412 = vpop.f32.mrf.mxu0
  %1413 = vdwg.mxu0
  %1414 = vmatpush.bf16.msra.mxu0 %v1064
  %1415 = vmatpush.bf16.msra.mxu0 %v1056
  %1416 = vmatpush.bf16.msra.mxu0 %v1048
  %1417 = vmatpush.bf16.msra.mxu0 %v1040
  %1418 = vmatpush.bf16.msra.mxu0 %v1032
  %1419 = vmatpush.bf16.msra.mxu0 %v1024
  %1420 = vmatpush.bf16.msra.mxu0 %v1016
  %1421 = vmatpush.bf16.msra.mxu0 %v1008
  %1422 = vmatmul.bf16.gmra.mxu0 %v617
  %v1423 = vpop.f32.mrf.mxu0
  %v1424 = vadd.f32 0.0, %v1423
  %v1425 = vpop.f32.mrf.mxu0
  %1426 = vdwg.mxu0
  %1427 = vmatpush.bf16.msra.mxu0 %v1128
  %1428 = vmatpush.bf16.msra.mxu0 %v1120
  %1429 = vmatpush.bf16.msra.mxu0 %v1112
  %1430 = vmatpush.bf16.msra.mxu0 %v1104
  %1431 = vmatpush.bf16.msra.mxu0 %v1096
  %1432 = vmatpush.bf16.msra.mxu0 %v1088
  %1433 = vmatpush.bf16.msra.mxu0 %v1080
  %1434 = vmatpush.bf16.msra.mxu0 %v1072
  %1435 = vmatmul.bf16.gmra.mxu0 %v617
  %v1436 = vpop.f32.mrf.mxu0
  %v1437 = vadd.f32 %v1424, %v1436
  %v1438 = vpop.f32.mrf.mxu0
  %1439 = vdwg.mxu0
  %1440 = vmatpush.bf16.msra.mxu0 %v1065
  %1441 = vmatpush.bf16.msra.mxu0 %v1057
  %1442 = vmatpush.bf16.msra.mxu0 %v1049
  %1443 = vmatpush.bf16.msra.mxu0 %v1041
  %1444 = vmatpush.bf16.msra.mxu0 %v1033
  %1445 = vmatpush.bf16.msra.mxu0 %v1025
  %1446 = vmatpush.bf16.msra.mxu0 %v1017
  %1447 = vmatpush.bf16.msra.mxu0 %v1009
  %1448 = vmatmul.bf16.gmra.mxu0 %v617
  %v1449 = vpop.f32.mrf.mxu0
  %v1450 = vadd.f32 0.0, %v1449
  %v1451 = vpop.f32.mrf.mxu0
  %1452 = vdwg.mxu0
  %1453 = vmatpush.bf16.msra.mxu0 %v1129
  %1454 = vmatpush.bf16.msra.mxu0 %v1121
  %1455 = vmatpush.bf16.msra.mxu0 %v1113
  %1456 = vmatpush.bf16.msra.mxu0 %v1105
  %1457 = vmatpush.bf16.msra.mxu0 %v1097
  %1458 = vmatpush.bf16.msra.mxu0 %v1089
  %1459 = vmatpush.bf16.msra.mxu0 %v1081
  %1460 = vmatpush.bf16.msra.mxu0 %v1073
  %1461 = vmatmul.bf16.gmra.mxu0 %v617
  %v1462 = vpop.f32.mrf.mxu0
  %v1463 = vadd.f32 %v1450, %v1462
  %v1464 = vpop.f32.mrf.mxu0
  %1465 = vdwg.mxu0
  %v1466 = vadd.f32 %v267, %v1281
  %v1467 = vadd.f32 %v296, %v1307
  %v1468 = vadd.f32 %v325, %v1333
  %v1469 = vadd.f32 %v354, %v1359
  %v1470 = vadd.f32 %v400, %v1385
  %v1471 = vadd.f32 %v429, %v1411
  %v1472 = vadd.f32 %v458, %v1437
  %v1473 = vadd.f32 %v487, %v1463
  %v1474 = vxor.u32 %v1466, 2147483648
  %v1475 = vmul.f32 %v1474, 1.442695
  %v1476 = vpow.pop %v1475
  %v1477 = vadd.f32 %v1476, 1.0
  %v1478 = vrcp.pop %v1477
  %v1479 = vmul.f32 %v1477, %v1478
  %v1480 = vsub.f32 1.0, %v1479
  %v1481 = vmul.f32 %v1478, %v1480
  %v1482 = vadd.f32 %v1478, %v1481
  %vm1483 = vweird.f32 %v1477
  %vm1484 = vweird.f32 %v1478
  %vm1485 = vmor %vm1483, %vm1484
  %v1486 = vsel %vm1485, %v1478, %v1482
  %v1487 = vand.u32 2147483647, %v1477
  %vm1488 = vcmp.eq.f32.partialorder %v1487, 8.507059e+37
  %v1489 = vand.u32 %v1477, 2147483648
  %v1490 = vor.u32 1.1754944e-38, %v1489
  %v1491 = vsel %vm1488, %v1490, %v1486
  %v1492 = vmul.f32 1.0, %v1491
  %v1493 = vxor.u32 %v1467, 2147483648
  %v1494 = vmul.f32 %v1493, 1.442695
  %v1495 = vpow.pop %v1494
  %v1496 = vadd.f32 %v1495, 1.0
  %v1497 = vrcp.pop %v1496
  %v1498 = vmul.f32 %v1496, %v1497
  %v1499 = vsub.f32 1.0, %v1498
  %v1500 = vmul.f32 %v1497, %v1499
  %v1501 = vadd.f32 %v1497, %v1500
  %vm1502 = vweird.f32 %v1496
  %vm1503 = vweird.f32 %v1497
  %vm1504 = vmor %vm1502, %vm1503
  %v1505 = vsel %vm1504, %v1497, %v1501
  %v1506 = vand.u32 2147483647, %v1496
  %vm1507 = vcmp.eq.f32.partialorder %v1506, 8.507059e+37
  %v1508 = vand.u32 %v1496, 2147483648
  %v1509 = vor.u32 1.1754944e-38, %v1508
  %v1510 = vsel %vm1507, %v1509, %v1505
  %v1511 = vmul.f32 1.0, %v1510
  %v1512 = vtanh.pop %v1468
  %v1513 = vxor.u32 %v1469, 2147483648
  %v1514 = vmul.f32 %v1513, 1.442695
  %v1515 = vpow.pop %v1514
  %v1516 = vadd.f32 %v1515, 1.0
  %v1517 = vrcp.pop %v1516
  %v1518 = vmul.f32 %v1516, %v1517
  %v1519 = vsub.f32 1.0, %v1518
  %v1520 = vmul.f32 %v1517, %v1519
  %v1521 = vadd.f32 %v1517, %v1520
  %vm1522 = vweird.f32 %v1516
  %vm1523 = vweird.f32 %v1517
  %vm1524 = vmor %vm1522, %vm1523
  %v1525 = vsel %vm1524, %v1517, %v1521
  %v1526 = vand.u32 2147483647, %v1516
  %vm1527 = vcmp.eq.f32.partialorder %v1526, 8.507059e+37
  %v1528 = vand.u32 %v1516, 2147483648
  %v1529 = vor.u32 1.1754944e-38, %v1528
  %v1530 = vsel %vm1527, %v1529, %v1525
  %v1531 = vmul.f32 1.0, %v1530
  %v1532 = vmul.f32 %v1511, 0.0
  %v1533 = vmul.f32 %v1492, %v1512
  %v1534 = vadd.f32 %v1532, %v1533
  %v1535 = vtanh.pop %v1534
  %v1536 = vmul.f32 %v1531, %v1535
  %v1537 = vxor.u32 %v1470, 2147483648
  %v1538 = vmul.f32 %v1537, 1.442695
  %v1539 = vpow.pop %v1538
  %v1540 = vadd.f32 %v1539, 1.0
  %v1541 = vrcp.pop %v1540
  %v1542 = vmul.f32 %v1540, %v1541
  %v1543 = vsub.f32 1.0, %v1542
  %v1544 = vmul.f32 %v1541, %v1543
  %v1545 = vadd.f32 %v1541, %v1544
  %vm1546 = vweird.f32 %v1540
  %vm1547 = vweird.f32 %v1541
  %vm1548 = vmor %vm1546, %vm1547
  %v1549 = vsel %vm1548, %v1541, %v1545
  %v1550 = vand.u32 2147483647, %v1540
  %vm1551 = vcmp.eq.f32.partialorder %v1550, 8.507059e+37
  %v1552 = vand.u32 %v1540, 2147483648
  %v1553 = vor.u32 1.1754944e-38, %v1552
  %v1554 = vsel %vm1551, %v1553, %v1549
  %v1555 = vmul.f32 1.0, %v1554
  %v1556 = vxor.u32 %v1471, 2147483648
  %v1557 = vmul.f32 %v1556, 1.442695
  %v1558 = vpow.pop %v1557
  %v1559 = vadd.f32 %v1558, 1.0
  %v1560 = vrcp.pop %v1559
  %v1561 = vmul.f32 %v1559, %v1560
  %v1562 = vsub.f32 1.0, %v1561
  %v1563 = vmul.f32 %v1560, %v1562
  %v1564 = vadd.f32 %v1560, %v1563
  %vm1565 = vweird.f32 %v1559
  %vm1566 = vweird.f32 %v1560
  %vm1567 = vmor %vm1565, %vm1566
  %v1568 = vsel %vm1567, %v1560, %v1564
  %v1569 = vand.u32 2147483647, %v1559
  %vm1570 = vcmp.eq.f32.partialorder %v1569, 8.507059e+37
  %v1571 = vand.u32 %v1559, 2147483648
  %v1572 = vor.u32 1.1754944e-38, %v1571
  %v1573 = vsel %vm1570, %v1572, %v1568
  %v1574 = vmul.f32 1.0, %v1573
  %v1575 = vtanh.pop %v1472
  %v1576 = vxor.u32 %v1473, 2147483648
  %v1577 = vmul.f32 %v1576, 1.442695
  %v1578 = vpow.pop %v1577
  %v1579 = vadd.f32 %v1578, 1.0
  %v1580 = vrcp.pop %v1579
  %v1581 = vmul.f32 %v1579, %v1580
  %v1582 = vsub.f32 1.0, %v1581
  %v1583 = vmul.f32 %v1580, %v1582
  %v1584 = vadd.f32 %v1580, %v1583
  %vm1585 = vweird.f32 %v1579
  %vm1586 = vweird.f32 %v1580
  %vm1587 = vmor %vm1585, %vm1586
  %v1588 = vsel %vm1587, %v1580, %v1584
  %v1589 = vand.u32 2147483647, %v1579
  %vm1590 = vcmp.eq.f32.partialorder %v1589, 8.507059e+37
  %v1591 = vand.u32 %v1579, 2147483648
  %v1592 = vor.u32 1.1754944e-38, %v1591
  %v1593 = vsel %vm1590, %v1592, %v1588
  %v1594 = vmul.f32 1.0, %v1593
  %v1595 = vmul.f32 %v1574, 0.0
  %v1596 = vmul.f32 %v1555, %v1575
  %v1597 = vadd.f32 %v1595, %v1596
  %v1598 = vtanh.pop %v1597
  %v1599 = vmul.f32 %v1594, %v1598
  %1600 = vst [vmem:[#allocation2] sm:$0xff] %v1536
  %1601 = vst [vmem:[#allocation2 + $0x78] sm:$0xff] %v1599
  %v1602 = vpack.c.bf16 %v1536, %v1536
  %v1603 = vpack.c.bf16 %v1599, %v1599
  %1604 = vmatpush.bf16.msra.mxu0 %v1058
  %1605 = vmatpush.bf16.msra.mxu0 %v1050
  %1606 = vmatpush.bf16.msra.mxu0 %v1042
  %1607 = vmatpush.bf16.msra.mxu0 %v1034
  %1608 = vmatpush.bf16.msra.mxu0 %v1026
  %1609 = vmatpush.bf16.msra.mxu0 %v1018
  %1610 = vmatpush.bf16.msra.mxu0 %v1010
  %1611 = vmatpush.bf16.msra.mxu0 %v1002
  %1612 = vmatmul.bf16.gmra.mxu0 %v1602
  %v1613 = vpop.f32.mrf.mxu0
  %v1614 = vadd.f32 0.0, %v1613
  %v1615 = vpop.f32.mrf.mxu0
  %1616 = vdwg.mxu0
  %1617 = vmatpush.bf16.msra.mxu0 %v1122
  %1618 = vmatpush.bf16.msra.mxu0 %v1114
  %1619 = vmatpush.bf16.msra.mxu0 %v1106
  %1620 = vmatpush.bf16.msra.mxu0 %v1098
  %1621 = vmatpush.bf16.msra.mxu0 %v1090
  %1622 = vmatpush.bf16.msra.mxu0 %v1082
  %1623 = vmatpush.bf16.msra.mxu0 %v1074
  %1624 = vmatpush.bf16.msra.mxu0 %v1066
  %1625 = vmatmul.bf16.gmra.mxu0 %v1603
  %v1626 = vpop.f32.mrf.mxu0
  %v1627 = vadd.f32 %v1614, %v1626
  %v1628 = vpop.f32.mrf.mxu0
  %1629 = vdwg.mxu0
  %1630 = vmatpush.bf16.msra.mxu0 %v1059
  %1631 = vmatpush.bf16.msra.mxu0 %v1051
  %1632 = vmatpush.bf16.msra.mxu0 %v1043
  %1633 = vmatpush.bf16.msra.mxu0 %v1035
  %1634 = vmatpush.bf16.msra.mxu0 %v1027
  %1635 = vmatpush.bf16.msra.mxu0 %v1019
  %1636 = vmatpush.bf16.msra.mxu0 %v1011
  %1637 = vmatpush.bf16.msra.mxu0 %v1003
  %1638 = vmatmul.bf16.gmra.mxu0 %v1602
  %v1639 = vpop.f32.mrf.mxu0
  %v1640 = vadd.f32 0.0, %v1639
  %v1641 = vpop.f32.mrf.mxu0
  %1642 = vdwg.mxu0
  %1643 = vmatpush.bf16.msra.mxu0 %v1123
  %1644 = vmatpush.bf16.msra.mxu0 %v1115
  %1645 = vmatpush.bf16.msra.mxu0 %v1107
  %1646 = vmatpush.bf16.msra.mxu0 %v1099
  %1647 = vmatpush.bf16.msra.mxu0 %v1091
  %1648 = vmatpush.bf16.msra.mxu0 %v1083
  %1649 = vmatpush.bf16.msra.mxu0 %v1075
  %1650 = vmatpush.bf16.msra.mxu0 %v1067
  %1651 = vmatmul.bf16.gmra.mxu0 %v1603
  %v1652 = vpop.f32.mrf.mxu0
  %v1653 = vadd.f32 %v1640, %v1652
  %v1654 = vpop.f32.mrf.mxu0
  %1655 = vdwg.mxu0
  %1656 = vmatpush.bf16.msra.mxu0 %v1060
  %1657 = vmatpush.bf16.msra.mxu0 %v1052
  %1658 = vmatpush.bf16.msra.mxu0 %v1044
  %1659 = vmatpush.bf16.msra.mxu0 %v1036
  %1660 = vmatpush.bf16.msra.mxu0 %v1028
  %1661 = vmatpush.bf16.msra.mxu0 %v1020
  %1662 = vmatpush.bf16.msra.mxu0 %v1012
  %1663 = vmatpush.bf16.msra.mxu0 %v1004
  %1664 = vmatmul.bf16.gmra.mxu0 %v1602
  %v1665 = vpop.f32.mrf.mxu0
  %v1666 = vadd.f32 0.0, %v1665
  %v1667 = vpop.f32.mrf.mxu0
  %1668 = vdwg.mxu0
  %1669 = vmatpush.bf16.msra.mxu0 %v1124
  %1670 = vmatpush.bf16.msra.mxu0 %v1116
  %1671 = vmatpush.bf16.msra.mxu0 %v1108
  %1672 = vmatpush.bf16.msra.mxu0 %v1100
  %1673 = vmatpush.bf16.msra.mxu0 %v1092
  %1674 = vmatpush.bf16.msra.mxu0 %v1084
  %1675 = vmatpush.bf16.msra.mxu0 %v1076
  %1676 = vmatpush.bf16.msra.mxu0 %v1068
  %1677 = vmatmul.bf16.gmra.mxu0 %v1603
  %v1678 = vpop.f32.mrf.mxu0
  %v1679 = vadd.f32 %v1666, %v1678
  %v1680 = vpop.f32.mrf.mxu0
  %1681 = vdwg.mxu0
  %1682 = vmatpush.bf16.msra.mxu0 %v1061
  %1683 = vmatpush.bf16.msra.mxu0 %v1053
  %1684 = vmatpush.bf16.msra.mxu0 %v1045
  %1685 = vmatpush.bf16.msra.mxu0 %v1037
  %1686 = vmatpush.bf16.msra.mxu0 %v1029
  %1687 = vmatpush.bf16.msra.mxu0 %v1021
  %1688 = vmatpush.bf16.msra.mxu0 %v1013
  %1689 = vmatpush.bf16.msra.mxu0 %v1005
  %1690 = vmatmul.bf16.gmra.mxu0 %v1602
  %v1691 = vpop.f32.mrf.mxu0
  %v1692 = vadd.f32 0.0, %v1691
  %v1693 = vpop.f32.mrf.mxu0
  %1694 = vdwg.mxu0
  %1695 = vmatpush.bf16.msra.mxu0 %v1125
  %1696 = vmatpush.bf16.msra.mxu0 %v1117
  %1697 = vmatpush.bf16.msra.mxu0 %v1109
  %1698 = vmatpush.bf16.msra.mxu0 %v1101
  %1699 = vmatpush.bf16.msra.mxu0 %v1093
  %1700 = vmatpush.bf16.msra.mxu0 %v1085
  %1701 = vmatpush.bf16.msra.mxu0 %v1077
  %1702 = vmatpush.bf16.msra.mxu0 %v1069
  %1703 = vmatmul.bf16.gmra.mxu0 %v1603
  %v1704 = vpop.f32.mrf.mxu0
  %v1705 = vadd.f32 %v1692, %v1704
  %v1706 = vpop.f32.mrf.mxu0
  %1707 = vdwg.mxu0
  %1708 = vmatpush.bf16.msra.mxu0 %v1062
  %1709 = vmatpush.bf16.msra.mxu0 %v1054
  %1710 = vmatpush.bf16.msra.mxu0 %v1046
  %1711 = vmatpush.bf16.msra.mxu0 %v1038
  %1712 = vmatpush.bf16.msra.mxu0 %v1030
  %1713 = vmatpush.bf16.msra.mxu0 %v1022
  %1714 = vmatpush.bf16.msra.mxu0 %v1014
  %1715 = vmatpush.bf16.msra.mxu0 %v1006
  %1716 = vmatmul.bf16.gmra.mxu0 %v1602
  %v1717 = vpop.f32.mrf.mxu0
  %v1718 = vadd.f32 0.0, %v1717
  %v1719 = vpop.f32.mrf.mxu0
  %1720 = vdwg.mxu0
  %1721 = vmatpush.bf16.msra.mxu0 %v1126
  %1722 = vmatpush.bf16.msra.mxu0 %v1118
  %1723 = vmatpush.bf16.msra.mxu0 %v1110
  %1724 = vmatpush.bf16.msra.mxu0 %v1102
  %1725 = vmatpush.bf16.msra.mxu0 %v1094
  %1726 = vmatpush.bf16.msra.mxu0 %v1086
  %1727 = vmatpush.bf16.msra.mxu0 %v1078
  %1728 = vmatpush.bf16.msra.mxu0 %v1070
  %1729 = vmatmul.bf16.gmra.mxu0 %v1603
  %v1730 = vpop.f32.mrf.mxu0
  %v1731 = vadd.f32 %v1718, %v1730
  %v1732 = vpop.f32.mrf.mxu0
  %1733 = vdwg.mxu0
  %1734 = vmatpush.bf16.msra.mxu0 %v1063
  %1735 = vmatpush.bf16.msra.mxu0 %v1055
  %1736 = vmatpush.bf16.msra.mxu0 %v1047
  %1737 = vmatpush.bf16.msra.mxu0 %v1039
  %1738 = vmatpush.bf16.msra.mxu0 %v1031
  %1739 = vmatpush.bf16.msra.mxu0 %v1023
  %1740 = vmatpush.bf16.msra.mxu0 %v1015
  %1741 = vmatpush.bf16.msra.mxu0 %v1007
  %1742 = vmatmul.bf16.gmra.mxu0 %v1602
  %v1743 = vpop.f32.mrf.mxu0
  %v1744 = vadd.f32 0.0, %v1743
  %v1745 = vpop.f32.mrf.mxu0
  %1746 = vdwg.mxu0
  %1747 = vmatpush.bf16.msra.mxu0 %v1127
  %1748 = vmatpush.bf16.msra.mxu0 %v1119
  %1749 = vmatpush.bf16.msra.mxu0 %v1111
  %1750 = vmatpush.bf16.msra.mxu0 %v1103
  %1751 = vmatpush.bf16.msra.mxu0 %v1095
  %1752 = vmatpush.bf16.msra.mxu0 %v1087
  %1753 = vmatpush.bf16.msra.mxu0 %v1079
  %1754 = vmatpush.bf16.msra.mxu0 %v1071
  %1755 = vmatmul.bf16.gmra.mxu0 %v1603
  %v1756 = vpop.f32.mrf.mxu0
  %v1757 = vadd.f32 %v1744, %v1756
  %v1758 = vpop.f32.mrf.mxu0
  %1759 = vdwg.mxu0
  %1760 = vmatpush.bf16.msra.mxu0 %v1064
  %1761 = vmatpush.bf16.msra.mxu0 %v1056
  %1762 = vmatpush.bf16.msra.mxu0 %v1048
  %1763 = vmatpush.bf16.msra.mxu0 %v1040
  %1764 = vmatpush.bf16.msra.mxu0 %v1032
  %1765 = vmatpush.bf16.msra.mxu0 %v1024
  %1766 = vmatpush.bf16.msra.mxu0 %v1016
  %1767 = vmatpush.bf16.msra.mxu0 %v1008
  %1768 = vmatmul.bf16.gmra.mxu0 %v1602
  %v1769 = vpop.f32.mrf.mxu0
  %v1770 = vadd.f32 0.0, %v1769
  %v1771 = vpop.f32.mrf.mxu0
  %1772 = vdwg.mxu0
  %1773 = vmatpush.bf16.msra.mxu0 %v1128
  %1774 = vmatpush.bf16.msra.mxu0 %v1120
  %1775 = vmatpush.bf16.msra.mxu0 %v1112
  %1776 = vmatpush.bf16.msra.mxu0 %v1104
  %1777 = vmatpush.bf16.msra.mxu0 %v1096
  %1778 = vmatpush.bf16.msra.mxu0 %v1088
  %1779 = vmatpush.bf16.msra.mxu0 %v1080
  %1780 = vmatpush.bf16.msra.mxu0 %v1072
  %1781 = vmatmul.bf16.gmra.mxu0 %v1603
  %v1782 = vpop.f32.mrf.mxu0
  %v1783 = vadd.f32 %v1770, %v1782
  %v1784 = vpop.f32.mrf.mxu0
  %1785 = vdwg.mxu0
  %1786 = vmatpush.bf16.msra.mxu0 %v1065
  %1787 = vmatpush.bf16.msra.mxu0 %v1057
  %1788 = vmatpush.bf16.msra.mxu0 %v1049
  %1789 = vmatpush.bf16.msra.mxu0 %v1041
  %1790 = vmatpush.bf16.msra.mxu0 %v1033
  %1791 = vmatpush.bf16.msra.mxu0 %v1025
  %1792 = vmatpush.bf16.msra.mxu0 %v1017
  %1793 = vmatpush.bf16.msra.mxu0 %v1009
  %1794 = vmatmul.bf16.gmra.mxu0 %v1602
  %v1795 = vpop.f32.mrf.mxu0
  %v1796 = vadd.f32 0.0, %v1795
  %v1797 = vpop.f32.mrf.mxu0
  %1798 = vdwg.mxu0
  %1799 = vmatpush.bf16.msra.mxu0 %v1129
  %1800 = vmatpush.bf16.msra.mxu0 %v1121
  %1801 = vmatpush.bf16.msra.mxu0 %v1113
  %1802 = vmatpush.bf16.msra.mxu0 %v1105
  %1803 = vmatpush.bf16.msra.mxu0 %v1097
  %1804 = vmatpush.bf16.msra.mxu0 %v1089
  %1805 = vmatpush.bf16.msra.mxu0 %v1081
  %1806 = vmatpush.bf16.msra.mxu0 %v1073
  %1807 = vmatmul.bf16.gmra.mxu0 %v1603
  %v1808 = vpop.f32.mrf.mxu0
  %v1809 = vadd.f32 %v1796, %v1808
  %v1810 = vpop.f32.mrf.mxu0
  %1811 = vdwg.mxu0
  %v1812 = vadd.f32 %v269, %v1627
  %v1813 = vadd.f32 %v298, %v1653
  %v1814 = vadd.f32 %v327, %v1679
  %v1815 = vadd.f32 %v356, %v1705
  %v1816 = vadd.f32 %v398, %v1731
  %v1817 = vadd.f32 %v427, %v1757
  %v1818 = vadd.f32 %v456, %v1783
  %v1819 = vadd.f32 %v485, %v1809
  %v1820 = vxor.u32 %v1812, 2147483648
  %v1821 = vmul.f32 %v1820, 1.442695
  %v1822 = vpow.pop %v1821
  %v1823 = vadd.f32 %v1822, 1.0
  %v1824 = vrcp.pop %v1823
  %v1825 = vmul.f32 %v1823, %v1824
  %v1826 = vsub.f32 1.0, %v1825
  %v1827 = vmul.f32 %v1824, %v1826
  %v1828 = vadd.f32 %v1824, %v1827
  %vm1829 = vweird.f32 %v1823
  %vm1830 = vweird.f32 %v1824
  %vm1831 = vmor %vm1829, %vm1830
  %v1832 = vsel %vm1831, %v1824, %v1828
  %v1833 = vand.u32 2147483647, %v1823
  %vm1834 = vcmp.eq.f32.partialorder %v1833, 8.507059e+37
  %v1835 = vand.u32 %v1823, 2147483648
  %v1836 = vor.u32 1.1754944e-38, %v1835
  %v1837 = vsel %vm1834, %v1836, %v1832
  %v1838 = vmul.f32 1.0, %v1837
  %v1839 = vxor.u32 %v1813, 2147483648
  %v1840 = vmul.f32 %v1839, 1.442695
  %v1841 = vpow.pop %v1840
  %v1842 = vadd.f32 %v1841, 1.0
  %v1843 = vrcp.pop %v1842
  %v1844 = vmul.f32 %v1842, %v1843
  %v1845 = vsub.f32 1.0, %v1844
  %v1846 = vmul.f32 %v1843, %v1845
  %v1847 = vadd.f32 %v1843, %v1846
  %vm1848 = vweird.f32 %v1842
  %vm1849 = vweird.f32 %v1843
  %vm1850 = vmor %vm1848, %vm1849
  %v1851 = vsel %vm1850, %v1843, %v1847
  %v1852 = vand.u32 2147483647, %v1842
  %vm1853 = vcmp.eq.f32.partialorder %v1852, 8.507059e+37
  %v1854 = vand.u32 %v1842, 2147483648
  %v1855 = vor.u32 1.1754944e-38, %v1854
  %v1856 = vsel %vm1853, %v1855, %v1851
  %v1857 = vmul.f32 1.0, %v1856
  %v1858 = vtanh.pop %v1814
  %v1859 = vxor.u32 %v1815, 2147483648
  %v1860 = vmul.f32 %v1859, 1.442695
  %v1861 = vpow.pop %v1860
  %v1862 = vadd.f32 %v1861, 1.0
  %v1863 = vrcp.pop %v1862
  %v1864 = vmul.f32 %v1862, %v1863
  %v1865 = vsub.f32 1.0, %v1864
  %v1866 = vmul.f32 %v1863, %v1865
  %v1867 = vadd.f32 %v1863, %v1866
  %vm1868 = vweird.f32 %v1862
  %vm1869 = vweird.f32 %v1863
  %vm1870 = vmor %vm1868, %vm1869
  %v1871 = vsel %vm1870, %v1863, %v1867
  %v1872 = vand.u32 2147483647, %v1862
  %vm1873 = vcmp.eq.f32.partialorder %v1872, 8.507059e+37
  %v1874 = vand.u32 %v1862, 2147483648
  %v1875 = vor.u32 1.1754944e-38, %v1874
  %v1876 = vsel %vm1873, %v1875, %v1871
  %v1877 = vmul.f32 1.0, %v1876
  %v1878 = vmul.f32 %v1857, %v1534
  %v1879 = vmul.f32 %v1838, %v1858
  %v1880 = vadd.f32 %v1878, %v1879
  %v1881 = vtanh.pop %v1880
  %v1882 = vmul.f32 %v1877, %v1881
  %v1883 = vxor.u32 %v1816, 2147483648
  %v1884 = vmul.f32 %v1883, 1.442695
  %v1885 = vpow.pop %v1884
  %v1886 = vadd.f32 %v1885, 1.0
  %v1887 = vrcp.pop %v1886
  %v1888 = vmul.f32 %v1886, %v1887
  %v1889 = vsub.f32 1.0, %v1888
  %v1890 = vmul.f32 %v1887, %v1889
  %v1891 = vadd.f32 %v1887, %v1890
  %vm1892 = vweird.f32 %v1886
  %vm1893 = vweird.f32 %v1887
  %vm1894 = vmor %vm1892, %vm1893
  %v1895 = vsel %vm1894, %v1887, %v1891
  %v1896 = vand.u32 2147483647, %v1886
  %vm1897 = vcmp.eq.f32.partialorder %v1896, 8.507059e+37
  %v1898 = vand.u32 %v1886, 2147483648
  %v1899 = vor.u32 1.1754944e-38, %v1898
  %v1900 = vsel %vm1897, %v1899, %v1895
  %v1901 = vmul.f32 1.0, %v1900
  %v1902 = vxor.u32 %v1817, 2147483648
  %v1903 = vmul.f32 %v1902, 1.442695
  %v1904 = vpow.pop %v1903
  %v1905 = vadd.f32 %v1904, 1.0
  %v1906 = vrcp.pop %v1905
  %v1907 = vmul.f32 %v1905, %v1906
  %v1908 = vsub.f32 1.0, %v1907
  %v1909 = vmul.f32 %v1906, %v1908
  %v1910 = vadd.f32 %v1906, %v1909
  %vm1911 = vweird.f32 %v1905
  %vm1912 = vweird.f32 %v1906
  %vm1913 = vmor %vm1911, %vm1912
  %v1914 = vsel %vm1913, %v1906, %v1910
  %v1915 = vand.u32 2147483647, %v1905
  %vm1916 = vcmp.eq.f32.partialorder %v1915, 8.507059e+37
  %v1917 = vand.u32 %v1905, 2147483648
  %v1918 = vor.u32 1.1754944e-38, %v1917
  %v1919 = vsel %vm1916, %v1918, %v1914
  %v1920 = vmul.f32 1.0, %v1919
  %v1921 = vtanh.pop %v1818
  %v1922 = vxor.u32 %v1819, 2147483648
  %v1923 = vmul.f32 %v1922, 1.442695
  %v1924 = vpow.pop %v1923
  %v1925 = vadd.f32 %v1924, 1.0
  %v1926 = vrcp.pop %v1925
  %v1927 = vmul.f32 %v1925, %v1926
  %v1928 = vsub.f32 1.0, %v1927
  %v1929 = vmul.f32 %v1926, %v1928
  %v1930 = vadd.f32 %v1926, %v1929
  %vm1931 = vweird.f32 %v1925
  %vm1932 = vweird.f32 %v1926
  %vm1933 = vmor %vm1931, %vm1932
  %v1934 = vsel %vm1933, %v1926, %v1930
  %v1935 = vand.u32 2147483647, %v1925
  %vm1936 = vcmp.eq.f32.partialorder %v1935, 8.507059e+37
  %v1937 = vand.u32 %v1925, 2147483648
  %v1938 = vor.u32 1.1754944e-38, %v1937
  %v1939 = vsel %vm1936, %v1938, %v1934
  %v1940 = vmul.f32 1.0, %v1939
  %v1941 = vmul.f32 %v1920, %v1597
  %v1942 = vmul.f32 %v1901, %v1921
  %v1943 = vadd.f32 %v1941, %v1942
  %v1944 = vtanh.pop %v1943
  %v1945 = vmul.f32 %v1940, %v1944
  %1946 = vst [vmem:[#allocation2 + $0x10] sm:$0xff] %v1882
  %1947 = vst [vmem:[#allocation2 + $0x68] sm:$0xff] %v1945
  %v1948 = vpack.c.bf16 %v1882, %v1882
  %v1949 = vpack.c.bf16 %v1945, %v1945
  %1950 = vmatpush.bf16.msra.mxu0 %v1058
  %1951 = vmatpush.bf16.msra.mxu0 %v1050
  %1952 = vmatpush.bf16.msra.mxu0 %v1042
  %1953 = vmatpush.bf16.msra.mxu0 %v1034
  %1954 = vmatpush.bf16.msra.mxu0 %v1026
  %1955 = vmatpush.bf16.msra.mxu0 %v1018
  %1956 = vmatpush.bf16.msra.mxu0 %v1010
  %1957 = vmatpush.bf16.msra.mxu0 %v1002
  %1958 = vmatmul.bf16.gmra.mxu0 %v1948
  %v1959 = vpop.f32.mrf.mxu0
  %v1960 = vadd.f32 0.0, %v1959
  %v1961 = vpop.f32.mrf.mxu0
  %1962 = vdwg.mxu0
  %1963 = vmatpush.bf16.msra.mxu0 %v1122
  %1964 = vmatpush.bf16.msra.mxu0 %v1114
  %1965 = vmatpush.bf16.msra.mxu0 %v1106
  %1966 = vmatpush.bf16.msra.mxu0 %v1098
  %1967 = vmatpush.bf16.msra.mxu0 %v1090
  %1968 = vmatpush.bf16.msra.mxu0 %v1082
  %1969 = vmatpush.bf16.msra.mxu0 %v1074
  %1970 = vmatpush.bf16.msra.mxu0 %v1066
  %1971 = vmatmul.bf16.gmra.mxu0 %v1949
  %v1972 = vpop.f32.mrf.mxu0
  %v1973 = vadd.f32 %v1960, %v1972
  %v1974 = vpop.f32.mrf.mxu0
  %1975 = vdwg.mxu0
  %1976 = vmatpush.bf16.msra.mxu0 %v1059
  %1977 = vmatpush.bf16.msra.mxu0 %v1051
  %1978 = vmatpush.bf16.msra.mxu0 %v1043
  %1979 = vmatpush.bf16.msra.mxu0 %v1035
  %1980 = vmatpush.bf16.msra.mxu0 %v1027
  %1981 = vmatpush.bf16.msra.mxu0 %v1019
  %1982 = vmatpush.bf16.msra.mxu0 %v1011
  %1983 = vmatpush.bf16.msra.mxu0 %v1003
  %1984 = vmatmul.bf16.gmra.mxu0 %v1948
  %v1985 = vpop.f32.mrf.mxu0
  %v1986 = vadd.f32 0.0, %v1985
  %v1987 = vpop.f32.mrf.mxu0
  %1988 = vdwg.mxu0
  %1989 = vmatpush.bf16.msra.mxu0 %v1123
  %1990 = vmatpush.bf16.msra.mxu0 %v1115
  %1991 = vmatpush.bf16.msra.mxu0 %v1107
  %1992 = vmatpush.bf16.msra.mxu0 %v1099
  %1993 = vmatpush.bf16.msra.mxu0 %v1091
  %1994 = vmatpush.bf16.msra.mxu0 %v1083
  %1995 = vmatpush.bf16.msra.mxu0 %v1075
  %1996 = vmatpush.bf16.msra.mxu0 %v1067
  %1997 = vmatmul.bf16.gmra.mxu0 %v1949
  %v1998 = vpop.f32.mrf.mxu0
  %v1999 = vadd.f32 %v1986, %v1998
  %v2000 = vpop.f32.mrf.mxu0
  %2001 = vdwg.mxu0
  %2002 = vmatpush.bf16.msra.mxu0 %v1060
  %2003 = vmatpush.bf16.msra.mxu0 %v1052
  %2004 = vmatpush.bf16.msra.mxu0 %v1044
  %2005 = vmatpush.bf16.msra.mxu0 %v1036
  %2006 = vmatpush.bf16.msra.mxu0 %v1028
  %2007 = vmatpush.bf16.msra.mxu0 %v1020
  %2008 = vmatpush.bf16.msra.mxu0 %v1012
  %2009 = vmatpush.bf16.msra.mxu0 %v1004
  %2010 = vmatmul.bf16.gmra.mxu0 %v1948
  %v2011 = vpop.f32.mrf.mxu0
  %v2012 = vadd.f32 0.0, %v2011
  %v2013 = vpop.f32.mrf.mxu0
  %2014 = vdwg.mxu0
  %2015 = vmatpush.bf16.msra.mxu0 %v1124
  %2016 = vmatpush.bf16.msra.mxu0 %v1116
  %2017 = vmatpush.bf16.msra.mxu0 %v1108
  %2018 = vmatpush.bf16.msra.mxu0 %v1100
  %2019 = vmatpush.bf16.msra.mxu0 %v1092
  %2020 = vmatpush.bf16.msra.mxu0 %v1084
  %2021 = vmatpush.bf16.msra.mxu0 %v1076
  %2022 = vmatpush.bf16.msra.mxu0 %v1068
  %2023 = vmatmul.bf16.gmra.mxu0 %v1949
  %v2024 = vpop.f32.mrf.mxu0
  %v2025 = vadd.f32 %v2012, %v2024
  %v2026 = vpop.f32.mrf.mxu0
  %2027 = vdwg.mxu0
  %2028 = vmatpush.bf16.msra.mxu0 %v1061
  %2029 = vmatpush.bf16.msra.mxu0 %v1053
  %2030 = vmatpush.bf16.msra.mxu0 %v1045
  %2031 = vmatpush.bf16.msra.mxu0 %v1037
  %2032 = vmatpush.bf16.msra.mxu0 %v1029
  %2033 = vmatpush.bf16.msra.mxu0 %v1021
  %2034 = vmatpush.bf16.msra.mxu0 %v1013
  %2035 = vmatpush.bf16.msra.mxu0 %v1005
  %2036 = vmatmul.bf16.gmra.mxu0 %v1948
  %v2037 = vpop.f32.mrf.mxu0
  %v2038 = vadd.f32 0.0, %v2037
  %v2039 = vpop.f32.mrf.mxu0
  %2040 = vdwg.mxu0
  %2041 = vmatpush.bf16.msra.mxu0 %v1125
  %2042 = vmatpush.bf16.msra.mxu0 %v1117
  %2043 = vmatpush.bf16.msra.mxu0 %v1109
  %2044 = vmatpush.bf16.msra.mxu0 %v1101
  %2045 = vmatpush.bf16.msra.mxu0 %v1093
  %2046 = vmatpush.bf16.msra.mxu0 %v1085
  %2047 = vmatpush.bf16.msra.mxu0 %v1077
  %2048 = vmatpush.bf16.msra.mxu0 %v1069
  %2049 = vmatmul.bf16.gmra.mxu0 %v1949
  %v2050 = vpop.f32.mrf.mxu0
  %v2051 = vadd.f32 %v2038, %v2050
  %v2052 = vpop.f32.mrf.mxu0
  %2053 = vdwg.mxu0
  %2054 = vmatpush.bf16.msra.mxu0 %v1062
  %2055 = vmatpush.bf16.msra.mxu0 %v1054
  %2056 = vmatpush.bf16.msra.mxu0 %v1046
  %2057 = vmatpush.bf16.msra.mxu0 %v1038
  %2058 = vmatpush.bf16.msra.mxu0 %v1030
  %2059 = vmatpush.bf16.msra.mxu0 %v1022
  %2060 = vmatpush.bf16.msra.mxu0 %v1014
  %2061 = vmatpush.bf16.msra.mxu0 %v1006
  %2062 = vmatmul.bf16.gmra.mxu0 %v1948
  %v2063 = vpop.f32.mrf.mxu0
  %v2064 = vadd.f32 0.0, %v2063
  %v2065 = vpop.f32.mrf.mxu0
  %2066 = vdwg.mxu0
  %2067 = vmatpush.bf16.msra.mxu0 %v1126
  %2068 = vmatpush.bf16.msra.mxu0 %v1118
  %2069 = vmatpush.bf16.msra.mxu0 %v1110
  %2070 = vmatpush.bf16.msra.mxu0 %v1102
  %2071 = vmatpush.bf16.msra.mxu0 %v1094
  %2072 = vmatpush.bf16.msra.mxu0 %v1086
  %2073 = vmatpush.bf16.msra.mxu0 %v1078
  %2074 = vmatpush.bf16.msra.mxu0 %v1070
  %2075 = vmatmul.bf16.gmra.mxu0 %v1949
  %v2076 = vpop.f32.mrf.mxu0
  %v2077 = vadd.f32 %v2064, %v2076
  %v2078 = vpop.f32.mrf.mxu0
  %2079 = vdwg.mxu0
  %2080 = vmatpush.bf16.msra.mxu0 %v1063
  %2081 = vmatpush.bf16.msra.mxu0 %v1055
  %2082 = vmatpush.bf16.msra.mxu0 %v1047
  %2083 = vmatpush.bf16.msra.mxu0 %v1039
  %2084 = vmatpush.bf16.msra.mxu0 %v1031
  %2085 = vmatpush.bf16.msra.mxu0 %v1023
  %2086 = vmatpush.bf16.msra.mxu0 %v1015
  %2087 = vmatpush.bf16.msra.mxu0 %v1007
  %2088 = vmatmul.bf16.gmra.mxu0 %v1948
  %v2089 = vpop.f32.mrf.mxu0
  %v2090 = vadd.f32 0.0, %v2089
  %v2091 = vpop.f32.mrf.mxu0
  %2092 = vdwg.mxu0
  %2093 = vmatpush.bf16.msra.mxu0 %v1127
  %2094 = vmatpush.bf16.msra.mxu0 %v1119
  %2095 = vmatpush.bf16.msra.mxu0 %v1111
  %2096 = vmatpush.bf16.msra.mxu0 %v1103
  %2097 = vmatpush.bf16.msra.mxu0 %v1095
  %2098 = vmatpush.bf16.msra.mxu0 %v1087
  %2099 = vmatpush.bf16.msra.mxu0 %v1079
  %2100 = vmatpush.bf16.msra.mxu0 %v1071
  %2101 = vmatmul.bf16.gmra.mxu0 %v1949
  %v2102 = vpop.f32.mrf.mxu0
  %v2103 = vadd.f32 %v2090, %v2102
  %v2104 = vpop.f32.mrf.mxu0
  %2105 = vdwg.mxu0
  %2106 = vmatpush.bf16.msra.mxu0 %v1064
  %2107 = vmatpush.bf16.msra.mxu0 %v1056
  %2108 = vmatpush.bf16.msra.mxu0 %v1048
  %2109 = vmatpush.bf16.msra.mxu0 %v1040
  %2110 = vmatpush.bf16.msra.mxu0 %v1032
  %2111 = vmatpush.bf16.msra.mxu0 %v1024
  %2112 = vmatpush.bf16.msra.mxu0 %v1016
  %2113 = vmatpush.bf16.msra.mxu0 %v1008
  %2114 = vmatmul.bf16.gmra.mxu0 %v1948
  %v2115 = vpop.f32.mrf.mxu0
  %v2116 = vadd.f32 0.0, %v2115
  %v2117 = vpop.f32.mrf.mxu0
  %2118 = vdwg.mxu0
  %2119 = vmatpush.bf16.msra.mxu0 %v1128
  %2120 = vmatpush.bf16.msra.mxu0 %v1120
  %2121 = vmatpush.bf16.msra.mxu0 %v1112
  %2122 = vmatpush.bf16.msra.mxu0 %v1104
  %2123 = vmatpush.bf16.msra.mxu0 %v1096
  %2124 = vmatpush.bf16.msra.mxu0 %v1088
  %2125 = vmatpush.bf16.msra.mxu0 %v1080
  %2126 = vmatpush.bf16.msra.mxu0 %v1072
  %2127 = vmatmul.bf16.gmra.mxu0 %v1949
  %v2128 = vpop.f32.mrf.mxu0
  %v2129 = vadd.f32 %v2116, %v2128
  %v2130 = vpop.f32.mrf.mxu0
  %2131 = vdwg.mxu0
  %2132 = vmatpush.bf16.msra.mxu0 %v1065
  %2133 = vmatpush.bf16.msra.mxu0 %v1057
  %2134 = vmatpush.bf16.msra.mxu0 %v1049
  %2135 = vmatpush.bf16.msra.mxu0 %v1041
  %2136 = vmatpush.bf16.msra.mxu0 %v1033
  %2137 = vmatpush.bf16.msra.mxu0 %v1025
  %2138 = vmatpush.bf16.msra.mxu0 %v1017
  %2139 = vmatpush.bf16.msra.mxu0 %v1009
  %2140 = vmatmul.bf16.gmra.mxu0 %v1948
  %v2141 = vpop.f32.mrf.mxu0
  %v2142 = vadd.f32 0.0, %v2141
  %v2143 = vpop.f32.mrf.mxu0
  %2144 = vdwg.mxu0
  %2145 = vmatpush.bf16.msra.mxu0 %v1129
  %2146 = vmatpush.bf16.msra.mxu0 %v1121
  %2147 = vmatpush.bf16.msra.mxu0 %v1113
  %2148 = vmatpush.bf16.msra.mxu0 %v1105
  %2149 = vmatpush.bf16.msra.mxu0 %v1097
  %2150 = vmatpush.bf16.msra.mxu0 %v1089
  %2151 = vmatpush.bf16.msra.mxu0 %v1081
  %2152 = vmatpush.bf16.msra.mxu0 %v1073
  %2153 = vmatmul.bf16.gmra.mxu0 %v1949
  %v2154 = vpop.f32.mrf.mxu0
  %v2155 = vadd.f32 %v2142, %v2154
  %v2156 = vpop.f32.mrf.mxu0
  %2157 = vdwg.mxu0
  %v2158 = vadd.f32 %v272, %v1973
  %v2159 = vadd.f32 %v301, %v1999
  %v2160 = vadd.f32 %v330, %v2025
  %v2161 = vadd.f32 %v359, %v2051
  %v2162 = vadd.f32 %v395, %v2077
  %v2163 = vadd.f32 %v424, %v2103
  %v2164 = vadd.f32 %v453, %v2129
  %v2165 = vadd.f32 %v482, %v2155
  %v2166 = vxor.u32 %v2158, 2147483648
  %v2167 = vmul.f32 %v2166, 1.442695
  %v2168 = vpow.pop %v2167
  %v2169 = vadd.f32 %v2168, 1.0
  %v2170 = vrcp.pop %v2169
  %v2171 = vmul.f32 %v2169, %v2170
  %v2172 = vsub.f32 1.0, %v2171
  %v2173 = vmul.f32 %v2170, %v2172
  %v2174 = vadd.f32 %v2170, %v2173
  %vm2175 = vweird.f32 %v2169
  %vm2176 = vweird.f32 %v2170
  %vm2177 = vmor %vm2175, %vm2176
  %v2178 = vsel %vm2177, %v2170, %v2174
  %v2179 = vand.u32 2147483647, %v2169
  %vm2180 = vcmp.eq.f32.partialorder %v2179, 8.507059e+37
  %v2181 = vand.u32 %v2169, 2147483648
  %v2182 = vor.u32 1.1754944e-38, %v2181
  %v2183 = vsel %vm2180, %v2182, %v2178
  %v2184 = vmul.f32 1.0, %v2183
  %v2185 = vxor.u32 %v2159, 2147483648
  %v2186 = vmul.f32 %v2185, 1.442695
  %v2187 = vpow.pop %v2186
  %v2188 = vadd.f32 %v2187, 1.0
  %v2189 = vrcp.pop %v2188
  %v2190 = vmul.f32 %v2188, %v2189
  %v2191 = vsub.f32 1.0, %v2190
  %v2192 = vmul.f32 %v2189, %v2191
  %v2193 = vadd.f32 %v2189, %v2192
  %vm2194 = vweird.f32 %v2188
  %vm2195 = vweird.f32 %v2189
  %vm2196 = vmor %vm2194, %vm2195
  %v2197 = vsel %vm2196, %v2189, %v2193
  %v2198 = vand.u32 2147483647, %v2188
  %vm2199 = vcmp.eq.f32.partialorder %v2198, 8.507059e+37
  %v2200 = vand.u32 %v2188, 2147483648
  %v2201 = vor.u32 1.1754944e-38, %v2200
  %v2202 = vsel %vm2199, %v2201, %v2197
  %v2203 = vmul.f32 1.0, %v2202
  %v2204 = vtanh.pop %v2160
  %v2205 = vxor.u32 %v2161, 2147483648
  %v2206 = vmul.f32 %v2205, 1.442695
  %v2207 = vpow.pop %v2206
  %v2208 = vadd.f32 %v2207, 1.0
  %v2209 = vrcp.pop %v2208
  %v2210 = vmul.f32 %v2208, %v2209
  %v2211 = vsub.f32 1.0, %v2210
  %v2212 = vmul.f32 %v2209, %v2211
  %v2213 = vadd.f32 %v2209, %v2212
  %vm2214 = vweird.f32 %v2208
  %vm2215 = vweird.f32 %v2209
  %vm2216 = vmor %vm2214, %vm2215
  %v2217 = vsel %vm2216, %v2209, %v2213
  %v2218 = vand.u32 2147483647, %v2208
  %vm2219 = vcmp.eq.f32.partialorder %v2218, 8.507059e+37
  %v2220 = vand.u32 %v2208, 2147483648
  %v2221 = vor.u32 1.1754944e-38, %v2220
  %v2222 = vsel %vm2219, %v2221, %v2217
  %v2223 = vmul.f32 1.0, %v2222
  %v2224 = vmul.f32 %v2203, %v1880
  %v2225 = vmul.f32 %v2184, %v2204
  %v2226 = vadd.f32 %v2224, %v2225
  %v2227 = vtanh.pop %v2226
  %v2228 = vmul.f32 %v2223, %v2227
  %v2229 = vxor.u32 %v2162, 2147483648
  %v2230 = vmul.f32 %v2229, 1.442695
  %v2231 = vpow.pop %v2230
  %v2232 = vadd.f32 %v2231, 1.0
  %v2233 = vrcp.pop %v2232
  %v2234 = vmul.f32 %v2232, %v2233
  %v2235 = vsub.f32 1.0, %v2234
  %v2236 = vmul.f32 %v2233, %v2235
  %v2237 = vadd.f32 %v2233, %v2236
  %vm2238 = vweird.f32 %v2232
  %vm2239 = vweird.f32 %v2233
  %vm2240 = vmor %vm2238, %vm2239
  %v2241 = vsel %vm2240, %v2233, %v2237
  %v2242 = vand.u32 2147483647, %v2232
  %vm2243 = vcmp.eq.f32.partialorder %v2242, 8.507059e+37
  %v2244 = vand.u32 %v2232, 2147483648
  %v2245 = vor.u32 1.1754944e-38, %v2244
  %v2246 = vsel %vm2243, %v2245, %v2241
  %v2247 = vmul.f32 1.0, %v2246
  %v2248 = vxor.u32 %v2163, 2147483648
  %v2249 = vmul.f32 %v2248, 1.442695
  %v2250 = vpow.pop %v2249
  %v2251 = vadd.f32 %v2250, 1.0
  %v2252 = vrcp.pop %v2251
  %v2253 = vmul.f32 %v2251, %v2252
  %v2254 = vsub.f32 1.0, %v2253
  %v2255 = vmul.f32 %v2252, %v2254
  %v2256 = vadd.f32 %v2252, %v2255
  %vm2257 = vweird.f32 %v2251
  %vm2258 = vweird.f32 %v2252
  %vm2259 = vmor %vm2257, %vm2258
  %v2260 = vsel %vm2259, %v2252, %v2256
  %v2261 = vand.u32 2147483647, %v2251
  %vm2262 = vcmp.eq.f32.partialorder %v2261, 8.507059e+37
  %v2263 = vand.u32 %v2251, 2147483648
  %v2264 = vor.u32 1.1754944e-38, %v2263
  %v2265 = vsel %vm2262, %v2264, %v2260
  %v2266 = vmul.f32 1.0, %v2265
  %v2267 = vtanh.pop %v2164
  %v2268 = vxor.u32 %v2165, 2147483648
  %v2269 = vmul.f32 %v2268, 1.442695
  %v2270 = vpow.pop %v2269
  %v2271 = vadd.f32 %v2270, 1.0
  %v2272 = vrcp.pop %v2271
  %v2273 = vmul.f32 %v2271, %v2272
  %v2274 = vsub.f32 1.0, %v2273
  %v2275 = vmul.f32 %v2272, %v2274
  %v2276 = vadd.f32 %v2272, %v2275
  %vm2277 = vweird.f32 %v2271
  %vm2278 = vweird.f32 %v2272
  %vm2279 = vmor %vm2277, %vm2278
  %v2280 = vsel %vm2279, %v2272, %v2276
  %v2281 = vand.u32 2147483647, %v2271
  %vm2282 = vcmp.eq.f32.partialorder %v2281, 8.507059e+37
  %v2283 = vand.u32 %v2271, 2147483648
  %v2284 = vor.u32 1.1754944e-38, %v2283
  %v2285 = vsel %vm2282, %v2284, %v2280
  %v2286 = vmul.f32 1.0, %v2285
  %v2287 = vmul.f32 %v2266, %v1943
  %v2288 = vmul.f32 %v2247, %v2267
  %v2289 = vadd.f32 %v2287, %v2288
  %v2290 = vtanh.pop %v2289
  %v2291 = vmul.f32 %v2286, %v2290
  %2292 = vst [vmem:[#allocation2 + $0x20] sm:$0xff] %v2228
  %2293 = vst [vmem:[#allocation2 + $0x58] sm:$0xff] %v2291
  %v2294 = vpack.c.bf16 %v2228, %v2228
  %v2295 = vpack.c.bf16 %v2291, %v2291
  %2296 = vmatpush.bf16.msra.mxu0 %v1058
  %2297 = vmatpush.bf16.msra.mxu0 %v1050
  %2298 = vmatpush.bf16.msra.mxu0 %v1042
  %2299 = vmatpush.bf16.msra.mxu0 %v1034
  %2300 = vmatpush.bf16.msra.mxu0 %v1026
  %2301 = vmatpush.bf16.msra.mxu0 %v1018
  %2302 = vmatpush.bf16.msra.mxu0 %v1010
  %2303 = vmatpush.bf16.msra.mxu0 %v1002
  %2304 = vmatmul.bf16.gmra.mxu0 %v2294
  %v2305 = vpop.f32.mrf.mxu0
  %v2306 = vadd.f32 0.0, %v2305
  %v2307 = vpop.f32.mrf.mxu0
  %2308 = vdwg.mxu0
  %2309 = vmatpush.bf16.msra.mxu0 %v1122
  %2310 = vmatpush.bf16.msra.mxu0 %v1114
  %2311 = vmatpush.bf16.msra.mxu0 %v1106
  %2312 = vmatpush.bf16.msra.mxu0 %v1098
  %2313 = vmatpush.bf16.msra.mxu0 %v1090
  %2314 = vmatpush.bf16.msra.mxu0 %v1082
  %2315 = vmatpush.bf16.msra.mxu0 %v1074
  %2316 = vmatpush.bf16.msra.mxu0 %v1066
  %2317 = vmatmul.bf16.gmra.mxu0 %v2295
  %v2318 = vpop.f32.mrf.mxu0
  %v2319 = vadd.f32 %v2306, %v2318
  %v2320 = vpop.f32.mrf.mxu0
  %2321 = vdwg.mxu0
  %2322 = vmatpush.bf16.msra.mxu0 %v1059
  %2323 = vmatpush.bf16.msra.mxu0 %v1051
  %2324 = vmatpush.bf16.msra.mxu0 %v1043
  %2325 = vmatpush.bf16.msra.mxu0 %v1035
  %2326 = vmatpush.bf16.msra.mxu0 %v1027
  %2327 = vmatpush.bf16.msra.mxu0 %v1019
  %2328 = vmatpush.bf16.msra.mxu0 %v1011
  %2329 = vmatpush.bf16.msra.mxu0 %v1003
  %2330 = vmatmul.bf16.gmra.mxu0 %v2294
  %v2331 = vpop.f32.mrf.mxu0
  %v2332 = vadd.f32 0.0, %v2331
  %v2333 = vpop.f32.mrf.mxu0
  %2334 = vdwg.mxu0
  %2335 = vmatpush.bf16.msra.mxu0 %v1123
  %2336 = vmatpush.bf16.msra.mxu0 %v1115
  %2337 = vmatpush.bf16.msra.mxu0 %v1107
  %2338 = vmatpush.bf16.msra.mxu0 %v1099
  %2339 = vmatpush.bf16.msra.mxu0 %v1091
  %2340 = vmatpush.bf16.msra.mxu0 %v1083
  %2341 = vmatpush.bf16.msra.mxu0 %v1075
  %2342 = vmatpush.bf16.msra.mxu0 %v1067
  %2343 = vmatmul.bf16.gmra.mxu0 %v2295
  %v2344 = vpop.f32.mrf.mxu0
  %v2345 = vadd.f32 %v2332, %v2344
  %v2346 = vpop.f32.mrf.mxu0
  %2347 = vdwg.mxu0
  %2348 = vmatpush.bf16.msra.mxu0 %v1060
  %2349 = vmatpush.bf16.msra.mxu0 %v1052
  %2350 = vmatpush.bf16.msra.mxu0 %v1044
  %2351 = vmatpush.bf16.msra.mxu0 %v1036
  %2352 = vmatpush.bf16.msra.mxu0 %v1028
  %2353 = vmatpush.bf16.msra.mxu0 %v1020
  %2354 = vmatpush.bf16.msra.mxu0 %v1012
  %2355 = vmatpush.bf16.msra.mxu0 %v1004
  %2356 = vmatmul.bf16.gmra.mxu0 %v2294
  %v2357 = vpop.f32.mrf.mxu0
  %v2358 = vadd.f32 0.0, %v2357
  %v2359 = vpop.f32.mrf.mxu0
  %2360 = vdwg.mxu0
  %2361 = vmatpush.bf16.msra.mxu0 %v1124
  %2362 = vmatpush.bf16.msra.mxu0 %v1116
  %2363 = vmatpush.bf16.msra.mxu0 %v1108
  %2364 = vmatpush.bf16.msra.mxu0 %v1100
  %2365 = vmatpush.bf16.msra.mxu0 %v1092
  %2366 = vmatpush.bf16.msra.mxu0 %v1084
  %2367 = vmatpush.bf16.msra.mxu0 %v1076
  %2368 = vmatpush.bf16.msra.mxu0 %v1068
  %2369 = vmatmul.bf16.gmra.mxu0 %v2295
  %v2370 = vpop.f32.mrf.mxu0
  %v2371 = vadd.f32 %v2358, %v2370
  %v2372 = vpop.f32.mrf.mxu0
  %2373 = vdwg.mxu0
  %2374 = vmatpush.bf16.msra.mxu0 %v1061
  %2375 = vmatpush.bf16.msra.mxu0 %v1053
  %2376 = vmatpush.bf16.msra.mxu0 %v1045
  %2377 = vmatpush.bf16.msra.mxu0 %v1037
  %2378 = vmatpush.bf16.msra.mxu0 %v1029
  %2379 = vmatpush.bf16.msra.mxu0 %v1021
  %2380 = vmatpush.bf16.msra.mxu0 %v1013
  %2381 = vmatpush.bf16.msra.mxu0 %v1005
  %2382 = vmatmul.bf16.gmra.mxu0 %v2294
  %v2383 = vpop.f32.mrf.mxu0
  %v2384 = vadd.f32 0.0, %v2383
  %v2385 = vpop.f32.mrf.mxu0
  %2386 = vdwg.mxu0
  %2387 = vmatpush.bf16.msra.mxu0 %v1125
  %2388 = vmatpush.bf16.msra.mxu0 %v1117
  %2389 = vmatpush.bf16.msra.mxu0 %v1109
  %2390 = vmatpush.bf16.msra.mxu0 %v1101
  %2391 = vmatpush.bf16.msra.mxu0 %v1093
  %2392 = vmatpush.bf16.msra.mxu0 %v1085
  %2393 = vmatpush.bf16.msra.mxu0 %v1077
  %2394 = vmatpush.bf16.msra.mxu0 %v1069
  %2395 = vmatmul.bf16.gmra.mxu0 %v2295
  %v2396 = vpop.f32.mrf.mxu0
  %v2397 = vadd.f32 %v2384, %v2396
  %v2398 = vpop.f32.mrf.mxu0
  %2399 = vdwg.mxu0
  %2400 = vmatpush.bf16.msra.mxu0 %v1062
  %2401 = vmatpush.bf16.msra.mxu0 %v1054
  %2402 = vmatpush.bf16.msra.mxu0 %v1046
  %2403 = vmatpush.bf16.msra.mxu0 %v1038
  %2404 = vmatpush.bf16.msra.mxu0 %v1030
  %2405 = vmatpush.bf16.msra.mxu0 %v1022
  %2406 = vmatpush.bf16.msra.mxu0 %v1014
  %2407 = vmatpush.bf16.msra.mxu0 %v1006
  %2408 = vmatmul.bf16.gmra.mxu0 %v2294
  %v2409 = vpop.f32.mrf.mxu0
  %v2410 = vadd.f32 0.0, %v2409
  %v2411 = vpop.f32.mrf.mxu0
  %2412 = vdwg.mxu0
  %2413 = vmatpush.bf16.msra.mxu0 %v1126
  %2414 = vmatpush.bf16.msra.mxu0 %v1118
  %2415 = vmatpush.bf16.msra.mxu0 %v1110
  %2416 = vmatpush.bf16.msra.mxu0 %v1102
  %2417 = vmatpush.bf16.msra.mxu0 %v1094
  %2418 = vmatpush.bf16.msra.mxu0 %v1086
  %2419 = vmatpush.bf16.msra.mxu0 %v1078
  %2420 = vmatpush.bf16.msra.mxu0 %v1070
  %2421 = vmatmul.bf16.gmra.mxu0 %v2295
  %v2422 = vpop.f32.mrf.mxu0
  %v2423 = vadd.f32 %v2410, %v2422
  %v2424 = vpop.f32.mrf.mxu0
  %2425 = vdwg.mxu0
  %2426 = vmatpush.bf16.msra.mxu0 %v1063
  %2427 = vmatpush.bf16.msra.mxu0 %v1055
  %2428 = vmatpush.bf16.msra.mxu0 %v1047
  %2429 = vmatpush.bf16.msra.mxu0 %v1039
  %2430 = vmatpush.bf16.msra.mxu0 %v1031
  %2431 = vmatpush.bf16.msra.mxu0 %v1023
  %2432 = vmatpush.bf16.msra.mxu0 %v1015
  %2433 = vmatpush.bf16.msra.mxu0 %v1007
  %2434 = vmatmul.bf16.gmra.mxu0 %v2294
  %v2435 = vpop.f32.mrf.mxu0
  %v2436 = vadd.f32 0.0, %v2435
  %v2437 = vpop.f32.mrf.mxu0
  %2438 = vdwg.mxu0
  %2439 = vmatpush.bf16.msra.mxu0 %v1127
  %2440 = vmatpush.bf16.msra.mxu0 %v1119
  %2441 = vmatpush.bf16.msra.mxu0 %v1111
  %2442 = vmatpush.bf16.msra.mxu0 %v1103
  %2443 = vmatpush.bf16.msra.mxu0 %v1095
  %2444 = vmatpush.bf16.msra.mxu0 %v1087
  %2445 = vmatpush.bf16.msra.mxu0 %v1079
  %2446 = vmatpush.bf16.msra.mxu0 %v1071
  %2447 = vmatmul.bf16.gmra.mxu0 %v2295
  %v2448 = vpop.f32.mrf.mxu0
  %v2449 = vadd.f32 %v2436, %v2448
  %v2450 = vpop.f32.mrf.mxu0
  %2451 = vdwg.mxu0
  %2452 = vmatpush.bf16.msra.mxu0 %v1064
  %2453 = vmatpush.bf16.msra.mxu0 %v1056
  %2454 = vmatpush.bf16.msra.mxu0 %v1048
  %2455 = vmatpush.bf16.msra.mxu0 %v1040
  %2456 = vmatpush.bf16.msra.mxu0 %v1032
  %2457 = vmatpush.bf16.msra.mxu0 %v1024
  %2458 = vmatpush.bf16.msra.mxu0 %v1016
  %2459 = vmatpush.bf16.msra.mxu0 %v1008
  %2460 = vmatmul.bf16.gmra.mxu0 %v2294
  %v2461 = vpop.f32.mrf.mxu0
  %v2462 = vadd.f32 0.0, %v2461
  %v2463 = vpop.f32.mrf.mxu0
  %2464 = vdwg.mxu0
  %2465 = vmatpush.bf16.msra.mxu0 %v1128
  %2466 = vmatpush.bf16.msra.mxu0 %v1120
  %2467 = vmatpush.bf16.msra.mxu0 %v1112
  %2468 = vmatpush.bf16.msra.mxu0 %v1104
  %2469 = vmatpush.bf16.msra.mxu0 %v1096
  %2470 = vmatpush.bf16.msra.mxu0 %v1088
  %2471 = vmatpush.bf16.msra.mxu0 %v1080
  %2472 = vmatpush.bf16.msra.mxu0 %v1072
  %2473 = vmatmul.bf16.gmra.mxu0 %v2295
  %v2474 = vpop.f32.mrf.mxu0
  %v2475 = vadd.f32 %v2462, %v2474
  %v2476 = vpop.f32.mrf.mxu0
  %2477 = vdwg.mxu0
  %2478 = vmatpush.bf16.msra.mxu0 %v1065
  %2479 = vmatpush.bf16.msra.mxu0 %v1057
  %2480 = vmatpush.bf16.msra.mxu0 %v1049
  %2481 = vmatpush.bf16.msra.mxu0 %v1041
  %2482 = vmatpush.bf16.msra.mxu0 %v1033
  %2483 = vmatpush.bf16.msra.mxu0 %v1025
  %2484 = vmatpush.bf16.msra.mxu0 %v1017
  %2485 = vmatpush.bf16.msra.mxu0 %v1009
  %2486 = vmatmul.bf16.gmra.mxu0 %v2294
  %v2487 = vpop.f32.mrf.mxu0
  %v2488 = vadd.f32 0.0, %v2487
  %v2489 = vpop.f32.mrf.mxu0
  %2490 = vdwg.mxu0
  %2491 = vmatpush.bf16.msra.mxu0 %v1129
  %2492 = vmatpush.bf16.msra.mxu0 %v1121
  %2493 = vmatpush.bf16.msra.mxu0 %v1113
  %2494 = vmatpush.bf16.msra.mxu0 %v1105
  %2495 = vmatpush.bf16.msra.mxu0 %v1097
  %2496 = vmatpush.bf16.msra.mxu0 %v1089
  %2497 = vmatpush.bf16.msra.mxu0 %v1081
  %2498 = vmatpush.bf16.msra.mxu0 %v1073
  %2499 = vmatmul.bf16.gmra.mxu0 %v2295
  %v2500 = vpop.f32.mrf.mxu0
  %v2501 = vadd.f32 %v2488, %v2500
  %v2502 = vpop.f32.mrf.mxu0
  %2503 = vdwg.mxu0
  %v2504 = vadd.f32 %v274, %v2319
  %v2505 = vadd.f32 %v303, %v2345
  %v2506 = vadd.f32 %v332, %v2371
  %v2507 = vadd.f32 %v361, %v2397
  %v2508 = vadd.f32 %v393, %v2423
  %v2509 = vadd.f32 %v422, %v2449
  %v2510 = vadd.f32 %v451, %v2475
  %v2511 = vadd.f32 %v480, %v2501
  %v2512 = vxor.u32 %v2504, 2147483648
  %v2513 = vmul.f32 %v2512, 1.442695
  %v2514 = vpow.pop %v2513
  %v2515 = vadd.f32 %v2514, 1.0
  %v2516 = vrcp.pop %v2515
  %v2517 = vmul.f32 %v2515, %v2516
  %v2518 = vsub.f32 1.0, %v2517
  %v2519 = vmul.f32 %v2516, %v2518
  %v2520 = vadd.f32 %v2516, %v2519
  %vm2521 = vweird.f32 %v2515
  %vm2522 = vweird.f32 %v2516
  %vm2523 = vmor %vm2521, %vm2522
  %v2524 = vsel %vm2523, %v2516, %v2520
  %v2525 = vand.u32 2147483647, %v2515
  %vm2526 = vcmp.eq.f32.partialorder %v2525, 8.507059e+37
  %v2527 = vand.u32 %v2515, 2147483648
  %v2528 = vor.u32 1.1754944e-38, %v2527
  %v2529 = vsel %vm2526, %v2528, %v2524
  %v2530 = vmul.f32 1.0, %v2529
  %v2531 = vxor.u32 %v2505, 2147483648
  %v2532 = vmul.f32 %v2531, 1.442695
  %v2533 = vpow.pop %v2532
  %v2534 = vadd.f32 %v2533, 1.0
  %v2535 = vrcp.pop %v2534
  %v2536 = vmul.f32 %v2534, %v2535
  %v2537 = vsub.f32 1.0, %v2536
  %v2538 = vmul.f32 %v2535, %v2537
  %v2539 = vadd.f32 %v2535, %v2538
  %vm2540 = vweird.f32 %v2534
  %vm2541 = vweird.f32 %v2535
  %vm2542 = vmor %vm2540, %vm2541
  %v2543 = vsel %vm2542, %v2535, %v2539
  %v2544 = vand.u32 2147483647, %v2534
  %vm2545 = vcmp.eq.f32.partialorder %v2544, 8.507059e+37
  %v2546 = vand.u32 %v2534, 2147483648
  %v2547 = vor.u32 1.1754944e-38, %v2546
  %v2548 = vsel %vm2545, %v2547, %v2543
  %v2549 = vmul.f32 1.0, %v2548
  %v2550 = vtanh.pop %v2506
  %v2551 = vxor.u32 %v2507, 2147483648
  %v2552 = vmul.f32 %v2551, 1.442695
  %v2553 = vpow.pop %v2552
  %v2554 = vadd.f32 %v2553, 1.0
  %v2555 = vrcp.pop %v2554
  %v2556 = vmul.f32 %v2554, %v2555
  %v2557 = vsub.f32 1.0, %v2556
  %v2558 = vmul.f32 %v2555, %v2557
  %v2559 = vadd.f32 %v2555, %v2558
  %vm2560 = vweird.f32 %v2554
  %vm2561 = vweird.f32 %v2555
  %vm2562 = vmor %vm2560, %vm2561
  %v2563 = vsel %vm2562, %v2555, %v2559
  %v2564 = vand.u32 2147483647, %v2554
  %vm2565 = vcmp.eq.f32.partialorder %v2564, 8.507059e+37
  %v2566 = vand.u32 %v2554, 2147483648
  %v2567 = vor.u32 1.1754944e-38, %v2566
  %v2568 = vsel %vm2565, %v2567, %v2563
  %v2569 = vmul.f32 1.0, %v2568
  %v2570 = vmul.f32 %v2549, %v2226
  %v2571 = vmul.f32 %v2530, %v2550
  %v2572 = vadd.f32 %v2570, %v2571
  %v2573 = vtanh.pop %v2572
  %v2574 = vmul.f32 %v2569, %v2573
  %v2575 = vxor.u32 %v2508, 2147483648
  %v2576 = vmul.f32 %v2575, 1.442695
  %v2577 = vpow.pop %v2576
  %v2578 = vadd.f32 %v2577, 1.0
  %v2579 = vrcp.pop %v2578
  %v2580 = vmul.f32 %v2578, %v2579
  %v2581 = vsub.f32 1.0, %v2580
  %v2582 = vmul.f32 %v2579, %v2581
  %v2583 = vadd.f32 %v2579, %v2582
  %vm2584 = vweird.f32 %v2578
  %vm2585 = vweird.f32 %v2579
  %vm2586 = vmor %vm2584, %vm2585
  %v2587 = vsel %vm2586, %v2579, %v2583
  %v2588 = vand.u32 2147483647, %v2578
  %vm2589 = vcmp.eq.f32.partialorder %v2588, 8.507059e+37
  %v2590 = vand.u32 %v2578, 2147483648
  %v2591 = vor.u32 1.1754944e-38, %v2590
  %v2592 = vsel %vm2589, %v2591, %v2587
  %v2593 = vmul.f32 1.0, %v2592
  %v2594 = vxor.u32 %v2509, 2147483648
  %v2595 = vmul.f32 %v2594, 1.442695
  %v2596 = vpow.pop %v2595
  %v2597 = vadd.f32 %v2596, 1.0
  %v2598 = vrcp.pop %v2597
  %v2599 = vmul.f32 %v2597, %v2598
  %v2600 = vsub.f32 1.0, %v2599
  %v2601 = vmul.f32 %v2598, %v2600
  %v2602 = vadd.f32 %v2598, %v2601
  %vm2603 = vweird.f32 %v2597
  %vm2604 = vweird.f32 %v2598
  %vm2605 = vmor %vm2603, %vm2604
  %v2606 = vsel %vm2605, %v2598, %v2602
  %v2607 = vand.u32 2147483647, %v2597
  %vm2608 = vcmp.eq.f32.partialorder %v2607, 8.507059e+37
  %v2609 = vand.u32 %v2597, 2147483648
  %v2610 = vor.u32 1.1754944e-38, %v2609
  %v2611 = vsel %vm2608, %v2610, %v2606
  %v2612 = vmul.f32 1.0, %v2611
  %v2613 = vtanh.pop %v2510
  %v2614 = vxor.u32 %v2511, 2147483648
  %v2615 = vmul.f32 %v2614, 1.442695
  %v2616 = vpow.pop %v2615
  %v2617 = vadd.f32 %v2616, 1.0
  %v2618 = vrcp.pop %v2617
  %v2619 = vmul.f32 %v2617, %v2618
  %v2620 = vsub.f32 1.0, %v2619
  %v2621 = vmul.f32 %v2618, %v2620
  %v2622 = vadd.f32 %v2618, %v2621
  %vm2623 = vweird.f32 %v2617
  %vm2624 = vweird.f32 %v2618
  %vm2625 = vmor %vm2623, %vm2624
  %v2626 = vsel %vm2625, %v2618, %v2622
  %v2627 = vand.u32 2147483647, %v2617
  %vm2628 = vcmp.eq.f32.partialorder %v2627, 8.507059e+37
  %v2629 = vand.u32 %v2617, 2147483648
  %v2630 = vor.u32 1.1754944e-38, %v2629
  %v2631 = vsel %vm2628, %v2630, %v2626
  %v2632 = vmul.f32 1.0, %v2631
  %v2633 = vmul.f32 %v2612, %v2289
  %v2634 = vmul.f32 %v2593, %v2613
  %v2635 = vadd.f32 %v2633, %v2634
  %v2636 = vtanh.pop %v2635
  %v2637 = vmul.f32 %v2632, %v2636
  %2638 = vst [vmem:[#allocation2 + $0x30] sm:$0xff] %v2574
  %2639 = vst [vmem:[#allocation2 + $0x48] sm:$0xff] %v2637
  %v2640 = vpack.c.bf16 %v2574, %v2574
  %v2641 = vpack.c.bf16 %v2637, %v2637
  %2642 = vmatpush.bf16.msra.mxu0 %v1058
  %2643 = vmatpush.bf16.msra.mxu0 %v1050
  %2644 = vmatpush.bf16.msra.mxu0 %v1042
  %2645 = vmatpush.bf16.msra.mxu0 %v1034
  %2646 = vmatpush.bf16.msra.mxu0 %v1026
  %2647 = vmatpush.bf16.msra.mxu0 %v1018
  %2648 = vmatpush.bf16.msra.mxu0 %v1010
  %2649 = vmatpush.bf16.msra.mxu0 %v1002
  %2650 = vmatmul.bf16.gmra.mxu0 %v2640
  %v2651 = vpop.f32.mrf.mxu0
  %v2652 = vadd.f32 0.0, %v2651
  %v2653 = vpop.f32.mrf.mxu0
  %2654 = vdwg.mxu0
  %2655 = vmatpush.bf16.msra.mxu0 %v1122
  %2656 = vmatpush.bf16.msra.mxu0 %v1114
  %2657 = vmatpush.bf16.msra.mxu0 %v1106
  %2658 = vmatpush.bf16.msra.mxu0 %v1098
  %2659 = vmatpush.bf16.msra.mxu0 %v1090
  %2660 = vmatpush.bf16.msra.mxu0 %v1082
  %2661 = vmatpush.bf16.msra.mxu0 %v1074
  %2662 = vmatpush.bf16.msra.mxu0 %v1066
  %2663 = vmatmul.bf16.gmra.mxu0 %v2641
  %v2664 = vpop.f32.mrf.mxu0
  %v2665 = vadd.f32 %v2652, %v2664
  %v2666 = vpop.f32.mrf.mxu0
  %2667 = vdwg.mxu0
  %2668 = vmatpush.bf16.msra.mxu0 %v1059
  %2669 = vmatpush.bf16.msra.mxu0 %v1051
  %2670 = vmatpush.bf16.msra.mxu0 %v1043
  %2671 = vmatpush.bf16.msra.mxu0 %v1035
  %2672 = vmatpush.bf16.msra.mxu0 %v1027
  %2673 = vmatpush.bf16.msra.mxu0 %v1019
  %2674 = vmatpush.bf16.msra.mxu0 %v1011
  %2675 = vmatpush.bf16.msra.mxu0 %v1003
  %2676 = vmatmul.bf16.gmra.mxu0 %v2640
  %v2677 = vpop.f32.mrf.mxu0
  %v2678 = vadd.f32 0.0, %v2677
  %v2679 = vpop.f32.mrf.mxu0
  %2680 = vdwg.mxu0
  %2681 = vmatpush.bf16.msra.mxu0 %v1123
  %2682 = vmatpush.bf16.msra.mxu0 %v1115
  %2683 = vmatpush.bf16.msra.mxu0 %v1107
  %2684 = vmatpush.bf16.msra.mxu0 %v1099
  %2685 = vmatpush.bf16.msra.mxu0 %v1091
  %2686 = vmatpush.bf16.msra.mxu0 %v1083
  %2687 = vmatpush.bf16.msra.mxu0 %v1075
  %2688 = vmatpush.bf16.msra.mxu0 %v1067
  %2689 = vmatmul.bf16.gmra.mxu0 %v2641
  %v2690 = vpop.f32.mrf.mxu0
  %v2691 = vadd.f32 %v2678, %v2690
  %v2692 = vpop.f32.mrf.mxu0
  %2693 = vdwg.mxu0
  %2694 = vmatpush.bf16.msra.mxu0 %v1060
  %2695 = vmatpush.bf16.msra.mxu0 %v1052
  %2696 = vmatpush.bf16.msra.mxu0 %v1044
  %2697 = vmatpush.bf16.msra.mxu0 %v1036
  %2698 = vmatpush.bf16.msra.mxu0 %v1028
  %2699 = vmatpush.bf16.msra.mxu0 %v1020
  %2700 = vmatpush.bf16.msra.mxu0 %v1012
  %2701 = vmatpush.bf16.msra.mxu0 %v1004
  %2702 = vmatmul.bf16.gmra.mxu0 %v2640
  %v2703 = vpop.f32.mrf.mxu0
  %v2704 = vadd.f32 0.0, %v2703
  %v2705 = vpop.f32.mrf.mxu0
  %2706 = vdwg.mxu0
  %2707 = vmatpush.bf16.msra.mxu0 %v1124
  %2708 = vmatpush.bf16.msra.mxu0 %v1116
  %2709 = vmatpush.bf16.msra.mxu0 %v1108
  %2710 = vmatpush.bf16.msra.mxu0 %v1100
  %2711 = vmatpush.bf16.msra.mxu0 %v1092
  %2712 = vmatpush.bf16.msra.mxu0 %v1084
  %2713 = vmatpush.bf16.msra.mxu0 %v1076
  %2714 = vmatpush.bf16.msra.mxu0 %v1068
  %2715 = vmatmul.bf16.gmra.mxu0 %v2641
  %v2716 = vpop.f32.mrf.mxu0
  %v2717 = vadd.f32 %v2704, %v2716
  %v2718 = vpop.f32.mrf.mxu0
  %2719 = vdwg.mxu0
  %2720 = vmatpush.bf16.msra.mxu0 %v1061
  %2721 = vmatpush.bf16.msra.mxu0 %v1053
  %2722 = vmatpush.bf16.msra.mxu0 %v1045
  %2723 = vmatpush.bf16.msra.mxu0 %v1037
  %2724 = vmatpush.bf16.msra.mxu0 %v1029
  %2725 = vmatpush.bf16.msra.mxu0 %v1021
  %2726 = vmatpush.bf16.msra.mxu0 %v1013
  %2727 = vmatpush.bf16.msra.mxu0 %v1005
  %2728 = vmatmul.bf16.gmra.mxu0 %v2640
  %v2729 = vpop.f32.mrf.mxu0
  %v2730 = vadd.f32 0.0, %v2729
  %v2731 = vpop.f32.mrf.mxu0
  %2732 = vdwg.mxu0
  %2733 = vmatpush.bf16.msra.mxu0 %v1125
  %2734 = vmatpush.bf16.msra.mxu0 %v1117
  %2735 = vmatpush.bf16.msra.mxu0 %v1109
  %2736 = vmatpush.bf16.msra.mxu0 %v1101
  %2737 = vmatpush.bf16.msra.mxu0 %v1093
  %2738 = vmatpush.bf16.msra.mxu0 %v1085
  %2739 = vmatpush.bf16.msra.mxu0 %v1077
  %2740 = vmatpush.bf16.msra.mxu0 %v1069
  %2741 = vmatmul.bf16.gmra.mxu0 %v2641
  %v2742 = vpop.f32.mrf.mxu0
  %v2743 = vadd.f32 %v2730, %v2742
  %v2744 = vpop.f32.mrf.mxu0
  %2745 = vdwg.mxu0
  %2746 = vmatpush.bf16.msra.mxu0 %v1062
  %2747 = vmatpush.bf16.msra.mxu0 %v1054
  %2748 = vmatpush.bf16.msra.mxu0 %v1046
  %2749 = vmatpush.bf16.msra.mxu0 %v1038
  %2750 = vmatpush.bf16.msra.mxu0 %v1030
  %2751 = vmatpush.bf16.msra.mxu0 %v1022
  %2752 = vmatpush.bf16.msra.mxu0 %v1014
  %2753 = vmatpush.bf16.msra.mxu0 %v1006
  %2754 = vmatmul.bf16.gmra.mxu0 %v2640
  %v2755 = vpop.f32.mrf.mxu0
  %v2756 = vadd.f32 0.0, %v2755
  %v2757 = vpop.f32.mrf.mxu0
  %2758 = vdwg.mxu0
  %2759 = vmatpush.bf16.msra.mxu0 %v1126
  %2760 = vmatpush.bf16.msra.mxu0 %v1118
  %2761 = vmatpush.bf16.msra.mxu0 %v1110
  %2762 = vmatpush.bf16.msra.mxu0 %v1102
  %2763 = vmatpush.bf16.msra.mxu0 %v1094
  %2764 = vmatpush.bf16.msra.mxu0 %v1086
  %2765 = vmatpush.bf16.msra.mxu0 %v1078
  %2766 = vmatpush.bf16.msra.mxu0 %v1070
  %2767 = vmatmul.bf16.gmra.mxu0 %v2641
  %v2768 = vpop.f32.mrf.mxu0
  %v2769 = vadd.f32 %v2756, %v2768
  %v2770 = vpop.f32.mrf.mxu0
  %2771 = vdwg.mxu0
  %2772 = vmatpush.bf16.msra.mxu0 %v1063
  %2773 = vmatpush.bf16.msra.mxu0 %v1055
  %2774 = vmatpush.bf16.msra.mxu0 %v1047
  %2775 = vmatpush.bf16.msra.mxu0 %v1039
  %2776 = vmatpush.bf16.msra.mxu0 %v1031
  %2777 = vmatpush.bf16.msra.mxu0 %v1023
  %2778 = vmatpush.bf16.msra.mxu0 %v1015
  %2779 = vmatpush.bf16.msra.mxu0 %v1007
  %2780 = vmatmul.bf16.gmra.mxu0 %v2640
  %v2781 = vpop.f32.mrf.mxu0
  %v2782 = vadd.f32 0.0, %v2781
  %v2783 = vpop.f32.mrf.mxu0
  %2784 = vdwg.mxu0
  %2785 = vmatpush.bf16.msra.mxu0 %v1127
  %2786 = vmatpush.bf16.msra.mxu0 %v1119
  %2787 = vmatpush.bf16.msra.mxu0 %v1111
  %2788 = vmatpush.bf16.msra.mxu0 %v1103
  %2789 = vmatpush.bf16.msra.mxu0 %v1095
  %2790 = vmatpush.bf16.msra.mxu0 %v1087
  %2791 = vmatpush.bf16.msra.mxu0 %v1079
  %2792 = vmatpush.bf16.msra.mxu0 %v1071
  %2793 = vmatmul.bf16.gmra.mxu0 %v2641
  %v2794 = vpop.f32.mrf.mxu0
  %v2795 = vadd.f32 %v2782, %v2794
  %v2796 = vpop.f32.mrf.mxu0
  %2797 = vdwg.mxu0
  %2798 = vmatpush.bf16.msra.mxu0 %v1064
  %2799 = vmatpush.bf16.msra.mxu0 %v1056
  %2800 = vmatpush.bf16.msra.mxu0 %v1048
  %2801 = vmatpush.bf16.msra.mxu0 %v1040
  %2802 = vmatpush.bf16.msra.mxu0 %v1032
  %2803 = vmatpush.bf16.msra.mxu0 %v1024
  %2804 = vmatpush.bf16.msra.mxu0 %v1016
  %2805 = vmatpush.bf16.msra.mxu0 %v1008
  %2806 = vmatmul.bf16.gmra.mxu0 %v2640
  %v2807 = vpop.f32.mrf.mxu0
  %v2808 = vadd.f32 0.0, %v2807
  %v2809 = vpop.f32.mrf.mxu0
  %2810 = vdwg.mxu0
  %2811 = vmatpush.bf16.msra.mxu0 %v1128
  %2812 = vmatpush.bf16.msra.mxu0 %v1120
  %2813 = vmatpush.bf16.msra.mxu0 %v1112
  %2814 = vmatpush.bf16.msra.mxu0 %v1104
  %2815 = vmatpush.bf16.msra.mxu0 %v1096
  %2816 = vmatpush.bf16.msra.mxu0 %v1088
  %2817 = vmatpush.bf16.msra.mxu0 %v1080
  %2818 = vmatpush.bf16.msra.mxu0 %v1072
  %2819 = vmatmul.bf16.gmra.mxu0 %v2641
  %v2820 = vpop.f32.mrf.mxu0
  %v2821 = vadd.f32 %v2808, %v2820
  %v2822 = vpop.f32.mrf.mxu0
  %2823 = vdwg.mxu0
  %2824 = vmatpush.bf16.msra.mxu0 %v1065
  %2825 = vmatpush.bf16.msra.mxu0 %v1057
  %2826 = vmatpush.bf16.msra.mxu0 %v1049
  %2827 = vmatpush.bf16.msra.mxu0 %v1041
  %2828 = vmatpush.bf16.msra.mxu0 %v1033
  %2829 = vmatpush.bf16.msra.mxu0 %v1025
  %2830 = vmatpush.bf16.msra.mxu0 %v1017
  %2831 = vmatpush.bf16.msra.mxu0 %v1009
  %2832 = vmatmul.bf16.gmra.mxu0 %v2640
  %v2833 = vpop.f32.mrf.mxu0
  %v2834 = vadd.f32 0.0, %v2833
  %v2835 = vpop.f32.mrf.mxu0
  %2836 = vdwg.mxu0
  %2837 = vmatpush.bf16.msra.mxu0 %v1129
  %2838 = vmatpush.bf16.msra.mxu0 %v1121
  %2839 = vmatpush.bf16.msra.mxu0 %v1113
  %2840 = vmatpush.bf16.msra.mxu0 %v1105
  %2841 = vmatpush.bf16.msra.mxu0 %v1097
  %2842 = vmatpush.bf16.msra.mxu0 %v1089
  %2843 = vmatpush.bf16.msra.mxu0 %v1081
  %2844 = vmatpush.bf16.msra.mxu0 %v1073
  %2845 = vmatmul.bf16.gmra.mxu0 %v2641
  %v2846 = vpop.f32.mrf.mxu0
  %v2847 = vadd.f32 %v2834, %v2846
  %v2848 = vpop.f32.mrf.mxu0
  %2849 = vdwg.mxu0
  %v2850 = vadd.f32 %v277, %v2665
  %v2851 = vadd.f32 %v306, %v2691
  %v2852 = vadd.f32 %v335, %v2717
  %v2853 = vadd.f32 %v364, %v2743
  %v2854 = vadd.f32 %v390, %v2769
  %v2855 = vadd.f32 %v419, %v2795
  %v2856 = vadd.f32 %v448, %v2821
  %v2857 = vadd.f32 %v477, %v2847
  %v2858 = vxor.u32 %v2850, 2147483648
  %v2859 = vmul.f32 %v2858, 1.442695
  %v2860 = vpow.pop %v2859
  %v2861 = vadd.f32 %v2860, 1.0
  %v2862 = vrcp.pop %v2861
  %v2863 = vmul.f32 %v2861, %v2862
  %v2864 = vsub.f32 1.0, %v2863
  %v2865 = vmul.f32 %v2862, %v2864
  %v2866 = vadd.f32 %v2862, %v2865
  %vm2867 = vweird.f32 %v2861
  %vm2868 = vweird.f32 %v2862
  %vm2869 = vmor %vm2867, %vm2868
  %v2870 = vsel %vm2869, %v2862, %v2866
  %v2871 = vand.u32 2147483647, %v2861
  %vm2872 = vcmp.eq.f32.partialorder %v2871, 8.507059e+37
  %v2873 = vand.u32 %v2861, 2147483648
  %v2874 = vor.u32 1.1754944e-38, %v2873
  %v2875 = vsel %vm2872, %v2874, %v2870
  %v2876 = vmul.f32 1.0, %v2875
  %v2877 = vxor.u32 %v2851, 2147483648
  %v2878 = vmul.f32 %v2877, 1.442695
  %v2879 = vpow.pop %v2878
  %v2880 = vadd.f32 %v2879, 1.0
  %v2881 = vrcp.pop %v2880
  %v2882 = vmul.f32 %v2880, %v2881
  %v2883 = vsub.f32 1.0, %v2882
  %v2884 = vmul.f32 %v2881, %v2883
  %v2885 = vadd.f32 %v2881, %v2884
  %vm2886 = vweird.f32 %v2880
  %vm2887 = vweird.f32 %v2881
  %vm2888 = vmor %vm2886, %vm2887
  %v2889 = vsel %vm2888, %v2881, %v2885
  %v2890 = vand.u32 2147483647, %v2880
  %vm2891 = vcmp.eq.f32.partialorder %v2890, 8.507059e+37
  %v2892 = vand.u32 %v2880, 2147483648
  %v2893 = vor.u32 1.1754944e-38, %v2892
  %v2894 = vsel %vm2891, %v2893, %v2889
  %v2895 = vmul.f32 1.0, %v2894
  %v2896 = vtanh.pop %v2852
  %v2897 = vxor.u32 %v2853, 2147483648
  %v2898 = vmul.f32 %v2897, 1.442695
  %v2899 = vpow.pop %v2898
  %v2900 = vadd.f32 %v2899, 1.0
  %v2901 = vrcp.pop %v2900
  %v2902 = vmul.f32 %v2900, %v2901
  %v2903 = vsub.f32 1.0, %v2902
  %v2904 = vmul.f32 %v2901, %v2903
  %v2905 = vadd.f32 %v2901, %v2904
  %vm2906 = vweird.f32 %v2900
  %vm2907 = vweird.f32 %v2901
  %vm2908 = vmor %vm2906, %vm2907
  %v2909 = vsel %vm2908, %v2901, %v2905
  %v2910 = vand.u32 2147483647, %v2900
  %vm2911 = vcmp.eq.f32.partialorder %v2910, 8.507059e+37
  %v2912 = vand.u32 %v2900, 2147483648
  %v2913 = vor.u32 1.1754944e-38, %v2912
  %v2914 = vsel %vm2911, %v2913, %v2909
  %v2915 = vmul.f32 1.0, %v2914
  %v2916 = vmul.f32 %v2895, %v2572
  %v2917 = vmul.f32 %v2876, %v2896
  %v2918 = vadd.f32 %v2916, %v2917
  %v2919 = vtanh.pop %v2918
  %v2920 = vmul.f32 %v2915, %v2919
  %v2921 = vxor.u32 %v2854, 2147483648
  %v2922 = vmul.f32 %v2921, 1.442695
  %v2923 = vpow.pop %v2922
  %v2924 = vadd.f32 %v2923, 1.0
  %v2925 = vrcp.pop %v2924
  %v2926 = vmul.f32 %v2924, %v2925
  %v2927 = vsub.f32 1.0, %v2926
  %v2928 = vmul.f32 %v2925, %v2927
  %v2929 = vadd.f32 %v2925, %v2928
  %vm2930 = vweird.f32 %v2924
  %vm2931 = vweird.f32 %v2925
  %vm2932 = vmor %vm2930, %vm2931
  %v2933 = vsel %vm2932, %v2925, %v2929
  %v2934 = vand.u32 2147483647, %v2924
  %vm2935 = vcmp.eq.f32.partialorder %v2934, 8.507059e+37
  %v2936 = vand.u32 %v2924, 2147483648
  %v2937 = vor.u32 1.1754944e-38, %v2936
  %v2938 = vsel %vm2935, %v2937, %v2933
  %v2939 = vmul.f32 1.0, %v2938
  %v2940 = vxor.u32 %v2855, 2147483648
  %v2941 = vmul.f32 %v2940, 1.442695
  %v2942 = vpow.pop %v2941
  %v2943 = vadd.f32 %v2942, 1.0
  %v2944 = vrcp.pop %v2943
  %v2945 = vmul.f32 %v2943, %v2944
  %v2946 = vsub.f32 1.0, %v2945
  %v2947 = vmul.f32 %v2944, %v2946
  %v2948 = vadd.f32 %v2944, %v2947
  %vm2949 = vweird.f32 %v2943
  %vm2950 = vweird.f32 %v2944
  %vm2951 = vmor %vm2949, %vm2950
  %v2952 = vsel %vm2951, %v2944, %v2948
  %v2953 = vand.u32 2147483647, %v2943
  %vm2954 = vcmp.eq.f32.partialorder %v2953, 8.507059e+37
  %v2955 = vand.u32 %v2943, 2147483648
  %v2956 = vor.u32 1.1754944e-38, %v2955
  %v2957 = vsel %vm2954, %v2956, %v2952
  %v2958 = vmul.f32 1.0, %v2957
  %v2959 = vtanh.pop %v2856
  %v2960 = vxor.u32 %v2857, 2147483648
  %v2961 = vmul.f32 %v2960, 1.442695
  %v2962 = vpow.pop %v2961
  %v2963 = vadd.f32 %v2962, 1.0
  %v2964 = vrcp.pop %v2963
  %v2965 = vmul.f32 %v2963, %v2964
  %v2966 = vsub.f32 1.0, %v2965
  %v2967 = vmul.f32 %v2964, %v2966
  %v2968 = vadd.f32 %v2964, %v2967
  %vm2969 = vweird.f32 %v2963
  %vm2970 = vweird.f32 %v2964
  %vm2971 = vmor %vm2969, %vm2970
  %v2972 = vsel %vm2971, %v2964, %v2968
  %v2973 = vand.u32 2147483647, %v2963
  %vm2974 = vcmp.eq.f32.partialorder %v2973, 8.507059e+37
  %v2975 = vand.u32 %v2963, 2147483648
  %v2976 = vor.u32 1.1754944e-38, %v2975
  %v2977 = vsel %vm2974, %v2976, %v2972
  %v2978 = vmul.f32 1.0, %v2977
  %v2979 = vmul.f32 %v2958, %v2635
  %v2980 = vmul.f32 %v2939, %v2959
  %v2981 = vadd.f32 %v2979, %v2980
  %v2982 = vtanh.pop %v2981
  %v2983 = vmul.f32 %v2978, %v2982
  %2984 = vst [vmem:[#allocation2 + $0x40] sm:$0xff] %v2920
  %2985 = vst [vmem:[#allocation2 + $0x38] sm:$0xff] %v2983
  %v2986 = vpack.c.bf16 %v2920, %v2920
  %v2987 = vpack.c.bf16 %v2983, %v2983
  %2988 = vmatpush.bf16.msra.mxu0 %v1058
  %2989 = vmatpush.bf16.msra.mxu0 %v1050
  %2990 = vmatpush.bf16.msra.mxu0 %v1042
  %2991 = vmatpush.bf16.msra.mxu0 %v1034
  %2992 = vmatpush.bf16.msra.mxu0 %v1026
  %2993 = vmatpush.bf16.msra.mxu0 %v1018
  %2994 = vmatpush.bf16.msra.mxu0 %v1010
  %2995 = vmatpush.bf16.msra.mxu0 %v1002
  %2996 = vmatmul.bf16.gmra.mxu0 %v2986
  %v2997 = vpop.f32.mrf.mxu0
  %v2998 = vadd.f32 0.0, %v2997
  %v2999 = vpop.f32.mrf.mxu0
  %3000 = vdwg.mxu0
  %3001 = vmatpush.bf16.msra.mxu0 %v1122
  %3002 = vmatpush.bf16.msra.mxu0 %v1114
  %3003 = vmatpush.bf16.msra.mxu0 %v1106
  %3004 = vmatpush.bf16.msra.mxu0 %v1098
  %3005 = vmatpush.bf16.msra.mxu0 %v1090
  %3006 = vmatpush.bf16.msra.mxu0 %v1082
  %3007 = vmatpush.bf16.msra.mxu0 %v1074
  %3008 = vmatpush.bf16.msra.mxu0 %v1066
  %3009 = vmatmul.bf16.gmra.mxu0 %v2987
  %v3010 = vpop.f32.mrf.mxu0
  %v3011 = vadd.f32 %v2998, %v3010
  %v3012 = vpop.f32.mrf.mxu0
  %3013 = vdwg.mxu0
  %3014 = vmatpush.bf16.msra.mxu0 %v1059
  %3015 = vmatpush.bf16.msra.mxu0 %v1051
  %3016 = vmatpush.bf16.msra.mxu0 %v1043
  %3017 = vmatpush.bf16.msra.mxu0 %v1035
  %3018 = vmatpush.bf16.msra.mxu0 %v1027
  %3019 = vmatpush.bf16.msra.mxu0 %v1019
  %3020 = vmatpush.bf16.msra.mxu0 %v1011
  %3021 = vmatpush.bf16.msra.mxu0 %v1003
  %3022 = vmatmul.bf16.gmra.mxu0 %v2986
  %v3023 = vpop.f32.mrf.mxu0
  %v3024 = vadd.f32 0.0, %v3023
  %v3025 = vpop.f32.mrf.mxu0
  %3026 = vdwg.mxu0
  %3027 = vmatpush.bf16.msra.mxu0 %v1123
  %3028 = vmatpush.bf16.msra.mxu0 %v1115
  %3029 = vmatpush.bf16.msra.mxu0 %v1107
  %3030 = vmatpush.bf16.msra.mxu0 %v1099
  %3031 = vmatpush.bf16.msra.mxu0 %v1091
  %3032 = vmatpush.bf16.msra.mxu0 %v1083
  %3033 = vmatpush.bf16.msra.mxu0 %v1075
  %3034 = vmatpush.bf16.msra.mxu0 %v1067
  %3035 = vmatmul.bf16.gmra.mxu0 %v2987
  %v3036 = vpop.f32.mrf.mxu0
  %v3037 = vadd.f32 %v3024, %v3036
  %v3038 = vpop.f32.mrf.mxu0
  %3039 = vdwg.mxu0
  %3040 = vmatpush.bf16.msra.mxu0 %v1060
  %3041 = vmatpush.bf16.msra.mxu0 %v1052
  %3042 = vmatpush.bf16.msra.mxu0 %v1044
  %3043 = vmatpush.bf16.msra.mxu0 %v1036
  %3044 = vmatpush.bf16.msra.mxu0 %v1028
  %3045 = vmatpush.bf16.msra.mxu0 %v1020
  %3046 = vmatpush.bf16.msra.mxu0 %v1012
  %3047 = vmatpush.bf16.msra.mxu0 %v1004
  %3048 = vmatmul.bf16.gmra.mxu0 %v2986
  %v3049 = vpop.f32.mrf.mxu0
  %v3050 = vadd.f32 0.0, %v3049
  %v3051 = vpop.f32.mrf.mxu0
  %3052 = vdwg.mxu0
  %3053 = vmatpush.bf16.msra.mxu0 %v1124
  %3054 = vmatpush.bf16.msra.mxu0 %v1116
  %3055 = vmatpush.bf16.msra.mxu0 %v1108
  %3056 = vmatpush.bf16.msra.mxu0 %v1100
  %3057 = vmatpush.bf16.msra.mxu0 %v1092
  %3058 = vmatpush.bf16.msra.mxu0 %v1084
  %3059 = vmatpush.bf16.msra.mxu0 %v1076
  %3060 = vmatpush.bf16.msra.mxu0 %v1068
  %3061 = vmatmul.bf16.gmra.mxu0 %v2987
  %v3062 = vpop.f32.mrf.mxu0
  %v3063 = vadd.f32 %v3050, %v3062
  %v3064 = vpop.f32.mrf.mxu0
  %3065 = vdwg.mxu0
  %3066 = vmatpush.bf16.msra.mxu0 %v1061
  %3067 = vmatpush.bf16.msra.mxu0 %v1053
  %3068 = vmatpush.bf16.msra.mxu0 %v1045
  %3069 = vmatpush.bf16.msra.mxu0 %v1037
  %3070 = vmatpush.bf16.msra.mxu0 %v1029
  %3071 = vmatpush.bf16.msra.mxu0 %v1021
  %3072 = vmatpush.bf16.msra.mxu0 %v1013
  %3073 = vmatpush.bf16.msra.mxu0 %v1005
  %3074 = vmatmul.bf16.gmra.mxu0 %v2986
  %v3075 = vpop.f32.mrf.mxu0
  %v3076 = vadd.f32 0.0, %v3075
  %v3077 = vpop.f32.mrf.mxu0
  %3078 = vdwg.mxu0
  %3079 = vmatpush.bf16.msra.mxu0 %v1125
  %3080 = vmatpush.bf16.msra.mxu0 %v1117
  %3081 = vmatpush.bf16.msra.mxu0 %v1109
  %3082 = vmatpush.bf16.msra.mxu0 %v1101
  %3083 = vmatpush.bf16.msra.mxu0 %v1093
  %3084 = vmatpush.bf16.msra.mxu0 %v1085
  %3085 = vmatpush.bf16.msra.mxu0 %v1077
  %3086 = vmatpush.bf16.msra.mxu0 %v1069
  %3087 = vmatmul.bf16.gmra.mxu0 %v2987
  %v3088 = vpop.f32.mrf.mxu0
  %v3089 = vadd.f32 %v3076, %v3088
  %v3090 = vpop.f32.mrf.mxu0
  %3091 = vdwg.mxu0
  %3092 = vmatpush.bf16.msra.mxu0 %v1062
  %3093 = vmatpush.bf16.msra.mxu0 %v1054
  %3094 = vmatpush.bf16.msra.mxu0 %v1046
  %3095 = vmatpush.bf16.msra.mxu0 %v1038
  %3096 = vmatpush.bf16.msra.mxu0 %v1030
  %3097 = vmatpush.bf16.msra.mxu0 %v1022
  %3098 = vmatpush.bf16.msra.mxu0 %v1014
  %3099 = vmatpush.bf16.msra.mxu0 %v1006
  %3100 = vmatmul.bf16.gmra.mxu0 %v2986
  %v3101 = vpop.f32.mrf.mxu0
  %v3102 = vadd.f32 0.0, %v3101
  %v3103 = vpop.f32.mrf.mxu0
  %3104 = vdwg.mxu0
  %3105 = vmatpush.bf16.msra.mxu0 %v1126
  %3106 = vmatpush.bf16.msra.mxu0 %v1118
  %3107 = vmatpush.bf16.msra.mxu0 %v1110
  %3108 = vmatpush.bf16.msra.mxu0 %v1102
  %3109 = vmatpush.bf16.msra.mxu0 %v1094
  %3110 = vmatpush.bf16.msra.mxu0 %v1086
  %3111 = vmatpush.bf16.msra.mxu0 %v1078
  %3112 = vmatpush.bf16.msra.mxu0 %v1070
  %3113 = vmatmul.bf16.gmra.mxu0 %v2987
  %v3114 = vpop.f32.mrf.mxu0
  %v3115 = vadd.f32 %v3102, %v3114
  %v3116 = vpop.f32.mrf.mxu0
  %3117 = vdwg.mxu0
  %3118 = vmatpush.bf16.msra.mxu0 %v1063
  %3119 = vmatpush.bf16.msra.mxu0 %v1055
  %3120 = vmatpush.bf16.msra.mxu0 %v1047
  %3121 = vmatpush.bf16.msra.mxu0 %v1039
  %3122 = vmatpush.bf16.msra.mxu0 %v1031
  %3123 = vmatpush.bf16.msra.mxu0 %v1023
  %3124 = vmatpush.bf16.msra.mxu0 %v1015
  %3125 = vmatpush.bf16.msra.mxu0 %v1007
  %3126 = vmatmul.bf16.gmra.mxu0 %v2986
  %v3127 = vpop.f32.mrf.mxu0
  %v3128 = vadd.f32 0.0, %v3127
  %v3129 = vpop.f32.mrf.mxu0
  %3130 = vdwg.mxu0
  %3131 = vmatpush.bf16.msra.mxu0 %v1127
  %3132 = vmatpush.bf16.msra.mxu0 %v1119
  %3133 = vmatpush.bf16.msra.mxu0 %v1111
  %3134 = vmatpush.bf16.msra.mxu0 %v1103
  %3135 = vmatpush.bf16.msra.mxu0 %v1095
  %3136 = vmatpush.bf16.msra.mxu0 %v1087
  %3137 = vmatpush.bf16.msra.mxu0 %v1079
  %3138 = vmatpush.bf16.msra.mxu0 %v1071
  %3139 = vmatmul.bf16.gmra.mxu0 %v2987
  %v3140 = vpop.f32.mrf.mxu0
  %v3141 = vadd.f32 %v3128, %v3140
  %v3142 = vpop.f32.mrf.mxu0
  %3143 = vdwg.mxu0
  %3144 = vmatpush.bf16.msra.mxu0 %v1064
  %3145 = vmatpush.bf16.msra.mxu0 %v1056
  %3146 = vmatpush.bf16.msra.mxu0 %v1048
  %3147 = vmatpush.bf16.msra.mxu0 %v1040
  %3148 = vmatpush.bf16.msra.mxu0 %v1032
  %3149 = vmatpush.bf16.msra.mxu0 %v1024
  %3150 = vmatpush.bf16.msra.mxu0 %v1016
  %3151 = vmatpush.bf16.msra.mxu0 %v1008
  %3152 = vmatmul.bf16.gmra.mxu0 %v2986
  %v3153 = vpop.f32.mrf.mxu0
  %v3154 = vadd.f32 0.0, %v3153
  %v3155 = vpop.f32.mrf.mxu0
  %3156 = vdwg.mxu0
  %3157 = vmatpush.bf16.msra.mxu0 %v1128
  %3158 = vmatpush.bf16.msra.mxu0 %v1120
  %3159 = vmatpush.bf16.msra.mxu0 %v1112
  %3160 = vmatpush.bf16.msra.mxu0 %v1104
  %3161 = vmatpush.bf16.msra.mxu0 %v1096
  %3162 = vmatpush.bf16.msra.mxu0 %v1088
  %3163 = vmatpush.bf16.msra.mxu0 %v1080
  %3164 = vmatpush.bf16.msra.mxu0 %v1072
  %3165 = vmatmul.bf16.gmra.mxu0 %v2987
  %v3166 = vpop.f32.mrf.mxu0
  %v3167 = vadd.f32 %v3154, %v3166
  %v3168 = vpop.f32.mrf.mxu0
  %3169 = vdwg.mxu0
  %3170 = vmatpush.bf16.msra.mxu0 %v1065
  %3171 = vmatpush.bf16.msra.mxu0 %v1057
  %3172 = vmatpush.bf16.msra.mxu0 %v1049
  %3173 = vmatpush.bf16.msra.mxu0 %v1041
  %3174 = vmatpush.bf16.msra.mxu0 %v1033
  %3175 = vmatpush.bf16.msra.mxu0 %v1025
  %3176 = vmatpush.bf16.msra.mxu0 %v1017
  %3177 = vmatpush.bf16.msra.mxu0 %v1009
  %3178 = vmatmul.bf16.gmra.mxu0 %v2986
  %v3179 = vpop.f32.mrf.mxu0
  %v3180 = vadd.f32 0.0, %v3179
  %v3181 = vpop.f32.mrf.mxu0
  %3182 = vdwg.mxu0
  %3183 = vmatpush.bf16.msra.mxu0 %v1129
  %3184 = vmatpush.bf16.msra.mxu0 %v1121
  %3185 = vmatpush.bf16.msra.mxu0 %v1113
  %3186 = vmatpush.bf16.msra.mxu0 %v1105
  %3187 = vmatpush.bf16.msra.mxu0 %v1097
  %3188 = vmatpush.bf16.msra.mxu0 %v1089
  %3189 = vmatpush.bf16.msra.mxu0 %v1081
  %3190 = vmatpush.bf16.msra.mxu0 %v1073
  %3191 = vmatmul.bf16.gmra.mxu0 %v2987
  %v3192 = vpop.f32.mrf.mxu0
  %v3193 = vadd.f32 %v3180, %v3192
  %v3194 = vpop.f32.mrf.mxu0
  %3195 = vdwg.mxu0
  %v3196 = vadd.f32 %v279, %v3011
  %v3197 = vadd.f32 %v308, %v3037
  %v3198 = vadd.f32 %v337, %v3063
  %v3199 = vadd.f32 %v366, %v3089
  %v3200 = vadd.f32 %v388, %v3115
  %v3201 = vadd.f32 %v417, %v3141
  %v3202 = vadd.f32 %v446, %v3167
  %v3203 = vadd.f32 %v475, %v3193
  %v3204 = vxor.u32 %v3196, 2147483648
  %v3205 = vmul.f32 %v3204, 1.442695
  %v3206 = vpow.pop %v3205
  %v3207 = vadd.f32 %v3206, 1.0
  %v3208 = vrcp.pop %v3207
  %v3209 = vmul.f32 %v3207, %v3208
  %v3210 = vsub.f32 1.0, %v3209
  %v3211 = vmul.f32 %v3208, %v3210
  %v3212 = vadd.f32 %v3208, %v3211
  %vm3213 = vweird.f32 %v3207
  %vm3214 = vweird.f32 %v3208
  %vm3215 = vmor %vm3213, %vm3214
  %v3216 = vsel %vm3215, %v3208, %v3212
  %v3217 = vand.u32 2147483647, %v3207
  %vm3218 = vcmp.eq.f32.partialorder %v3217, 8.507059e+37
  %v3219 = vand.u32 %v3207, 2147483648
  %v3220 = vor.u32 1.1754944e-38, %v3219
  %v3221 = vsel %vm3218, %v3220, %v3216
  %v3222 = vmul.f32 1.0, %v3221
  %v3223 = vxor.u32 %v3197, 2147483648
  %v3224 = vmul.f32 %v3223, 1.442695
  %v3225 = vpow.pop %v3224
  %v3226 = vadd.f32 %v3225, 1.0
  %v3227 = vrcp.pop %v3226
  %v3228 = vmul.f32 %v3226, %v3227
  %v3229 = vsub.f32 1.0, %v3228
  %v3230 = vmul.f32 %v3227, %v3229
  %v3231 = vadd.f32 %v3227, %v3230
  %vm3232 = vweird.f32 %v3226
  %vm3233 = vweird.f32 %v3227
  %vm3234 = vmor %vm3232, %vm3233
  %v3235 = vsel %vm3234, %v3227, %v3231
  %v3236 = vand.u32 2147483647, %v3226
  %vm3237 = vcmp.eq.f32.partialorder %v3236, 8.507059e+37
  %v3238 = vand.u32 %v3226, 2147483648
  %v3239 = vor.u32 1.1754944e-38, %v3238
  %v3240 = vsel %vm3237, %v3239, %v3235
  %v3241 = vmul.f32 1.0, %v3240
  %v3242 = vtanh.pop %v3198
  %v3243 = vxor.u32 %v3199, 2147483648
  %v3244 = vmul.f32 %v3243, 1.442695
  %v3245 = vpow.pop %v3244
  %v3246 = vadd.f32 %v3245, 1.0
  %v3247 = vrcp.pop %v3246
  %v3248 = vmul.f32 %v3246, %v3247
  %v3249 = vsub.f32 1.0, %v3248
  %v3250 = vmul.f32 %v3247, %v3249
  %v3251 = vadd.f32 %v3247, %v3250
  %vm3252 = vweird.f32 %v3246
  %vm3253 = vweird.f32 %v3247
  %vm3254 = vmor %vm3252, %vm3253
  %v3255 = vsel %vm3254, %v3247, %v3251
  %v3256 = vand.u32 2147483647, %v3246
  %vm3257 = vcmp.eq.f32.partialorder %v3256, 8.507059e+37
  %v3258 = vand.u32 %v3246, 2147483648
  %v3259 = vor.u32 1.1754944e-38, %v3258
  %v3260 = vsel %vm3257, %v3259, %v3255
  %v3261 = vmul.f32 1.0, %v3260
  %v3262 = vmul.f32 %v3241, %v2918
  %v3263 = vmul.f32 %v3222, %v3242
  %v3264 = vadd.f32 %v3262, %v3263
  %v3265 = vtanh.pop %v3264
  %v3266 = vmul.f32 %v3261, %v3265
  %v3267 = vxor.u32 %v3200, 2147483648
  %v3268 = vmul.f32 %v3267, 1.442695
  %v3269 = vpow.pop %v3268
  %v3270 = vadd.f32 %v3269, 1.0
  %v3271 = vrcp.pop %v3270
  %v3272 = vmul.f32 %v3270, %v3271
  %v3273 = vsub.f32 1.0, %v3272
  %v3274 = vmul.f32 %v3271, %v3273
  %v3275 = vadd.f32 %v3271, %v3274
  %vm3276 = vweird.f32 %v3270
  %vm3277 = vweird.f32 %v3271
  %vm3278 = vmor %vm3276, %vm3277
  %v3279 = vsel %vm3278, %v3271, %v3275
  %v3280 = vand.u32 2147483647, %v3270
  %vm3281 = vcmp.eq.f32.partialorder %v3280, 8.507059e+37
  %v3282 = vand.u32 %v3270, 2147483648
  %v3283 = vor.u32 1.1754944e-38, %v3282
  %v3284 = vsel %vm3281, %v3283, %v3279
  %v3285 = vmul.f32 1.0, %v3284
  %v3286 = vxor.u32 %v3201, 2147483648
  %v3287 = vmul.f32 %v3286, 1.442695
  %v3288 = vpow.pop %v3287
  %v3289 = vadd.f32 %v3288, 1.0
  %v3290 = vrcp.pop %v3289
  %v3291 = vmul.f32 %v3289, %v3290
  %v3292 = vsub.f32 1.0, %v3291
  %v3293 = vmul.f32 %v3290, %v3292
  %v3294 = vadd.f32 %v3290, %v3293
  %vm3295 = vweird.f32 %v3289
  %vm3296 = vweird.f32 %v3290
  %vm3297 = vmor %vm3295, %vm3296
  %v3298 = vsel %vm3297, %v3290, %v3294
  %v3299 = vand.u32 2147483647, %v3289
  %vm3300 = vcmp.eq.f32.partialorder %v3299, 8.507059e+37
  %v3301 = vand.u32 %v3289, 2147483648
  %v3302 = vor.u32 1.1754944e-38, %v3301
  %v3303 = vsel %vm3300, %v3302, %v3298
  %v3304 = vmul.f32 1.0, %v3303
  %v3305 = vtanh.pop %v3202
  %v3306 = vxor.u32 %v3203, 2147483648
  %v3307 = vmul.f32 %v3306, 1.442695
  %v3308 = vpow.pop %v3307
  %v3309 = vadd.f32 %v3308, 1.0
  %v3310 = vrcp.pop %v3309
  %v3311 = vmul.f32 %v3309, %v3310
  %v3312 = vsub.f32 1.0, %v3311
  %v3313 = vmul.f32 %v3310, %v3312
  %v3314 = vadd.f32 %v3310, %v3313
  %vm3315 = vweird.f32 %v3309
  %vm3316 = vweird.f32 %v3310
  %vm3317 = vmor %vm3315, %vm3316
  %v3318 = vsel %vm3317, %v3310, %v3314
  %v3319 = vand.u32 2147483647, %v3309
  %vm3320 = vcmp.eq.f32.partialorder %v3319, 8.507059e+37
  %v3321 = vand.u32 %v3309, 2147483648
  %v3322 = vor.u32 1.1754944e-38, %v3321
  %v3323 = vsel %vm3320, %v3322, %v3318
  %v3324 = vmul.f32 1.0, %v3323
  %v3325 = vmul.f32 %v3304, %v2981
  %v3326 = vmul.f32 %v3285, %v3305
  %v3327 = vadd.f32 %v3325, %v3326
  %v3328 = vtanh.pop %v3327
  %v3329 = vmul.f32 %v3324, %v3328
  %3330 = vst [vmem:[#allocation2 + $0x50] sm:$0xff] %v3266
  %3331 = vst [vmem:[#allocation2 + $0x28] sm:$0xff] %v3329
  %v3332 = vpack.c.bf16 %v3266, %v3266
  %v3333 = vpack.c.bf16 %v3329, %v3329
  %3334 = vmatpush.bf16.msra.mxu0 %v1058
  %3335 = vmatpush.bf16.msra.mxu0 %v1050
  %3336 = vmatpush.bf16.msra.mxu0 %v1042
  %3337 = vmatpush.bf16.msra.mxu0 %v1034
  %3338 = vmatpush.bf16.msra.mxu0 %v1026
  %3339 = vmatpush.bf16.msra.mxu0 %v1018
  %3340 = vmatpush.bf16.msra.mxu0 %v1010
  %3341 = vmatpush.bf16.msra.mxu0 %v1002
  %3342 = vmatmul.bf16.gmra.mxu0 %v3332
  %v3343 = vpop.f32.mrf.mxu0
  %v3344 = vadd.f32 0.0, %v3343
  %v3345 = vpop.f32.mrf.mxu0
  %3346 = vdwg.mxu0
  %3347 = vmatpush.bf16.msra.mxu0 %v1122
  %3348 = vmatpush.bf16.msra.mxu0 %v1114
  %3349 = vmatpush.bf16.msra.mxu0 %v1106
  %3350 = vmatpush.bf16.msra.mxu0 %v1098
  %3351 = vmatpush.bf16.msra.mxu0 %v1090
  %3352 = vmatpush.bf16.msra.mxu0 %v1082
  %3353 = vmatpush.bf16.msra.mxu0 %v1074
  %3354 = vmatpush.bf16.msra.mxu0 %v1066
  %3355 = vmatmul.bf16.gmra.mxu0 %v3333
  %v3356 = vpop.f32.mrf.mxu0
  %v3357 = vadd.f32 %v3344, %v3356
  %v3358 = vpop.f32.mrf.mxu0
  %3359 = vdwg.mxu0
  %3360 = vmatpush.bf16.msra.mxu0 %v1059
  %3361 = vmatpush.bf16.msra.mxu0 %v1051
  %3362 = vmatpush.bf16.msra.mxu0 %v1043
  %3363 = vmatpush.bf16.msra.mxu0 %v1035
  %3364 = vmatpush.bf16.msra.mxu0 %v1027
  %3365 = vmatpush.bf16.msra.mxu0 %v1019
  %3366 = vmatpush.bf16.msra.mxu0 %v1011
  %3367 = vmatpush.bf16.msra.mxu0 %v1003
  %3368 = vmatmul.bf16.gmra.mxu0 %v3332
  %v3369 = vpop.f32.mrf.mxu0
  %v3370 = vadd.f32 0.0, %v3369
  %v3371 = vpop.f32.mrf.mxu0
  %3372 = vdwg.mxu0
  %3373 = vmatpush.bf16.msra.mxu0 %v1123
  %3374 = vmatpush.bf16.msra.mxu0 %v1115
  %3375 = vmatpush.bf16.msra.mxu0 %v1107
  %3376 = vmatpush.bf16.msra.mxu0 %v1099
  %3377 = vmatpush.bf16.msra.mxu0 %v1091
  %3378 = vmatpush.bf16.msra.mxu0 %v1083
  %3379 = vmatpush.bf16.msra.mxu0 %v1075
  %3380 = vmatpush.bf16.msra.mxu0 %v1067
  %3381 = vmatmul.bf16.gmra.mxu0 %v3333
  %v3382 = vpop.f32.mrf.mxu0
  %v3383 = vadd.f32 %v3370, %v3382
  %v3384 = vpop.f32.mrf.mxu0
  %3385 = vdwg.mxu0
  %3386 = vmatpush.bf16.msra.mxu0 %v1060
  %3387 = vmatpush.bf16.msra.mxu0 %v1052
  %3388 = vmatpush.bf16.msra.mxu0 %v1044
  %3389 = vmatpush.bf16.msra.mxu0 %v1036
  %3390 = vmatpush.bf16.msra.mxu0 %v1028
  %3391 = vmatpush.bf16.msra.mxu0 %v1020
  %3392 = vmatpush.bf16.msra.mxu0 %v1012
  %3393 = vmatpush.bf16.msra.mxu0 %v1004
  %3394 = vmatmul.bf16.gmra.mxu0 %v3332
  %v3395 = vpop.f32.mrf.mxu0
  %v3396 = vadd.f32 0.0, %v3395
  %v3397 = vpop.f32.mrf.mxu0
  %3398 = vdwg.mxu0
  %3399 = vmatpush.bf16.msra.mxu0 %v1124
  %3400 = vmatpush.bf16.msra.mxu0 %v1116
  %3401 = vmatpush.bf16.msra.mxu0 %v1108
  %3402 = vmatpush.bf16.msra.mxu0 %v1100
  %3403 = vmatpush.bf16.msra.mxu0 %v1092
  %3404 = vmatpush.bf16.msra.mxu0 %v1084
  %3405 = vmatpush.bf16.msra.mxu0 %v1076
  %3406 = vmatpush.bf16.msra.mxu0 %v1068
  %3407 = vmatmul.bf16.gmra.mxu0 %v3333
  %v3408 = vpop.f32.mrf.mxu0
  %v3409 = vadd.f32 %v3396, %v3408
  %v3410 = vpop.f32.mrf.mxu0
  %3411 = vdwg.mxu0
  %3412 = vmatpush.bf16.msra.mxu0 %v1061
  %3413 = vmatpush.bf16.msra.mxu0 %v1053
  %3414 = vmatpush.bf16.msra.mxu0 %v1045
  %3415 = vmatpush.bf16.msra.mxu0 %v1037
  %3416 = vmatpush.bf16.msra.mxu0 %v1029
  %3417 = vmatpush.bf16.msra.mxu0 %v1021
  %3418 = vmatpush.bf16.msra.mxu0 %v1013
  %3419 = vmatpush.bf16.msra.mxu0 %v1005
  %3420 = vmatmul.bf16.gmra.mxu0 %v3332
  %v3421 = vpop.f32.mrf.mxu0
  %v3422 = vadd.f32 0.0, %v3421
  %v3423 = vpop.f32.mrf.mxu0
  %3424 = vdwg.mxu0
  %3425 = vmatpush.bf16.msra.mxu0 %v1125
  %3426 = vmatpush.bf16.msra.mxu0 %v1117
  %3427 = vmatpush.bf16.msra.mxu0 %v1109
  %3428 = vmatpush.bf16.msra.mxu0 %v1101
  %3429 = vmatpush.bf16.msra.mxu0 %v1093
  %3430 = vmatpush.bf16.msra.mxu0 %v1085
  %3431 = vmatpush.bf16.msra.mxu0 %v1077
  %3432 = vmatpush.bf16.msra.mxu0 %v1069
  %3433 = vmatmul.bf16.gmra.mxu0 %v3333
  %v3434 = vpop.f32.mrf.mxu0
  %v3435 = vadd.f32 %v3422, %v3434
  %v3436 = vpop.f32.mrf.mxu0
  %3437 = vdwg.mxu0
  %3438 = vmatpush.bf16.msra.mxu0 %v1062
  %3439 = vmatpush.bf16.msra.mxu0 %v1054
  %3440 = vmatpush.bf16.msra.mxu0 %v1046
  %3441 = vmatpush.bf16.msra.mxu0 %v1038
  %3442 = vmatpush.bf16.msra.mxu0 %v1030
  %3443 = vmatpush.bf16.msra.mxu0 %v1022
  %3444 = vmatpush.bf16.msra.mxu0 %v1014
  %3445 = vmatpush.bf16.msra.mxu0 %v1006
  %3446 = vmatmul.bf16.gmra.mxu0 %v3332
  %v3447 = vpop.f32.mrf.mxu0
  %v3448 = vadd.f32 0.0, %v3447
  %v3449 = vpop.f32.mrf.mxu0
  %3450 = vdwg.mxu0
  %3451 = vmatpush.bf16.msra.mxu0 %v1126
  %3452 = vmatpush.bf16.msra.mxu0 %v1118
  %3453 = vmatpush.bf16.msra.mxu0 %v1110
  %3454 = vmatpush.bf16.msra.mxu0 %v1102
  %3455 = vmatpush.bf16.msra.mxu0 %v1094
  %3456 = vmatpush.bf16.msra.mxu0 %v1086
  %3457 = vmatpush.bf16.msra.mxu0 %v1078
  %3458 = vmatpush.bf16.msra.mxu0 %v1070
  %3459 = vmatmul.bf16.gmra.mxu0 %v3333
  %v3460 = vpop.f32.mrf.mxu0
  %v3461 = vadd.f32 %v3448, %v3460
  %v3462 = vpop.f32.mrf.mxu0
  %3463 = vdwg.mxu0
  %3464 = vmatpush.bf16.msra.mxu0 %v1063
  %3465 = vmatpush.bf16.msra.mxu0 %v1055
  %3466 = vmatpush.bf16.msra.mxu0 %v1047
  %3467 = vmatpush.bf16.msra.mxu0 %v1039
  %3468 = vmatpush.bf16.msra.mxu0 %v1031
  %3469 = vmatpush.bf16.msra.mxu0 %v1023
  %3470 = vmatpush.bf16.msra.mxu0 %v1015
  %3471 = vmatpush.bf16.msra.mxu0 %v1007
  %3472 = vmatmul.bf16.gmra.mxu0 %v3332
  %v3473 = vpop.f32.mrf.mxu0
  %v3474 = vadd.f32 0.0, %v3473
  %v3475 = vpop.f32.mrf.mxu0
  %3476 = vdwg.mxu0
  %3477 = vmatpush.bf16.msra.mxu0 %v1127
  %3478 = vmatpush.bf16.msra.mxu0 %v1119
  %3479 = vmatpush.bf16.msra.mxu0 %v1111
  %3480 = vmatpush.bf16.msra.mxu0 %v1103
  %3481 = vmatpush.bf16.msra.mxu0 %v1095
  %3482 = vmatpush.bf16.msra.mxu0 %v1087
  %3483 = vmatpush.bf16.msra.mxu0 %v1079
  %3484 = vmatpush.bf16.msra.mxu0 %v1071
  %3485 = vmatmul.bf16.gmra.mxu0 %v3333
  %v3486 = vpop.f32.mrf.mxu0
  %v3487 = vadd.f32 %v3474, %v3486
  %v3488 = vpop.f32.mrf.mxu0
  %3489 = vdwg.mxu0
  %3490 = vmatpush.bf16.msra.mxu0 %v1064
  %3491 = vmatpush.bf16.msra.mxu0 %v1056
  %3492 = vmatpush.bf16.msra.mxu0 %v1048
  %3493 = vmatpush.bf16.msra.mxu0 %v1040
  %3494 = vmatpush.bf16.msra.mxu0 %v1032
  %3495 = vmatpush.bf16.msra.mxu0 %v1024
  %3496 = vmatpush.bf16.msra.mxu0 %v1016
  %3497 = vmatpush.bf16.msra.mxu0 %v1008
  %3498 = vmatmul.bf16.gmra.mxu0 %v3332
  %v3499 = vpop.f32.mrf.mxu0
  %v3500 = vadd.f32 0.0, %v3499
  %v3501 = vpop.f32.mrf.mxu0
  %3502 = vdwg.mxu0
  %3503 = vmatpush.bf16.msra.mxu0 %v1128
  %3504 = vmatpush.bf16.msra.mxu0 %v1120
  %3505 = vmatpush.bf16.msra.mxu0 %v1112
  %3506 = vmatpush.bf16.msra.mxu0 %v1104
  %3507 = vmatpush.bf16.msra.mxu0 %v1096
  %3508 = vmatpush.bf16.msra.mxu0 %v1088
  %3509 = vmatpush.bf16.msra.mxu0 %v1080
  %3510 = vmatpush.bf16.msra.mxu0 %v1072
  %3511 = vmatmul.bf16.gmra.mxu0 %v3333
  %v3512 = vpop.f32.mrf.mxu0
  %v3513 = vadd.f32 %v3500, %v3512
  %v3514 = vpop.f32.mrf.mxu0
  %3515 = vdwg.mxu0
  %3516 = vmatpush.bf16.msra.mxu0 %v1065
  %3517 = vmatpush.bf16.msra.mxu0 %v1057
  %3518 = vmatpush.bf16.msra.mxu0 %v1049
  %3519 = vmatpush.bf16.msra.mxu0 %v1041
  %3520 = vmatpush.bf16.msra.mxu0 %v1033
  %3521 = vmatpush.bf16.msra.mxu0 %v1025
  %3522 = vmatpush.bf16.msra.mxu0 %v1017
  %3523 = vmatpush.bf16.msra.mxu0 %v1009
  %3524 = vmatmul.bf16.gmra.mxu0 %v3332
  %v3525 = vpop.f32.mrf.mxu0
  %v3526 = vadd.f32 0.0, %v3525
  %v3527 = vpop.f32.mrf.mxu0
  %3528 = vdwg.mxu0
  %3529 = vmatpush.bf16.msra.mxu0 %v1129
  %3530 = vmatpush.bf16.msra.mxu0 %v1121
  %3531 = vmatpush.bf16.msra.mxu0 %v1113
  %3532 = vmatpush.bf16.msra.mxu0 %v1105
  %3533 = vmatpush.bf16.msra.mxu0 %v1097
  %3534 = vmatpush.bf16.msra.mxu0 %v1089
  %3535 = vmatpush.bf16.msra.mxu0 %v1081
  %3536 = vmatpush.bf16.msra.mxu0 %v1073
  %3537 = vmatmul.bf16.gmra.mxu0 %v3333
  %v3538 = vpop.f32.mrf.mxu0
  %v3539 = vadd.f32 %v3526, %v3538
  %v3540 = vpop.f32.mrf.mxu0
  %3541 = vdwg.mxu0
  %v3542 = vadd.f32 %v282, %v3357
  %v3543 = vadd.f32 %v311, %v3383
  %v3544 = vadd.f32 %v340, %v3409
  %v3545 = vadd.f32 %v369, %v3435
  %v3546 = vadd.f32 %v385, %v3461
  %v3547 = vadd.f32 %v414, %v3487
  %v3548 = vadd.f32 %v443, %v3513
  %v3549 = vadd.f32 %v472, %v3539
  %v3550 = vxor.u32 %v3542, 2147483648
  %v3551 = vmul.f32 %v3550, 1.442695
  %v3552 = vpow.pop %v3551
  %v3553 = vadd.f32 %v3552, 1.0
  %v3554 = vrcp.pop %v3553
  %v3555 = vmul.f32 %v3553, %v3554
  %v3556 = vsub.f32 1.0, %v3555
  %v3557 = vmul.f32 %v3554, %v3556
  %v3558 = vadd.f32 %v3554, %v3557
  %vm3559 = vweird.f32 %v3553
  %vm3560 = vweird.f32 %v3554
  %vm3561 = vmor %vm3559, %vm3560
  %v3562 = vsel %vm3561, %v3554, %v3558
  %v3563 = vand.u32 2147483647, %v3553
  %vm3564 = vcmp.eq.f32.partialorder %v3563, 8.507059e+37
  %v3565 = vand.u32 %v3553, 2147483648
  %v3566 = vor.u32 1.1754944e-38, %v3565
  %v3567 = vsel %vm3564, %v3566, %v3562
  %v3568 = vmul.f32 1.0, %v3567
  %v3569 = vxor.u32 %v3543, 2147483648
  %v3570 = vmul.f32 %v3569, 1.442695
  %v3571 = vpow.pop %v3570
  %v3572 = vadd.f32 %v3571, 1.0
  %v3573 = vrcp.pop %v3572
  %v3574 = vmul.f32 %v3572, %v3573
  %v3575 = vsub.f32 1.0, %v3574
  %v3576 = vmul.f32 %v3573, %v3575
  %v3577 = vadd.f32 %v3573, %v3576
  %vm3578 = vweird.f32 %v3572
  %vm3579 = vweird.f32 %v3573
  %vm3580 = vmor %vm3578, %vm3579
  %v3581 = vsel %vm3580, %v3573, %v3577
  %v3582 = vand.u32 2147483647, %v3572
  %vm3583 = vcmp.eq.f32.partialorder %v3582, 8.507059e+37
  %v3584 = vand.u32 %v3572, 2147483648
  %v3585 = vor.u32 1.1754944e-38, %v3584
  %v3586 = vsel %vm3583, %v3585, %v3581
  %v3587 = vmul.f32 1.0, %v3586
  %v3588 = vtanh.pop %v3544
  %v3589 = vxor.u32 %v3545, 2147483648
  %v3590 = vmul.f32 %v3589, 1.442695
  %v3591 = vpow.pop %v3590
  %v3592 = vadd.f32 %v3591, 1.0
  %v3593 = vrcp.pop %v3592
  %v3594 = vmul.f32 %v3592, %v3593
  %v3595 = vsub.f32 1.0, %v3594
  %v3596 = vmul.f32 %v3593, %v3595
  %v3597 = vadd.f32 %v3593, %v3596
  %vm3598 = vweird.f32 %v3592
  %vm3599 = vweird.f32 %v3593
  %vm3600 = vmor %vm3598, %vm3599
  %v3601 = vsel %vm3600, %v3593, %v3597
  %v3602 = vand.u32 2147483647, %v3592
  %vm3603 = vcmp.eq.f32.partialorder %v3602, 8.507059e+37
  %v3604 = vand.u32 %v3592, 2147483648
  %v3605 = vor.u32 1.1754944e-38, %v3604
  %v3606 = vsel %vm3603, %v3605, %v3601
  %v3607 = vmul.f32 1.0, %v3606
  %v3608 = vmul.f32 %v3587, %v3264
  %v3609 = vmul.f32 %v3568, %v3588
  %v3610 = vadd.f32 %v3608, %v3609
  %v3611 = vtanh.pop %v3610
  %v3612 = vmul.f32 %v3607, %v3611
  %v3613 = vxor.u32 %v3546, 2147483648
  %v3614 = vmul.f32 %v3613, 1.442695
  %v3615 = vpow.pop %v3614
  %v3616 = vadd.f32 %v3615, 1.0
  %v3617 = vrcp.pop %v3616
  %v3618 = vmul.f32 %v3616, %v3617
  %v3619 = vsub.f32 1.0, %v3618
  %v3620 = vmul.f32 %v3617, %v3619
  %v3621 = vadd.f32 %v3617, %v3620
  %vm3622 = vweird.f32 %v3616
  %vm3623 = vweird.f32 %v3617
  %vm3624 = vmor %vm3622, %vm3623
  %v3625 = vsel %vm3624, %v3617, %v3621
  %v3626 = vand.u32 2147483647, %v3616
  %vm3627 = vcmp.eq.f32.partialorder %v3626, 8.507059e+37
  %v3628 = vand.u32 %v3616, 2147483648
  %v3629 = vor.u32 1.1754944e-38, %v3628
  %v3630 = vsel %vm3627, %v3629, %v3625
  %v3631 = vmul.f32 1.0, %v3630
  %v3632 = vxor.u32 %v3547, 2147483648
  %v3633 = vmul.f32 %v3632, 1.442695
  %v3634 = vpow.pop %v3633
  %v3635 = vadd.f32 %v3634, 1.0
  %v3636 = vrcp.pop %v3635
  %v3637 = vmul.f32 %v3635, %v3636
  %v3638 = vsub.f32 1.0, %v3637
  %v3639 = vmul.f32 %v3636, %v3638
  %v3640 = vadd.f32 %v3636, %v3639
  %vm3641 = vweird.f32 %v3635
  %vm3642 = vweird.f32 %v3636
  %vm3643 = vmor %vm3641, %vm3642
  %v3644 = vsel %vm3643, %v3636, %v3640
  %v3645 = vand.u32 2147483647, %v3635
  %vm3646 = vcmp.eq.f32.partialorder %v3645, 8.507059e+37
  %v3647 = vand.u32 %v3635, 2147483648
  %v3648 = vor.u32 1.1754944e-38, %v3647
  %v3649 = vsel %vm3646, %v3648, %v3644
  %v3650 = vmul.f32 1.0, %v3649
  %v3651 = vtanh.pop %v3548
  %v3652 = vxor.u32 %v3549, 2147483648
  %v3653 = vmul.f32 %v3652, 1.442695
  %v3654 = vpow.pop %v3653
  %v3655 = vadd.f32 %v3654, 1.0
  %v3656 = vrcp.pop %v3655
  %v3657 = vmul.f32 %v3655, %v3656
  %v3658 = vsub.f32 1.0, %v3657
  %v3659 = vmul.f32 %v3656, %v3658
  %v3660 = vadd.f32 %v3656, %v3659
  %vm3661 = vweird.f32 %v3655
  %vm3662 = vweird.f32 %v3656
  %vm3663 = vmor %vm3661, %vm3662
  %v3664 = vsel %vm3663, %v3656, %v3660
  %v3665 = vand.u32 2147483647, %v3655
  %vm3666 = vcmp.eq.f32.partialorder %v3665, 8.507059e+37
  %v3667 = vand.u32 %v3655, 2147483648
  %v3668 = vor.u32 1.1754944e-38, %v3667
  %v3669 = vsel %vm3666, %v3668, %v3664
  %v3670 = vmul.f32 1.0, %v3669
  %v3671 = vmul.f32 %v3650, %v3327
  %v3672 = vmul.f32 %v3631, %v3651
  %v3673 = vadd.f32 %v3671, %v3672
  %v3674 = vtanh.pop %v3673
  %v3675 = vmul.f32 %v3670, %v3674
  %3676 = vst [vmem:[#allocation2 + $0x60] sm:$0xff] %v3612
  %3677 = vst [vmem:[#allocation2 + $0x18] sm:$0xff] %v3675
  %v3678 = vpack.c.bf16 %v3612, %v3612
  %v3679 = vpack.c.bf16 %v3675, %v3675
  %3680 = vmatpush.bf16.msra.mxu0 %v1058
  %3681 = vmatpush.bf16.msra.mxu0 %v1050
  %3682 = vmatpush.bf16.msra.mxu0 %v1042
  %3683 = vmatpush.bf16.msra.mxu0 %v1034
  %3684 = vmatpush.bf16.msra.mxu0 %v1026
  %3685 = vmatpush.bf16.msra.mxu0 %v1018
  %3686 = vmatpush.bf16.msra.mxu0 %v1010
  %3687 = vmatpush.bf16.msra.mxu0 %v1002
  %3688 = vmatmul.bf16.gmra.mxu0 %v3678
  %v3689 = vpop.f32.mrf.mxu0
  %v3690 = vadd.f32 0.0, %v3689
  %v3691 = vpop.f32.mrf.mxu0
  %3692 = vdwg.mxu0
  %3693 = vmatpush.bf16.msra.mxu0 %v1122
  %3694 = vmatpush.bf16.msra.mxu0 %v1114
  %3695 = vmatpush.bf16.msra.mxu0 %v1106
  %3696 = vmatpush.bf16.msra.mxu0 %v1098
  %3697 = vmatpush.bf16.msra.mxu0 %v1090
  %3698 = vmatpush.bf16.msra.mxu0 %v1082
  %3699 = vmatpush.bf16.msra.mxu0 %v1074
  %3700 = vmatpush.bf16.msra.mxu0 %v1066
  %3701 = vmatmul.bf16.gmra.mxu0 %v3679
  %v3702 = vpop.f32.mrf.mxu0
  %v3703 = vadd.f32 %v3690, %v3702
  %v3704 = vpop.f32.mrf.mxu0
  %3705 = vdwg.mxu0
  %3706 = vmatpush.bf16.msra.mxu0 %v1059
  %3707 = vmatpush.bf16.msra.mxu0 %v1051
  %3708 = vmatpush.bf16.msra.mxu0 %v1043
  %3709 = vmatpush.bf16.msra.mxu0 %v1035
  %3710 = vmatpush.bf16.msra.mxu0 %v1027
  %3711 = vmatpush.bf16.msra.mxu0 %v1019
  %3712 = vmatpush.bf16.msra.mxu0 %v1011
  %3713 = vmatpush.bf16.msra.mxu0 %v1003
  %3714 = vmatmul.bf16.gmra.mxu0 %v3678
  %v3715 = vpop.f32.mrf.mxu0
  %v3716 = vadd.f32 0.0, %v3715
  %v3717 = vpop.f32.mrf.mxu0
  %3718 = vdwg.mxu0
  %3719 = vmatpush.bf16.msra.mxu0 %v1123
  %3720 = vmatpush.bf16.msra.mxu0 %v1115
  %3721 = vmatpush.bf16.msra.mxu0 %v1107
  %3722 = vmatpush.bf16.msra.mxu0 %v1099
  %3723 = vmatpush.bf16.msra.mxu0 %v1091
  %3724 = vmatpush.bf16.msra.mxu0 %v1083
  %3725 = vmatpush.bf16.msra.mxu0 %v1075
  %3726 = vmatpush.bf16.msra.mxu0 %v1067
  %3727 = vmatmul.bf16.gmra.mxu0 %v3679
  %v3728 = vpop.f32.mrf.mxu0
  %v3729 = vadd.f32 %v3716, %v3728
  %v3730 = vpop.f32.mrf.mxu0
  %3731 = vdwg.mxu0
  %3732 = vmatpush.bf16.msra.mxu0 %v1060
  %3733 = vmatpush.bf16.msra.mxu0 %v1052
  %3734 = vmatpush.bf16.msra.mxu0 %v1044
  %3735 = vmatpush.bf16.msra.mxu0 %v1036
  %3736 = vmatpush.bf16.msra.mxu0 %v1028
  %3737 = vmatpush.bf16.msra.mxu0 %v1020
  %3738 = vmatpush.bf16.msra.mxu0 %v1012
  %3739 = vmatpush.bf16.msra.mxu0 %v1004
  %3740 = vmatmul.bf16.gmra.mxu0 %v3678
  %v3741 = vpop.f32.mrf.mxu0
  %v3742 = vadd.f32 0.0, %v3741
  %v3743 = vpop.f32.mrf.mxu0
  %3744 = vdwg.mxu0
  %3745 = vmatpush.bf16.msra.mxu0 %v1124
  %3746 = vmatpush.bf16.msra.mxu0 %v1116
  %3747 = vmatpush.bf16.msra.mxu0 %v1108
  %3748 = vmatpush.bf16.msra.mxu0 %v1100
  %3749 = vmatpush.bf16.msra.mxu0 %v1092
  %3750 = vmatpush.bf16.msra.mxu0 %v1084
  %3751 = vmatpush.bf16.msra.mxu0 %v1076
  %3752 = vmatpush.bf16.msra.mxu0 %v1068
  %3753 = vmatmul.bf16.gmra.mxu0 %v3679
  %v3754 = vpop.f32.mrf.mxu0
  %v3755 = vadd.f32 %v3742, %v3754
  %v3756 = vpop.f32.mrf.mxu0
  %3757 = vdwg.mxu0
  %3758 = vmatpush.bf16.msra.mxu0 %v1061
  %3759 = vmatpush.bf16.msra.mxu0 %v1053
  %3760 = vmatpush.bf16.msra.mxu0 %v1045
  %3761 = vmatpush.bf16.msra.mxu0 %v1037
  %3762 = vmatpush.bf16.msra.mxu0 %v1029
  %3763 = vmatpush.bf16.msra.mxu0 %v1021
  %3764 = vmatpush.bf16.msra.mxu0 %v1013
  %3765 = vmatpush.bf16.msra.mxu0 %v1005
  %3766 = vmatmul.bf16.gmra.mxu0 %v3678
  %v3767 = vpop.f32.mrf.mxu0
  %v3768 = vadd.f32 0.0, %v3767
  %v3769 = vpop.f32.mrf.mxu0
  %3770 = vdwg.mxu0
  %3771 = vmatpush.bf16.msra.mxu0 %v1125
  %3772 = vmatpush.bf16.msra.mxu0 %v1117
  %3773 = vmatpush.bf16.msra.mxu0 %v1109
  %3774 = vmatpush.bf16.msra.mxu0 %v1101
  %3775 = vmatpush.bf16.msra.mxu0 %v1093
  %3776 = vmatpush.bf16.msra.mxu0 %v1085
  %3777 = vmatpush.bf16.msra.mxu0 %v1077
  %3778 = vmatpush.bf16.msra.mxu0 %v1069
  %3779 = vmatmul.bf16.gmra.mxu0 %v3679
  %v3780 = vpop.f32.mrf.mxu0
  %v3781 = vadd.f32 %v3768, %v3780
  %v3782 = vpop.f32.mrf.mxu0
  %3783 = vdwg.mxu0
  %3784 = vmatpush.bf16.msra.mxu0 %v1062
  %3785 = vmatpush.bf16.msra.mxu0 %v1054
  %3786 = vmatpush.bf16.msra.mxu0 %v1046
  %3787 = vmatpush.bf16.msra.mxu0 %v1038
  %3788 = vmatpush.bf16.msra.mxu0 %v1030
  %3789 = vmatpush.bf16.msra.mxu0 %v1022
  %3790 = vmatpush.bf16.msra.mxu0 %v1014
  %3791 = vmatpush.bf16.msra.mxu0 %v1006
  %3792 = vmatmul.bf16.gmra.mxu0 %v3678
  %v3793 = vpop.f32.mrf.mxu0
  %v3794 = vadd.f32 0.0, %v3793
  %v3795 = vpop.f32.mrf.mxu0
  %3796 = vdwg.mxu0
  %3797 = vmatpush.bf16.msra.mxu0 %v1126
  %3798 = vmatpush.bf16.msra.mxu0 %v1118
  %3799 = vmatpush.bf16.msra.mxu0 %v1110
  %3800 = vmatpush.bf16.msra.mxu0 %v1102
  %3801 = vmatpush.bf16.msra.mxu0 %v1094
  %3802 = vmatpush.bf16.msra.mxu0 %v1086
  %3803 = vmatpush.bf16.msra.mxu0 %v1078
  %3804 = vmatpush.bf16.msra.mxu0 %v1070
  %3805 = vmatmul.bf16.gmra.mxu0 %v3679
  %v3806 = vpop.f32.mrf.mxu0
  %v3807 = vadd.f32 %v3794, %v3806
  %v3808 = vpop.f32.mrf.mxu0
  %3809 = vdwg.mxu0
  %3810 = vmatpush.bf16.msra.mxu0 %v1063
  %3811 = vmatpush.bf16.msra.mxu0 %v1055
  %3812 = vmatpush.bf16.msra.mxu0 %v1047
  %3813 = vmatpush.bf16.msra.mxu0 %v1039
  %3814 = vmatpush.bf16.msra.mxu0 %v1031
  %3815 = vmatpush.bf16.msra.mxu0 %v1023
  %3816 = vmatpush.bf16.msra.mxu0 %v1015
  %3817 = vmatpush.bf16.msra.mxu0 %v1007
  %3818 = vmatmul.bf16.gmra.mxu0 %v3678
  %v3819 = vpop.f32.mrf.mxu0
  %v3820 = vadd.f32 0.0, %v3819
  %v3821 = vpop.f32.mrf.mxu0
  %3822 = vdwg.mxu0
  %3823 = vmatpush.bf16.msra.mxu0 %v1127
  %3824 = vmatpush.bf16.msra.mxu0 %v1119
  %3825 = vmatpush.bf16.msra.mxu0 %v1111
  %3826 = vmatpush.bf16.msra.mxu0 %v1103
  %3827 = vmatpush.bf16.msra.mxu0 %v1095
  %3828 = vmatpush.bf16.msra.mxu0 %v1087
  %3829 = vmatpush.bf16.msra.mxu0 %v1079
  %3830 = vmatpush.bf16.msra.mxu0 %v1071
  %3831 = vmatmul.bf16.gmra.mxu0 %v3679
  %v3832 = vpop.f32.mrf.mxu0
  %v3833 = vadd.f32 %v3820, %v3832
  %v3834 = vpop.f32.mrf.mxu0
  %3835 = vdwg.mxu0
  %3836 = vmatpush.bf16.msra.mxu0 %v1064
  %3837 = vmatpush.bf16.msra.mxu0 %v1056
  %3838 = vmatpush.bf16.msra.mxu0 %v1048
  %3839 = vmatpush.bf16.msra.mxu0 %v1040
  %3840 = vmatpush.bf16.msra.mxu0 %v1032
  %3841 = vmatpush.bf16.msra.mxu0 %v1024
  %3842 = vmatpush.bf16.msra.mxu0 %v1016
  %3843 = vmatpush.bf16.msra.mxu0 %v1008
  %3844 = vmatmul.bf16.gmra.mxu0 %v3678
  %v3845 = vpop.f32.mrf.mxu0
  %v3846 = vadd.f32 0.0, %v3845
  %v3847 = vpop.f32.mrf.mxu0
  %3848 = vdwg.mxu0
  %3849 = vmatpush.bf16.msra.mxu0 %v1128
  %3850 = vmatpush.bf16.msra.mxu0 %v1120
  %3851 = vmatpush.bf16.msra.mxu0 %v1112
  %3852 = vmatpush.bf16.msra.mxu0 %v1104
  %3853 = vmatpush.bf16.msra.mxu0 %v1096
  %3854 = vmatpush.bf16.msra.mxu0 %v1088
  %3855 = vmatpush.bf16.msra.mxu0 %v1080
  %3856 = vmatpush.bf16.msra.mxu0 %v1072
  %3857 = vmatmul.bf16.gmra.mxu0 %v3679
  %v3858 = vpop.f32.mrf.mxu0
  %v3859 = vadd.f32 %v3846, %v3858
  %v3860 = vpop.f32.mrf.mxu0
  %3861 = vdwg.mxu0
  %3862 = vmatpush.bf16.msra.mxu0 %v1065
  %3863 = vmatpush.bf16.msra.mxu0 %v1057
  %3864 = vmatpush.bf16.msra.mxu0 %v1049
  %3865 = vmatpush.bf16.msra.mxu0 %v1041
  %3866 = vmatpush.bf16.msra.mxu0 %v1033
  %3867 = vmatpush.bf16.msra.mxu0 %v1025
  %3868 = vmatpush.bf16.msra.mxu0 %v1017
  %3869 = vmatpush.bf16.msra.mxu0 %v1009
  %3870 = vmatmul.bf16.gmra.mxu0 %v3678
  %v3871 = vpop.f32.mrf.mxu0
  %v3872 = vadd.f32 0.0, %v3871
  %v3873 = vpop.f32.mrf.mxu0
  %3874 = vdwg.mxu0
  %3875 = vmatpush.bf16.msra.mxu0 %v1129
  %3876 = vmatpush.bf16.msra.mxu0 %v1121
  %3877 = vmatpush.bf16.msra.mxu0 %v1113
  %3878 = vmatpush.bf16.msra.mxu0 %v1105
  %3879 = vmatpush.bf16.msra.mxu0 %v1097
  %3880 = vmatpush.bf16.msra.mxu0 %v1089
  %3881 = vmatpush.bf16.msra.mxu0 %v1081
  %3882 = vmatpush.bf16.msra.mxu0 %v1073
  %3883 = vmatmul.bf16.gmra.mxu0 %v3679
  %v3884 = vpop.f32.mrf.mxu0
  %v3885 = vadd.f32 %v3872, %v3884
  %v3886 = vpop.f32.mrf.mxu0
  %3887 = vdwg.mxu0
  %v3888 = vadd.f32 %v284, %v3703
  %v3889 = vadd.f32 %v313, %v3729
  %v3890 = vadd.f32 %v342, %v3755
  %v3891 = vadd.f32 %v371, %v3781
  %v3892 = vadd.f32 %v383, %v3807
  %v3893 = vadd.f32 %v412, %v3833
  %v3894 = vadd.f32 %v441, %v3859
  %v3895 = vadd.f32 %v470, %v3885
  %v3896 = vxor.u32 %v3888, 2147483648
  %v3897 = vmul.f32 %v3896, 1.442695
  %v3898 = vpow.pop %v3897
  %v3899 = vadd.f32 %v3898, 1.0
  %v3900 = vrcp.pop %v3899
  %v3901 = vmul.f32 %v3899, %v3900
  %v3902 = vsub.f32 1.0, %v3901
  %v3903 = vmul.f32 %v3900, %v3902
  %v3904 = vadd.f32 %v3900, %v3903
  %vm3905 = vweird.f32 %v3899
  %vm3906 = vweird.f32 %v3900
  %vm3907 = vmor %vm3905, %vm3906
  %v3908 = vsel %vm3907, %v3900, %v3904
  %v3909 = vand.u32 2147483647, %v3899
  %vm3910 = vcmp.eq.f32.partialorder %v3909, 8.507059e+37
  %v3911 = vand.u32 %v3899, 2147483648
  %v3912 = vor.u32 1.1754944e-38, %v3911
  %v3913 = vsel %vm3910, %v3912, %v3908
  %v3914 = vmul.f32 1.0, %v3913
  %v3915 = vxor.u32 %v3889, 2147483648
  %v3916 = vmul.f32 %v3915, 1.442695
  %v3917 = vpow.pop %v3916
  %v3918 = vadd.f32 %v3917, 1.0
  %v3919 = vrcp.pop %v3918
  %v3920 = vmul.f32 %v3918, %v3919
  %v3921 = vsub.f32 1.0, %v3920
  %v3922 = vmul.f32 %v3919, %v3921
  %v3923 = vadd.f32 %v3919, %v3922
  %vm3924 = vweird.f32 %v3918
  %vm3925 = vweird.f32 %v3919
  %vm3926 = vmor %vm3924, %vm3925
  %v3927 = vsel %vm3926, %v3919, %v3923
  %v3928 = vand.u32 2147483647, %v3918
  %vm3929 = vcmp.eq.f32.partialorder %v3928, 8.507059e+37
  %v3930 = vand.u32 %v3918, 2147483648
  %v3931 = vor.u32 1.1754944e-38, %v3930
  %v3932 = vsel %vm3929, %v3931, %v3927
  %v3933 = vmul.f32 1.0, %v3932
  %v3934 = vtanh.pop %v3890
  %v3935 = vxor.u32 %v3891, 2147483648
  %v3936 = vmul.f32 %v3935, 1.442695
  %v3937 = vpow.pop %v3936
  %v3938 = vadd.f32 %v3937, 1.0
  %v3939 = vrcp.pop %v3938
  %v3940 = vmul.f32 %v3938, %v3939
  %v3941 = vsub.f32 1.0, %v3940
  %v3942 = vmul.f32 %v3939, %v3941
  %v3943 = vadd.f32 %v3939, %v3942
  %vm3944 = vweird.f32 %v3938
  %vm3945 = vweird.f32 %v3939
  %vm3946 = vmor %vm3944, %vm3945
  %v3947 = vsel %vm3946, %v3939, %v3943
  %v3948 = vand.u32 2147483647, %v3938
  %vm3949 = vcmp.eq.f32.partialorder %v3948, 8.507059e+37
  %v3950 = vand.u32 %v3938, 2147483648
  %v3951 = vor.u32 1.1754944e-38, %v3950
  %v3952 = vsel %vm3949, %v3951, %v3947
  %v3953 = vmul.f32 1.0, %v3952
  %v3954 = vmul.f32 %v3933, %v3610
  %v3955 = vmul.f32 %v3914, %v3934
  %v3956 = vadd.f32 %v3954, %v3955
  %v3957 = vtanh.pop %v3956
  %v3958 = vmul.f32 %v3953, %v3957
  %v3959 = vxor.u32 %v3892, 2147483648
  %v3960 = vmul.f32 %v3959, 1.442695
  %v3961 = vpow.pop %v3960
  %v3962 = vadd.f32 %v3961, 1.0
  %v3963 = vrcp.pop %v3962
  %v3964 = vmul.f32 %v3962, %v3963
  %v3965 = vsub.f32 1.0, %v3964
  %v3966 = vmul.f32 %v3963, %v3965
  %v3967 = vadd.f32 %v3963, %v3966
  %vm3968 = vweird.f32 %v3962
  %vm3969 = vweird.f32 %v3963
  %vm3970 = vmor %vm3968, %vm3969
  %v3971 = vsel %vm3970, %v3963, %v3967
  %v3972 = vand.u32 2147483647, %v3962
  %vm3973 = vcmp.eq.f32.partialorder %v3972, 8.507059e+37
  %v3974 = vand.u32 %v3962, 2147483648
  %v3975 = vor.u32 1.1754944e-38, %v3974
  %v3976 = vsel %vm3973, %v3975, %v3971
  %v3977 = vmul.f32 1.0, %v3976
  %v3978 = vxor.u32 %v3893, 2147483648
  %v3979 = vmul.f32 %v3978, 1.442695
  %v3980 = vpow.pop %v3979
  %v3981 = vadd.f32 %v3980, 1.0
  %v3982 = vrcp.pop %v3981
  %v3983 = vmul.f32 %v3981, %v3982
  %v3984 = vsub.f32 1.0, %v3983
  %v3985 = vmul.f32 %v3982, %v3984
  %v3986 = vadd.f32 %v3982, %v3985
  %vm3987 = vweird.f32 %v3981
  %vm3988 = vweird.f32 %v3982
  %vm3989 = vmor %vm3987, %vm3988
  %v3990 = vsel %vm3989, %v3982, %v3986
  %v3991 = vand.u32 2147483647, %v3981
  %vm3992 = vcmp.eq.f32.partialorder %v3991, 8.507059e+37
  %v3993 = vand.u32 %v3981, 2147483648
  %v3994 = vor.u32 1.1754944e-38, %v3993
  %v3995 = vsel %vm3992, %v3994, %v3990
  %v3996 = vmul.f32 1.0, %v3995
  %v3997 = vtanh.pop %v3894
  %v3998 = vxor.u32 %v3895, 2147483648
  %v3999 = vmul.f32 %v3998, 1.442695
  %v4000 = vpow.pop %v3999
  %v4001 = vadd.f32 %v4000, 1.0
  %v4002 = vrcp.pop %v4001
  %v4003 = vmul.f32 %v4001, %v4002
  %v4004 = vsub.f32 1.0, %v4003
  %v4005 = vmul.f32 %v4002, %v4004
  %v4006 = vadd.f32 %v4002, %v4005
  %vm4007 = vweird.f32 %v4001
  %vm4008 = vweird.f32 %v4002
  %vm4009 = vmor %vm4007, %vm4008
  %v4010 = vsel %vm4009, %v4002, %v4006
  %v4011 = vand.u32 2147483647, %v4001
  %vm4012 = vcmp.eq.f32.partialorder %v4011, 8.507059e+37
  %v4013 = vand.u32 %v4001, 2147483648
  %v4014 = vor.u32 1.1754944e-38, %v4013
  %v4015 = vsel %vm4012, %v4014, %v4010
  %v4016 = vmul.f32 1.0, %v4015
  %v4017 = vmul.f32 %v3996, %v3673
  %v4018 = vmul.f32 %v3977, %v3997
  %v4019 = vadd.f32 %v4017, %v4018
  %v4020 = vtanh.pop %v4019
  %v4021 = vmul.f32 %v4016, %v4020
  %4022 = vst [vmem:[#allocation2 + $0x70] sm:$0xff] %v3958
  %4023 = vst [vmem:[#allocation2 + $0x8] sm:$0xff] %v4021
  %v4024 = vld [vmem:[#allocation2] sm:$0xff]
  %v4025 = vld [vmem:[#allocation2 + $0x8] sm:$0xff]
  %v4026 = vld [vmem:[#allocation2 + $0x10] sm:$0xff]
  %v4027 = vld [vmem:[#allocation2 + $0x18] sm:$0xff]
  %v4028 = vld [vmem:[#allocation2 + $0x20] sm:$0xff]
  %v4029 = vld [vmem:[#allocation2 + $0x28] sm:$0xff]
  %v4030 = vld [vmem:[#allocation2 + $0x30] sm:$0xff]
  %v4031 = vld [vmem:[#allocation2 + $0x38] sm:$0xff]
  %v4032 = vld [vmem:[#allocation2 + $0x40] sm:$0xff]
  %v4033 = vld [vmem:[#allocation2 + $0x48] sm:$0xff]
  %v4034 = vld [vmem:[#allocation2 + $0x50] sm:$0xff]
  %v4035 = vld [vmem:[#allocation2 + $0x58] sm:$0xff]
  %v4036 = vld [vmem:[#allocation2 + $0x60] sm:$0xff]
  %v4037 = vld [vmem:[#allocation2 + $0x68] sm:$0xff]
  %v4038 = vld [vmem:[#allocation2 + $0x70] sm:$0xff]
  %v4039 = vld [vmem:[#allocation2 + $0x78] sm:$0xff]
  %v4040 = vpack.c.bf16 %v4025, %v4024
  %v4041 = vpack.c.bf16 %v4027, %v4026
  %v4042 = vpack.c.bf16 %v4029, %v4028
  %v4043 = vpack.c.bf16 %v4031, %v4030
  %v4044 = vpack.c.bf16 %v4033, %v4032
  %v4045 = vpack.c.bf16 %v4035, %v4034
  %v4046 = vpack.c.bf16 %v4037, %v4036
  %v4047 = vpack.c.bf16 %v4039, %v4038
  %v4048 = vld [vmem:[%s3] sm:$0xff]
  %v4049 = vld [vmem:[%s3 + $0x8] sm:$0xff]
  %v4050 = vld [vmem:[%s3 + $0x10] sm:$0xff]
  %v4051 = vld [vmem:[%s3 + $0x18] sm:$0xff]
  %v4052 = vld [vmem:[%s3 + $0x20] sm:$0xff]
  %v4053 = vld [vmem:[%s3 + $0x28] sm:$0xff]
  %v4054 = vld [vmem:[%s3 + $0x30] sm:$0xff]
  %v4055 = vld [vmem:[%s3 + $0x38] sm:$0xff]
  %v4056 = vld [vmem:[%s3 + $0x40] sm:$0xff]
  %v4057 = vld [vmem:[%s3 + $0x48] sm:$0xff]
  %v4058 = vld [vmem:[%s3 + $0x50] sm:$0xff]
  %v4059 = vld [vmem:[%s3 + $0x58] sm:$0xff]
  %v4060 = vld [vmem:[%s3 + $0x60] sm:$0xff]
  %v4061 = vld [vmem:[%s3 + $0x68] sm:$0xff]
  %v4062 = vld [vmem:[%s3 + $0x70] sm:$0xff]
  %v4063 = vld [vmem:[%s3 + $0x78] sm:$0xff]
  %v4064 = vld [vmem:[%s3 + $0x80] sm:$0xff]
  %v4065 = vld [vmem:[%s3 + $0x88] sm:$0xff]
  %v4066 = vld [vmem:[%s3 + $0x90] sm:$0xff]
  %v4067 = vld [vmem:[%s3 + $0x98] sm:$0xff]
  %v4068 = vld [vmem:[%s3 + $0xa0] sm:$0xff]
  %v4069 = vld [vmem:[%s3 + $0xa8] sm:$0xff]
  %v4070 = vld [vmem:[%s3 + $0xb0] sm:$0xff]
  %v4071 = vld [vmem:[%s3 + $0xb8] sm:$0xff]
  %v4072 = vld [vmem:[%s3 + $0xc0] sm:$0xff]
  %v4073 = vld [vmem:[%s3 + $0xc8] sm:$0xff]
  %v4074 = vld [vmem:[%s3 + $0xd0] sm:$0xff]
  %v4075 = vld [vmem:[%s3 + $0xd8] sm:$0xff]
  %v4076 = vld [vmem:[%s3 + $0xe0] sm:$0xff]
  %v4077 = vld [vmem:[%s3 + $0xe8] sm:$0xff]
  %v4078 = vld [vmem:[%s3 + $0xf0] sm:$0xff]
  %v4079 = vld [vmem:[%s3 + $0xf8] sm:$0xff]
  %v4080 = vld [vmem:[%s3 + $0x100] sm:$0xff]
  %v4081 = vld [vmem:[%s3 + $0x108] sm:$0xff]
  %v4082 = vld [vmem:[%s3 + $0x110] sm:$0xff]
  %v4083 = vld [vmem:[%s3 + $0x118] sm:$0xff]
  %v4084 = vld [vmem:[%s3 + $0x120] sm:$0xff]
  %v4085 = vld [vmem:[%s3 + $0x128] sm:$0xff]
  %v4086 = vld [vmem:[%s3 + $0x130] sm:$0xff]
  %v4087 = vld [vmem:[%s3 + $0x138] sm:$0xff]
  %v4088 = vld [vmem:[%s3 + $0x140] sm:$0xff]
  %v4089 = vld [vmem:[%s3 + $0x148] sm:$0xff]
  %v4090 = vld [vmem:[%s3 + $0x150] sm:$0xff]
  %v4091 = vld [vmem:[%s3 + $0x158] sm:$0xff]
  %v4092 = vld [vmem:[%s3 + $0x160] sm:$0xff]
  %v4093 = vld [vmem:[%s3 + $0x168] sm:$0xff]
  %v4094 = vld [vmem:[%s3 + $0x170] sm:$0xff]
  %v4095 = vld [vmem:[%s3 + $0x178] sm:$0xff]
  %v4096 = vld [vmem:[%s3 + $0x180] sm:$0xff]
  %v4097 = vld [vmem:[%s3 + $0x188] sm:$0xff]
  %v4098 = vld [vmem:[%s3 + $0x190] sm:$0xff]
  %v4099 = vld [vmem:[%s3 + $0x198] sm:$0xff]
  %v4100 = vld [vmem:[%s3 + $0x1a0] sm:$0xff]
  %v4101 = vld [vmem:[%s3 + $0x1a8] sm:$0xff]
  %v4102 = vld [vmem:[%s3 + $0x1b0] sm:$0xff]
  %v4103 = vld [vmem:[%s3 + $0x1b8] sm:$0xff]
  %v4104 = vld [vmem:[%s3 + $0x1c0] sm:$0xff]
  %v4105 = vld [vmem:[%s3 + $0x1c8] sm:$0xff]
  %v4106 = vld [vmem:[%s3 + $0x1d0] sm:$0xff]
  %v4107 = vld [vmem:[%s3 + $0x1d8] sm:$0xff]
  %v4108 = vld [vmem:[%s3 + $0x1e0] sm:$0xff]
  %v4109 = vld [vmem:[%s3 + $0x1e8] sm:$0xff]
  %v4110 = vld [vmem:[%s3 + $0x1f0] sm:$0xff]
  %v4111 = vld [vmem:[%s3 + $0x1f8] sm:$0xff]
  %v4120 = vunpack.c.l.b16 %v4040
  %v4121 = vunpack.c.h.b16 %v4040
  %v4122 = vunpack.c.l.b16 %v4041
  %v4123 = vunpack.c.h.b16 %v4041
  %v4124 = vunpack.c.l.b16 %v4042
  %v4125 = vunpack.c.h.b16 %v4042
  %v4126 = vunpack.c.l.b16 %v4043
  %v4127 = vunpack.c.h.b16 %v4043
  %v4128 = vunpack.c.l.b16 %v4044
  %v4129 = vunpack.c.h.b16 %v4044
  %v4130 = vunpack.c.l.b16 %v4045
  %v4131 = vunpack.c.h.b16 %v4045
  %v4132 = vunpack.c.l.b16 %v4046
  %v4133 = vunpack.c.h.b16 %v4046
  %v4134 = vunpack.c.l.b16 %v4047
  %v4135 = vunpack.c.h.b16 %v4047
  %v4136 = vpack.c.b16 %v4122, %v4120
  %v4137 = vpack.c.b16 %v4123, %v4121
  %v4138 = vpack.c.b16 %v4126, %v4124
  %v4139 = vpack.c.b16 %v4127, %v4125
  %v4140 = vpack.c.b16 %v4130, %v4128
  %v4141 = vpack.c.b16 %v4131, %v4129
  %v4142 = vpack.c.b16 %v4134, %v4132
  %v4143 = vpack.c.b16 %v4135, %v4133
  %v4216 = vunpack.c.l.b16 %v4048
  %v4217 = vunpack.c.h.b16 %v4048
  %v4218 = vunpack.c.l.b16 %v4049
  %v4219 = vunpack.c.h.b16 %v4049
  %v4220 = vunpack.c.l.b16 %v4050
  %v4221 = vunpack.c.h.b16 %v4050
  %v4222 = vunpack.c.l.b16 %v4051
  %v4223 = vunpack.c.h.b16 %v4051
  %v4224 = vunpack.c.l.b16 %v4052
  %v4225 = vunpack.c.h.b16 %v4052
  %v4226 = vunpack.c.l.b16 %v4053
  %v4227 = vunpack.c.h.b16 %v4053
  %v4228 = vunpack.c.l.b16 %v4054
  %v4229 = vunpack.c.h.b16 %v4054
  %v4230 = vunpack.c.l.b16 %v4055
  %v4231 = vunpack.c.h.b16 %v4055
  %v4232 = vunpack.c.l.b16 %v4056
  %v4233 = vunpack.c.h.b16 %v4056
  %v4234 = vunpack.c.l.b16 %v4057
  %v4235 = vunpack.c.h.b16 %v4057
  %v4236 = vunpack.c.l.b16 %v4058
  %v4237 = vunpack.c.h.b16 %v4058
  %v4238 = vunpack.c.l.b16 %v4059
  %v4239 = vunpack.c.h.b16 %v4059
  %v4240 = vunpack.c.l.b16 %v4060
  %v4241 = vunpack.c.h.b16 %v4060
  %v4242 = vunpack.c.l.b16 %v4061
  %v4243 = vunpack.c.h.b16 %v4061
  %v4244 = vunpack.c.l.b16 %v4062
  %v4245 = vunpack.c.h.b16 %v4062
  %v4246 = vunpack.c.l.b16 %v4063
  %v4247 = vunpack.c.h.b16 %v4063
  %v4248 = vunpack.c.l.b16 %v4064
  %v4249 = vunpack.c.h.b16 %v4064
  %v4250 = vunpack.c.l.b16 %v4065
  %v4251 = vunpack.c.h.b16 %v4065
  %v4252 = vunpack.c.l.b16 %v4066
  %v4253 = vunpack.c.h.b16 %v4066
  %v4254 = vunpack.c.l.b16 %v4067
  %v4255 = vunpack.c.h.b16 %v4067
  %v4256 = vunpack.c.l.b16 %v4068
  %v4257 = vunpack.c.h.b16 %v4068
  %v4258 = vunpack.c.l.b16 %v4069
  %v4259 = vunpack.c.h.b16 %v4069
  %v4260 = vunpack.c.l.b16 %v4070
  %v4261 = vunpack.c.h.b16 %v4070
  %v4262 = vunpack.c.l.b16 %v4071
  %v4263 = vunpack.c.h.b16 %v4071
  %v4264 = vunpack.c.l.b16 %v4072
  %v4265 = vunpack.c.h.b16 %v4072
  %v4266 = vunpack.c.l.b16 %v4073
  %v4267 = vunpack.c.h.b16 %v4073
  %v4268 = vunpack.c.l.b16 %v4074
  %v4269 = vunpack.c.h.b16 %v4074
  %v4270 = vunpack.c.l.b16 %v4075
  %v4271 = vunpack.c.h.b16 %v4075
  %v4272 = vunpack.c.l.b16 %v4076
  %v4273 = vunpack.c.h.b16 %v4076
  %v4274 = vunpack.c.l.b16 %v4077
  %v4275 = vunpack.c.h.b16 %v4077
  %v4276 = vunpack.c.l.b16 %v4078
  %v4277 = vunpack.c.h.b16 %v4078
  %v4278 = vunpack.c.l.b16 %v4079
  %v4279 = vunpack.c.h.b16 %v4079
  %v4280 = vunpack.c.l.b16 %v4080
  %v4281 = vunpack.c.h.b16 %v4080
  %v4282 = vunpack.c.l.b16 %v4081
  %v4283 = vunpack.c.h.b16 %v4081
  %v4284 = vunpack.c.l.b16 %v4082
  %v4285 = vunpack.c.h.b16 %v4082
  %v4286 = vunpack.c.l.b16 %v4083
  %v4287 = vunpack.c.h.b16 %v4083
  %v4288 = vunpack.c.l.b16 %v4084
  %v4289 = vunpack.c.h.b16 %v4084
  %v4290 = vunpack.c.l.b16 %v4085
  %v4291 = vunpack.c.h.b16 %v4085
  %v4292 = vunpack.c.l.b16 %v4086
  %v4293 = vunpack.c.h.b16 %v4086
  %v4294 = vunpack.c.l.b16 %v4087
  %v4295 = vunpack.c.h.b16 %v4087
  %v4296 = vunpack.c.l.b16 %v4088
  %v4297 = vunpack.c.h.b16 %v4088
  %v4298 = vunpack.c.l.b16 %v4089
  %v4299 = vunpack.c.h.b16 %v4089
  %v4300 = vunpack.c.l.b16 %v4090
  %v4301 = vunpack.c.h.b16 %v4090
  %v4302 = vunpack.c.l.b16 %v4091
  %v4303 = vunpack.c.h.b16 %v4091
  %v4304 = vunpack.c.l.b16 %v4092
  %v4305 = vunpack.c.h.b16 %v4092
  %v4306 = vunpack.c.l.b16 %v4093
  %v4307 = vunpack.c.h.b16 %v4093
  %v4308 = vunpack.c.l.b16 %v4094
  %v4309 = vunpack.c.h.b16 %v4094
  %v4310 = vunpack.c.l.b16 %v4095
  %v4311 = vunpack.c.h.b16 %v4095
  %v4312 = vunpack.c.l.b16 %v4096
  %v4313 = vunpack.c.h.b16 %v4096
  %v4314 = vunpack.c.l.b16 %v4097
  %v4315 = vunpack.c.h.b16 %v4097
  %v4316 = vunpack.c.l.b16 %v4098
  %v4317 = vunpack.c.h.b16 %v4098
  %v4318 = vunpack.c.l.b16 %v4099
  %v4319 = vunpack.c.h.b16 %v4099
  %v4320 = vunpack.c.l.b16 %v4100
  %v4321 = vunpack.c.h.b16 %v4100
  %v4322 = vunpack.c.l.b16 %v4101
  %v4323 = vunpack.c.h.b16 %v4101
  %v4324 = vunpack.c.l.b16 %v4102
  %v4325 = vunpack.c.h.b16 %v4102
  %v4326 = vunpack.c.l.b16 %v4103
  %v4327 = vunpack.c.h.b16 %v4103
  %v4328 = vunpack.c.l.b16 %v4104
  %v4329 = vunpack.c.h.b16 %v4104
  %v4330 = vunpack.c.l.b16 %v4105
  %v4331 = vunpack.c.h.b16 %v4105
  %v4332 = vunpack.c.l.b16 %v4106
  %v4333 = vunpack.c.h.b16 %v4106
  %v4334 = vunpack.c.l.b16 %v4107
  %v4335 = vunpack.c.h.b16 %v4107
  %v4336 = vunpack.c.l.b16 %v4108
  %v4337 = vunpack.c.h.b16 %v4108
  %v4338 = vunpack.c.l.b16 %v4109
  %v4339 = vunpack.c.h.b16 %v4109
  %v4340 = vunpack.c.l.b16 %v4110
  %v4341 = vunpack.c.h.b16 %v4110
  %v4342 = vunpack.c.l.b16 %v4111
  %v4343 = vunpack.c.h.b16 %v4111
  %v4344 = vpack.c.b16 %v4220, %v4216
  %v4345 = vpack.c.b16 %v4221, %v4217
  %v4346 = vpack.c.b16 %v4222, %v4218
  %v4347 = vpack.c.b16 %v4223, %v4219
  %v4348 = vpack.c.b16 %v4228, %v4224
  %v4349 = vpack.c.b16 %v4229, %v4225
  %v4350 = vpack.c.b16 %v4230, %v4226
  %v4351 = vpack.c.b16 %v4231, %v4227
  %v4352 = vpack.c.b16 %v4236, %v4232
  %v4353 = vpack.c.b16 %v4237, %v4233
  %v4354 = vpack.c.b16 %v4238, %v4234
  %v4355 = vpack.c.b16 %v4239, %v4235
  %v4356 = vpack.c.b16 %v4244, %v4240
  %v4357 = vpack.c.b16 %v4245, %v4241
  %v4358 = vpack.c.b16 %v4246, %v4242
  %v4359 = vpack.c.b16 %v4247, %v4243
  %v4360 = vpack.c.b16 %v4252, %v4248
  %v4361 = vpack.c.b16 %v4253, %v4249
  %v4362 = vpack.c.b16 %v4254, %v4250
  %v4363 = vpack.c.b16 %v4255, %v4251
  %v4364 = vpack.c.b16 %v4260, %v4256
  %v4365 = vpack.c.b16 %v4261, %v4257
  %v4366 = vpack.c.b16 %v4262, %v4258
  %v4367 = vpack.c.b16 %v4263, %v4259
  %v4368 = vpack.c.b16 %v4268, %v4264
  %v4369 = vpack.c.b16 %v4269, %v4265
  %v4370 = vpack.c.b16 %v4270, %v4266
  %v4371 = vpack.c.b16 %v4271, %v4267
  %v4372 = vpack.c.b16 %v4276, %v4272
  %v4373 = vpack.c.b16 %v4277, %v4273
  %v4374 = vpack.c.b16 %v4278, %v4274
  %v4375 = vpack.c.b16 %v4279, %v4275
  %v4376 = vpack.c.b16 %v4284, %v4280
  %v4377 = vpack.c.b16 %v4285, %v4281
  %v4378 = vpack.c.b16 %v4286, %v4282
  %v4379 = vpack.c.b16 %v4287, %v4283
  %v4380 = vpack.c.b16 %v4292, %v4288
  %v4381 = vpack.c.b16 %v4293, %v4289
  %v4382 = vpack.c.b16 %v4294, %v4290
  %v4383 = vpack.c.b16 %v4295, %v4291
  %v4384 = vpack.c.b16 %v4300, %v4296
  %v4385 = vpack.c.b16 %v4301, %v4297
  %v4386 = vpack.c.b16 %v4302, %v4298
  %v4387 = vpack.c.b16 %v4303, %v4299
  %v4388 = vpack.c.b16 %v4308, %v4304
  %v4389 = vpack.c.b16 %v4309, %v4305
  %v4390 = vpack.c.b16 %v4310, %v4306
  %v4391 = vpack.c.b16 %v4311, %v4307
  %v4392 = vpack.c.b16 %v4316, %v4312
  %v4393 = vpack.c.b16 %v4317, %v4313
  %v4394 = vpack.c.b16 %v4318, %v4314
  %v4395 = vpack.c.b16 %v4319, %v4315
  %v4396 = vpack.c.b16 %v4324, %v4320
  %v4397 = vpack.c.b16 %v4325, %v4321
  %v4398 = vpack.c.b16 %v4326, %v4322
  %v4399 = vpack.c.b16 %v4327, %v4323
  %v4400 = vpack.c.b16 %v4332, %v4328
  %v4401 = vpack.c.b16 %v4333, %v4329
  %v4402 = vpack.c.b16 %v4334, %v4330
  %v4403 = vpack.c.b16 %v4335, %v4331
  %v4404 = vpack.c.b16 %v4340, %v4336
  %v4405 = vpack.c.b16 %v4341, %v4337
  %v4406 = vpack.c.b16 %v4342, %v4338
  %v4407 = vpack.c.b16 %v4343, %v4339
  %4472 = vmatpush.bf16.msra.mxu0 %v4372
  %4473 = vmatpush.bf16.msra.mxu0 %v4368
  %4474 = vmatpush.bf16.msra.mxu0 %v4364
  %4475 = vmatpush.bf16.msra.mxu0 %v4360
  %4476 = vmatpush.bf16.msra.mxu0 %v4356
  %4477 = vmatpush.bf16.msra.mxu0 %v4352
  %4478 = vmatpush.bf16.msra.mxu0 %v4348
  %4479 = vmatpush.bf16.msra.mxu0 %v4344
  %4480 = vmatmul.bf16.gmra.mxu0 %v4136
  %v4481 = vpop.f32.mrf.mxu0
  %v4482 = vadd.f32 0.0, %v4481
  %v4483 = vpop.f32.mrf.mxu0
  %v4484 = vadd.f32 0.0, %v4483
  %4485 = vmatmul.bf16.gmra.mxu0 %v4138
  %v4486 = vpop.f32.mrf.mxu0
  %v4487 = vadd.f32 0.0, %v4486
  %v4488 = vpop.f32.mrf.mxu0
  %v4489 = vadd.f32 0.0, %v4488
  %4490 = vmatmul.bf16.gmra.mxu0 %v4140
  %v4491 = vpop.f32.mrf.mxu0
  %v4492 = vadd.f32 0.0, %v4491
  %v4493 = vpop.f32.mrf.mxu0
  %v4494 = vadd.f32 0.0, %v4493
  %4495 = vmatmul.bf16.gmra.mxu0 %v4142
  %v4496 = vpop.f32.mrf.mxu0
  %v4497 = vadd.f32 0.0, %v4496
  %v4498 = vpop.f32.mrf.mxu0
  %v4499 = vadd.f32 0.0, %v4498
  %4500 = vdwg.mxu0
  %4501 = vmatpush.bf16.msra.mxu0 %v4404
  %4502 = vmatpush.bf16.msra.mxu0 %v4400
  %4503 = vmatpush.bf16.msra.mxu0 %v4396
  %4504 = vmatpush.bf16.msra.mxu0 %v4392
  %4505 = vmatpush.bf16.msra.mxu0 %v4388
  %4506 = vmatpush.bf16.msra.mxu0 %v4384
  %4507 = vmatpush.bf16.msra.mxu0 %v4380
  %4508 = vmatpush.bf16.msra.mxu0 %v4376
  %4509 = vmatmul.bf16.gmra.mxu0 %v4137
  %v4510 = vpop.f32.mrf.mxu0
  %v4511 = vadd.f32 %v4482, %v4510
  %v4512 = vpop.f32.mrf.mxu0
  %v4513 = vadd.f32 %v4484, %v4512
  %4514 = vmatmul.bf16.gmra.mxu0 %v4139
  %v4515 = vpop.f32.mrf.mxu0
  %v4516 = vadd.f32 %v4487, %v4515
  %v4517 = vpop.f32.mrf.mxu0
  %v4518 = vadd.f32 %v4489, %v4517
  %4519 = vmatmul.bf16.gmra.mxu0 %v4141
  %v4520 = vpop.f32.mrf.mxu0
  %v4521 = vadd.f32 %v4492, %v4520
  %v4522 = vpop.f32.mrf.mxu0
  %v4523 = vadd.f32 %v4494, %v4522
  %4524 = vmatmul.bf16.gmra.mxu0 %v4143
  %v4525 = vpop.f32.mrf.mxu0
  %v4526 = vadd.f32 %v4497, %v4525
  %v4527 = vpop.f32.mrf.mxu0
  %v4528 = vadd.f32 %v4499, %v4527
  %4529 = vdwg.mxu0
  %4530 = vmatpush.bf16.msra.mxu0 %v4373
  %4531 = vmatpush.bf16.msra.mxu0 %v4369
  %4532 = vmatpush.bf16.msra.mxu0 %v4365
  %4533 = vmatpush.bf16.msra.mxu0 %v4361
  %4534 = vmatpush.bf16.msra.mxu0 %v4357
  %4535 = vmatpush.bf16.msra.mxu0 %v4353
  %4536 = vmatpush.bf16.msra.mxu0 %v4349
  %4537 = vmatpush.bf16.msra.mxu0 %v4345
  %4538 = vmatmul.bf16.gmra.mxu0 %v4136
  %v4539 = vpop.f32.mrf.mxu0
  %v4540 = vadd.f32 0.0, %v4539
  %v4541 = vpop.f32.mrf.mxu0
  %v4542 = vadd.f32 0.0, %v4541
  %4543 = vmatmul.bf16.gmra.mxu0 %v4138
  %v4544 = vpop.f32.mrf.mxu0
  %v4545 = vadd.f32 0.0, %v4544
  %v4546 = vpop.f32.mrf.mxu0
  %v4547 = vadd.f32 0.0, %v4546
  %4548 = vmatmul.bf16.gmra.mxu0 %v4140
  %v4549 = vpop.f32.mrf.mxu0
  %v4550 = vadd.f32 0.0, %v4549
  %v4551 = vpop.f32.mrf.mxu0
  %v4552 = vadd.f32 0.0, %v4551
  %4553 = vmatmul.bf16.gmra.mxu0 %v4142
  %v4554 = vpop.f32.mrf.mxu0
  %v4555 = vadd.f32 0.0, %v4554
  %v4556 = vpop.f32.mrf.mxu0
  %v4557 = vadd.f32 0.0, %v4556
  %4558 = vdwg.mxu0
  %4559 = vmatpush.bf16.msra.mxu0 %v4405
  %4560 = vmatpush.bf16.msra.mxu0 %v4401
  %4561 = vmatpush.bf16.msra.mxu0 %v4397
  %4562 = vmatpush.bf16.msra.mxu0 %v4393
  %4563 = vmatpush.bf16.msra.mxu0 %v4389
  %4564 = vmatpush.bf16.msra.mxu0 %v4385
  %4565 = vmatpush.bf16.msra.mxu0 %v4381
  %4566 = vmatpush.bf16.msra.mxu0 %v4377
  %4567 = vmatmul.bf16.gmra.mxu0 %v4137
  %v4568 = vpop.f32.mrf.mxu0
  %v4569 = vadd.f32 %v4540, %v4568
  %v4570 = vpop.f32.mrf.mxu0
  %v4571 = vadd.f32 %v4542, %v4570
  %4572 = vmatmul.bf16.gmra.mxu0 %v4139
  %v4573 = vpop.f32.mrf.mxu0
  %v4574 = vadd.f32 %v4545, %v4573
  %v4575 = vpop.f32.mrf.mxu0
  %v4576 = vadd.f32 %v4547, %v4575
  %4577 = vmatmul.bf16.gmra.mxu0 %v4141
  %v4578 = vpop.f32.mrf.mxu0
  %v4579 = vadd.f32 %v4550, %v4578
  %v4580 = vpop.f32.mrf.mxu0
  %v4581 = vadd.f32 %v4552, %v4580
  %4582 = vmatmul.bf16.gmra.mxu0 %v4143
  %v4583 = vpop.f32.mrf.mxu0
  %v4584 = vadd.f32 %v4555, %v4583
  %v4585 = vpop.f32.mrf.mxu0
  %v4586 = vadd.f32 %v4557, %v4585
  %4587 = vdwg.mxu0
  %4588 = vmatpush.bf16.msra.mxu0 %v4374
  %4589 = vmatpush.bf16.msra.mxu0 %v4370
  %4590 = vmatpush.bf16.msra.mxu0 %v4366
  %4591 = vmatpush.bf16.msra.mxu0 %v4362
  %4592 = vmatpush.bf16.msra.mxu0 %v4358
  %4593 = vmatpush.bf16.msra.mxu0 %v4354
  %4594 = vmatpush.bf16.msra.mxu0 %v4350
  %4595 = vmatpush.bf16.msra.mxu0 %v4346
  %4596 = vmatmul.bf16.gmra.mxu0 %v4136
  %v4597 = vpop.f32.mrf.mxu0
  %v4598 = vadd.f32 0.0, %v4597
  %v4599 = vpop.f32.mrf.mxu0
  %v4600 = vadd.f32 0.0, %v4599
  %4601 = vmatmul.bf16.gmra.mxu0 %v4138
  %v4602 = vpop.f32.mrf.mxu0
  %v4603 = vadd.f32 0.0, %v4602
  %v4604 = vpop.f32.mrf.mxu0
  %v4605 = vadd.f32 0.0, %v4604
  %4606 = vmatmul.bf16.gmra.mxu0 %v4140
  %v4607 = vpop.f32.mrf.mxu0
  %v4608 = vadd.f32 0.0, %v4607
  %v4609 = vpop.f32.mrf.mxu0
  %v4610 = vadd.f32 0.0, %v4609
  %4611 = vmatmul.bf16.gmra.mxu0 %v4142
  %v4612 = vpop.f32.mrf.mxu0
  %v4613 = vadd.f32 0.0, %v4612
  %v4614 = vpop.f32.mrf.mxu0
  %v4615 = vadd.f32 0.0, %v4614
  %4616 = vdwg.mxu0
  %4617 = vmatpush.bf16.msra.mxu0 %v4406
  %4618 = vmatpush.bf16.msra.mxu0 %v4402
  %4619 = vmatpush.bf16.msra.mxu0 %v4398
  %4620 = vmatpush.bf16.msra.mxu0 %v4394
  %4621 = vmatpush.bf16.msra.mxu0 %v4390
  %4622 = vmatpush.bf16.msra.mxu0 %v4386
  %4623 = vmatpush.bf16.msra.mxu0 %v4382
  %4624 = vmatpush.bf16.msra.mxu0 %v4378
  %4625 = vmatmul.bf16.gmra.mxu0 %v4137
  %v4626 = vpop.f32.mrf.mxu0
  %v4627 = vadd.f32 %v4598, %v4626
  %v4628 = vpop.f32.mrf.mxu0
  %v4629 = vadd.f32 %v4600, %v4628
  %4630 = vmatmul.bf16.gmra.mxu0 %v4139
  %v4631 = vpop.f32.mrf.mxu0
  %v4632 = vadd.f32 %v4603, %v4631
  %v4633 = vpop.f32.mrf.mxu0
  %v4634 = vadd.f32 %v4605, %v4633
  %4635 = vmatmul.bf16.gmra.mxu0 %v4141
  %v4636 = vpop.f32.mrf.mxu0
  %v4637 = vadd.f32 %v4608, %v4636
  %v4638 = vpop.f32.mrf.mxu0
  %v4639 = vadd.f32 %v4610, %v4638
  %4640 = vmatmul.bf16.gmra.mxu0 %v4143
  %v4641 = vpop.f32.mrf.mxu0
  %v4642 = vadd.f32 %v4613, %v4641
  %v4643 = vpop.f32.mrf.mxu0
  %v4644 = vadd.f32 %v4615, %v4643
  %4645 = vdwg.mxu0
  %4646 = vmatpush.bf16.msra.mxu0 %v4375
  %4647 = vmatpush.bf16.msra.mxu0 %v4371
  %4648 = vmatpush.bf16.msra.mxu0 %v4367
  %4649 = vmatpush.bf16.msra.mxu0 %v4363
  %4650 = vmatpush.bf16.msra.mxu0 %v4359
  %4651 = vmatpush.bf16.msra.mxu0 %v4355
  %4652 = vmatpush.bf16.msra.mxu0 %v4351
  %4653 = vmatpush.bf16.msra.mxu0 %v4347
  %4654 = vmatmul.bf16.gmra.mxu0 %v4136
  %v4655 = vpop.f32.mrf.mxu0
  %v4656 = vadd.f32 0.0, %v4655
  %v4657 = vpop.f32.mrf.mxu0
  %v4658 = vadd.f32 0.0, %v4657
  %4659 = vmatmul.bf16.gmra.mxu0 %v4138
  %v4660 = vpop.f32.mrf.mxu0
  %v4661 = vadd.f32 0.0, %v4660
  %v4662 = vpop.f32.mrf.mxu0
  %v4663 = vadd.f32 0.0, %v4662
  %4664 = vmatmul.bf16.gmra.mxu0 %v4140
  %v4665 = vpop.f32.mrf.mxu0
  %v4666 = vadd.f32 0.0, %v4665
  %v4667 = vpop.f32.mrf.mxu0
  %v4668 = vadd.f32 0.0, %v4667
  %4669 = vmatmul.bf16.gmra.mxu0 %v4142
  %v4670 = vpop.f32.mrf.mxu0
  %v4671 = vadd.f32 0.0, %v4670
  %v4672 = vpop.f32.mrf.mxu0
  %v4673 = vadd.f32 0.0, %v4672
  %4674 = vdwg.mxu0
  %4675 = vmatpush.bf16.msra.mxu0 %v4407
  %4676 = vmatpush.bf16.msra.mxu0 %v4403
  %4677 = vmatpush.bf16.msra.mxu0 %v4399
  %4678 = vmatpush.bf16.msra.mxu0 %v4395
  %4679 = vmatpush.bf16.msra.mxu0 %v4391
  %4680 = vmatpush.bf16.msra.mxu0 %v4387
  %4681 = vmatpush.bf16.msra.mxu0 %v4383
  %4682 = vmatpush.bf16.msra.mxu0 %v4379
  %4683 = vmatmul.bf16.gmra.mxu0 %v4137
  %v4684 = vpop.f32.mrf.mxu0
  %v4685 = vadd.f32 %v4656, %v4684
  %v4686 = vpop.f32.mrf.mxu0
  %v4687 = vadd.f32 %v4658, %v4686
  %4688 = vmatmul.bf16.gmra.mxu0 %v4139
  %v4689 = vpop.f32.mrf.mxu0
  %v4690 = vadd.f32 %v4661, %v4689
  %v4691 = vpop.f32.mrf.mxu0
  %v4692 = vadd.f32 %v4663, %v4691
  %4693 = vmatmul.bf16.gmra.mxu0 %v4141
  %v4694 = vpop.f32.mrf.mxu0
  %v4695 = vadd.f32 %v4666, %v4694
  %v4696 = vpop.f32.mrf.mxu0
  %v4697 = vadd.f32 %v4668, %v4696
  %4698 = vmatmul.bf16.gmra.mxu0 %v4143
  %v4699 = vpop.f32.mrf.mxu0
  %v4700 = vadd.f32 %v4671, %v4699
  %v4701 = vpop.f32.mrf.mxu0
  %v4702 = vadd.f32 %v4673, %v4701
  %4703 = vdwg.mxu0
  %v4704 = vld [vmem:[%s4] sm:$0xff]
  %v4705 = vld [vmem:[%s4 + $0x8] sm:$0xff]
  %v4706 = vld [vmem:[%s4 + $0x10] sm:$0xff]
  %v4707 = vld [vmem:[%s4 + $0x18] sm:$0xff]
  %v4708 = vld [vmem:[%s4 + $0x20] sm:$0xff]
  %v4709 = vld [vmem:[%s4 + $0x28] sm:$0xff]
  %v4710 = vld [vmem:[%s4 + $0x30] sm:$0xff]
  %v4711 = vld [vmem:[%s4 + $0x38] sm:$0xff]
  %v4712 = vld [vmem:[%s4 + $0x40] sm:$0xff]
  %v4713 = vld [vmem:[%s4 + $0x48] sm:$0xff]
  %v4714 = vld [vmem:[%s4 + $0x50] sm:$0xff]
  %v4715 = vld [vmem:[%s4 + $0x58] sm:$0xff]
  %v4716 = vld [vmem:[%s4 + $0x60] sm:$0xff]
  %v4717 = vld [vmem:[%s4 + $0x68] sm:$0xff]
  %v4718 = vld [vmem:[%s4 + $0x70] sm:$0xff]
  %v4719 = vld [vmem:[%s4 + $0x78] sm:$0xff]
  %v4720 = vld [vmem:[%s4 + $0x80] sm:$0xff]
  %v4721 = vld [vmem:[%s4 + $0x88] sm:$0xff]
  %v4722 = vld [vmem:[%s4 + $0x90] sm:$0xff]
  %v4723 = vld [vmem:[%s4 + $0x98] sm:$0xff]
  %v4724 = vld [vmem:[%s4 + $0xa0] sm:$0xff]
  %v4725 = vld [vmem:[%s4 + $0xa8] sm:$0xff]
  %v4726 = vld [vmem:[%s4 + $0xb0] sm:$0xff]
  %v4727 = vld [vmem:[%s4 + $0xb8] sm:$0xff]
  %v4728 = vld [vmem:[%s4 + $0xc0] sm:$0xff]
  %v4729 = vld [vmem:[%s4 + $0xc8] sm:$0xff]
  %v4730 = vld [vmem:[%s4 + $0xd0] sm:$0xff]
  %v4731 = vld [vmem:[%s4 + $0xd8] sm:$0xff]
  %v4732 = vld [vmem:[%s4 + $0xe0] sm:$0xff]
  %v4733 = vld [vmem:[%s4 + $0xe8] sm:$0xff]
  %v4734 = vld [vmem:[%s4 + $0xf0] sm:$0xff]
  %v4735 = vld [vmem:[%s4 + $0xf8] sm:$0xff]
  %v4736 = vld [vmem:[%s4 + $0x100] sm:$0xff]
  %v4737 = vld [vmem:[%s4 + $0x108] sm:$0xff]
  %v4738 = vld [vmem:[%s4 + $0x110] sm:$0xff]
  %v4739 = vld [vmem:[%s4 + $0x118] sm:$0xff]
  %v4740 = vld [vmem:[%s4 + $0x120] sm:$0xff]
  %v4741 = vld [vmem:[%s4 + $0x128] sm:$0xff]
  %v4742 = vld [vmem:[%s4 + $0x130] sm:$0xff]
  %v4743 = vld [vmem:[%s4 + $0x138] sm:$0xff]
  %v4744 = vld [vmem:[%s4 + $0x140] sm:$0xff]
  %v4745 = vld [vmem:[%s4 + $0x148] sm:$0xff]
  %v4746 = vld [vmem:[%s4 + $0x150] sm:$0xff]
  %v4747 = vld [vmem:[%s4 + $0x158] sm:$0xff]
  %v4748 = vld [vmem:[%s4 + $0x160] sm:$0xff]
  %v4749 = vld [vmem:[%s4 + $0x168] sm:$0xff]
  %v4750 = vld [vmem:[%s4 + $0x170] sm:$0xff]
  %v4751 = vld [vmem:[%s4 + $0x178] sm:$0xff]
  %v4752 = vld [vmem:[%s4 + $0x180] sm:$0xff]
  %v4753 = vld [vmem:[%s4 + $0x188] sm:$0xff]
  %v4754 = vld [vmem:[%s4 + $0x190] sm:$0xff]
  %v4755 = vld [vmem:[%s4 + $0x198] sm:$0xff]
  %v4756 = vld [vmem:[%s4 + $0x1a0] sm:$0xff]
  %v4757 = vld [vmem:[%s4 + $0x1a8] sm:$0xff]
  %v4758 = vld [vmem:[%s4 + $0x1b0] sm:$0xff]
  %v4759 = vld [vmem:[%s4 + $0x1b8] sm:$0xff]
  %v4760 = vld [vmem:[%s4 + $0x1c0] sm:$0xff]
  %v4761 = vld [vmem:[%s4 + $0x1c8] sm:$0xff]
  %v4762 = vld [vmem:[%s4 + $0x1d0] sm:$0xff]
  %v4763 = vld [vmem:[%s4 + $0x1d8] sm:$0xff]
  %v4764 = vld [vmem:[%s4 + $0x1e0] sm:$0xff]
  %v4765 = vld [vmem:[%s4 + $0x1e8] sm:$0xff]
  %v4766 = vld [vmem:[%s4 + $0x1f0] sm:$0xff]
  %v4767 = vld [vmem:[%s4 + $0x1f8] sm:$0xff]
  %v4768 = vpack.c.b16 %v4134, %v4134
  %v4769 = vpack.c.b16 %v4135, %v4135
  %v4836 = vunpack.c.l.b16 %v4704
  %v4837 = vunpack.c.h.b16 %v4704
  %v4838 = vunpack.c.l.b16 %v4705
  %v4839 = vunpack.c.h.b16 %v4705
  %v4840 = vunpack.c.l.b16 %v4706
  %v4841 = vunpack.c.h.b16 %v4706
  %v4842 = vunpack.c.l.b16 %v4707
  %v4843 = vunpack.c.h.b16 %v4707
  %v4844 = vunpack.c.l.b16 %v4708
  %v4845 = vunpack.c.h.b16 %v4708
  %v4846 = vunpack.c.l.b16 %v4709
  %v4847 = vunpack.c.h.b16 %v4709
  %v4848 = vunpack.c.l.b16 %v4710
  %v4849 = vunpack.c.h.b16 %v4710
  %v4850 = vunpack.c.l.b16 %v4711
  %v4851 = vunpack.c.h.b16 %v4711
  %v4852 = vunpack.c.l.b16 %v4712
  %v4853 = vunpack.c.h.b16 %v4712
  %v4854 = vunpack.c.l.b16 %v4713
  %v4855 = vunpack.c.h.b16 %v4713
  %v4856 = vunpack.c.l.b16 %v4714
  %v4857 = vunpack.c.h.b16 %v4714
  %v4858 = vunpack.c.l.b16 %v4715
  %v4859 = vunpack.c.h.b16 %v4715
  %v4860 = vunpack.c.l.b16 %v4716
  %v4861 = vunpack.c.h.b16 %v4716
  %v4862 = vunpack.c.l.b16 %v4717
  %v4863 = vunpack.c.h.b16 %v4717
  %v4864 = vunpack.c.l.b16 %v4718
  %v4865 = vunpack.c.h.b16 %v4718
  %v4866 = vunpack.c.l.b16 %v4719
  %v4867 = vunpack.c.h.b16 %v4719
  %v4868 = vunpack.c.l.b16 %v4720
  %v4869 = vunpack.c.h.b16 %v4720
  %v4870 = vunpack.c.l.b16 %v4721
  %v4871 = vunpack.c.h.b16 %v4721
  %v4872 = vunpack.c.l.b16 %v4722
  %v4873 = vunpack.c.h.b16 %v4722
  %v4874 = vunpack.c.l.b16 %v4723
  %v4875 = vunpack.c.h.b16 %v4723
  %v4876 = vunpack.c.l.b16 %v4724
  %v4877 = vunpack.c.h.b16 %v4724
  %v4878 = vunpack.c.l.b16 %v4725
  %v4879 = vunpack.c.h.b16 %v4725
  %v4880 = vunpack.c.l.b16 %v4726
  %v4881 = vunpack.c.h.b16 %v4726
  %v4882 = vunpack.c.l.b16 %v4727
  %v4883 = vunpack.c.h.b16 %v4727
  %v4884 = vunpack.c.l.b16 %v4728
  %v4885 = vunpack.c.h.b16 %v4728
  %v4886 = vunpack.c.l.b16 %v4729
  %v4887 = vunpack.c.h.b16 %v4729
  %v4888 = vunpack.c.l.b16 %v4730
  %v4889 = vunpack.c.h.b16 %v4730
  %v4890 = vunpack.c.l.b16 %v4731
  %v4891 = vunpack.c.h.b16 %v4731
  %v4892 = vunpack.c.l.b16 %v4732
  %v4893 = vunpack.c.h.b16 %v4732
  %v4894 = vunpack.c.l.b16 %v4733
  %v4895 = vunpack.c.h.b16 %v4733
  %v4896 = vunpack.c.l.b16 %v4734
  %v4897 = vunpack.c.h.b16 %v4734
  %v4898 = vunpack.c.l.b16 %v4735
  %v4899 = vunpack.c.h.b16 %v4735
  %v4900 = vunpack.c.l.b16 %v4736
  %v4901 = vunpack.c.h.b16 %v4736
  %v4902 = vunpack.c.l.b16 %v4737
  %v4903 = vunpack.c.h.b16 %v4737
  %v4904 = vunpack.c.l.b16 %v4738
  %v4905 = vunpack.c.h.b16 %v4738
  %v4906 = vunpack.c.l.b16 %v4739
  %v4907 = vunpack.c.h.b16 %v4739
  %v4908 = vunpack.c.l.b16 %v4740
  %v4909 = vunpack.c.h.b16 %v4740
  %v4910 = vunpack.c.l.b16 %v4741
  %v4911 = vunpack.c.h.b16 %v4741
  %v4912 = vunpack.c.l.b16 %v4742
  %v4913 = vunpack.c.h.b16 %v4742
  %v4914 = vunpack.c.l.b16 %v4743
  %v4915 = vunpack.c.h.b16 %v4743
  %v4916 = vunpack.c.l.b16 %v4744
  %v4917 = vunpack.c.h.b16 %v4744
  %v4918 = vunpack.c.l.b16 %v4745
  %v4919 = vunpack.c.h.b16 %v4745
  %v4920 = vunpack.c.l.b16 %v4746
  %v4921 = vunpack.c.h.b16 %v4746
  %v4922 = vunpack.c.l.b16 %v4747
  %v4923 = vunpack.c.h.b16 %v4747
  %v4924 = vunpack.c.l.b16 %v4748
  %v4925 = vunpack.c.h.b16 %v4748
  %v4926 = vunpack.c.l.b16 %v4749
  %v4927 = vunpack.c.h.b16 %v4749
  %v4928 = vunpack.c.l.b16 %v4750
  %v4929 = vunpack.c.h.b16 %v4750
  %v4930 = vunpack.c.l.b16 %v4751
  %v4931 = vunpack.c.h.b16 %v4751
  %v4932 = vunpack.c.l.b16 %v4752
  %v4933 = vunpack.c.h.b16 %v4752
  %v4934 = vunpack.c.l.b16 %v4753
  %v4935 = vunpack.c.h.b16 %v4753
  %v4936 = vunpack.c.l.b16 %v4754
  %v4937 = vunpack.c.h.b16 %v4754
  %v4938 = vunpack.c.l.b16 %v4755
  %v4939 = vunpack.c.h.b16 %v4755
  %v4940 = vunpack.c.l.b16 %v4756
  %v4941 = vunpack.c.h.b16 %v4756
  %v4942 = vunpack.c.l.b16 %v4757
  %v4943 = vunpack.c.h.b16 %v4757
  %v4944 = vunpack.c.l.b16 %v4758
  %v4945 = vunpack.c.h.b16 %v4758
  %v4946 = vunpack.c.l.b16 %v4759
  %v4947 = vunpack.c.h.b16 %v4759
  %v4948 = vunpack.c.l.b16 %v4760
  %v4949 = vunpack.c.h.b16 %v4760
  %v4950 = vunpack.c.l.b16 %v4761
  %v4951 = vunpack.c.h.b16 %v4761
  %v4952 = vunpack.c.l.b16 %v4762
  %v4953 = vunpack.c.h.b16 %v4762
  %v4954 = vunpack.c.l.b16 %v4763
  %v4955 = vunpack.c.h.b16 %v4763
  %v4956 = vunpack.c.l.b16 %v4764
  %v4957 = vunpack.c.h.b16 %v4764
  %v4958 = vunpack.c.l.b16 %v4765
  %v4959 = vunpack.c.h.b16 %v4765
  %v4960 = vunpack.c.l.b16 %v4766
  %v4961 = vunpack.c.h.b16 %v4766
  %v4962 = vunpack.c.l.b16 %v4767
  %v4963 = vunpack.c.h.b16 %v4767
  %v4964 = vpack.c.b16 %v4840, %v4836
  %v4965 = vpack.c.b16 %v4841, %v4837
  %v4966 = vpack.c.b16 %v4842, %v4838
  %v4967 = vpack.c.b16 %v4843, %v4839
  %v4968 = vpack.c.b16 %v4848, %v4844
  %v4969 = vpack.c.b16 %v4849, %v4845
  %v4970 = vpack.c.b16 %v4850, %v4846
  %v4971 = vpack.c.b16 %v4851, %v4847
  %v4972 = vpack.c.b16 %v4856, %v4852
  %v4973 = vpack.c.b16 %v4857, %v4853
  %v4974 = vpack.c.b16 %v4858, %v4854
  %v4975 = vpack.c.b16 %v4859, %v4855
  %v4976 = vpack.c.b16 %v4864, %v4860
  %v4977 = vpack.c.b16 %v4865, %v4861
  %v4978 = vpack.c.b16 %v4866, %v4862
  %v4979 = vpack.c.b16 %v4867, %v4863
  %v4980 = vpack.c.b16 %v4872, %v4868
  %v4981 = vpack.c.b16 %v4873, %v4869
  %v4982 = vpack.c.b16 %v4874, %v4870
  %v4983 = vpack.c.b16 %v4875, %v4871
  %v4984 = vpack.c.b16 %v4880, %v4876
  %v4985 = vpack.c.b16 %v4881, %v4877
  %v4986 = vpack.c.b16 %v4882, %v4878
  %v4987 = vpack.c.b16 %v4883, %v4879
  %v4988 = vpack.c.b16 %v4888, %v4884
  %v4989 = vpack.c.b16 %v4889, %v4885
  %v4990 = vpack.c.b16 %v4890, %v4886
  %v4991 = vpack.c.b16 %v4891, %v4887
  %v4992 = vpack.c.b16 %v4896, %v4892
  %v4993 = vpack.c.b16 %v4897, %v4893
  %v4994 = vpack.c.b16 %v4898, %v4894
  %v4995 = vpack.c.b16 %v4899, %v4895
  %v4996 = vpack.c.b16 %v4904, %v4900
  %v4997 = vpack.c.b16 %v4905, %v4901
  %v4998 = vpack.c.b16 %v4906, %v4902
  %v4999 = vpack.c.b16 %v4907, %v4903
  %v5000 = vpack.c.b16 %v4912, %v4908
  %v5001 = vpack.c.b16 %v4913, %v4909
  %v5002 = vpack.c.b16 %v4914, %v4910
  %v5003 = vpack.c.b16 %v4915, %v4911
  %v5004 = vpack.c.b16 %v4920, %v4916
  %v5005 = vpack.c.b16 %v4921, %v4917
  %v5006 = vpack.c.b16 %v4922, %v4918
  %v5007 = vpack.c.b16 %v4923, %v4919
  %v5008 = vpack.c.b16 %v4928, %v4924
  %v5009 = vpack.c.b16 %v4929, %v4925
  %v5010 = vpack.c.b16 %v4930, %v4926
  %v5011 = vpack.c.b16 %v4931, %v4927
  %v5012 = vpack.c.b16 %v4936, %v4932
  %v5013 = vpack.c.b16 %v4937, %v4933
  %v5014 = vpack.c.b16 %v4938, %v4934
  %v5015 = vpack.c.b16 %v4939, %v4935
  %v5016 = vpack.c.b16 %v4944, %v4940
  %v5017 = vpack.c.b16 %v4945, %v4941
  %v5018 = vpack.c.b16 %v4946, %v4942
  %v5019 = vpack.c.b16 %v4947, %v4943
  %v5020 = vpack.c.b16 %v4952, %v4948
  %v5021 = vpack.c.b16 %v4953, %v4949
  %v5022 = vpack.c.b16 %v4954, %v4950
  %v5023 = vpack.c.b16 %v4955, %v4951
  %v5024 = vpack.c.b16 %v4960, %v4956
  %v5025 = vpack.c.b16 %v4961, %v4957
  %v5026 = vpack.c.b16 %v4962, %v4958
  %v5027 = vpack.c.b16 %v4963, %v4959
  %5092 = vmatpush.bf16.msra.mxu0 %v4992
  %5093 = vmatpush.bf16.msra.mxu0 %v4988
  %5094 = vmatpush.bf16.msra.mxu0 %v4984
  %5095 = vmatpush.bf16.msra.mxu0 %v4980
  %5096 = vmatpush.bf16.msra.mxu0 %v4976
  %5097 = vmatpush.bf16.msra.mxu0 %v4972
  %5098 = vmatpush.bf16.msra.mxu0 %v4968
  %5099 = vmatpush.bf16.msra.mxu0 %v4964
  %5100 = vmatmul.bf16.gmra.mxu0 %v4768
  %v5101 = vpop.f32.mrf.mxu0
  %v5102 = vadd.f32 0.0, %v5101
  %v5103 = vpop.f32.mrf.mxu0
  %5104 = vdwg.mxu0
  %5105 = vmatpush.bf16.msra.mxu0 %v5024
  %5106 = vmatpush.bf16.msra.mxu0 %v5020
  %5107 = vmatpush.bf16.msra.mxu0 %v5016
  %5108 = vmatpush.bf16.msra.mxu0 %v5012
  %5109 = vmatpush.bf16.msra.mxu0 %v5008
  %5110 = vmatpush.bf16.msra.mxu0 %v5004
  %5111 = vmatpush.bf16.msra.mxu0 %v5000
  %5112 = vmatpush.bf16.msra.mxu0 %v4996
  %5113 = vmatmul.bf16.gmra.mxu0 %v4769
  %v5114 = vpop.f32.mrf.mxu0
  %v5115 = vadd.f32 %v5102, %v5114
  %v5116 = vpop.f32.mrf.mxu0
  %5117 = vdwg.mxu0
  %5118 = vmatpush.bf16.msra.mxu0 %v4993
  %5119 = vmatpush.bf16.msra.mxu0 %v4989
  %5120 = vmatpush.bf16.msra.mxu0 %v4985
  %5121 = vmatpush.bf16.msra.mxu0 %v4981
  %5122 = vmatpush.bf16.msra.mxu0 %v4977
  %5123 = vmatpush.bf16.msra.mxu0 %v4973
  %5124 = vmatpush.bf16.msra.mxu0 %v4969
  %5125 = vmatpush.bf16.msra.mxu0 %v4965
  %5126 = vmatmul.bf16.gmra.mxu0 %v4768
  %v5127 = vpop.f32.mrf.mxu0
  %v5128 = vadd.f32 0.0, %v5127
  %v5129 = vpop.f32.mrf.mxu0
  %5130 = vdwg.mxu0
  %5131 = vmatpush.bf16.msra.mxu0 %v5025
  %5132 = vmatpush.bf16.msra.mxu0 %v5021
  %5133 = vmatpush.bf16.msra.mxu0 %v5017
  %5134 = vmatpush.bf16.msra.mxu0 %v5013
  %5135 = vmatpush.bf16.msra.mxu0 %v5009
  %5136 = vmatpush.bf16.msra.mxu0 %v5005
  %5137 = vmatpush.bf16.msra.mxu0 %v5001
  %5138 = vmatpush.bf16.msra.mxu0 %v4997
  %5139 = vmatmul.bf16.gmra.mxu0 %v4769
  %v5140 = vpop.f32.mrf.mxu0
  %v5141 = vadd.f32 %v5128, %v5140
  %v5142 = vpop.f32.mrf.mxu0
  %5143 = vdwg.mxu0
  %5144 = vmatpush.bf16.msra.mxu0 %v4994
  %5145 = vmatpush.bf16.msra.mxu0 %v4990
  %5146 = vmatpush.bf16.msra.mxu0 %v4986
  %5147 = vmatpush.bf16.msra.mxu0 %v4982
  %5148 = vmatpush.bf16.msra.mxu0 %v4978
  %5149 = vmatpush.bf16.msra.mxu0 %v4974
  %5150 = vmatpush.bf16.msra.mxu0 %v4970
  %5151 = vmatpush.bf16.msra.mxu0 %v4966
  %5152 = vmatmul.bf16.gmra.mxu0 %v4768
  %v5153 = vpop.f32.mrf.mxu0
  %v5154 = vadd.f32 0.0, %v5153
  %v5155 = vpop.f32.mrf.mxu0
  %5156 = vdwg.mxu0
  %5157 = vmatpush.bf16.msra.mxu0 %v5026
  %5158 = vmatpush.bf16.msra.mxu0 %v5022
  %5159 = vmatpush.bf16.msra.mxu0 %v5018
  %5160 = vmatpush.bf16.msra.mxu0 %v5014
  %5161 = vmatpush.bf16.msra.mxu0 %v5010
  %5162 = vmatpush.bf16.msra.mxu0 %v5006
  %5163 = vmatpush.bf16.msra.mxu0 %v5002
  %5164 = vmatpush.bf16.msra.mxu0 %v4998
  %5165 = vmatmul.bf16.gmra.mxu0 %v4769
  %v5166 = vpop.f32.mrf.mxu0
  %v5167 = vadd.f32 %v5154, %v5166
  %v5168 = vpop.f32.mrf.mxu0
  %5169 = vdwg.mxu0
  %5170 = vmatpush.bf16.msra.mxu0 %v4995
  %5171 = vmatpush.bf16.msra.mxu0 %v4991
  %5172 = vmatpush.bf16.msra.mxu0 %v4987
  %5173 = vmatpush.bf16.msra.mxu0 %v4983
  %5174 = vmatpush.bf16.msra.mxu0 %v4979
  %5175 = vmatpush.bf16.msra.mxu0 %v4975
  %5176 = vmatpush.bf16.msra.mxu0 %v4971
  %5177 = vmatpush.bf16.msra.mxu0 %v4967
  %5178 = vmatmul.bf16.gmra.mxu0 %v4768
  %v5179 = vpop.f32.mrf.mxu0
  %v5180 = vadd.f32 0.0, %v5179
  %v5181 = vpop.f32.mrf.mxu0
  %5182 = vdwg.mxu0
  %5183 = vmatpush.bf16.msra.mxu0 %v5027
  %5184 = vmatpush.bf16.msra.mxu0 %v5023
  %5185 = vmatpush.bf16.msra.mxu0 %v5019
  %5186 = vmatpush.bf16.msra.mxu0 %v5015
  %5187 = vmatpush.bf16.msra.mxu0 %v5011
  %5188 = vmatpush.bf16.msra.mxu0 %v5007
  %5189 = vmatpush.bf16.msra.mxu0 %v5003
  %5190 = vmatpush.bf16.msra.mxu0 %v4999
  %5191 = vmatmul.bf16.gmra.mxu0 %v4769
  %v5192 = vpop.f32.mrf.mxu0
  %v5193 = vadd.f32 %v5180, %v5192
  %v5194 = vpop.f32.mrf.mxu0
  %5195 = vdwg.mxu0
  %v5196 = vld [vmem:[%s5] sm:$0xff]
  %v5197 = vld [vmem:[%s5 + $0x8] sm:$0xff]
  %v5198 = vld [vmem:[%s5 + $0x10] sm:$0xff]
  %v5199 = vld [vmem:[%s5 + $0x18] sm:$0xff]
  %v5200 = vld [vmem:[%s5 + $0x20] sm:$0xff]
  %v5201 = vld [vmem:[%s5 + $0x28] sm:$0xff]
  %v5202 = vld [vmem:[%s5 + $0x30] sm:$0xff]
  %v5203 = vld [vmem:[%s5 + $0x38] sm:$0xff]
  %v5204 = vld [vmem:[%s5 + $0x40] sm:$0xff]
  %v5205 = vld [vmem:[%s5 + $0x48] sm:$0xff]
  %v5206 = vld [vmem:[%s5 + $0x50] sm:$0xff]
  %v5207 = vld [vmem:[%s5 + $0x58] sm:$0xff]
  %v5208 = vld [vmem:[%s5 + $0x60] sm:$0xff]
  %v5209 = vld [vmem:[%s5 + $0x68] sm:$0xff]
  %v5210 = vld [vmem:[%s5 + $0x70] sm:$0xff]
  %v5211 = vld [vmem:[%s5 + $0x78] sm:$0xff]
  %v5212 = vld [vmem:[%s5 + $0x80] sm:$0xff]
  %v5213 = vld [vmem:[%s5 + $0x88] sm:$0xff]
  %v5214 = vld [vmem:[%s5 + $0x90] sm:$0xff]
  %v5215 = vld [vmem:[%s5 + $0x98] sm:$0xff]
  %v5216 = vld [vmem:[%s5 + $0xa0] sm:$0xff]
  %v5217 = vld [vmem:[%s5 + $0xa8] sm:$0xff]
  %v5218 = vld [vmem:[%s5 + $0xb0] sm:$0xff]
  %v5219 = vld [vmem:[%s5 + $0xb8] sm:$0xff]
  %v5220 = vld [vmem:[%s5 + $0xc0] sm:$0xff]
  %v5221 = vld [vmem:[%s5 + $0xc8] sm:$0xff]
  %v5222 = vld [vmem:[%s5 + $0xd0] sm:$0xff]
  %v5223 = vld [vmem:[%s5 + $0xd8] sm:$0xff]
  %v5224 = vld [vmem:[%s5 + $0xe0] sm:$0xff]
  %v5225 = vld [vmem:[%s5 + $0xe8] sm:$0xff]
  %v5226 = vld [vmem:[%s5 + $0xf0] sm:$0xff]
  %v5227 = vld [vmem:[%s5 + $0xf8] sm:$0xff]
  %v5260 = vunpack.c.l.b16 %v5196
  %v5261 = vunpack.c.h.b16 %v5196
  %v5262 = vunpack.c.l.b16 %v5197
  %v5263 = vunpack.c.h.b16 %v5197
  %v5264 = vunpack.c.l.b16 %v5198
  %v5265 = vunpack.c.h.b16 %v5198
  %v5266 = vunpack.c.l.b16 %v5199
  %v5267 = vunpack.c.h.b16 %v5199
  %v5268 = vunpack.c.l.b16 %v5200
  %v5269 = vunpack.c.h.b16 %v5200
  %v5270 = vunpack.c.l.b16 %v5201
  %v5271 = vunpack.c.h.b16 %v5201
  %v5272 = vunpack.c.l.b16 %v5202
  %v5273 = vunpack.c.h.b16 %v5202
  %v5274 = vunpack.c.l.b16 %v5203
  %v5275 = vunpack.c.h.b16 %v5203
  %v5276 = vunpack.c.l.b16 %v5204
  %v5277 = vunpack.c.h.b16 %v5204
  %v5278 = vunpack.c.l.b16 %v5205
  %v5279 = vunpack.c.h.b16 %v5205
  %v5280 = vunpack.c.l.b16 %v5206
  %v5281 = vunpack.c.h.b16 %v5206
  %v5282 = vunpack.c.l.b16 %v5207
  %v5283 = vunpack.c.h.b16 %v5207
  %v5284 = vunpack.c.l.b16 %v5208
  %v5285 = vunpack.c.h.b16 %v5208
  %v5286 = vunpack.c.l.b16 %v5209
  %v5287 = vunpack.c.h.b16 %v5209
  %v5288 = vunpack.c.l.b16 %v5210
  %v5289 = vunpack.c.h.b16 %v5210
  %v5290 = vunpack.c.l.b16 %v5211
  %v5291 = vunpack.c.h.b16 %v5211
  %v5292 = vunpack.c.l.b16 %v5212
  %v5293 = vunpack.c.h.b16 %v5212
  %v5294 = vunpack.c.l.b16 %v5213
  %v5295 = vunpack.c.h.b16 %v5213
  %v5296 = vunpack.c.l.b16 %v5214
  %v5297 = vunpack.c.h.b16 %v5214
  %v5298 = vunpack.c.l.b16 %v5215
  %v5299 = vunpack.c.h.b16 %v5215
  %v5300 = vunpack.c.l.b16 %v5216
  %v5301 = vunpack.c.h.b16 %v5216
  %v5302 = vunpack.c.l.b16 %v5217
  %v5303 = vunpack.c.h.b16 %v5217
  %v5304 = vunpack.c.l.b16 %v5218
  %v5305 = vunpack.c.h.b16 %v5218
  %v5306 = vunpack.c.l.b16 %v5219
  %v5307 = vunpack.c.h.b16 %v5219
  %v5308 = vunpack.c.l.b16 %v5220
  %v5309 = vunpack.c.h.b16 %v5220
  %v5310 = vunpack.c.l.b16 %v5221
  %v5311 = vunpack.c.h.b16 %v5221
  %v5312 = vunpack.c.l.b16 %v5222
  %v5313 = vunpack.c.h.b16 %v5222
  %v5314 = vunpack.c.l.b16 %v5223
  %v5315 = vunpack.c.h.b16 %v5223
  %v5316 = vunpack.c.l.b16 %v5224
  %v5317 = vunpack.c.h.b16 %v5224
  %v5318 = vunpack.c.l.b16 %v5225
  %v5319 = vunpack.c.h.b16 %v5225
  %v5320 = vunpack.c.l.b16 %v5226
  %v5321 = vunpack.c.h.b16 %v5226
  %v5322 = vunpack.c.l.b16 %v5227
  %v5323 = vunpack.c.h.b16 %v5227
  %v5324 = vpack.c.b16 %v5264, %v5260
  %v5325 = vpack.c.b16 %v5265, %v5261
  %v5326 = vpack.c.b16 %v5266, %v5262
  %v5327 = vpack.c.b16 %v5267, %v5263
  %v5328 = vpack.c.b16 %v5272, %v5268
  %v5329 = vpack.c.b16 %v5273, %v5269
  %v5330 = vpack.c.b16 %v5274, %v5270
  %v5331 = vpack.c.b16 %v5275, %v5271
  %v5332 = vpack.c.b16 %v5280, %v5276
  %v5333 = vpack.c.b16 %v5281, %v5277
  %v5334 = vpack.c.b16 %v5282, %v5278
  %v5335 = vpack.c.b16 %v5283, %v5279
  %v5336 = vpack.c.b16 %v5288, %v5284
  %v5337 = vpack.c.b16 %v5289, %v5285
  %v5338 = vpack.c.b16 %v5290, %v5286
  %v5339 = vpack.c.b16 %v5291, %v5287
  %v5340 = vpack.c.b16 %v5296, %v5292
  %v5341 = vpack.c.b16 %v5297, %v5293
  %v5342 = vpack.c.b16 %v5298, %v5294
  %v5343 = vpack.c.b16 %v5299, %v5295
  %v5344 = vpack.c.b16 %v5304, %v5300
  %v5345 = vpack.c.b16 %v5305, %v5301
  %v5346 = vpack.c.b16 %v5306, %v5302
  %v5347 = vpack.c.b16 %v5307, %v5303
  %v5348 = vpack.c.b16 %v5312, %v5308
  %v5349 = vpack.c.b16 %v5313, %v5309
  %v5350 = vpack.c.b16 %v5314, %v5310
  %v5351 = vpack.c.b16 %v5315, %v5311
  %v5352 = vpack.c.b16 %v5320, %v5316
  %v5353 = vpack.c.b16 %v5321, %v5317
  %v5354 = vpack.c.b16 %v5322, %v5318
  %v5355 = vpack.c.b16 %v5323, %v5319
  %5388 = vmatpush.bf16.msra.mxu0 %v5352
  %5389 = vmatpush.bf16.msra.mxu0 %v5348
  %5390 = vmatpush.bf16.msra.mxu0 %v5344
  %5391 = vmatpush.bf16.msra.mxu0 %v5340
  %5392 = vmatpush.bf16.msra.mxu0 %v5336
  %5393 = vmatpush.bf16.msra.mxu0 %v5332
  %5394 = vmatpush.bf16.msra.mxu0 %v5328
  %5395 = vmatpush.bf16.msra.mxu0 %v5324
  %5396 = vmatmul.bf16.gmra.mxu0 0
  %v5397 = vpop.f32.mrf.mxu0
  %v5398 = vadd.f32 0.0, %v5397
  %v5399 = vpop.f32.mrf.mxu0
  %5400 = vdwg.mxu0
  %5401 = vmatpush.bf16.msra.mxu0 %v5353
  %5402 = vmatpush.bf16.msra.mxu0 %v5349
  %5403 = vmatpush.bf16.msra.mxu0 %v5345
  %5404 = vmatpush.bf16.msra.mxu0 %v5341
  %5405 = vmatpush.bf16.msra.mxu0 %v5337
  %5406 = vmatpush.bf16.msra.mxu0 %v5333
  %5407 = vmatpush.bf16.msra.mxu0 %v5329
  %5408 = vmatpush.bf16.msra.mxu0 %v5325
  %5409 = vmatmul.bf16.gmra.mxu0 0
  %v5410 = vpop.f32.mrf.mxu0
  %v5411 = vadd.f32 0.0, %v5410
  %v5412 = vpop.f32.mrf.mxu0
  %5413 = vdwg.mxu0
  %5414 = vmatpush.bf16.msra.mxu0 %v5354
  %5415 = vmatpush.bf16.msra.mxu0 %v5350
  %5416 = vmatpush.bf16.msra.mxu0 %v5346
  %5417 = vmatpush.bf16.msra.mxu0 %v5342
  %5418 = vmatpush.bf16.msra.mxu0 %v5338
  %5419 = vmatpush.bf16.msra.mxu0 %v5334
  %5420 = vmatpush.bf16.msra.mxu0 %v5330
  %5421 = vmatpush.bf16.msra.mxu0 %v5326
  %5422 = vmatmul.bf16.gmra.mxu0 0
  %v5423 = vpop.f32.mrf.mxu0
  %v5424 = vadd.f32 0.0, %v5423
  %v5425 = vpop.f32.mrf.mxu0
  %5426 = vdwg.mxu0
  %5427 = vmatpush.bf16.msra.mxu0 %v5355
  %5428 = vmatpush.bf16.msra.mxu0 %v5351
  %5429 = vmatpush.bf16.msra.mxu0 %v5347
  %5430 = vmatpush.bf16.msra.mxu0 %v5343
  %5431 = vmatpush.bf16.msra.mxu0 %v5339
  %5432 = vmatpush.bf16.msra.mxu0 %v5335
  %5433 = vmatpush.bf16.msra.mxu0 %v5331
  %5434 = vmatpush.bf16.msra.mxu0 %v5327
  %5435 = vmatmul.bf16.gmra.mxu0 0
  %v5436 = vpop.f32.mrf.mxu0
  %v5437 = vadd.f32 0.0, %v5436
  %v5438 = vpop.f32.mrf.mxu0
  %5439 = vdwg.mxu0
  %v5440 = vadd.f32 %v4511, %v5398
  %v5441 = vadd.f32 %v4569, %v5411
  %v5442 = vadd.f32 %v4627, %v5424
  %v5443 = vadd.f32 %v4685, %v5437
  %v5444 = vxor.u32 %v5440, 2147483648
  %v5445 = vmul.f32 %v5444, 1.442695
  %v5446 = vpow.pop %v5445
  %v5447 = vadd.f32 %v5446, 1.0
  %v5448 = vrcp.pop %v5447
  %v5449 = vmul.f32 %v5447, %v5448
  %v5450 = vsub.f32 1.0, %v5449
  %v5451 = vmul.f32 %v5448, %v5450
  %v5452 = vadd.f32 %v5448, %v5451
  %vm5453 = vweird.f32 %v5447
  %vm5454 = vweird.f32 %v5448
  %vm5455 = vmor %vm5453, %vm5454
  %v5456 = vsel %vm5455, %v5448, %v5452
  %v5457 = vand.u32 2147483647, %v5447
  %vm5458 = vcmp.eq.f32.partialorder %v5457, 8.507059e+37
  %v5459 = vand.u32 %v5447, 2147483648
  %v5460 = vor.u32 1.1754944e-38, %v5459
  %v5461 = vsel %vm5458, %v5460, %v5456
  %v5462 = vmul.f32 1.0, %v5461
  %v5463 = vxor.u32 %v5441, 2147483648
  %v5464 = vmul.f32 %v5463, 1.442695
  %v5465 = vpow.pop %v5464
  %v5466 = vadd.f32 %v5465, 1.0
  %v5467 = vrcp.pop %v5466
  %v5468 = vmul.f32 %v5466, %v5467
  %v5469 = vsub.f32 1.0, %v5468
  %v5470 = vmul.f32 %v5467, %v5469
  %v5471 = vadd.f32 %v5467, %v5470
  %vm5472 = vweird.f32 %v5466
  %vm5473 = vweird.f32 %v5467
  %vm5474 = vmor %vm5472, %vm5473
  %v5475 = vsel %vm5474, %v5467, %v5471
  %v5476 = vand.u32 2147483647, %v5466
  %vm5477 = vcmp.eq.f32.partialorder %v5476, 8.507059e+37
  %v5478 = vand.u32 %v5466, 2147483648
  %v5479 = vor.u32 1.1754944e-38, %v5478
  %v5480 = vsel %vm5477, %v5479, %v5475
  %v5481 = vmul.f32 1.0, %v5480
  %v5482 = vtanh.pop %v5442
  %v5483 = vxor.u32 %v5443, 2147483648
  %v5484 = vmul.f32 %v5483, 1.442695
  %v5485 = vpow.pop %v5484
  %v5486 = vadd.f32 %v5485, 1.0
  %v5487 = vrcp.pop %v5486
  %v5488 = vmul.f32 %v5486, %v5487
  %v5489 = vsub.f32 1.0, %v5488
  %v5490 = vmul.f32 %v5487, %v5489
  %v5491 = vadd.f32 %v5487, %v5490
  %vm5492 = vweird.f32 %v5486
  %vm5493 = vweird.f32 %v5487
  %vm5494 = vmor %vm5492, %vm5493
  %v5495 = vsel %vm5494, %v5487, %v5491
  %v5496 = vand.u32 2147483647, %v5486
  %vm5497 = vcmp.eq.f32.partialorder %v5496, 8.507059e+37
  %v5498 = vand.u32 %v5486, 2147483648
  %v5499 = vor.u32 1.1754944e-38, %v5498
  %v5500 = vsel %vm5497, %v5499, %v5495
  %v5501 = vmul.f32 1.0, %v5500
  %v5502 = vmul.f32 %v5481, 0.0
  %v5503 = vmul.f32 %v5462, %v5482
  %v5504 = vadd.f32 %v5502, %v5503
  %v5505 = vtanh.pop %v5504
  %v5506 = vmul.f32 %v5501, %v5505
  %v5507 = vpack.c.bf16 %v5506, %v5506
  %5508 = vmatpush.bf16.msra.mxu0 %v5352
  %5509 = vmatpush.bf16.msra.mxu0 %v5348
  %5510 = vmatpush.bf16.msra.mxu0 %v5344
  %5511 = vmatpush.bf16.msra.mxu0 %v5340
  %5512 = vmatpush.bf16.msra.mxu0 %v5336
  %5513 = vmatpush.bf16.msra.mxu0 %v5332
  %5514 = vmatpush.bf16.msra.mxu0 %v5328
  %5515 = vmatpush.bf16.msra.mxu0 %v5324
  %5516 = vmatmul.bf16.gmra.mxu0 %v5507
  %v5517 = vpop.f32.mrf.mxu0
  %v5518 = vadd.f32 0.0, %v5517
  %v5519 = vpop.f32.mrf.mxu0
  %5520 = vdwg.mxu0
  %5521 = vmatpush.bf16.msra.mxu0 %v5353
  %5522 = vmatpush.bf16.msra.mxu0 %v5349
  %5523 = vmatpush.bf16.msra.mxu0 %v5345
  %5524 = vmatpush.bf16.msra.mxu0 %v5341
  %5525 = vmatpush.bf16.msra.mxu0 %v5337
  %5526 = vmatpush.bf16.msra.mxu0 %v5333
  %5527 = vmatpush.bf16.msra.mxu0 %v5329
  %5528 = vmatpush.bf16.msra.mxu0 %v5325
  %5529 = vmatmul.bf16.gmra.mxu0 %v5507
  %v5530 = vpop.f32.mrf.mxu0
  %v5531 = vadd.f32 0.0, %v5530
  %v5532 = vpop.f32.mrf.mxu0
  %5533 = vdwg.mxu0
  %5534 = vmatpush.bf16.msra.mxu0 %v5354
  %5535 = vmatpush.bf16.msra.mxu0 %v5350
  %5536 = vmatpush.bf16.msra.mxu0 %v5346
  %5537 = vmatpush.bf16.msra.mxu0 %v5342
  %5538 = vmatpush.bf16.msra.mxu0 %v5338
  %5539 = vmatpush.bf16.msra.mxu0 %v5334
  %5540 = vmatpush.bf16.msra.mxu0 %v5330
  %5541 = vmatpush.bf16.msra.mxu0 %v5326
  %5542 = vmatmul.bf16.gmra.mxu0 %v5507
  %v5543 = vpop.f32.mrf.mxu0
  %v5544 = vadd.f32 0.0, %v5543
  %v5545 = vpop.f32.mrf.mxu0
  %5546 = vdwg.mxu0
  %5547 = vmatpush.bf16.msra.mxu0 %v5355
  %5548 = vmatpush.bf16.msra.mxu0 %v5351
  %5549 = vmatpush.bf16.msra.mxu0 %v5347
  %5550 = vmatpush.bf16.msra.mxu0 %v5343
  %5551 = vmatpush.bf16.msra.mxu0 %v5339
  %5552 = vmatpush.bf16.msra.mxu0 %v5335
  %5553 = vmatpush.bf16.msra.mxu0 %v5331
  %5554 = vmatpush.bf16.msra.mxu0 %v5327
  %5555 = vmatmul.bf16.gmra.mxu0 %v5507
  %v5556 = vpop.f32.mrf.mxu0
  %v5557 = vadd.f32 0.0, %v5556
  %v5558 = vpop.f32.mrf.mxu0
  %5559 = vdwg.mxu0
  %v5560 = vadd.f32 %v4513, %v5518
  %v5561 = vadd.f32 %v4571, %v5531
  %v5562 = vadd.f32 %v4629, %v5544
  %v5563 = vadd.f32 %v4687, %v5557
  %v5564 = vxor.u32 %v5560, 2147483648
  %v5565 = vmul.f32 %v5564, 1.442695
  %v5566 = vpow.pop %v5565
  %v5567 = vadd.f32 %v5566, 1.0
  %v5568 = vrcp.pop %v5567
  %v5569 = vmul.f32 %v5567, %v5568
  %v5570 = vsub.f32 1.0, %v5569
  %v5571 = vmul.f32 %v5568, %v5570
  %v5572 = vadd.f32 %v5568, %v5571
  %vm5573 = vweird.f32 %v5567
  %vm5574 = vweird.f32 %v5568
  %vm5575 = vmor %vm5573, %vm5574
  %v5576 = vsel %vm5575, %v5568, %v5572
  %v5577 = vand.u32 2147483647, %v5567
  %vm5578 = vcmp.eq.f32.partialorder %v5577, 8.507059e+37
  %v5579 = vand.u32 %v5567, 2147483648
  %v5580 = vor.u32 1.1754944e-38, %v5579
  %v5581 = vsel %vm5578, %v5580, %v5576
  %v5582 = vmul.f32 1.0, %v5581
  %v5583 = vxor.u32 %v5561, 2147483648
  %v5584 = vmul.f32 %v5583, 1.442695
  %v5585 = vpow.pop %v5584
  %v5586 = vadd.f32 %v5585, 1.0
  %v5587 = vrcp.pop %v5586
  %v5588 = vmul.f32 %v5586, %v5587
  %v5589 = vsub.f32 1.0, %v5588
  %v5590 = vmul.f32 %v5587, %v5589
  %v5591 = vadd.f32 %v5587, %v5590
  %vm5592 = vweird.f32 %v5586
  %vm5593 = vweird.f32 %v5587
  %vm5594 = vmor %vm5592, %vm5593
  %v5595 = vsel %vm5594, %v5587, %v5591
  %v5596 = vand.u32 2147483647, %v5586
  %vm5597 = vcmp.eq.f32.partialorder %v5596, 8.507059e+37
  %v5598 = vand.u32 %v5586, 2147483648
  %v5599 = vor.u32 1.1754944e-38, %v5598
  %v5600 = vsel %vm5597, %v5599, %v5595
  %v5601 = vmul.f32 1.0, %v5600
  %v5602 = vtanh.pop %v5562
  %v5603 = vxor.u32 %v5563, 2147483648
  %v5604 = vmul.f32 %v5603, 1.442695
  %v5605 = vpow.pop %v5604
  %v5606 = vadd.f32 %v5605, 1.0
  %v5607 = vrcp.pop %v5606
  %v5608 = vmul.f32 %v5606, %v5607
  %v5609 = vsub.f32 1.0, %v5608
  %v5610 = vmul.f32 %v5607, %v5609
  %v5611 = vadd.f32 %v5607, %v5610
  %vm5612 = vweird.f32 %v5606
  %vm5613 = vweird.f32 %v5607
  %vm5614 = vmor %vm5612, %vm5613
  %v5615 = vsel %vm5614, %v5607, %v5611
  %v5616 = vand.u32 2147483647, %v5606
  %vm5617 = vcmp.eq.f32.partialorder %v5616, 8.507059e+37
  %v5618 = vand.u32 %v5606, 2147483648
  %v5619 = vor.u32 1.1754944e-38, %v5618
  %v5620 = vsel %vm5617, %v5619, %v5615
  %v5621 = vmul.f32 1.0, %v5620
  %v5622 = vmul.f32 %v5601, %v5504
  %v5623 = vmul.f32 %v5582, %v5602
  %v5624 = vadd.f32 %v5622, %v5623
  %v5625 = vtanh.pop %v5624
  %v5626 = vmul.f32 %v5621, %v5625
  %v5627 = vpack.c.bf16 %v5626, %v5626
  %5628 = vmatpush.bf16.msra.mxu0 %v5352
  %5629 = vmatpush.bf16.msra.mxu0 %v5348
  %5630 = vmatpush.bf16.msra.mxu0 %v5344
  %5631 = vmatpush.bf16.msra.mxu0 %v5340
  %5632 = vmatpush.bf16.msra.mxu0 %v5336
  %5633 = vmatpush.bf16.msra.mxu0 %v5332
  %5634 = vmatpush.bf16.msra.mxu0 %v5328
  %5635 = vmatpush.bf16.msra.mxu0 %v5324
  %5636 = vmatmul.bf16.gmra.mxu0 %v5627
  %v5637 = vpop.f32.mrf.mxu0
  %v5638 = vadd.f32 0.0, %v5637
  %v5639 = vpop.f32.mrf.mxu0
  %5640 = vdwg.mxu0
  %5641 = vmatpush.bf16.msra.mxu0 %v5353
  %5642 = vmatpush.bf16.msra.mxu0 %v5349
  %5643 = vmatpush.bf16.msra.mxu0 %v5345
  %5644 = vmatpush.bf16.msra.mxu0 %v5341
  %5645 = vmatpush.bf16.msra.mxu0 %v5337
  %5646 = vmatpush.bf16.msra.mxu0 %v5333
  %5647 = vmatpush.bf16.msra.mxu0 %v5329
  %5648 = vmatpush.bf16.msra.mxu0 %v5325
  %5649 = vmatmul.bf16.gmra.mxu0 %v5627
  %v5650 = vpop.f32.mrf.mxu0
  %v5651 = vadd.f32 0.0, %v5650
  %v5652 = vpop.f32.mrf.mxu0
  %5653 = vdwg.mxu0
  %5654 = vmatpush.bf16.msra.mxu0 %v5354
  %5655 = vmatpush.bf16.msra.mxu0 %v5350
  %5656 = vmatpush.bf16.msra.mxu0 %v5346
  %5657 = vmatpush.bf16.msra.mxu0 %v5342
  %5658 = vmatpush.bf16.msra.mxu0 %v5338
  %5659 = vmatpush.bf16.msra.mxu0 %v5334
  %5660 = vmatpush.bf16.msra.mxu0 %v5330
  %5661 = vmatpush.bf16.msra.mxu0 %v5326
  %5662 = vmatmul.bf16.gmra.mxu0 %v5627
  %v5663 = vpop.f32.mrf.mxu0
  %v5664 = vadd.f32 0.0, %v5663
  %v5665 = vpop.f32.mrf.mxu0
  %5666 = vdwg.mxu0
  %5667 = vmatpush.bf16.msra.mxu0 %v5355
  %5668 = vmatpush.bf16.msra.mxu0 %v5351
  %5669 = vmatpush.bf16.msra.mxu0 %v5347
  %5670 = vmatpush.bf16.msra.mxu0 %v5343
  %5671 = vmatpush.bf16.msra.mxu0 %v5339
  %5672 = vmatpush.bf16.msra.mxu0 %v5335
  %5673 = vmatpush.bf16.msra.mxu0 %v5331
  %5674 = vmatpush.bf16.msra.mxu0 %v5327
  %5675 = vmatmul.bf16.gmra.mxu0 %v5627
  %v5676 = vpop.f32.mrf.mxu0
  %v5677 = vadd.f32 0.0, %v5676
  %v5678 = vpop.f32.mrf.mxu0
  %5679 = vdwg.mxu0
  %v5680 = vadd.f32 %v4516, %v5638
  %v5681 = vadd.f32 %v4574, %v5651
  %v5682 = vadd.f32 %v4632, %v5664
  %v5683 = vadd.f32 %v4690, %v5677
  %v5684 = vxor.u32 %v5680, 2147483648
  %v5685 = vmul.f32 %v5684, 1.442695
  %v5686 = vpow.pop %v5685
  %v5687 = vadd.f32 %v5686, 1.0
  %v5688 = vrcp.pop %v5687
  %v5689 = vmul.f32 %v5687, %v5688
  %v5690 = vsub.f32 1.0, %v5689
  %v5691 = vmul.f32 %v5688, %v5690
  %v5692 = vadd.f32 %v5688, %v5691
  %vm5693 = vweird.f32 %v5687
  %vm5694 = vweird.f32 %v5688
  %vm5695 = vmor %vm5693, %vm5694
  %v5696 = vsel %vm5695, %v5688, %v5692
  %v5697 = vand.u32 2147483647, %v5687
  %vm5698 = vcmp.eq.f32.partialorder %v5697, 8.507059e+37
  %v5699 = vand.u32 %v5687, 2147483648
  %v5700 = vor.u32 1.1754944e-38, %v5699
  %v5701 = vsel %vm5698, %v5700, %v5696
  %v5702 = vmul.f32 1.0, %v5701
  %v5703 = vxor.u32 %v5681, 2147483648
  %v5704 = vmul.f32 %v5703, 1.442695
  %v5705 = vpow.pop %v5704
  %v5706 = vadd.f32 %v5705, 1.0
  %v5707 = vrcp.pop %v5706
  %v5708 = vmul.f32 %v5706, %v5707
  %v5709 = vsub.f32 1.0, %v5708
  %v5710 = vmul.f32 %v5707, %v5709
  %v5711 = vadd.f32 %v5707, %v5710
  %vm5712 = vweird.f32 %v5706
  %vm5713 = vweird.f32 %v5707
  %vm5714 = vmor %vm5712, %vm5713
  %v5715 = vsel %vm5714, %v5707, %v5711
  %v5716 = vand.u32 2147483647, %v5706
  %vm5717 = vcmp.eq.f32.partialorder %v5716, 8.507059e+37
  %v5718 = vand.u32 %v5706, 2147483648
  %v5719 = vor.u32 1.1754944e-38, %v5718
  %v5720 = vsel %vm5717, %v5719, %v5715
  %v5721 = vmul.f32 1.0, %v5720
  %v5722 = vtanh.pop %v5682
  %v5723 = vxor.u32 %v5683, 2147483648
  %v5724 = vmul.f32 %v5723, 1.442695
  %v5725 = vpow.pop %v5724
  %v5726 = vadd.f32 %v5725, 1.0
  %v5727 = vrcp.pop %v5726
  %v5728 = vmul.f32 %v5726, %v5727
  %v5729 = vsub.f32 1.0, %v5728
  %v5730 = vmul.f32 %v5727, %v5729
  %v5731 = vadd.f32 %v5727, %v5730
  %vm5732 = vweird.f32 %v5726
  %vm5733 = vweird.f32 %v5727
  %vm5734 = vmor %vm5732, %vm5733
  %v5735 = vsel %vm5734, %v5727, %v5731
  %v5736 = vand.u32 2147483647, %v5726
  %vm5737 = vcmp.eq.f32.partialorder %v5736, 8.507059e+37
  %v5738 = vand.u32 %v5726, 2147483648
  %v5739 = vor.u32 1.1754944e-38, %v5738
  %v5740 = vsel %vm5737, %v5739, %v5735
  %v5741 = vmul.f32 1.0, %v5740
  %v5742 = vmul.f32 %v5721, %v5624
  %v5743 = vmul.f32 %v5702, %v5722
  %v5744 = vadd.f32 %v5742, %v5743
  %v5745 = vtanh.pop %v5744
  %v5746 = vmul.f32 %v5741, %v5745
  %v5747 = vpack.c.bf16 %v5746, %v5746
  %5748 = vmatpush.bf16.msra.mxu0 %v5352
  %5749 = vmatpush.bf16.msra.mxu0 %v5348
  %5750 = vmatpush.bf16.msra.mxu0 %v5344
  %5751 = vmatpush.bf16.msra.mxu0 %v5340
  %5752 = vmatpush.bf16.msra.mxu0 %v5336
  %5753 = vmatpush.bf16.msra.mxu0 %v5332
  %5754 = vmatpush.bf16.msra.mxu0 %v5328
  %5755 = vmatpush.bf16.msra.mxu0 %v5324
  %5756 = vmatmul.bf16.gmra.mxu0 %v5747
  %v5757 = vpop.f32.mrf.mxu0
  %v5758 = vadd.f32 0.0, %v5757
  %v5759 = vpop.f32.mrf.mxu0
  %5760 = vdwg.mxu0
  %5761 = vmatpush.bf16.msra.mxu0 %v5353
  %5762 = vmatpush.bf16.msra.mxu0 %v5349
  %5763 = vmatpush.bf16.msra.mxu0 %v5345
  %5764 = vmatpush.bf16.msra.mxu0 %v5341
  %5765 = vmatpush.bf16.msra.mxu0 %v5337
  %5766 = vmatpush.bf16.msra.mxu0 %v5333
  %5767 = vmatpush.bf16.msra.mxu0 %v5329
  %5768 = vmatpush.bf16.msra.mxu0 %v5325
  %5769 = vmatmul.bf16.gmra.mxu0 %v5747
  %v5770 = vpop.f32.mrf.mxu0
  %v5771 = vadd.f32 0.0, %v5770
  %v5772 = vpop.f32.mrf.mxu0
  %5773 = vdwg.mxu0
  %5774 = vmatpush.bf16.msra.mxu0 %v5354
  %5775 = vmatpush.bf16.msra.mxu0 %v5350
  %5776 = vmatpush.bf16.msra.mxu0 %v5346
  %5777 = vmatpush.bf16.msra.mxu0 %v5342
  %5778 = vmatpush.bf16.msra.mxu0 %v5338
  %5779 = vmatpush.bf16.msra.mxu0 %v5334
  %5780 = vmatpush.bf16.msra.mxu0 %v5330
  %5781 = vmatpush.bf16.msra.mxu0 %v5326
  %5782 = vmatmul.bf16.gmra.mxu0 %v5747
  %v5783 = vpop.f32.mrf.mxu0
  %v5784 = vadd.f32 0.0, %v5783
  %v5785 = vpop.f32.mrf.mxu0
  %5786 = vdwg.mxu0
  %5787 = vmatpush.bf16.msra.mxu0 %v5355
  %5788 = vmatpush.bf16.msra.mxu0 %v5351
  %5789 = vmatpush.bf16.msra.mxu0 %v5347
  %5790 = vmatpush.bf16.msra.mxu0 %v5343
  %5791 = vmatpush.bf16.msra.mxu0 %v5339
  %5792 = vmatpush.bf16.msra.mxu0 %v5335
  %5793 = vmatpush.bf16.msra.mxu0 %v5331
  %5794 = vmatpush.bf16.msra.mxu0 %v5327
  %5795 = vmatmul.bf16.gmra.mxu0 %v5747
  %v5796 = vpop.f32.mrf.mxu0
  %v5797 = vadd.f32 0.0, %v5796
  %v5798 = vpop.f32.mrf.mxu0
  %5799 = vdwg.mxu0
  %v5800 = vadd.f32 %v4518, %v5758
  %v5801 = vadd.f32 %v4576, %v5771
  %v5802 = vadd.f32 %v4634, %v5784
  %v5803 = vadd.f32 %v4692, %v5797
  %v5804 = vxor.u32 %v5800, 2147483648
  %v5805 = vmul.f32 %v5804, 1.442695
  %v5806 = vpow.pop %v5805
  %v5807 = vadd.f32 %v5806, 1.0
  %v5808 = vrcp.pop %v5807
  %v5809 = vmul.f32 %v5807, %v5808
  %v5810 = vsub.f32 1.0, %v5809
  %v5811 = vmul.f32 %v5808, %v5810
  %v5812 = vadd.f32 %v5808, %v5811
  %vm5813 = vweird.f32 %v5807
  %vm5814 = vweird.f32 %v5808
  %vm5815 = vmor %vm5813, %vm5814
  %v5816 = vsel %vm5815, %v5808, %v5812
  %v5817 = vand.u32 2147483647, %v5807
  %vm5818 = vcmp.eq.f32.partialorder %v5817, 8.507059e+37
  %v5819 = vand.u32 %v5807, 2147483648
  %v5820 = vor.u32 1.1754944e-38, %v5819
  %v5821 = vsel %vm5818, %v5820, %v5816
  %v5822 = vmul.f32 1.0, %v5821
  %v5823 = vxor.u32 %v5801, 2147483648
  %v5824 = vmul.f32 %v5823, 1.442695
  %v5825 = vpow.pop %v5824
  %v5826 = vadd.f32 %v5825, 1.0
  %v5827 = vrcp.pop %v5826
  %v5828 = vmul.f32 %v5826, %v5827
  %v5829 = vsub.f32 1.0, %v5828
  %v5830 = vmul.f32 %v5827, %v5829
  %v5831 = vadd.f32 %v5827, %v5830
  %vm5832 = vweird.f32 %v5826
  %vm5833 = vweird.f32 %v5827
  %vm5834 = vmor %vm5832, %vm5833
  %v5835 = vsel %vm5834, %v5827, %v5831
  %v5836 = vand.u32 2147483647, %v5826
  %vm5837 = vcmp.eq.f32.partialorder %v5836, 8.507059e+37
  %v5838 = vand.u32 %v5826, 2147483648
  %v5839 = vor.u32 1.1754944e-38, %v5838
  %v5840 = vsel %vm5837, %v5839, %v5835
  %v5841 = vmul.f32 1.0, %v5840
  %v5842 = vtanh.pop %v5802
  %v5843 = vxor.u32 %v5803, 2147483648
  %v5844 = vmul.f32 %v5843, 1.442695
  %v5845 = vpow.pop %v5844
  %v5846 = vadd.f32 %v5845, 1.0
  %v5847 = vrcp.pop %v5846
  %v5848 = vmul.f32 %v5846, %v5847
  %v5849 = vsub.f32 1.0, %v5848
  %v5850 = vmul.f32 %v5847, %v5849
  %v5851 = vadd.f32 %v5847, %v5850
  %vm5852 = vweird.f32 %v5846
  %vm5853 = vweird.f32 %v5847
  %vm5854 = vmor %vm5852, %vm5853
  %v5855 = vsel %vm5854, %v5847, %v5851
  %v5856 = vand.u32 2147483647, %v5846
  %vm5857 = vcmp.eq.f32.partialorder %v5856, 8.507059e+37
  %v5858 = vand.u32 %v5846, 2147483648
  %v5859 = vor.u32 1.1754944e-38, %v5858
  %v5860 = vsel %vm5857, %v5859, %v5855
  %v5861 = vmul.f32 1.0, %v5860
  %v5862 = vmul.f32 %v5841, %v5744
  %v5863 = vmul.f32 %v5822, %v5842
  %v5864 = vadd.f32 %v5862, %v5863
  %v5865 = vtanh.pop %v5864
  %v5866 = vmul.f32 %v5861, %v5865
  %v5867 = vpack.c.bf16 %v5866, %v5866
  %5868 = vmatpush.bf16.msra.mxu0 %v5352
  %5869 = vmatpush.bf16.msra.mxu0 %v5348
  %5870 = vmatpush.bf16.msra.mxu0 %v5344
  %5871 = vmatpush.bf16.msra.mxu0 %v5340
  %5872 = vmatpush.bf16.msra.mxu0 %v5336
  %5873 = vmatpush.bf16.msra.mxu0 %v5332
  %5874 = vmatpush.bf16.msra.mxu0 %v5328
  %5875 = vmatpush.bf16.msra.mxu0 %v5324
  %5876 = vmatmul.bf16.gmra.mxu0 %v5867
  %v5877 = vpop.f32.mrf.mxu0
  %v5878 = vadd.f32 0.0, %v5877
  %v5879 = vpop.f32.mrf.mxu0
  %5880 = vdwg.mxu0
  %5881 = vmatpush.bf16.msra.mxu0 %v5353
  %5882 = vmatpush.bf16.msra.mxu0 %v5349
  %5883 = vmatpush.bf16.msra.mxu0 %v5345
  %5884 = vmatpush.bf16.msra.mxu0 %v5341
  %5885 = vmatpush.bf16.msra.mxu0 %v5337
  %5886 = vmatpush.bf16.msra.mxu0 %v5333
  %5887 = vmatpush.bf16.msra.mxu0 %v5329
  %5888 = vmatpush.bf16.msra.mxu0 %v5325
  %5889 = vmatmul.bf16.gmra.mxu0 %v5867
  %v5890 = vpop.f32.mrf.mxu0
  %v5891 = vadd.f32 0.0, %v5890
  %v5892 = vpop.f32.mrf.mxu0
  %5893 = vdwg.mxu0
  %5894 = vmatpush.bf16.msra.mxu0 %v5354
  %5895 = vmatpush.bf16.msra.mxu0 %v5350
  %5896 = vmatpush.bf16.msra.mxu0 %v5346
  %5897 = vmatpush.bf16.msra.mxu0 %v5342
  %5898 = vmatpush.bf16.msra.mxu0 %v5338
  %5899 = vmatpush.bf16.msra.mxu0 %v5334
  %5900 = vmatpush.bf16.msra.mxu0 %v5330
  %5901 = vmatpush.bf16.msra.mxu0 %v5326
  %5902 = vmatmul.bf16.gmra.mxu0 %v5867
  %v5903 = vpop.f32.mrf.mxu0
  %v5904 = vadd.f32 0.0, %v5903
  %v5905 = vpop.f32.mrf.mxu0
  %5906 = vdwg.mxu0
  %5907 = vmatpush.bf16.msra.mxu0 %v5355
  %5908 = vmatpush.bf16.msra.mxu0 %v5351
  %5909 = vmatpush.bf16.msra.mxu0 %v5347
  %5910 = vmatpush.bf16.msra.mxu0 %v5343
  %5911 = vmatpush.bf16.msra.mxu0 %v5339
  %5912 = vmatpush.bf16.msra.mxu0 %v5335
  %5913 = vmatpush.bf16.msra.mxu0 %v5331
  %5914 = vmatpush.bf16.msra.mxu0 %v5327
  %5915 = vmatmul.bf16.gmra.mxu0 %v5867
  %v5916 = vpop.f32.mrf.mxu0
  %v5917 = vadd.f32 0.0, %v5916
  %v5918 = vpop.f32.mrf.mxu0
  %5919 = vdwg.mxu0
  %v5920 = vadd.f32 %v4521, %v5878
  %v5921 = vadd.f32 %v4579, %v5891
  %v5922 = vadd.f32 %v4637, %v5904
  %v5923 = vadd.f32 %v4695, %v5917
  %v5924 = vxor.u32 %v5920, 2147483648
  %v5925 = vmul.f32 %v5924, 1.442695
  %v5926 = vpow.pop %v5925
  %v5927 = vadd.f32 %v5926, 1.0
  %v5928 = vrcp.pop %v5927
  %v5929 = vmul.f32 %v5927, %v5928
  %v5930 = vsub.f32 1.0, %v5929
  %v5931 = vmul.f32 %v5928, %v5930
  %v5932 = vadd.f32 %v5928, %v5931
  %vm5933 = vweird.f32 %v5927
  %vm5934 = vweird.f32 %v5928
  %vm5935 = vmor %vm5933, %vm5934
  %v5936 = vsel %vm5935, %v5928, %v5932
  %v5937 = vand.u32 2147483647, %v5927
  %vm5938 = vcmp.eq.f32.partialorder %v5937, 8.507059e+37
  %v5939 = vand.u32 %v5927, 2147483648
  %v5940 = vor.u32 1.1754944e-38, %v5939
  %v5941 = vsel %vm5938, %v5940, %v5936
  %v5942 = vmul.f32 1.0, %v5941
  %v5943 = vxor.u32 %v5921, 2147483648
  %v5944 = vmul.f32 %v5943, 1.442695
  %v5945 = vpow.pop %v5944
  %v5946 = vadd.f32 %v5945, 1.0
  %v5947 = vrcp.pop %v5946
  %v5948 = vmul.f32 %v5946, %v5947
  %v5949 = vsub.f32 1.0, %v5948
  %v5950 = vmul.f32 %v5947, %v5949
  %v5951 = vadd.f32 %v5947, %v5950
  %vm5952 = vweird.f32 %v5946
  %vm5953 = vweird.f32 %v5947
  %vm5954 = vmor %vm5952, %vm5953
  %v5955 = vsel %vm5954, %v5947, %v5951
  %v5956 = vand.u32 2147483647, %v5946
  %vm5957 = vcmp.eq.f32.partialorder %v5956, 8.507059e+37
  %v5958 = vand.u32 %v5946, 2147483648
  %v5959 = vor.u32 1.1754944e-38, %v5958
  %v5960 = vsel %vm5957, %v5959, %v5955
  %v5961 = vmul.f32 1.0, %v5960
  %v5962 = vtanh.pop %v5922
  %v5963 = vxor.u32 %v5923, 2147483648
  %v5964 = vmul.f32 %v5963, 1.442695
  %v5965 = vpow.pop %v5964
  %v5966 = vadd.f32 %v5965, 1.0
  %v5967 = vrcp.pop %v5966
  %v5968 = vmul.f32 %v5966, %v5967
  %v5969 = vsub.f32 1.0, %v5968
  %v5970 = vmul.f32 %v5967, %v5969
  %v5971 = vadd.f32 %v5967, %v5970
  %vm5972 = vweird.f32 %v5966
  %vm5973 = vweird.f32 %v5967
  %vm5974 = vmor %vm5972, %vm5973
  %v5975 = vsel %vm5974, %v5967, %v5971
  %v5976 = vand.u32 2147483647, %v5966
  %vm5977 = vcmp.eq.f32.partialorder %v5976, 8.507059e+37
  %v5978 = vand.u32 %v5966, 2147483648
  %v5979 = vor.u32 1.1754944e-38, %v5978
  %v5980 = vsel %vm5977, %v5979, %v5975
  %v5981 = vmul.f32 1.0, %v5980
  %v5982 = vmul.f32 %v5961, %v5864
  %v5983 = vmul.f32 %v5942, %v5962
  %v5984 = vadd.f32 %v5982, %v5983
  %v5985 = vtanh.pop %v5984
  %v5986 = vmul.f32 %v5981, %v5985
  %v5987 = vpack.c.bf16 %v5986, %v5986
  %5988 = vmatpush.bf16.msra.mxu0 %v5352
  %5989 = vmatpush.bf16.msra.mxu0 %v5348
  %5990 = vmatpush.bf16.msra.mxu0 %v5344
  %5991 = vmatpush.bf16.msra.mxu0 %v5340
  %5992 = vmatpush.bf16.msra.mxu0 %v5336
  %5993 = vmatpush.bf16.msra.mxu0 %v5332
  %5994 = vmatpush.bf16.msra.mxu0 %v5328
  %5995 = vmatpush.bf16.msra.mxu0 %v5324
  %5996 = vmatmul.bf16.gmra.mxu0 %v5987
  %v5997 = vpop.f32.mrf.mxu0
  %v5998 = vadd.f32 0.0, %v5997
  %v5999 = vpop.f32.mrf.mxu0
  %6000 = vdwg.mxu0
  %6001 = vmatpush.bf16.msra.mxu0 %v5353
  %6002 = vmatpush.bf16.msra.mxu0 %v5349
  %6003 = vmatpush.bf16.msra.mxu0 %v5345
  %6004 = vmatpush.bf16.msra.mxu0 %v5341
  %6005 = vmatpush.bf16.msra.mxu0 %v5337
  %6006 = vmatpush.bf16.msra.mxu0 %v5333
  %6007 = vmatpush.bf16.msra.mxu0 %v5329
  %6008 = vmatpush.bf16.msra.mxu0 %v5325
  %6009 = vmatmul.bf16.gmra.mxu0 %v5987
  %v6010 = vpop.f32.mrf.mxu0
  %v6011 = vadd.f32 0.0, %v6010
  %v6012 = vpop.f32.mrf.mxu0
  %6013 = vdwg.mxu0
  %6014 = vmatpush.bf16.msra.mxu0 %v5354
  %6015 = vmatpush.bf16.msra.mxu0 %v5350
  %6016 = vmatpush.bf16.msra.mxu0 %v5346
  %6017 = vmatpush.bf16.msra.mxu0 %v5342
  %6018 = vmatpush.bf16.msra.mxu0 %v5338
  %6019 = vmatpush.bf16.msra.mxu0 %v5334
  %6020 = vmatpush.bf16.msra.mxu0 %v5330
  %6021 = vmatpush.bf16.msra.mxu0 %v5326
  %6022 = vmatmul.bf16.gmra.mxu0 %v5987
  %v6023 = vpop.f32.mrf.mxu0
  %v6024 = vadd.f32 0.0, %v6023
  %v6025 = vpop.f32.mrf.mxu0
  %6026 = vdwg.mxu0
  %6027 = vmatpush.bf16.msra.mxu0 %v5355
  %6028 = vmatpush.bf16.msra.mxu0 %v5351
  %6029 = vmatpush.bf16.msra.mxu0 %v5347
  %6030 = vmatpush.bf16.msra.mxu0 %v5343
  %6031 = vmatpush.bf16.msra.mxu0 %v5339
  %6032 = vmatpush.bf16.msra.mxu0 %v5335
  %6033 = vmatpush.bf16.msra.mxu0 %v5331
  %6034 = vmatpush.bf16.msra.mxu0 %v5327
  %6035 = vmatmul.bf16.gmra.mxu0 %v5987
  %v6036 = vpop.f32.mrf.mxu0
  %v6037 = vadd.f32 0.0, %v6036
  %v6038 = vpop.f32.mrf.mxu0
  %6039 = vdwg.mxu0
  %v6040 = vadd.f32 %v4523, %v5998
  %v6041 = vadd.f32 %v4581, %v6011
  %v6042 = vadd.f32 %v4639, %v6024
  %v6043 = vadd.f32 %v4697, %v6037
  %v6044 = vxor.u32 %v6040, 2147483648
  %v6045 = vmul.f32 %v6044, 1.442695
  %v6046 = vpow.pop %v6045
  %v6047 = vadd.f32 %v6046, 1.0
  %v6048 = vrcp.pop %v6047
  %v6049 = vmul.f32 %v6047, %v6048
  %v6050 = vsub.f32 1.0, %v6049
  %v6051 = vmul.f32 %v6048, %v6050
  %v6052 = vadd.f32 %v6048, %v6051
  %vm6053 = vweird.f32 %v6047
  %vm6054 = vweird.f32 %v6048
  %vm6055 = vmor %vm6053, %vm6054
  %v6056 = vsel %vm6055, %v6048, %v6052
  %v6057 = vand.u32 2147483647, %v6047
  %vm6058 = vcmp.eq.f32.partialorder %v6057, 8.507059e+37
  %v6059 = vand.u32 %v6047, 2147483648
  %v6060 = vor.u32 1.1754944e-38, %v6059
  %v6061 = vsel %vm6058, %v6060, %v6056
  %v6062 = vmul.f32 1.0, %v6061
  %v6063 = vxor.u32 %v6041, 2147483648
  %v6064 = vmul.f32 %v6063, 1.442695
  %v6065 = vpow.pop %v6064
  %v6066 = vadd.f32 %v6065, 1.0
  %v6067 = vrcp.pop %v6066
  %v6068 = vmul.f32 %v6066, %v6067
  %v6069 = vsub.f32 1.0, %v6068
  %v6070 = vmul.f32 %v6067, %v6069
  %v6071 = vadd.f32 %v6067, %v6070
  %vm6072 = vweird.f32 %v6066
  %vm6073 = vweird.f32 %v6067
  %vm6074 = vmor %vm6072, %vm6073
  %v6075 = vsel %vm6074, %v6067, %v6071
  %v6076 = vand.u32 2147483647, %v6066
  %vm6077 = vcmp.eq.f32.partialorder %v6076, 8.507059e+37
  %v6078 = vand.u32 %v6066, 2147483648
  %v6079 = vor.u32 1.1754944e-38, %v6078
  %v6080 = vsel %vm6077, %v6079, %v6075
  %v6081 = vmul.f32 1.0, %v6080
  %v6082 = vtanh.pop %v6042
  %v6083 = vxor.u32 %v6043, 2147483648
  %v6084 = vmul.f32 %v6083, 1.442695
  %v6085 = vpow.pop %v6084
  %v6086 = vadd.f32 %v6085, 1.0
  %v6087 = vrcp.pop %v6086
  %v6088 = vmul.f32 %v6086, %v6087
  %v6089 = vsub.f32 1.0, %v6088
  %v6090 = vmul.f32 %v6087, %v6089
  %v6091 = vadd.f32 %v6087, %v6090
  %vm6092 = vweird.f32 %v6086
  %vm6093 = vweird.f32 %v6087
  %vm6094 = vmor %vm6092, %vm6093
  %v6095 = vsel %vm6094, %v6087, %v6091
  %v6096 = vand.u32 2147483647, %v6086
  %vm6097 = vcmp.eq.f32.partialorder %v6096, 8.507059e+37
  %v6098 = vand.u32 %v6086, 2147483648
  %v6099 = vor.u32 1.1754944e-38, %v6098
  %v6100 = vsel %vm6097, %v6099, %v6095
  %v6101 = vmul.f32 1.0, %v6100
  %v6102 = vmul.f32 %v6081, %v5984
  %v6103 = vmul.f32 %v6062, %v6082
  %v6104 = vadd.f32 %v6102, %v6103
  %v6105 = vtanh.pop %v6104
  %v6106 = vmul.f32 %v6101, %v6105
  %v6107 = vpack.c.bf16 %v6106, %v6106
  %6108 = vmatpush.bf16.msra.mxu0 %v5352
  %6109 = vmatpush.bf16.msra.mxu0 %v5348
  %6110 = vmatpush.bf16.msra.mxu0 %v5344
  %6111 = vmatpush.bf16.msra.mxu0 %v5340
  %6112 = vmatpush.bf16.msra.mxu0 %v5336
  %6113 = vmatpush.bf16.msra.mxu0 %v5332
  %6114 = vmatpush.bf16.msra.mxu0 %v5328
  %6115 = vmatpush.bf16.msra.mxu0 %v5324
  %6116 = vmatmul.bf16.gmra.mxu0 %v6107
  %v6117 = vpop.f32.mrf.mxu0
  %v6118 = vadd.f32 0.0, %v6117
  %v6119 = vpop.f32.mrf.mxu0
  %6120 = vdwg.mxu0
  %6121 = vmatpush.bf16.msra.mxu0 %v5353
  %6122 = vmatpush.bf16.msra.mxu0 %v5349
  %6123 = vmatpush.bf16.msra.mxu0 %v5345
  %6124 = vmatpush.bf16.msra.mxu0 %v5341
  %6125 = vmatpush.bf16.msra.mxu0 %v5337
  %6126 = vmatpush.bf16.msra.mxu0 %v5333
  %6127 = vmatpush.bf16.msra.mxu0 %v5329
  %6128 = vmatpush.bf16.msra.mxu0 %v5325
  %6129 = vmatmul.bf16.gmra.mxu0 %v6107
  %v6130 = vpop.f32.mrf.mxu0
  %v6131 = vadd.f32 0.0, %v6130
  %v6132 = vpop.f32.mrf.mxu0
  %6133 = vdwg.mxu0
  %6134 = vmatpush.bf16.msra.mxu0 %v5354
  %6135 = vmatpush.bf16.msra.mxu0 %v5350
  %6136 = vmatpush.bf16.msra.mxu0 %v5346
  %6137 = vmatpush.bf16.msra.mxu0 %v5342
  %6138 = vmatpush.bf16.msra.mxu0 %v5338
  %6139 = vmatpush.bf16.msra.mxu0 %v5334
  %6140 = vmatpush.bf16.msra.mxu0 %v5330
  %6141 = vmatpush.bf16.msra.mxu0 %v5326
  %6142 = vmatmul.bf16.gmra.mxu0 %v6107
  %v6143 = vpop.f32.mrf.mxu0
  %v6144 = vadd.f32 0.0, %v6143
  %v6145 = vpop.f32.mrf.mxu0
  %6146 = vdwg.mxu0
  %6147 = vmatpush.bf16.msra.mxu0 %v5355
  %6148 = vmatpush.bf16.msra.mxu0 %v5351
  %6149 = vmatpush.bf16.msra.mxu0 %v5347
  %6150 = vmatpush.bf16.msra.mxu0 %v5343
  %6151 = vmatpush.bf16.msra.mxu0 %v5339
  %6152 = vmatpush.bf16.msra.mxu0 %v5335
  %6153 = vmatpush.bf16.msra.mxu0 %v5331
  %6154 = vmatpush.bf16.msra.mxu0 %v5327
  %6155 = vmatmul.bf16.gmra.mxu0 %v6107
  %v6156 = vpop.f32.mrf.mxu0
  %v6157 = vadd.f32 0.0, %v6156
  %v6158 = vpop.f32.mrf.mxu0
  %6159 = vdwg.mxu0
  %v6160 = vadd.f32 %v4526, %v6118
  %v6161 = vadd.f32 %v4584, %v6131
  %v6162 = vadd.f32 %v4642, %v6144
  %v6163 = vadd.f32 %v4700, %v6157
  %v6164 = vxor.u32 %v6160, 2147483648
  %v6165 = vmul.f32 %v6164, 1.442695
  %v6166 = vpow.pop %v6165
  %v6167 = vadd.f32 %v6166, 1.0
  %v6168 = vrcp.pop %v6167
  %v6169 = vmul.f32 %v6167, %v6168
  %v6170 = vsub.f32 1.0, %v6169
  %v6171 = vmul.f32 %v6168, %v6170
  %v6172 = vadd.f32 %v6168, %v6171
  %vm6173 = vweird.f32 %v6167
  %vm6174 = vweird.f32 %v6168
  %vm6175 = vmor %vm6173, %vm6174
  %v6176 = vsel %vm6175, %v6168, %v6172
  %v6177 = vand.u32 2147483647, %v6167
  %vm6178 = vcmp.eq.f32.partialorder %v6177, 8.507059e+37
  %v6179 = vand.u32 %v6167, 2147483648
  %v6180 = vor.u32 1.1754944e-38, %v6179
  %v6181 = vsel %vm6178, %v6180, %v6176
  %v6182 = vmul.f32 1.0, %v6181
  %v6183 = vxor.u32 %v6161, 2147483648
  %v6184 = vmul.f32 %v6183, 1.442695
  %v6185 = vpow.pop %v6184
  %v6186 = vadd.f32 %v6185, 1.0
  %v6187 = vrcp.pop %v6186
  %v6188 = vmul.f32 %v6186, %v6187
  %v6189 = vsub.f32 1.0, %v6188
  %v6190 = vmul.f32 %v6187, %v6189
  %v6191 = vadd.f32 %v6187, %v6190
  %vm6192 = vweird.f32 %v6186
  %vm6193 = vweird.f32 %v6187
  %vm6194 = vmor %vm6192, %vm6193
  %v6195 = vsel %vm6194, %v6187, %v6191
  %v6196 = vand.u32 2147483647, %v6186
  %vm6197 = vcmp.eq.f32.partialorder %v6196, 8.507059e+37
  %v6198 = vand.u32 %v6186, 2147483648
  %v6199 = vor.u32 1.1754944e-38, %v6198
  %v6200 = vsel %vm6197, %v6199, %v6195
  %v6201 = vmul.f32 1.0, %v6200
  %v6202 = vtanh.pop %v6162
  %v6203 = vxor.u32 %v6163, 2147483648
  %v6204 = vmul.f32 %v6203, 1.442695
  %v6205 = vpow.pop %v6204
  %v6206 = vadd.f32 %v6205, 1.0
  %v6207 = vrcp.pop %v6206
  %v6208 = vmul.f32 %v6206, %v6207
  %v6209 = vsub.f32 1.0, %v6208
  %v6210 = vmul.f32 %v6207, %v6209
  %v6211 = vadd.f32 %v6207, %v6210
  %vm6212 = vweird.f32 %v6206
  %vm6213 = vweird.f32 %v6207
  %vm6214 = vmor %vm6212, %vm6213
  %v6215 = vsel %vm6214, %v6207, %v6211
  %v6216 = vand.u32 2147483647, %v6206
  %vm6217 = vcmp.eq.f32.partialorder %v6216, 8.507059e+37
  %v6218 = vand.u32 %v6206, 2147483648
  %v6219 = vor.u32 1.1754944e-38, %v6218
  %v6220 = vsel %vm6217, %v6219, %v6215
  %v6221 = vmul.f32 1.0, %v6220
  %v6222 = vmul.f32 %v6201, %v6104
  %v6223 = vmul.f32 %v6182, %v6202
  %v6224 = vadd.f32 %v6222, %v6223
  %v6225 = vtanh.pop %v6224
  %v6226 = vmul.f32 %v6221, %v6225
  %v6227 = vpack.c.bf16 %v6226, %v6226
  %6228 = vmatpush.bf16.msra.mxu0 %v5352
  %6229 = vmatpush.bf16.msra.mxu0 %v5348
  %6230 = vmatpush.bf16.msra.mxu0 %v5344
  %6231 = vmatpush.bf16.msra.mxu0 %v5340
  %6232 = vmatpush.bf16.msra.mxu0 %v5336
  %6233 = vmatpush.bf16.msra.mxu0 %v5332
  %6234 = vmatpush.bf16.msra.mxu0 %v5328
  %6235 = vmatpush.bf16.msra.mxu0 %v5324
  %6236 = vmatmul.bf16.gmra.mxu0 %v6227
  %v6237 = vpop.f32.mrf.mxu0
  %v6238 = vadd.f32 0.0, %v6237
  %v6239 = vpop.f32.mrf.mxu0
  %6240 = vdwg.mxu0
  %6241 = vmatpush.bf16.msra.mxu0 %v5353
  %6242 = vmatpush.bf16.msra.mxu0 %v5349
  %6243 = vmatpush.bf16.msra.mxu0 %v5345
  %6244 = vmatpush.bf16.msra.mxu0 %v5341
  %6245 = vmatpush.bf16.msra.mxu0 %v5337
  %6246 = vmatpush.bf16.msra.mxu0 %v5333
  %6247 = vmatpush.bf16.msra.mxu0 %v5329
  %6248 = vmatpush.bf16.msra.mxu0 %v5325
  %6249 = vmatmul.bf16.gmra.mxu0 %v6227
  %v6250 = vpop.f32.mrf.mxu0
  %v6251 = vadd.f32 0.0, %v6250
  %v6252 = vpop.f32.mrf.mxu0
  %6253 = vdwg.mxu0
  %6254 = vmatpush.bf16.msra.mxu0 %v5354
  %6255 = vmatpush.bf16.msra.mxu0 %v5350
  %6256 = vmatpush.bf16.msra.mxu0 %v5346
  %6257 = vmatpush.bf16.msra.mxu0 %v5342
  %6258 = vmatpush.bf16.msra.mxu0 %v5338
  %6259 = vmatpush.bf16.msra.mxu0 %v5334
  %6260 = vmatpush.bf16.msra.mxu0 %v5330
  %6261 = vmatpush.bf16.msra.mxu0 %v5326
  %6262 = vmatmul.bf16.gmra.mxu0 %v6227
  %v6263 = vpop.f32.mrf.mxu0
  %v6264 = vadd.f32 0.0, %v6263
  %v6265 = vpop.f32.mrf.mxu0
  %6266 = vdwg.mxu0
  %6267 = vmatpush.bf16.msra.mxu0 %v5355
  %6268 = vmatpush.bf16.msra.mxu0 %v5351
  %6269 = vmatpush.bf16.msra.mxu0 %v5347
  %6270 = vmatpush.bf16.msra.mxu0 %v5343
  %6271 = vmatpush.bf16.msra.mxu0 %v5339
  %6272 = vmatpush.bf16.msra.mxu0 %v5335
  %6273 = vmatpush.bf16.msra.mxu0 %v5331
  %6274 = vmatpush.bf16.msra.mxu0 %v5327
  %6275 = vmatmul.bf16.gmra.mxu0 %v6227
  %v6276 = vpop.f32.mrf.mxu0
  %v6277 = vadd.f32 0.0, %v6276
  %v6278 = vpop.f32.mrf.mxu0
  %6279 = vdwg.mxu0
  %v6280 = vadd.f32 %v4528, %v6238
  %v6281 = vadd.f32 %v4586, %v6251
  %v6282 = vadd.f32 %v4644, %v6264
  %v6283 = vadd.f32 %v4702, %v6277
  %v6284 = vxor.u32 %v6280, 2147483648
  %v6285 = vmul.f32 %v6284, 1.442695
  %v6286 = vpow.pop %v6285
  %v6287 = vadd.f32 %v6286, 1.0
  %v6288 = vrcp.pop %v6287
  %v6289 = vmul.f32 %v6287, %v6288
  %v6290 = vsub.f32 1.0, %v6289
  %v6291 = vmul.f32 %v6288, %v6290
  %v6292 = vadd.f32 %v6288, %v6291
  %vm6293 = vweird.f32 %v6287
  %vm6294 = vweird.f32 %v6288
  %vm6295 = vmor %vm6293, %vm6294
  %v6296 = vsel %vm6295, %v6288, %v6292
  %v6297 = vand.u32 2147483647, %v6287
  %vm6298 = vcmp.eq.f32.partialorder %v6297, 8.507059e+37
  %v6299 = vand.u32 %v6287, 2147483648
  %v6300 = vor.u32 1.1754944e-38, %v6299
  %v6301 = vsel %vm6298, %v6300, %v6296
  %v6302 = vmul.f32 1.0, %v6301
  %v6303 = vxor.u32 %v6281, 2147483648
  %v6304 = vmul.f32 %v6303, 1.442695
  %v6305 = vpow.pop %v6304
  %v6306 = vadd.f32 %v6305, 1.0
  %v6307 = vrcp.pop %v6306
  %v6308 = vmul.f32 %v6306, %v6307
  %v6309 = vsub.f32 1.0, %v6308
  %v6310 = vmul.f32 %v6307, %v6309
  %v6311 = vadd.f32 %v6307, %v6310
  %vm6312 = vweird.f32 %v6306
  %vm6313 = vweird.f32 %v6307
  %vm6314 = vmor %vm6312, %vm6313
  %v6315 = vsel %vm6314, %v6307, %v6311
  %v6316 = vand.u32 2147483647, %v6306
  %vm6317 = vcmp.eq.f32.partialorder %v6316, 8.507059e+37
  %v6318 = vand.u32 %v6306, 2147483648
  %v6319 = vor.u32 1.1754944e-38, %v6318
  %v6320 = vsel %vm6317, %v6319, %v6315
  %v6321 = vmul.f32 1.0, %v6320
  %v6322 = vtanh.pop %v6282
  %v6323 = vxor.u32 %v6283, 2147483648
  %v6324 = vmul.f32 %v6323, 1.442695
  %v6325 = vpow.pop %v6324
  %v6326 = vadd.f32 %v6325, 1.0
  %v6327 = vrcp.pop %v6326
  %v6328 = vmul.f32 %v6326, %v6327
  %v6329 = vsub.f32 1.0, %v6328
  %v6330 = vmul.f32 %v6327, %v6329
  %v6331 = vadd.f32 %v6327, %v6330
  %vm6332 = vweird.f32 %v6326
  %vm6333 = vweird.f32 %v6327
  %vm6334 = vmor %vm6332, %vm6333
  %v6335 = vsel %vm6334, %v6327, %v6331
  %v6336 = vand.u32 2147483647, %v6326
  %vm6337 = vcmp.eq.f32.partialorder %v6336, 8.507059e+37
  %v6338 = vand.u32 %v6326, 2147483648
  %v6339 = vor.u32 1.1754944e-38, %v6338
  %v6340 = vsel %vm6337, %v6339, %v6335
  %v6341 = vmul.f32 1.0, %v6340
  %v6342 = vmul.f32 %v6321, %v6224
  %v6343 = vmul.f32 %v6302, %v6322
  %v6344 = vadd.f32 %v6342, %v6343
  %v6345 = vtanh.pop %v6344
  %v6346 = vmul.f32 %v6341, %v6345
  %v6347 = vxor.u32 %v5115, 2147483648
  %v6348 = vmul.f32 %v6347, 1.442695
  %v6349 = vpow.pop %v6348
  %v6350 = vadd.f32 %v6349, 1.0
  %v6351 = vrcp.pop %v6350
  %v6352 = vmul.f32 %v6350, %v6351
  %v6353 = vsub.f32 1.0, %v6352
  %v6354 = vmul.f32 %v6351, %v6353
  %v6355 = vadd.f32 %v6351, %v6354
  %vm6356 = vweird.f32 %v6350
  %vm6357 = vweird.f32 %v6351
  %vm6358 = vmor %vm6356, %vm6357
  %v6359 = vsel %vm6358, %v6351, %v6355
  %v6360 = vand.u32 2147483647, %v6350
  %vm6361 = vcmp.eq.f32.partialorder %v6360, 8.507059e+37
  %v6362 = vand.u32 %v6350, 2147483648
  %v6363 = vor.u32 1.1754944e-38, %v6362
  %v6364 = vsel %vm6361, %v6363, %v6359
  %v6365 = vmul.f32 1.0, %v6364
  %v6366 = vxor.u32 %v5141, 2147483648
  %v6367 = vmul.f32 %v6366, 1.442695
  %v6368 = vpow.pop %v6367
  %v6369 = vadd.f32 %v6368, 1.0
  %v6370 = vrcp.pop %v6369
  %v6371 = vmul.f32 %v6369, %v6370
  %v6372 = vsub.f32 1.0, %v6371
  %v6373 = vmul.f32 %v6370, %v6372
  %v6374 = vadd.f32 %v6370, %v6373
  %vm6375 = vweird.f32 %v6369
  %vm6376 = vweird.f32 %v6370
  %vm6377 = vmor %vm6375, %vm6376
  %v6378 = vsel %vm6377, %v6370, %v6374
  %v6379 = vand.u32 2147483647, %v6369
  %vm6380 = vcmp.eq.f32.partialorder %v6379, 8.507059e+37
  %v6381 = vand.u32 %v6369, 2147483648
  %v6382 = vor.u32 1.1754944e-38, %v6381
  %v6383 = vsel %vm6380, %v6382, %v6378
  %v6384 = vmul.f32 1.0, %v6383
  %v6385 = vtanh.pop %v5167
  %v6386 = vxor.u32 %v5193, 2147483648
  %v6387 = vmul.f32 %v6386, 1.442695
  %v6388 = vpow.pop %v6387
  %v6389 = vadd.f32 %v6388, 1.0
  %v6390 = vrcp.pop %v6389
  %v6391 = vmul.f32 %v6389, %v6390
  %v6392 = vsub.f32 1.0, %v6391
  %v6393 = vmul.f32 %v6390, %v6392
  %v6394 = vadd.f32 %v6390, %v6393
  %vm6395 = vweird.f32 %v6389
  %vm6396 = vweird.f32 %v6390
  %vm6397 = vmor %vm6395, %vm6396
  %v6398 = vsel %vm6397, %v6390, %v6394
  %v6399 = vand.u32 2147483647, %v6389
  %vm6400 = vcmp.eq.f32.partialorder %v6399, 8.507059e+37
  %v6401 = vand.u32 %v6389, 2147483648
  %v6402 = vor.u32 1.1754944e-38, %v6401
  %v6403 = vsel %vm6400, %v6402, %v6398
  %v6404 = vmul.f32 1.0, %v6403
  %v6405 = vmul.f32 %v6384, 0.0
  %v6406 = vmul.f32 %v6365, %v6385
  %v6407 = vadd.f32 %v6405, %v6406
  %v6408 = vtanh.pop %v6407
  %v6409 = vmul.f32 %v6404, %v6408
  %6410 = vst [vmem:[%s6] sm:$0xff] %v6346
  %6411 = vst [vmem:[%s6 + $0x8] sm:$0xff] %v6409
  // Predicated region
  $region26: #{bilstm_forward.1} parent=0 // pred_check
    _
  $region27: #{bilstm_forward.1} parent=0 // pred_check_branch
    %6413 = sbr.rel (0) target = $region29
  $region28: #{bilstm_forward.1} parent=0 // pred_region
    _
  $region29: #{bilstm_forward.1} parent=0 // pred_fallthru
    _
  // Predicated region
  $region30: #{bilstm_forward.1} parent=0 // pred_check
    _
  $region31: #{bilstm_forward.1} parent=0 // pred_check_branch
    %6415 = sbr.rel (0) target = $region33
  $region32: #{bilstm_forward.1} parent=0 // pred_region
    _
  $region33: #{bilstm_forward.1} parent=0 // pred_fallthru
    _

</llo_original>
